<compile_context>
chip_gen: v7x
topology: tpu7x:2x2x1
jax: 0.10.0
libtpu: 0.0.40
codegen_flags: <defaults>
</compile_context>

<pallas_src>
import jax
import jax.numpy as jnp
from jax.experimental import pallas as pl
from jax.experimental.pallas import tpu as pltpu  # noqa: F401  (TPU backend)

# ---- model hyper-parameters (args.* in the reference) ----
IN_DIM = 256          # fixed by GTM_net
HIDDEN_DIM = 32       # args.hidden_dim
FOUT_DIM = 32         # args.latent_dim
NUM_HEADS = 4         # args.num_heads  (256 % 4 == 0)
NUM_LAYERS = 2        # args.num_layers
DEPTH = IN_DIM // NUM_HEADS     # 64
OUT_DIM = 256         # self.output
NEG_SLOPE = 0.01      # F.leaky_relu default
LN_EPS = 1e-5         # nn.LayerNorm default


# ---------------- in-kernel helpers (traced inside the Pallas body) ----------------
def _leaky(x):
    return jnp.where(x >= 0, x, NEG_SLOPE * x)


def _mm(x, w):
    # bf16 x bf16 MXU matmul with f32 accumulation.
    return jnp.dot(x.astype(jnp.bfloat16), w, preferred_element_type=jnp.float32)


def _layernorm(x, g, b):
    mu = jnp.mean(x, axis=-1, keepdims=True)
    var = jnp.mean((x - mu) ** 2, axis=-1, keepdims=True)
    return (x - mu) * jax.lax.rsqrt(var + LN_EPS) * g + b


# ---------------- fused forward kernel ----------------
def gtm_fused_kernel(x_ref,
                     w_fnn, b_fnn,
                     w_qkv, b_qkv,          # (256, 768) = [Wq*scale | Wk | Wv]
                     w_ao, b_ao,            # (4, 64, 32) per-head output_linear rows
                     w_res, b_res,
                     w_o, b_o,
                     g1, be1,
                     w_f1, b_f1,
                     w_f2, b_f2,
                     g2, be2,
                     w_fn, b_fn,
                     o_ref):
    x = x_ref[...]                                           # (N, 256) f32
    n = x.shape[0]

    # X = leaky_relu(FNN(x))
    X = _leaky(_mm(x, w_fnn[...]) + b_fnn[...])              # (N, 256)

    # ---- last GraphTransformerLayer (the only one whose output the reference uses) ----
    h_in1 = _mm(X, w_res[...]) + b_res[...]                  # residual proj (N, 32)

    # fused Q/K/V projection; 1/sqrt(DEPTH) already folded into the Q columns
    qkv = _mm(X, w_qkv[...]) + b_qkv[...]                    # (N, 768) f32

    # scores[n, i, j] = sum_h Q[n, h*D+i] * K[n, h*D+j]   (reference split_heads semantics)
    scores = jnp.zeros((n, DEPTH, DEPTH), jnp.float32)
    for hh in range(NUM_HEADS):
        qh = qkv[:, hh * DEPTH:(hh + 1) * DEPTH]             # (N, D)
        kh = qkv[:, IN_DIM + hh * DEPTH: IN_DIM + (hh + 1) * DEPTH]
        scores = scores + qh[:, :, None] * kh[:, None, :]

    # torch.softmax(scores, dim=0): softmax over the NODE dimension (as in the reference)
    m = jnp.max(scores, axis=0, keepdims=True)
    e = jnp.exp(scores - m)
    aw = e * pl.reciprocal(jnp.sum(e, axis=0, keepdims=True), approx=True)   # (N, D, D)

    # attention output fed straight into output_linear, accumulated per head:
    #   att32 = sum_h ( sum_j aw[n,i,j] * V[n, h*D+j] ) @ Wao[h*D:(h+1)*D, :]
    acc = jnp.zeros((n, HIDDEN_DIM), jnp.float32)
    for hh in range(NUM_HEADS):
        vh = qkv[:, 2 * IN_DIM + hh * DEPTH: 2 * IN_DIM + (hh + 1) * DEPTH]  # (N, D)
        head = jnp.sum(aw * vh[:, None, :], axis=-1)          # (N, D)
        acc = acc + _mm(head, w_ao[hh])                       # (N, 32)
    att = jax.nn.sigmoid(acc + b_ao[...])                     # (N, 32)

    # TODO(synk): F.dropout treated as identity (eval / drop_rate=0 semantics)
    att = _leaky(_mm(att, w_o[...]) + b_o[...])               # O: (N, 32)
    att = h_in1 + att                                         # residual
    att = _layernorm(att, g1[...], be1[...])                  # LayerNorm1

    h_in2 = att
    f = _leaky(_mm(att, w_f1[...]) + b_f1[...])               # FFN_layer1 (+leaky) (N, 64)
    f = _leaky(_mm(f, w_f2[...]) + b_f2[...])                 # FFN_layer2 (+leaky) (N, 32)
    f = h_in2 + f                                             # residual
    h_out = _layernorm(f, g2[...], be2[...])                  # LayerNorm2 (N, 32)

    # outputs = leaky_relu(FN(h))  -- the only HBM store, lane-dense (N, 256)
    o_ref[...] = _leaky(_mm(h_out, w_fn[...]) + b_fn[...])


# ---------------- pallas_call wrapper ----------------
def gtm_forward(fp, x):
    n = x.shape[0]
    args = [x,
            fp['w_fnn'], fp['b_fnn'],
            fp['w_qkv'], fp['b_qkv'],
            fp['w_ao'], fp['b_ao'],
            fp['w_res'], fp['b_res'],
            fp['w_o'], fp['b_o'],
            fp['g1'], fp['be1'],
            fp['w_f1'], fp['b_f1'],
            fp['w_f2'], fp['b_f2'],
            fp['g2'], fp['be2'],
            fp['w_fn'], fp['b_fn']]
    # Whole problem fits in VMEM -> no grid, full arrays as single blocks.
    ce = pl.CostEstimate(flops=10_500_000, transcendentals=70_000,
                         bytes_accessed=700_000)
    return pl.pallas_call(
        gtm_fused_kernel,
        out_shape=jax.ShapeDtypeStruct((n, OUT_DIM), jnp.float32),
        cost_estimate=ce,
    )(*args)


# ---------------- parameter init (deterministic, synthetic; mirrors the nn.Module) ----------------
def init_params(key):
    keys = iter(jax.random.split(key, 64))

    def lin(in_d, out_d):
        bound = 1.0 / (in_d ** 0.5)
        w = jax.random.uniform(next(keys), (in_d, out_d), jnp.float32, -bound, bound)
        b = jax.random.uniform(next(keys), (1, out_d), jnp.float32, -bound, bound)
        return w, b

    params = {}
    params['fnn_w'], params['fnn_b'] = lin(256, 256)          # self.FNN
    layers = []
    for _ in range(NUM_LAYERS):
        p = {}
        p['wq'], p['bq'] = lin(IN_DIM, IN_DIM)                # query_linear
        p['wk'], p['bk'] = lin(IN_DIM, IN_DIM)                # key_linear
        p['wv'], p['bv'] = lin(IN_DIM, IN_DIM)                # value_linear
        p['wao'], p['bao'] = lin(IN_DIM, HIDDEN_DIM)          # attention.output_linear
        p['wres'], p['bres'] = lin(IN_DIM, FOUT_DIM)          # residual_layer1
        p['wO'], p['bO'] = lin(HIDDEN_DIM, FOUT_DIM)          # O
        p['g1'] = jnp.ones((1, FOUT_DIM), jnp.float32)        # layer_norm1
        p['be1'] = jnp.zeros((1, FOUT_DIM), jnp.float32)
        p['wf1'], p['bf1'] = lin(FOUT_DIM, 2 * FOUT_DIM)      # FFN_layer1
        p['wf2'], p['bf2'] = lin(2 * FOUT_DIM, FOUT_DIM)      # FFN_layer2
        p['g2'] = jnp.ones((1, FOUT_DIM), jnp.float32)        # layer_norm2
        p['be2'] = jnp.zeros((1, FOUT_DIM), jnp.float32)
        layers.append(p)
    params['layers'] = layers
    params['fn_w'], params['fn_b'] = lin(FOUT_DIM, OUT_DIM)   # self.FN
    return params


def prepare_fused_params(params):
    """Host-side one-time prep: drop dead layers, concat QKV, fold scale, cast weights to bf16."""
    lp = params['layers'][-1]   # only the last layer's output reaches the reference output
    scale = 1.0 / jnp.sqrt(jnp.float32(DEPTH))
    w_qkv = jnp.concatenate([lp['wq'] * scale, lp['wk'], lp['wv']], axis=1)   # (256, 768)
    b_qkv = jnp.concatenate([lp['bq'] * scale, lp['bk'], lp['bv']], axis=1)   # (1, 768)
    bf16 = jnp.bfloat16
    return {
        'w_fnn': params['fnn_w'].astype(bf16), 'b_fnn': params['fnn_b'],
        'w_qkv': w_qkv.astype(bf16), 'b_qkv': b_qkv,
        'w_ao': lp['wao'].reshape(NUM_HEADS, DEPTH, HIDDEN_DIM).astype(bf16),
        'b_ao': lp['bao'],
        'w_res': lp['wres'].astype(bf16), 'b_res': lp['bres'],
        'w_o': lp['wO'].astype(bf16), 'b_o': lp['bO'],
        'g1': lp['g1'], 'be1': lp['be1'],
        'w_f1': lp['wf1'].astype(bf16), 'b_f1': lp['bf1'],
        'w_f2': lp['wf2'].astype(bf16), 'b_f2': lp['bf2'],
        'g2': lp['g2'], 'be2': lp['be2'],
        'w_fn': params['fn_w'].astype(bf16), 'b_fn': params['fn_b'],
    }


def gtm_net_forward(params, x, edge_index=None, rel_matrix=None):
    # edge_index / rel_matrix are unused by the reference forward pass.
    return gtm_forward(prepare_fused_params(params), x)


if __name__ == "__main__":
    key = jax.random.PRNGKey(0)
    pkey, xkey = jax.random.split(key)
    params = init_params(pkey)
    fused = prepare_fused_params(params)

    N = 16  # number of graph nodes
    x = jax.random.normal(xkey, (N, IN_DIM), jnp.float32)
    edge_index = jnp.zeros((2, 4), jnp.int32)       # unused by forward
    rel_matrix = jnp.zeros((N, N), jnp.float32)     # unused by forward

    out = gtm_forward(fused, x)
    jax.block_until_ready(out)
    assert out.shape == (N, OUT_DIM) and out.dtype == jnp.float32
    print("KERNEL_OK")
</pallas_src>

<mosaic_0001>
module attributes {stable_mosaic.version = 11 : i64} {
  func.func @gtm_fused_kernel(%arg0: memref<16x256xf32, #tpu.memory_space<vmem>>, %arg1: memref<256x256xbf16, #tpu.memory_space<vmem>>, %arg2: memref<1x256xf32, #tpu.memory_space<vmem>>, %arg3: memref<256x768xbf16, #tpu.memory_space<vmem>>, %arg4: memref<1x768xf32, #tpu.memory_space<vmem>>, %arg5: memref<4x64x32xbf16, #tpu.memory_space<vmem>>, %arg6: memref<1x32xf32, #tpu.memory_space<vmem>>, %arg7: memref<256x32xbf16, #tpu.memory_space<vmem>>, %arg8: memref<1x32xf32, #tpu.memory_space<vmem>>, %arg9: memref<32x32xbf16, #tpu.memory_space<vmem>>, %arg10: memref<1x32xf32, #tpu.memory_space<vmem>>, %arg11: memref<1x32xf32, #tpu.memory_space<vmem>>, %arg12: memref<1x32xf32, #tpu.memory_space<vmem>>, %arg13: memref<32x64xbf16, #tpu.memory_space<vmem>>, %arg14: memref<1x64xf32, #tpu.memory_space<vmem>>, %arg15: memref<64x32xbf16, #tpu.memory_space<vmem>>, %arg16: memref<1x32xf32, #tpu.memory_space<vmem>>, %arg17: memref<1x32xf32, #tpu.memory_space<vmem>>, %arg18: memref<1x32xf32, #tpu.memory_space<vmem>>, %arg19: memref<32x256xbf16, #tpu.memory_space<vmem>>, %arg20: memref<1x256xf32, #tpu.memory_space<vmem>>, %arg21: memref<16x256xf32, #tpu.memory_space<vmem>>) attributes {dimension_semantics = [], scalar_prefetch = 0 : i64, scratch_operands = 0 : i64, tpu.core_type = #tpu.core_type<tc>} {
    %c0 = arith.constant 0 : index
    %c0_0 = arith.constant 0 : index
    %0 = vector.load %arg0[%c0, %c0_0] : memref<16x256xf32, #tpu.memory_space<vmem>>, vector<16x256xf32>
    %c0_1 = arith.constant 0 : index
    %c0_2 = arith.constant 0 : index
    %1 = vector.load %arg1[%c0_1, %c0_2] : memref<256x256xbf16, #tpu.memory_space<vmem>>, vector<256x256xbf16>
    %2 = arith.truncf %0 : vector<16x256xf32> to vector<16x256xbf16>
    %cst = arith.constant dense<0.000000e+00> : vector<16x256xf32>
    %3 = tpu.matmul %2, %1, %cst {dimension_numbers = #tpu.dot_dimension_numbers<[1], [0], [0], [1], [0, 0, 1, 1], [], []>} : vector<16x256xbf16>, vector<256x256xbf16>, vector<16x256xf32> -> vector<16x256xf32>
    %c0_3 = arith.constant 0 : index
    %c0_4 = arith.constant 0 : index
    %4 = vector.load %arg2[%c0_3, %c0_4] : memref<1x256xf32, #tpu.memory_space<vmem>>, vector<1x256xf32>
    %5 = vector.broadcast %4 : vector<1x256xf32> to vector<16x256xf32>
    %6 = arith.addf %3, %5 : vector<16x256xf32>
    %cst_5 = arith.constant 0.000000e+00 : f32
    %7 = vector.broadcast %cst_5 : f32 to vector<16x256xf32>
    %8 = arith.cmpf oge, %6, %7 : vector<16x256xf32>
    %cst_6 = arith.constant 0.00999999977 : f32
    %9 = vector.broadcast %cst_6 : f32 to vector<16x256xf32>
    %10 = arith.mulf %9, %6 : vector<16x256xf32>
    %11 = arith.select %8, %6, %10 : vector<16x256xi1>, vector<16x256xf32>
    %c0_7 = arith.constant 0 : index
    %c0_8 = arith.constant 0 : index
    %12 = vector.load %arg7[%c0_7, %c0_8] : memref<256x32xbf16, #tpu.memory_space<vmem>>, vector<256x32xbf16>
    %13 = arith.truncf %11 : vector<16x256xf32> to vector<16x256xbf16>
    %cst_9 = arith.constant dense<0.000000e+00> : vector<16x32xf32>
    %14 = tpu.matmul %13, %12, %cst_9 {dimension_numbers = #tpu.dot_dimension_numbers<[1], [0], [0], [1], [0, 0, 1, 1], [], []>} : vector<16x256xbf16>, vector<256x32xbf16>, vector<16x32xf32> -> vector<16x32xf32>
    %c0_10 = arith.constant 0 : index
    %c0_11 = arith.constant 0 : index
    %15 = vector.load %arg8[%c0_10, %c0_11] : memref<1x32xf32, #tpu.memory_space<vmem>>, vector<1x32xf32>
    %16 = vector.broadcast %15 : vector<1x32xf32> to vector<16x32xf32>
    %17 = arith.addf %14, %16 : vector<16x32xf32>
    %c0_12 = arith.constant 0 : index
    %c0_13 = arith.constant 0 : index
    %18 = vector.load %arg3[%c0_12, %c0_13] : memref<256x768xbf16, #tpu.memory_space<vmem>>, vector<256x768xbf16>
    %19 = arith.truncf %11 : vector<16x256xf32> to vector<16x256xbf16>
    %cst_14 = arith.constant dense<0.000000e+00> : vector<16x768xf32>
    %20 = tpu.matmul %19, %18, %cst_14 {dimension_numbers = #tpu.dot_dimension_numbers<[1], [0], [0], [1], [0, 0, 1, 1], [], []>} : vector<16x256xbf16>, vector<256x768xbf16>, vector<16x768xf32> -> vector<16x768xf32>
    %c0_15 = arith.constant 0 : index
    %c0_16 = arith.constant 0 : index
    %21 = vector.load %arg4[%c0_15, %c0_16] : memref<1x768xf32, #tpu.memory_space<vmem>>, vector<1x768xf32>
    %22 = vector.broadcast %21 : vector<1x768xf32> to vector<16x768xf32>
    %23 = arith.addf %20, %22 : vector<16x768xf32>
    %cst_17 = arith.constant 0.000000e+00 : f32
    %24 = vector.broadcast %cst_17 : f32 to vector<16x64x64xf32>
    %25 = vector.extract_strided_slice %23 {offsets = [0, 0], sizes = [16, 64], strides = [1, 1]} : vector<16x768xf32> to vector<16x64xf32>
    %26 = vector.extract_strided_slice %23 {offsets = [0, 256], sizes = [16, 64], strides = [1, 1]} : vector<16x768xf32> to vector<16x64xf32>
    %27 = vector.shape_cast %25 : vector<16x64xf32> to vector<16x64x1xf32>
    %28 = vector.shape_cast %26 : vector<16x64xf32> to vector<16x1x64xf32>
    %29 = vector.broadcast %27 : vector<16x64x1xf32> to vector<16x64x64xf32>
    %30 = vector.broadcast %28 : vector<16x1x64xf32> to vector<16x64x64xf32>
    %31 = arith.mulf %29, %30 : vector<16x64x64xf32>
    %32 = arith.addf %24, %31 : vector<16x64x64xf32>
    %33 = vector.extract_strided_slice %23 {offsets = [0, 64], sizes = [16, 64], strides = [1, 1]} : vector<16x768xf32> to vector<16x64xf32>
    %34 = vector.extract_strided_slice %23 {offsets = [0, 320], sizes = [16, 64], strides = [1, 1]} : vector<16x768xf32> to vector<16x64xf32>
    %35 = vector.shape_cast %33 : vector<16x64xf32> to vector<16x64x1xf32>
    %36 = vector.shape_cast %34 : vector<16x64xf32> to vector<16x1x64xf32>
    %37 = vector.broadcast %35 : vector<16x64x1xf32> to vector<16x64x64xf32>
    %38 = vector.broadcast %36 : vector<16x1x64xf32> to vector<16x64x64xf32>
    %39 = arith.mulf %37, %38 : vector<16x64x64xf32>
    %40 = arith.addf %32, %39 : vector<16x64x64xf32>
    %41 = vector.extract_strided_slice %23 {offsets = [0, 128], sizes = [16, 64], strides = [1, 1]} : vector<16x768xf32> to vector<16x64xf32>
    %42 = vector.extract_strided_slice %23 {offsets = [0, 384], sizes = [16, 64], strides = [1, 1]} : vector<16x768xf32> to vector<16x64xf32>
    %43 = vector.shape_cast %41 : vector<16x64xf32> to vector<16x64x1xf32>
    %44 = vector.shape_cast %42 : vector<16x64xf32> to vector<16x1x64xf32>
    %45 = vector.broadcast %43 : vector<16x64x1xf32> to vector<16x64x64xf32>
    %46 = vector.broadcast %44 : vector<16x1x64xf32> to vector<16x64x64xf32>
    %47 = arith.mulf %45, %46 : vector<16x64x64xf32>
    %48 = arith.addf %40, %47 : vector<16x64x64xf32>
    %49 = vector.extract_strided_slice %23 {offsets = [0, 192], sizes = [16, 64], strides = [1, 1]} : vector<16x768xf32> to vector<16x64xf32>
    %50 = vector.extract_strided_slice %23 {offsets = [0, 448], sizes = [16, 64], strides = [1, 1]} : vector<16x768xf32> to vector<16x64xf32>
    %51 = vector.shape_cast %49 : vector<16x64xf32> to vector<16x64x1xf32>
    %52 = vector.shape_cast %50 : vector<16x64xf32> to vector<16x1x64xf32>
    %53 = vector.broadcast %51 : vector<16x64x1xf32> to vector<16x64x64xf32>
    %54 = vector.broadcast %52 : vector<16x1x64xf32> to vector<16x64x64xf32>
    %55 = arith.mulf %53, %54 : vector<16x64x64xf32>
    %56 = arith.addf %48, %55 : vector<16x64x64xf32>
    %cst_18 = arith.constant dense<0xFF800000> : vector<64x64xf32>
    %57 = vector.multi_reduction <maximumf>, %56, %cst_18 [0] : vector<16x64x64xf32> to vector<64x64xf32>
    %58 = vector.shape_cast %57 : vector<64x64xf32> to vector<1x64x64xf32>
    %59 = vector.broadcast %58 : vector<1x64x64xf32> to vector<16x64x64xf32>
    %60 = arith.subf %56, %59 : vector<16x64x64xf32>
    %61 = math.exp %60 : vector<16x64x64xf32>
    %cst_19 = arith.constant dense<0.000000e+00> : vector<64x64xf32>
    %62 = vector.multi_reduction <add>, %61, %cst_19 [0] : vector<16x64x64xf32> to vector<64x64xf32>
    %63 = vector.shape_cast %62 : vector<64x64xf32> to vector<1x64x64xf32>
    %64 = tpu.reciprocal %63 {approx = true} : vector<1x64x64xf32> -> vector<1x64x64xf32>
    %65 = vector.broadcast %64 : vector<1x64x64xf32> to vector<16x64x64xf32>
    %66 = arith.mulf %61, %65 : vector<16x64x64xf32>
    %cst_20 = arith.constant 0.000000e+00 : f32
    %67 = vector.broadcast %cst_20 : f32 to vector<16x32xf32>
    %68 = vector.extract_strided_slice %23 {offsets = [0, 512], sizes = [16, 64], strides = [1, 1]} : vector<16x768xf32> to vector<16x64xf32>
    %69 = vector.shape_cast %68 : vector<16x64xf32> to vector<16x1x64xf32>
    %70 = vector.broadcast %69 : vector<16x1x64xf32> to vector<16x64x64xf32>
    %71 = arith.mulf %66, %70 : vector<16x64x64xf32>
    %cst_21 = arith.constant dense<0.000000e+00> : vector<16x64xf32>
    %72 = vector.multi_reduction <add>, %71, %cst_21 [2] : vector<16x64x64xf32> to vector<16x64xf32>
    %c0_22 = arith.constant 0 : index
    %c0_23 = arith.constant 0 : index
    %c0_24 = arith.constant 0 : index
    %73 = vector.load %arg5[%c0_22, %c0_23, %c0_24] : memref<4x64x32xbf16, #tpu.memory_space<vmem>>, vector<1x64x32xbf16>
    %74 = vector.shape_cast %73 : vector<1x64x32xbf16> to vector<64x32xbf16>
    %75 = arith.truncf %72 : vector<16x64xf32> to vector<16x64xbf16>
    %cst_25 = arith.constant dense<0.000000e+00> : vector<16x32xf32>
    %76 = tpu.matmul %75, %74, %cst_25 {dimension_numbers = #tpu.dot_dimension_numbers<[1], [0], [0], [1], [0, 0, 1, 1], [], []>} : vector<16x64xbf16>, vector<64x32xbf16>, vector<16x32xf32> -> vector<16x32xf32>
    %77 = arith.addf %67, %76 : vector<16x32xf32>
    %78 = vector.extract_strided_slice %23 {offsets = [0, 576], sizes = [16, 64], strides = [1, 1]} : vector<16x768xf32> to vector<16x64xf32>
    %79 = vector.shape_cast %78 : vector<16x64xf32> to vector<16x1x64xf32>
    %80 = vector.broadcast %79 : vector<16x1x64xf32> to vector<16x64x64xf32>
    %81 = arith.mulf %66, %80 : vector<16x64x64xf32>
    %cst_26 = arith.constant dense<0.000000e+00> : vector<16x64xf32>
    %82 = vector.multi_reduction <add>, %81, %cst_26 [2] : vector<16x64x64xf32> to vector<16x64xf32>
    %c1 = arith.constant 1 : index
    %c0_27 = arith.constant 0 : index
    %c0_28 = arith.constant 0 : index
    %83 = vector.load %arg5[%c1, %c0_27, %c0_28] : memref<4x64x32xbf16, #tpu.memory_space<vmem>>, vector<1x64x32xbf16>
    %84 = vector.shape_cast %83 : vector<1x64x32xbf16> to vector<64x32xbf16>
    %85 = arith.truncf %82 : vector<16x64xf32> to vector<16x64xbf16>
    %cst_29 = arith.constant dense<0.000000e+00> : vector<16x32xf32>
    %86 = tpu.matmul %85, %84, %cst_29 {dimension_numbers = #tpu.dot_dimension_numbers<[1], [0], [0], [1], [0, 0, 1, 1], [], []>} : vector<16x64xbf16>, vector<64x32xbf16>, vector<16x32xf32> -> vector<16x32xf32>
    %87 = arith.addf %77, %86 : vector<16x32xf32>
    %88 = vector.extract_strided_slice %23 {offsets = [0, 640], sizes = [16, 64], strides = [1, 1]} : vector<16x768xf32> to vector<16x64xf32>
    %89 = vector.shape_cast %88 : vector<16x64xf32> to vector<16x1x64xf32>
    %90 = vector.broadcast %89 : vector<16x1x64xf32> to vector<16x64x64xf32>
    %91 = arith.mulf %66, %90 : vector<16x64x64xf32>
    %cst_30 = arith.constant dense<0.000000e+00> : vector<16x64xf32>
    %92 = vector.multi_reduction <add>, %91, %cst_30 [2] : vector<16x64x64xf32> to vector<16x64xf32>
    %c2 = arith.constant 2 : index
    %c0_31 = arith.constant 0 : index
    %c0_32 = arith.constant 0 : index
    %93 = vector.load %arg5[%c2, %c0_31, %c0_32] : memref<4x64x32xbf16, #tpu.memory_space<vmem>>, vector<1x64x32xbf16>
    %94 = vector.shape_cast %93 : vector<1x64x32xbf16> to vector<64x32xbf16>
    %95 = arith.truncf %92 : vector<16x64xf32> to vector<16x64xbf16>
    %cst_33 = arith.constant dense<0.000000e+00> : vector<16x32xf32>
    %96 = tpu.matmul %95, %94, %cst_33 {dimension_numbers = #tpu.dot_dimension_numbers<[1], [0], [0], [1], [0, 0, 1, 1], [], []>} : vector<16x64xbf16>, vector<64x32xbf16>, vector<16x32xf32> -> vector<16x32xf32>
    %97 = arith.addf %87, %96 : vector<16x32xf32>
    %98 = vector.extract_strided_slice %23 {offsets = [0, 704], sizes = [16, 64], strides = [1, 1]} : vector<16x768xf32> to vector<16x64xf32>
    %99 = vector.shape_cast %98 : vector<16x64xf32> to vector<16x1x64xf32>
    %100 = vector.broadcast %99 : vector<16x1x64xf32> to vector<16x64x64xf32>
    %101 = arith.mulf %66, %100 : vector<16x64x64xf32>
    %cst_34 = arith.constant dense<0.000000e+00> : vector<16x64xf32>
    %102 = vector.multi_reduction <add>, %101, %cst_34 [2] : vector<16x64x64xf32> to vector<16x64xf32>
    %c3 = arith.constant 3 : index
    %c0_35 = arith.constant 0 : index
    %c0_36 = arith.constant 0 : index
    %103 = vector.load %arg5[%c3, %c0_35, %c0_36] : memref<4x64x32xbf16, #tpu.memory_space<vmem>>, vector<1x64x32xbf16>
    %104 = vector.shape_cast %103 : vector<1x64x32xbf16> to vector<64x32xbf16>
    %105 = arith.truncf %102 : vector<16x64xf32> to vector<16x64xbf16>
    %cst_37 = arith.constant dense<0.000000e+00> : vector<16x32xf32>
    %106 = tpu.matmul %105, %104, %cst_37 {dimension_numbers = #tpu.dot_dimension_numbers<[1], [0], [0], [1], [0, 0, 1, 1], [], []>} : vector<16x64xbf16>, vector<64x32xbf16>, vector<16x32xf32> -> vector<16x32xf32>
    %107 = arith.addf %97, %106 : vector<16x32xf32>
    %c0_38 = arith.constant 0 : index
    %c0_39 = arith.constant 0 : index
    %108 = vector.load %arg6[%c0_38, %c0_39] : memref<1x32xf32, #tpu.memory_space<vmem>>, vector<1x32xf32>
    %109 = vector.broadcast %108 : vector<1x32xf32> to vector<16x32xf32>
    %110 = arith.addf %107, %109 : vector<16x32xf32>
    %111 = arith.negf %110 : vector<16x32xf32>
    %112 = math.exp %111 : vector<16x32xf32>
    %cst_40 = arith.constant 1.000000e+00 : f32
    %113 = vector.broadcast %cst_40 : f32 to vector<16x32xf32>
    %114 = arith.addf %113, %112 : vector<16x32xf32>
    %115 = arith.divf %113, %114 : vector<16x32xf32>
    %c0_41 = arith.constant 0 : index
    %c0_42 = arith.constant 0 : index
    %116 = vector.load %arg9[%c0_41, %c0_42] : memref<32x32xbf16, #tpu.memory_space<vmem>>, vector<32x32xbf16>
    %117 = arith.truncf %115 : vector<16x32xf32> to vector<16x32xbf16>
    %cst_43 = arith.constant dense<0.000000e+00> : vector<16x32xf32>
    %118 = tpu.matmul %117, %116, %cst_43 {dimension_numbers = #tpu.dot_dimension_numbers<[1], [0], [0], [1], [0, 0, 1, 1], [], []>} : vector<16x32xbf16>, vector<32x32xbf16>, vector<16x32xf32> -> vector<16x32xf32>
    %c0_44 = arith.constant 0 : index
    %c0_45 = arith.constant 0 : index
    %119 = vector.load %arg10[%c0_44, %c0_45] : memref<1x32xf32, #tpu.memory_space<vmem>>, vector<1x32xf32>
    %120 = vector.broadcast %119 : vector<1x32xf32> to vector<16x32xf32>
    %121 = arith.addf %118, %120 : vector<16x32xf32>
    %cst_46 = arith.constant 0.000000e+00 : f32
    %122 = vector.broadcast %cst_46 : f32 to vector<16x32xf32>
    %123 = arith.cmpf oge, %121, %122 : vector<16x32xf32>
    %cst_47 = arith.constant 0.00999999977 : f32
    %124 = vector.broadcast %cst_47 : f32 to vector<16x32xf32>
    %125 = arith.mulf %124, %121 : vector<16x32xf32>
    %126 = arith.select %123, %121, %125 : vector<16x32xi1>, vector<16x32xf32>
    %127 = arith.addf %17, %126 : vector<16x32xf32>
    %c0_48 = arith.constant 0 : index
    %c0_49 = arith.constant 0 : index
    %128 = vector.load %arg11[%c0_48, %c0_49] : memref<1x32xf32, #tpu.memory_space<vmem>>, vector<1x32xf32>
    %c0_50 = arith.constant 0 : index
    %c0_51 = arith.constant 0 : index
    %129 = vector.load %arg12[%c0_50, %c0_51] : memref<1x32xf32, #tpu.memory_space<vmem>>, vector<1x32xf32>
    %cst_52 = arith.constant dense<0.000000e+00> : vector<16xf32>
    %130 = vector.multi_reduction <add>, %127, %cst_52 [1] : vector<16x32xf32> to vector<16xf32>
    %131 = vector.shape_cast %130 : vector<16xf32> to vector<16x1xf32>
    %cst_53 = arith.constant 3.200000e+01 : f32
    %132 = vector.broadcast %cst_53 : f32 to vector<16x1xf32>
    %133 = arith.divf %131, %132 : vector<16x1xf32>
    %134 = vector.broadcast %133 : vector<16x1xf32> to vector<16x32xf32>
    %135 = arith.subf %127, %134 : vector<16x32xf32>
    %136 = arith.mulf %135, %135 : vector<16x32xf32>
    %cst_54 = arith.constant dense<0.000000e+00> : vector<16xf32>
    %137 = vector.multi_reduction <add>, %136, %cst_54 [1] : vector<16x32xf32> to vector<16xf32>
    %138 = vector.shape_cast %137 : vector<16xf32> to vector<16x1xf32>
    %cst_55 = arith.constant 3.200000e+01 : f32
    %139 = vector.broadcast %cst_55 : f32 to vector<16x1xf32>
    %140 = arith.divf %138, %139 : vector<16x1xf32>
    %141 = vector.broadcast %133 : vector<16x1xf32> to vector<16x32xf32>
    %142 = arith.subf %127, %141 : vector<16x32xf32>
    %cst_56 = arith.constant 9.99999974E-6 : f32
    %143 = vector.broadcast %cst_56 : f32 to vector<16x1xf32>
    %144 = arith.addf %140, %143 : vector<16x1xf32>
    %145 = math.rsqrt %144 : vector<16x1xf32>
    %146 = vector.broadcast %145 : vector<16x1xf32> to vector<16x32xf32>
    %147 = arith.mulf %142, %146 : vector<16x32xf32>
    %148 = vector.broadcast %128 : vector<1x32xf32> to vector<16x32xf32>
    %149 = arith.mulf %147, %148 : vector<16x32xf32>
    %150 = vector.broadcast %129 : vector<1x32xf32> to vector<16x32xf32>
    %151 = arith.addf %149, %150 : vector<16x32xf32>
    %c0_57 = arith.constant 0 : index
    %c0_58 = arith.constant 0 : index
    %152 = vector.load %arg13[%c0_57, %c0_58] : memref<32x64xbf16, #tpu.memory_space<vmem>>, vector<32x64xbf16>
    %153 = arith.truncf %151 : vector<16x32xf32> to vector<16x32xbf16>
    %cst_59 = arith.constant dense<0.000000e+00> : vector<16x64xf32>
    %154 = tpu.matmul %153, %152, %cst_59 {dimension_numbers = #tpu.dot_dimension_numbers<[1], [0], [0], [1], [0, 0, 1, 1], [], []>} : vector<16x32xbf16>, vector<32x64xbf16>, vector<16x64xf32> -> vector<16x64xf32>
    %c0_60 = arith.constant 0 : index
    %c0_61 = arith.constant 0 : index
    %155 = vector.load %arg14[%c0_60, %c0_61] : memref<1x64xf32, #tpu.memory_space<vmem>>, vector<1x64xf32>
    %156 = vector.broadcast %155 : vector<1x64xf32> to vector<16x64xf32>
    %157 = arith.addf %154, %156 : vector<16x64xf32>
    %cst_62 = arith.constant 0.000000e+00 : f32
    %158 = vector.broadcast %cst_62 : f32 to vector<16x64xf32>
    %159 = arith.cmpf oge, %157, %158 : vector<16x64xf32>
    %cst_63 = arith.constant 0.00999999977 : f32
    %160 = vector.broadcast %cst_63 : f32 to vector<16x64xf32>
    %161 = arith.mulf %160, %157 : vector<16x64xf32>
    %162 = arith.select %159, %157, %161 : vector<16x64xi1>, vector<16x64xf32>
    %c0_64 = arith.constant 0 : index
    %c0_65 = arith.constant 0 : index
    %163 = vector.load %arg15[%c0_64, %c0_65] : memref<64x32xbf16, #tpu.memory_space<vmem>>, vector<64x32xbf16>
    %164 = arith.truncf %162 : vector<16x64xf32> to vector<16x64xbf16>
    %cst_66 = arith.constant dense<0.000000e+00> : vector<16x32xf32>
    %165 = tpu.matmul %164, %163, %cst_66 {dimension_numbers = #tpu.dot_dimension_numbers<[1], [0], [0], [1], [0, 0, 1, 1], [], []>} : vector<16x64xbf16>, vector<64x32xbf16>, vector<16x32xf32> -> vector<16x32xf32>
    %c0_67 = arith.constant 0 : index
    %c0_68 = arith.constant 0 : index
    %166 = vector.load %arg16[%c0_67, %c0_68] : memref<1x32xf32, #tpu.memory_space<vmem>>, vector<1x32xf32>
    %167 = vector.broadcast %166 : vector<1x32xf32> to vector<16x32xf32>
    %168 = arith.addf %165, %167 : vector<16x32xf32>
    %cst_69 = arith.constant 0.000000e+00 : f32
    %169 = vector.broadcast %cst_69 : f32 to vector<16x32xf32>
    %170 = arith.cmpf oge, %168, %169 : vector<16x32xf32>
    %cst_70 = arith.constant 0.00999999977 : f32
    %171 = vector.broadcast %cst_70 : f32 to vector<16x32xf32>
    %172 = arith.mulf %171, %168 : vector<16x32xf32>
    %173 = arith.select %170, %168, %172 : vector<16x32xi1>, vector<16x32xf32>
    %174 = arith.addf %151, %173 : vector<16x32xf32>
    %c0_71 = arith.constant 0 : index
    %c0_72 = arith.constant 0 : index
    %175 = vector.load %arg17[%c0_71, %c0_72] : memref<1x32xf32, #tpu.memory_space<vmem>>, vector<1x32xf32>
    %c0_73 = arith.constant 0 : index
    %c0_74 = arith.constant 0 : index
    %176 = vector.load %arg18[%c0_73, %c0_74] : memref<1x32xf32, #tpu.memory_space<vmem>>, vector<1x32xf32>
    %cst_75 = arith.constant dense<0.000000e+00> : vector<16xf32>
    %177 = vector.multi_reduction <add>, %174, %cst_75 [1] : vector<16x32xf32> to vector<16xf32>
    %178 = vector.shape_cast %177 : vector<16xf32> to vector<16x1xf32>
    %cst_76 = arith.constant 3.200000e+01 : f32
    %179 = vector.broadcast %cst_76 : f32 to vector<16x1xf32>
    %180 = arith.divf %178, %179 : vector<16x1xf32>
    %181 = vector.broadcast %180 : vector<16x1xf32> to vector<16x32xf32>
    %182 = arith.subf %174, %181 : vector<16x32xf32>
    %183 = arith.mulf %182, %182 : vector<16x32xf32>
    %cst_77 = arith.constant dense<0.000000e+00> : vector<16xf32>
    %184 = vector.multi_reduction <add>, %183, %cst_77 [1] : vector<16x32xf32> to vector<16xf32>
    %185 = vector.shape_cast %184 : vector<16xf32> to vector<16x1xf32>
    %cst_78 = arith.constant 3.200000e+01 : f32
    %186 = vector.broadcast %cst_78 : f32 to vector<16x1xf32>
    %187 = arith.divf %185, %186 : vector<16x1xf32>
    %188 = vector.broadcast %180 : vector<16x1xf32> to vector<16x32xf32>
    %189 = arith.subf %174, %188 : vector<16x32xf32>
    %cst_79 = arith.constant 9.99999974E-6 : f32
    %190 = vector.broadcast %cst_79 : f32 to vector<16x1xf32>
    %191 = arith.addf %187, %190 : vector<16x1xf32>
    %192 = math.rsqrt %191 : vector<16x1xf32>
    %193 = vector.broadcast %192 : vector<16x1xf32> to vector<16x32xf32>
    %194 = arith.mulf %189, %193 : vector<16x32xf32>
    %195 = vector.broadcast %175 : vector<1x32xf32> to vector<16x32xf32>
    %196 = arith.mulf %194, %195 : vector<16x32xf32>
    %197 = vector.broadcast %176 : vector<1x32xf32> to vector<16x32xf32>
    %198 = arith.addf %196, %197 : vector<16x32xf32>
    %c0_80 = arith.constant 0 : index
    %c0_81 = arith.constant 0 : index
    %199 = vector.load %arg19[%c0_80, %c0_81] : memref<32x256xbf16, #tpu.memory_space<vmem>>, vector<32x256xbf16>
    %200 = arith.truncf %198 : vector<16x32xf32> to vector<16x32xbf16>
    %cst_82 = arith.constant dense<0.000000e+00> : vector<16x256xf32>
    %201 = tpu.matmul %200, %199, %cst_82 {dimension_numbers = #tpu.dot_dimension_numbers<[1], [0], [0], [1], [0, 0, 1, 1], [], []>} : vector<16x32xbf16>, vector<32x256xbf16>, vector<16x256xf32> -> vector<16x256xf32>
    %c0_83 = arith.constant 0 : index
    %c0_84 = arith.constant 0 : index
    %202 = vector.load %arg20[%c0_83, %c0_84] : memref<1x256xf32, #tpu.memory_space<vmem>>, vector<1x256xf32>
    %203 = vector.broadcast %202 : vector<1x256xf32> to vector<16x256xf32>
    %204 = arith.addf %201, %203 : vector<16x256xf32>
    %cst_85 = arith.constant 0.000000e+00 : f32
    %205 = vector.broadcast %cst_85 : f32 to vector<16x256xf32>
    %206 = arith.cmpf oge, %204, %205 : vector<16x256xf32>
    %cst_86 = arith.constant 0.00999999977 : f32
    %207 = vector.broadcast %cst_86 : f32 to vector<16x256xf32>
    %208 = arith.mulf %207, %204 : vector<16x256xf32>
    %209 = arith.select %206, %204, %208 : vector<16x256xi1>, vector<16x256xf32>
    %c0_87 = arith.constant 0 : index
    %c0_88 = arith.constant 0 : index
    %210 = vector.load %arg21[%c0_87, %c0_88] : memref<16x256xf32, #tpu.memory_space<vmem>>, vector<16x256xf32>
    tpu.vector_store %arg21[%c0_87, %c0_88], %209 {strides = array<i32>} : memref<16x256xf32, #tpu.memory_space<vmem>>, vector<16x256xf32>,
    return
  }
}

</mosaic_0001>

<llo_original>
// kernel: tpu_custom_call.1
$region0: #{tpu_custom_call.1}
  #allocation0 [shape = 'u32[]', space=smem, size = 0x4, offset = 0x4, fixed_abs, tag = 'smem constant byte address 0x4 - core index']
  #allocation1 [shape = 'u32[144,128]{1,0:T(1,128)}', space=vmem, size = 0x12000, scoped, tag = 'internal scratch']
  %s0 = inlined_call_operand.vmem [shape: f32[16,256], index: 0, kind: input, shape index: {}]
  %s1 = inlined_call_operand.vmem [shape: bf16[256,256], index: 1, kind: input, shape index: {}]
  %s2 = inlined_call_operand.hbm [shape: f32[1,256], index: 2, kind: input, shape index: {}]
  %s3 = inlined_call_operand.hbm [shape: bf16[256,768], index: 3, kind: input, shape index: {}]
  %s4 = inlined_call_operand.hbm [shape: f32[1,768], index: 4, kind: input, shape index: {}]
  %s5 = inlined_call_operand.vmem [shape: bf16[4,64,32], index: 5, kind: input, shape index: {}]
  %s6 = inlined_call_operand.vmem [shape: f32[1,32], index: 6, kind: input, shape index: {}]
  %s7 = inlined_call_operand.vmem [shape: bf16[256,32], index: 7, kind: input, shape index: {}]
  %s8 = inlined_call_operand.hbm [shape: f32[1,32], index: 8, kind: input, shape index: {}]
  %s9 = inlined_call_operand.hbm [shape: bf16[32,32], index: 9, kind: input, shape index: {}]
  %s10 = inlined_call_operand.hbm [shape: f32[1,32], index: 10, kind: input, shape index: {}]
  %s11 = inlined_call_operand.hbm [shape: f32[1,32], index: 11, kind: input, shape index: {}]
  %s12 = inlined_call_operand.hbm [shape: f32[1,32], index: 12, kind: input, shape index: {}]
  %s13 = inlined_call_operand.vmem [shape: bf16[32,64], index: 13, kind: input, shape index: {}]
  %s14 = inlined_call_operand.vmem [shape: f32[1,64], index: 14, kind: input, shape index: {}]
  %s15 = inlined_call_operand.vmem [shape: bf16[64,32], index: 15, kind: input, shape index: {}]
  %s16 = inlined_call_operand.vmem [shape: f32[1,32], index: 16, kind: input, shape index: {}]
  %s17 = inlined_call_operand.vmem [shape: f32[1,32], index: 17, kind: input, shape index: {}]
  %s18 = inlined_call_operand.vmem [shape: f32[1,32], index: 18, kind: input, shape index: {}]
  %s19 = inlined_call_operand.vmem [shape: bf16[32,256], index: 19, kind: input, shape index: {}]
  %s20 = inlined_call_operand.vmem [shape: f32[1,256], index: 20, kind: input, shape index: {}]
  %s21 = inlined_call_operand.hbm [shape: f32[16,256], index: 21, kind: output, shape index: {}]
  %s22 = sld [smem:[#allocation0]]
  $region126: #{tpu_custom_call.1} parent=0
    _
  %s24 = ssub.s32 1, %s22
  %s25 = scalar_select 0, %s24, %s22
  $region1: #{tpu_custom_call.1} parent=0
    #allocation2 [shape = 'u8[1024]{0}', space=vmem, size = 0x400, scoped, tag = 'input window, operand 2, single buffered']
    #allocation3 [shape = 's32[1]{0}', space=sflag, size = 0x4, scoped, tag = 'scoped memory for tpu_custom_call.1']
    #allocation4 [shape = 's32[1]{0}', space=sflag, size = 0x4, scoped, tag = 'scoped memory for tpu_custom_call.1']
    #allocation5 [shape = 'u8[393216]{0}', space=vmem, size = 0x60000, scoped, tag = 'input window, operand 3, single buffered']
    #allocation6 [shape = 's32[1]{0}', space=sflag, size = 0x4, scoped, tag = 'scoped memory for tpu_custom_call.1']
    #allocation7 [shape = 'u8[3072]{0}', space=vmem, size = 0xc00, scoped, tag = 'input window, operand 4, single buffered']
    #allocation8 [shape = 'u8[512]{0}', space=vmem, size = 0x400, scoped, tag = 'input window, operand 8, single buffered']
    #allocation9 [shape = 's32[1]{0}', space=sflag, size = 0x4, scoped, tag = 'scoped memory for tpu_custom_call.1']
    #allocation10 [shape = 'u8[8192]{0}', space=vmem, size = 0x2000, scoped, tag = 'input window, operand 9, single buffered']
    #allocation11 [shape = 'u8[512]{0}', space=vmem, size = 0x400, scoped, tag = 'input window, operand 10, single buffered']
    #allocation12 [shape = 's32[1]{0}', space=sflag, size = 0x4, scoped, tag = 'scoped memory for tpu_custom_call.1']
    #allocation13 [shape = 'u8[512]{0}', space=vmem, size = 0x400, scoped, tag = 'input window, operand 11, single buffered']
    #allocation14 [shape = 'u8[512]{0}', space=vmem, size = 0x400, scoped, tag = 'input window, operand 12, single buffered']
    #allocation15 [shape = 's32[1]{0}', space=sflag, size = 0x4, scoped, tag = 'scoped memory for tpu_custom_call.1']
    #allocation16 [shape = 'u8[16384]{0}', space=vmem, size = 0x4000, scoped, tag = 'output window, operand 0, single buffered']
    %26 = vsyncpa [#allocation3], 0
    %27 = vsyncpa [#allocation6], 0
    %28 = vsyncpa [#allocation9], 0
    %29 = vsyncpa [#allocation12], 0
    %30 = vsyncpa [#allocation15], 0
    %31 = vsyncpa [#allocation4], 0
    // Predicated region
    $region2: #{tpu_custom_call.1} parent=1 // pred_check
      _
    $region3: #{tpu_custom_call.1} parent=1 // pred_check_branch
      %33 = sbr.rel (0) target = $region5
    $region4: #{tpu_custom_call.1} parent=1 // pred_region
      _
    $region5: #{tpu_custom_call.1} parent=1 // pred_fallthru
      _
    // Predicated region
    $region6: #{tpu_custom_call.1} parent=1 // pred_check
      _
    $region7: #{tpu_custom_call.1} parent=1 // pred_check_branch
      %35 = sbr.rel (0) target = $region9
    $region8: #{tpu_custom_call.1} parent=1 // pred_region
      _
    $region9: #{tpu_custom_call.1} parent=1 // pred_fallthru
      _
    // Predicated region
    $region10: #{tpu_custom_call.1} parent=1 // pred_check
      _
    $region11: #{tpu_custom_call.1} parent=1 // pred_check_branch
      %37 = sbr.rel (0) target = $region13
    $region12: #{tpu_custom_call.1} parent=1 // pred_region
      %s39 = ssub.s32 32, 32
      %40 = vsyncadd [#allocation3], %s39
      %s42 = sshll.u32 [#allocation2], 4
      %s43 = int_to_ptr.vmem [resolvable:$true] %s42
      %45 = dma.hbm_to_vmem [thread:$0]  %s2, 32, %s43, [#allocation3]
    $region13: #{tpu_custom_call.1} parent=1 // pred_fallthru
      _
    // Predicated region
    $region14: #{tpu_custom_call.1} parent=1 // pred_check
      _
    $region15: #{tpu_custom_call.1} parent=1 // pred_check_branch
      %47 = sbr.rel (0) target = $region17
    $region16: #{tpu_custom_call.1} parent=1 // pred_region
      %s49 = ssub.s32 12288, 12288
      %50 = vsyncadd [#allocation6], %s49
      %s51 = sshll.u32 [#allocation5], 4
      %s52 = int_to_ptr.vmem [resolvable:$true] %s51
      %57 = dma.hbm_to_vmem [thread:$0]  %s3, 12288, %s52, [#allocation6], 384, 384, 24
    $region17: #{tpu_custom_call.1} parent=1 // pred_fallthru
      _
    // Predicated region
    $region18: #{tpu_custom_call.1} parent=1 // pred_check
      _
    $region19: #{tpu_custom_call.1} parent=1 // pred_check_branch
      %59 = sbr.rel (0) target = $region21
    $region20: #{tpu_custom_call.1} parent=1 // pred_region
      %s61 = ssub.s32 96, 96
      %62 = vsyncadd [#allocation6], %s61
      %s64 = sshll.u32 [#allocation7], 4
      %s65 = int_to_ptr.vmem [resolvable:$true] %s64
      %67 = dma.hbm_to_vmem [thread:$0]  %s4, 96, %s65, [#allocation6]
    $region21: #{tpu_custom_call.1} parent=1 // pred_fallthru
      _
    // Predicated region
    $region22: #{tpu_custom_call.1} parent=1 // pred_check
      _
    $region23: #{tpu_custom_call.1} parent=1 // pred_check_branch
      %69 = sbr.rel (0) target = $region25
    $region24: #{tpu_custom_call.1} parent=1 // pred_region
      _
    $region25: #{tpu_custom_call.1} parent=1 // pred_fallthru
      _
    // Predicated region
    $region26: #{tpu_custom_call.1} parent=1 // pred_check
      _
    $region27: #{tpu_custom_call.1} parent=1 // pred_check_branch
      %71 = sbr.rel (0) target = $region29
    $region28: #{tpu_custom_call.1} parent=1 // pred_region
      _
    $region29: #{tpu_custom_call.1} parent=1 // pred_fallthru
      _
    // Predicated region
    $region30: #{tpu_custom_call.1} parent=1 // pred_check
      _
    $region31: #{tpu_custom_call.1} parent=1 // pred_check_branch
      %73 = sbr.rel (0) target = $region33
    $region32: #{tpu_custom_call.1} parent=1 // pred_region
      _
    $region33: #{tpu_custom_call.1} parent=1 // pred_fallthru
      _
    // Predicated region
    $region34: #{tpu_custom_call.1} parent=1 // pred_check
      _
    $region35: #{tpu_custom_call.1} parent=1 // pred_check_branch
      %75 = sbr.rel (0) target = $region37
    $region36: #{tpu_custom_call.1} parent=1 // pred_region
      %s77 = ssub.s32 16, 16
      %78 = vsyncadd [#allocation9], %s77
      %s80 = sshll.u32 [#allocation8], 4
      %s81 = int_to_ptr.vmem [resolvable:$true] %s80
      %83 = dma.hbm_to_vmem [thread:$0]  %s8, 16, %s81, [#allocation9]
    $region37: #{tpu_custom_call.1} parent=1 // pred_fallthru
      _
    // Predicated region
    $region38: #{tpu_custom_call.1} parent=1 // pred_check
      _
    $region39: #{tpu_custom_call.1} parent=1 // pred_check_branch
      %85 = sbr.rel (0) target = $region41
    $region40: #{tpu_custom_call.1} parent=1 // pred_region
      %s87 = ssub.s32 256, 256
      %88 = vsyncadd [#allocation9], %s87
      %s89 = sshll.u32 [#allocation10], 4
      %s90 = int_to_ptr.vmem [resolvable:$true] %s89
      %95 = dma.hbm_to_vmem [thread:$0]  %s9, 256, %s90, [#allocation9], 64, 64, 4
    $region41: #{tpu_custom_call.1} parent=1 // pred_fallthru
      _
    // Predicated region
    $region42: #{tpu_custom_call.1} parent=1 // pred_check
      _
    $region43: #{tpu_custom_call.1} parent=1 // pred_check_branch
      %97 = sbr.rel (0) target = $region45
    $region44: #{tpu_custom_call.1} parent=1 // pred_region
      %s99 = ssub.s32 16, 16
      %100 = vsyncadd [#allocation12], %s99
      %s102 = sshll.u32 [#allocation11], 4
      %s103 = int_to_ptr.vmem [resolvable:$true] %s102
      %105 = dma.hbm_to_vmem [thread:$0]  %s10, 16, %s103, [#allocation12]
    $region45: #{tpu_custom_call.1} parent=1 // pred_fallthru
      _
    // Predicated region
    $region46: #{tpu_custom_call.1} parent=1 // pred_check
      _
    $region47: #{tpu_custom_call.1} parent=1 // pred_check_branch
      %107 = sbr.rel (0) target = $region49
    $region48: #{tpu_custom_call.1} parent=1 // pred_region
      %s109 = ssub.s32 16, 16
      %110 = vsyncadd [#allocation12], %s109
      %s112 = sshll.u32 [#allocation13], 4
      %s113 = int_to_ptr.vmem [resolvable:$true] %s112
      %115 = dma.hbm_to_vmem [thread:$0]  %s11, 16, %s113, [#allocation12]
    $region49: #{tpu_custom_call.1} parent=1 // pred_fallthru
      _
    // Predicated region
    $region50: #{tpu_custom_call.1} parent=1 // pred_check
      _
    $region51: #{tpu_custom_call.1} parent=1 // pred_check_branch
      %117 = sbr.rel (0) target = $region53
    $region52: #{tpu_custom_call.1} parent=1 // pred_region
      %s119 = ssub.s32 16, 16
      %120 = vsyncadd [#allocation15], %s119
      %s122 = sshll.u32 [#allocation14], 4
      %s123 = int_to_ptr.vmem [resolvable:$true] %s122
      %125 = dma.hbm_to_vmem [thread:$0]  %s12, 16, %s123, [#allocation15]
    $region53: #{tpu_custom_call.1} parent=1 // pred_fallthru
      _
    // Predicated region
    $region54: #{tpu_custom_call.1} parent=1 // pred_check
      _
    $region55: #{tpu_custom_call.1} parent=1 // pred_check_branch
      %127 = sbr.rel (0) target = $region57
    $region56: #{tpu_custom_call.1} parent=1 // pred_region
      _
    $region57: #{tpu_custom_call.1} parent=1 // pred_fallthru
      _
    // Predicated region
    $region58: #{tpu_custom_call.1} parent=1 // pred_check
      _
    $region59: #{tpu_custom_call.1} parent=1 // pred_check_branch
      %129 = sbr.rel (0) target = $region61
    $region60: #{tpu_custom_call.1} parent=1 // pred_region
      _
    $region61: #{tpu_custom_call.1} parent=1 // pred_fallthru
      _
    // Predicated region
    $region62: #{tpu_custom_call.1} parent=1 // pred_check
      _
    $region63: #{tpu_custom_call.1} parent=1 // pred_check_branch
      %131 = sbr.rel (0) target = $region65
    $region64: #{tpu_custom_call.1} parent=1 // pred_region
      _
    $region65: #{tpu_custom_call.1} parent=1 // pred_fallthru
      _
    // Predicated region
    $region66: #{tpu_custom_call.1} parent=1 // pred_check
      _
    $region67: #{tpu_custom_call.1} parent=1 // pred_check_branch
      %133 = sbr.rel (0) target = $region69
    $region68: #{tpu_custom_call.1} parent=1 // pred_region
      _
    $region69: #{tpu_custom_call.1} parent=1 // pred_fallthru
      _
    // Predicated region
    $region70: #{tpu_custom_call.1} parent=1 // pred_check
      _
    $region71: #{tpu_custom_call.1} parent=1 // pred_check_branch
      %135 = sbr.rel (0) target = $region73
    $region72: #{tpu_custom_call.1} parent=1 // pred_region
      _
    $region73: #{tpu_custom_call.1} parent=1 // pred_fallthru
      _
    // Predicated region
    $region74: #{tpu_custom_call.1} parent=1 // pred_check
      _
    $region75: #{tpu_custom_call.1} parent=1 // pred_check_branch
      %137 = sbr.rel (0) target = $region77
    $region76: #{tpu_custom_call.1} parent=1 // pred_region
      _
    $region77: #{tpu_custom_call.1} parent=1 // pred_fallthru
      _
    // Predicated region
    $region78: #{tpu_custom_call.1} parent=1 // pred_check
      _
    $region79: #{tpu_custom_call.1} parent=1 // pred_check_branch
      %139 = sbr.rel (0) target = $region81
    $region80: #{tpu_custom_call.1} parent=1 // pred_region
      _
    $region81: #{tpu_custom_call.1} parent=1 // pred_fallthru
      _
    // Predicated region
    $region82: #{tpu_custom_call.1} parent=1 // pred_check
      _
    $region83: #{tpu_custom_call.1} parent=1 // pred_check_branch
      %141 = sbr.rel (0) target = $region85
    $region84: #{tpu_custom_call.1} parent=1 // pred_region
      _
    $region85: #{tpu_custom_call.1} parent=1 // pred_fallthru
      _
    // Predicated region
    $region86: #{tpu_custom_call.1} parent=1 // pred_check
      _
    $region87: #{tpu_custom_call.1} parent=1 // pred_check_branch
      %143 = sbr.rel (0) target = $region89
    $region88: #{tpu_custom_call.1} parent=1 // pred_region
      %144 = dma.done [#allocation3], 32
    $region89: #{tpu_custom_call.1} parent=1 // pred_fallthru
      _
    // Predicated region
    $region90: #{tpu_custom_call.1} parent=1 // pred_check
      _
    $region91: #{tpu_custom_call.1} parent=1 // pred_check_branch
      %146 = sbr.rel (0) target = $region93
    $region92: #{tpu_custom_call.1} parent=1 // pred_region
      %147 = dma.done [#allocation6], 12288
    $region93: #{tpu_custom_call.1} parent=1 // pred_fallthru
      _
    // Predicated region
    $region94: #{tpu_custom_call.1} parent=1 // pred_check
      _
    $region95: #{tpu_custom_call.1} parent=1 // pred_check_branch
      %149 = sbr.rel (0) target = $region97
    $region96: #{tpu_custom_call.1} parent=1 // pred_region
      %150 = dma.done [#allocation6], 96
    $region97: #{tpu_custom_call.1} parent=1 // pred_fallthru
      _
    // Predicated region
    $region98: #{tpu_custom_call.1} parent=1 // pred_check
      _
    $region99: #{tpu_custom_call.1} parent=1 // pred_check_branch
      %152 = sbr.rel (0) target = $region101
    $region100: #{tpu_custom_call.1} parent=1 // pred_region
      %153 = dma.done [#allocation9], 16
    $region101: #{tpu_custom_call.1} parent=1 // pred_fallthru
      _
    // Predicated region
    $region102: #{tpu_custom_call.1} parent=1 // pred_check
      _
    $region103: #{tpu_custom_call.1} parent=1 // pred_check_branch
      %155 = sbr.rel (0) target = $region105
    $region104: #{tpu_custom_call.1} parent=1 // pred_region
      %156 = dma.done [#allocation9], 256
    $region105: #{tpu_custom_call.1} parent=1 // pred_fallthru
      _
    // Predicated region
    $region106: #{tpu_custom_call.1} parent=1 // pred_check
      _
    $region107: #{tpu_custom_call.1} parent=1 // pred_check_branch
      %158 = sbr.rel (0) target = $region109
    $region108: #{tpu_custom_call.1} parent=1 // pred_region
      %159 = dma.done [#allocation12], 16
    $region109: #{tpu_custom_call.1} parent=1 // pred_fallthru
      _
    // Predicated region
    $region110: #{tpu_custom_call.1} parent=1 // pred_check
      _
    $region111: #{tpu_custom_call.1} parent=1 // pred_check_branch
      %161 = sbr.rel (0) target = $region113
    $region112: #{tpu_custom_call.1} parent=1 // pred_region
      %162 = dma.done [#allocation12], 16
    $region113: #{tpu_custom_call.1} parent=1 // pred_fallthru
      _
    // Predicated region
    $region114: #{tpu_custom_call.1} parent=1 // pred_check
      _
    $region115: #{tpu_custom_call.1} parent=1 // pred_check_branch
      %164 = sbr.rel (0) target = $region117
    $region116: #{tpu_custom_call.1} parent=1 // pred_region
      %165 = dma.done [#allocation15], 16
    $region117: #{tpu_custom_call.1} parent=1 // pred_fallthru
      _
    %v167 = vld [vmem:[%s0] sm:$0xff]
    %v168 = vld [vmem:[%s0 + $0x8] sm:$0xff]
    %v169 = vld [vmem:[%s0 + $0x10] sm:$0xff]
    %v170 = vld [vmem:[%s0 + $0x18] sm:$0xff]
    %v171 = vld [vmem:[%s1] sm:$0xff]
    %v172 = vld [vmem:[%s1 + $0x8] sm:$0xff]
    %v173 = vld [vmem:[%s1 + $0x10] sm:$0xff]
    %v174 = vld [vmem:[%s1 + $0x18] sm:$0xff]
    %v175 = vld [vmem:[%s1 + $0x20] sm:$0xff]
    %v176 = vld [vmem:[%s1 + $0x28] sm:$0xff]
    %v177 = vld [vmem:[%s1 + $0x30] sm:$0xff]
    %v178 = vld [vmem:[%s1 + $0x38] sm:$0xff]
    %v179 = vld [vmem:[%s1 + $0x40] sm:$0xff]
    %v180 = vld [vmem:[%s1 + $0x48] sm:$0xff]
    %v181 = vld [vmem:[%s1 + $0x50] sm:$0xff]
    %v182 = vld [vmem:[%s1 + $0x58] sm:$0xff]
    %v183 = vld [vmem:[%s1 + $0x60] sm:$0xff]
    %v184 = vld [vmem:[%s1 + $0x68] sm:$0xff]
    %v185 = vld [vmem:[%s1 + $0x70] sm:$0xff]
    %v186 = vld [vmem:[%s1 + $0x78] sm:$0xff]
    %v187 = vld [vmem:[%s1 + $0x80] sm:$0xff]
    %v188 = vld [vmem:[%s1 + $0x88] sm:$0xff]
    %v189 = vld [vmem:[%s1 + $0x90] sm:$0xff]
    %v190 = vld [vmem:[%s1 + $0x98] sm:$0xff]
    %v191 = vld [vmem:[%s1 + $0xa0] sm:$0xff]
    %v192 = vld [vmem:[%s1 + $0xa8] sm:$0xff]
    %v193 = vld [vmem:[%s1 + $0xb0] sm:$0xff]
    %v194 = vld [vmem:[%s1 + $0xb8] sm:$0xff]
    %v195 = vld [vmem:[%s1 + $0xc0] sm:$0xff]
    %v196 = vld [vmem:[%s1 + $0xc8] sm:$0xff]
    %v197 = vld [vmem:[%s1 + $0xd0] sm:$0xff]
    %v198 = vld [vmem:[%s1 + $0xd8] sm:$0xff]
    %v199 = vld [vmem:[%s1 + $0xe0] sm:$0xff]
    %v200 = vld [vmem:[%s1 + $0xe8] sm:$0xff]
    %v201 = vld [vmem:[%s1 + $0xf0] sm:$0xff]
    %v202 = vld [vmem:[%s1 + $0xf8] sm:$0xff]
    %v203 = vpack.c.bf16 %v169, %v167
    %v204 = vpack.c.bf16 %v170, %v168
    %v205 = vld [vmem:[#allocation2] sm:$0x3]
    %v207 = vlaneseq
    %v208 = vshrl.u32 %v207, 7
    %v209 = vsub.s32 0, %v208
    %v210 = vrot.slane %v205, %v209
    %v211 = vlaneseq
    %v212 = vshrl.u32 %v211, 7
    %v213 = vsub.s32 1, %v212
    %v214 = vrot.slane %v205, %v213
    %v249 = vunpack.c.l.b16 %v171
    %v250 = vunpack.c.h.b16 %v171
    %v251 = vunpack.c.l.b16 %v172
    %v252 = vunpack.c.h.b16 %v172
    %v253 = vunpack.c.l.b16 %v173
    %v254 = vunpack.c.h.b16 %v173
    %v255 = vunpack.c.l.b16 %v174
    %v256 = vunpack.c.h.b16 %v174
    %v257 = vunpack.c.l.b16 %v175
    %v258 = vunpack.c.h.b16 %v175
    %v259 = vunpack.c.l.b16 %v176
    %v260 = vunpack.c.h.b16 %v176
    %v261 = vunpack.c.l.b16 %v177
    %v262 = vunpack.c.h.b16 %v177
    %v263 = vunpack.c.l.b16 %v178
    %v264 = vunpack.c.h.b16 %v178
    %v265 = vunpack.c.l.b16 %v179
    %v266 = vunpack.c.h.b16 %v179
    %v267 = vunpack.c.l.b16 %v180
    %v268 = vunpack.c.h.b16 %v180
    %v269 = vunpack.c.l.b16 %v181
    %v270 = vunpack.c.h.b16 %v181
    %v271 = vunpack.c.l.b16 %v182
    %v272 = vunpack.c.h.b16 %v182
    %v273 = vunpack.c.l.b16 %v183
    %v274 = vunpack.c.h.b16 %v183
    %v275 = vunpack.c.l.b16 %v184
    %v276 = vunpack.c.h.b16 %v184
    %v277 = vunpack.c.l.b16 %v185
    %v278 = vunpack.c.h.b16 %v185
    %v279 = vunpack.c.l.b16 %v186
    %v280 = vunpack.c.h.b16 %v186
    %v281 = vunpack.c.l.b16 %v187
    %v282 = vunpack.c.h.b16 %v187
    %v283 = vunpack.c.l.b16 %v188
    %v284 = vunpack.c.h.b16 %v188
    %v285 = vunpack.c.l.b16 %v189
    %v286 = vunpack.c.h.b16 %v189
    %v287 = vunpack.c.l.b16 %v190
    %v288 = vunpack.c.h.b16 %v190
    %v289 = vunpack.c.l.b16 %v191
    %v290 = vunpack.c.h.b16 %v191
    %v291 = vunpack.c.l.b16 %v192
    %v292 = vunpack.c.h.b16 %v192
    %v293 = vunpack.c.l.b16 %v193
    %v294 = vunpack.c.h.b16 %v193
    %v295 = vunpack.c.l.b16 %v194
    %v296 = vunpack.c.h.b16 %v194
    %v297 = vunpack.c.l.b16 %v195
    %v298 = vunpack.c.h.b16 %v195
    %v299 = vunpack.c.l.b16 %v196
    %v300 = vunpack.c.h.b16 %v196
    %v301 = vunpack.c.l.b16 %v197
    %v302 = vunpack.c.h.b16 %v197
    %v303 = vunpack.c.l.b16 %v198
    %v304 = vunpack.c.h.b16 %v198
    %v305 = vunpack.c.l.b16 %v199
    %v306 = vunpack.c.h.b16 %v199
    %v307 = vunpack.c.l.b16 %v200
    %v308 = vunpack.c.h.b16 %v200
    %v309 = vunpack.c.l.b16 %v201
    %v310 = vunpack.c.h.b16 %v201
    %v311 = vunpack.c.l.b16 %v202
    %v312 = vunpack.c.h.b16 %v202
    %v313 = vpack.c.b16 %v251, %v249
    %v314 = vpack.c.b16 %v252, %v250
    %v315 = vpack.c.b16 %v255, %v253
    %v316 = vpack.c.b16 %v256, %v254
    %v317 = vpack.c.b16 %v259, %v257
    %v318 = vpack.c.b16 %v260, %v258
    %v319 = vpack.c.b16 %v263, %v261
    %v320 = vpack.c.b16 %v264, %v262
    %v321 = vpack.c.b16 %v267, %v265
    %v322 = vpack.c.b16 %v268, %v266
    %v323 = vpack.c.b16 %v271, %v269
    %v324 = vpack.c.b16 %v272, %v270
    %v325 = vpack.c.b16 %v275, %v273
    %v326 = vpack.c.b16 %v276, %v274
    %v327 = vpack.c.b16 %v279, %v277
    %v328 = vpack.c.b16 %v280, %v278
    %v329 = vpack.c.b16 %v283, %v281
    %v330 = vpack.c.b16 %v284, %v282
    %v331 = vpack.c.b16 %v287, %v285
    %v332 = vpack.c.b16 %v288, %v286
    %v333 = vpack.c.b16 %v291, %v289
    %v334 = vpack.c.b16 %v292, %v290
    %v335 = vpack.c.b16 %v295, %v293
    %v336 = vpack.c.b16 %v296, %v294
    %v337 = vpack.c.b16 %v299, %v297
    %v338 = vpack.c.b16 %v300, %v298
    %v339 = vpack.c.b16 %v303, %v301
    %v340 = vpack.c.b16 %v304, %v302
    %v341 = vpack.c.b16 %v307, %v305
    %v342 = vpack.c.b16 %v308, %v306
    %v343 = vpack.c.b16 %v311, %v309
    %v344 = vpack.c.b16 %v312, %v310
    %377 = vmatprep.subr.bf16.mxu0 %v314
    %378 = vmatpush1.bf16.msra.mxu0 %v313
    %379 = vmatprep.subr.bf16.mxu0 %v316
    %380 = vmatpush1.bf16.msra.mxu0 %v315
    %381 = vmatprep.subr.bf16.mxu0 %v318
    %382 = vmatpush1.bf16.msra.mxu0 %v317
    %383 = vmatprep.subr.bf16.mxu0 %v320
    %384 = vmatpush1.bf16.msra.mxu0 %v319
    %385 = vmatprep.subr.bf16.mxu0 %v322
    %386 = vmatpush1.bf16.msra.mxu0 %v321
    %387 = vmatprep.subr.bf16.mxu0 %v324
    %388 = vmatpush1.bf16.msra.mxu0 %v323
    %389 = vmatprep.subr.bf16.mxu0 %v326
    %390 = vmatpush1.bf16.msra.mxu0 %v325
    %391 = vmatprep.subr.bf16.mxu0 %v328
    %392 = vmatpush1.bf16.msra.mxu0 %v327
    %393 = vmatprep.subr.bf16.mxu0 %v330
    %394 = vmatpush1.bf16.msra.mxu0 %v329
    %395 = vmatprep.subr.bf16.mxu0 %v332
    %396 = vmatpush1.bf16.msra.mxu0 %v331
    %397 = vmatprep.subr.bf16.mxu0 %v334
    %398 = vmatpush1.bf16.msra.mxu0 %v333
    %399 = vmatprep.subr.bf16.mxu0 %v336
    %400 = vmatpush1.bf16.msra.mxu0 %v335
    %401 = vmatprep.subr.bf16.mxu0 %v338
    %402 = vmatpush1.bf16.msra.mxu0 %v337
    %403 = vmatprep.subr.bf16.mxu0 %v340
    %404 = vmatpush1.bf16.msra.mxu0 %v339
    %405 = vmatprep.subr.bf16.mxu0 %v342
    %406 = vmatpush1.bf16.msra.mxu0 %v341
    %407 = vmatprep.subr.bf16.mxu0 %v344
    %408 = vmatpush1.bf16.msra.mxu0 %v343
    %409 = vmatprep.mubr.bf16.mxu0 %v204
    %410 = vmatmul.mubr.bf16.gmra.mrb[0].mxu0 %v203
    %v411 = vpop.f32.mrb[0].mxu0
    %v412 = vadd.f32 %v210, %v411
    %v413 = vpop.f32.mrb[0].mxu0
    %v414 = vadd.f32 %v214, %v413
    %v415 = vpop.f32.mrb[0].mxu0
    %v416 = vadd.f32 %v210, %v415
    %v417 = vpop.f32.mrb[0].mxu0
    %v418 = vadd.f32 %v214, %v417
    %419 = vdwg.mxu0
    %vm420 = vcmp.ge.f32.partialorder %v412, 0.0
    %vm421 = vcmp.ge.f32.partialorder %v414, 0.0
    %vm422 = vcmp.ge.f32.partialorder %v416, 0.0
    %vm423 = vcmp.ge.f32.partialorder %v418, 0.0
    %v424 = vmul.f32 %v412, 0.01
    %v425 = vmul.f32 %v414, 0.01
    %v426 = vmul.f32 %v416, 0.01
    %v427 = vmul.f32 %v418, 0.01
    %v428 = vsel %vm420, %v412, %v424
    %v429 = vsel %vm421, %v414, %v425
    %v430 = vsel %vm422, %v416, %v426
    %v431 = vsel %vm423, %v418, %v427
    %v432 = vld [vmem:[%s7] sm:$0xf]
    %v433 = vld [vmem:[%s7 + $0x4] sm:$0xf]
    %v434 = vld [vmem:[%s7 + $0x8] sm:$0xf]
    %v435 = vld [vmem:[%s7 + $0xc] sm:$0xf]
    %v436 = vld [vmem:[%s7 + $0x10] sm:$0xf]
    %v437 = vld [vmem:[%s7 + $0x14] sm:$0xf]
    %v438 = vld [vmem:[%s7 + $0x18] sm:$0xf]
    %v439 = vld [vmem:[%s7 + $0x1c] sm:$0xf]
    %v440 = vld [vmem:[%s7 + $0x20] sm:$0xf]
    %v441 = vld [vmem:[%s7 + $0x24] sm:$0xf]
    %v442 = vld [vmem:[%s7 + $0x28] sm:$0xf]
    %v443 = vld [vmem:[%s7 + $0x2c] sm:$0xf]
    %v444 = vld [vmem:[%s7 + $0x30] sm:$0xf]
    %v445 = vld [vmem:[%s7 + $0x34] sm:$0xf]
    %v446 = vld [vmem:[%s7 + $0x38] sm:$0xf]
    %v447 = vld [vmem:[%s7 + $0x3c] sm:$0xf]
    %v448 = vld [vmem:[%s7 + $0x40] sm:$0xf]
    %v449 = vld [vmem:[%s7 + $0x44] sm:$0xf]
    %v450 = vld [vmem:[%s7 + $0x48] sm:$0xf]
    %v451 = vld [vmem:[%s7 + $0x4c] sm:$0xf]
    %v452 = vld [vmem:[%s7 + $0x50] sm:$0xf]
    %v453 = vld [vmem:[%s7 + $0x54] sm:$0xf]
    %v454 = vld [vmem:[%s7 + $0x58] sm:$0xf]
    %v455 = vld [vmem:[%s7 + $0x5c] sm:$0xf]
    %v456 = vld [vmem:[%s7 + $0x60] sm:$0xf]
    %v457 = vld [vmem:[%s7 + $0x64] sm:$0xf]
    %v458 = vld [vmem:[%s7 + $0x68] sm:$0xf]
    %v459 = vld [vmem:[%s7 + $0x6c] sm:$0xf]
    %v460 = vld [vmem:[%s7 + $0x70] sm:$0xf]
    %v461 = vld [vmem:[%s7 + $0x74] sm:$0xf]
    %v462 = vld [vmem:[%s7 + $0x78] sm:$0xf]
    %v463 = vld [vmem:[%s7 + $0x7c] sm:$0xf]
    %v464 = vpack.c.bf16 %v430, %v428
    %v465 = vpack.c.bf16 %v431, %v429
    %v466 = vld [vmem:[#allocation8] sm:$0x1]
    %v468 = vlaneseq
    %v469 = vshrl.u32 %v468, 7
    %v470 = vsub.s32 0, %v469
    %v471 = vrot.slane %v466, %v470
    %v505 = vunpack.c.l.b16 %v432
    %v506 = vunpack.c.l.b16 %v433
    %v507 = vunpack.c.l.b16 %v434
    %v508 = vunpack.c.l.b16 %v435
    %v509 = vunpack.c.l.b16 %v436
    %v510 = vunpack.c.l.b16 %v437
    %v511 = vunpack.c.l.b16 %v438
    %v512 = vunpack.c.l.b16 %v439
    %v513 = vunpack.c.l.b16 %v440
    %v514 = vunpack.c.l.b16 %v441
    %v515 = vunpack.c.l.b16 %v442
    %v516 = vunpack.c.l.b16 %v443
    %v517 = vunpack.c.l.b16 %v444
    %v518 = vunpack.c.l.b16 %v445
    %v519 = vunpack.c.l.b16 %v446
    %v520 = vunpack.c.l.b16 %v447
    %v521 = vunpack.c.l.b16 %v448
    %v522 = vunpack.c.l.b16 %v449
    %v523 = vunpack.c.l.b16 %v450
    %v524 = vunpack.c.l.b16 %v451
    %v525 = vunpack.c.l.b16 %v452
    %v526 = vunpack.c.l.b16 %v453
    %v527 = vunpack.c.l.b16 %v454
    %v528 = vunpack.c.l.b16 %v455
    %v529 = vunpack.c.l.b16 %v456
    %v530 = vunpack.c.l.b16 %v457
    %v531 = vunpack.c.l.b16 %v458
    %v532 = vunpack.c.l.b16 %v459
    %v533 = vunpack.c.l.b16 %v460
    %v534 = vunpack.c.l.b16 %v461
    %v535 = vunpack.c.l.b16 %v462
    %v536 = vunpack.c.l.b16 %v463
    %v537 = vpack.c.b16 %v506, %v505
    %v538 = vpack.c.b16 %v508, %v507
    %v539 = vpack.c.b16 %v510, %v509
    %v540 = vpack.c.b16 %v512, %v511
    %v541 = vpack.c.b16 %v514, %v513
    %v542 = vpack.c.b16 %v516, %v515
    %v543 = vpack.c.b16 %v518, %v517
    %v544 = vpack.c.b16 %v520, %v519
    %v545 = vpack.c.b16 %v522, %v521
    %v546 = vpack.c.b16 %v524, %v523
    %v547 = vpack.c.b16 %v526, %v525
    %v548 = vpack.c.b16 %v528, %v527
    %v549 = vpack.c.b16 %v530, %v529
    %v550 = vpack.c.b16 %v532, %v531
    %v551 = vpack.c.b16 %v534, %v533
    %v552 = vpack.c.b16 %v536, %v535
    %569 = vmatprep.subr.bf16.mxu0 0
    %570 = vmatpush1.bf16.msra.mxu0 %v537
    %571 = vmatprep.subr.bf16.mxu0 0
    %572 = vmatpush1.bf16.msra.mxu0 %v538
    %573 = vmatprep.subr.bf16.mxu0 0
    %574 = vmatpush1.bf16.msra.mxu0 %v539
    %575 = vmatprep.subr.bf16.mxu0 0
    %576 = vmatpush1.bf16.msra.mxu0 %v540
    %577 = vmatprep.subr.bf16.mxu0 0
    %578 = vmatpush1.bf16.msra.mxu0 %v541
    %579 = vmatprep.subr.bf16.mxu0 0
    %580 = vmatpush1.bf16.msra.mxu0 %v542
    %581 = vmatprep.subr.bf16.mxu0 0
    %582 = vmatpush1.bf16.msra.mxu0 %v543
    %583 = vmatprep.subr.bf16.mxu0 0
    %584 = vmatpush1.bf16.msra.mxu0 %v544
    %585 = vmatprep.subr.bf16.mxu0 0
    %586 = vmatpush1.bf16.msra.mxu0 %v545
    %587 = vmatprep.subr.bf16.mxu0 0
    %588 = vmatpush1.bf16.msra.mxu0 %v546
    %589 = vmatprep.subr.bf16.mxu0 0
    %590 = vmatpush1.bf16.msra.mxu0 %v547
    %591 = vmatprep.subr.bf16.mxu0 0
    %592 = vmatpush1.bf16.msra.mxu0 %v548
    %593 = vmatprep.subr.bf16.mxu0 0
    %594 = vmatpush1.bf16.msra.mxu0 %v549
    %595 = vmatprep.subr.bf16.mxu0 0
    %596 = vmatpush1.bf16.msra.mxu0 %v550
    %597 = vmatprep.subr.bf16.mxu0 0
    %598 = vmatpush1.bf16.msra.mxu0 %v551
    %599 = vmatprep.subr.bf16.mxu0 0
    %600 = vmatpush1.bf16.msra.mxu0 %v552
    %601 = vmatprep.mubr.bf16.mxu0 %v465
    %602 = vmatmul.mubr.bf16.gmra.mrb[0].mxu0 %v464
    %v603 = vpop.f32.mrb[0].mxu0
    %v604 = vadd.f32 %v471, %v603
    %v605 = vpop.f32.mrb[0].mxu0
    %v606 = vpop.f32.mrb[0].mxu0
    %v607 = vadd.f32 %v471, %v606
    %v608 = vpop.f32.mrb[0].mxu0
    %609 = vdwg.mxu0
    %v610 = vld [vmem:[#allocation5] sm:$0xff]
    %v611 = vld [vmem:[#allocation5 + $0x8] sm:$0xff]
    %v612 = vld [vmem:[#allocation5 + $0x10] sm:$0xff]
    %v613 = vld [vmem:[#allocation5 + $0x18] sm:$0xff]
    %v614 = vld [vmem:[#allocation5 + $0x20] sm:$0xff]
    %v615 = vld [vmem:[#allocation5 + $0x28] sm:$0xff]
    %v616 = vld [vmem:[#allocation5 + $0x30] sm:$0xff]
    %v617 = vld [vmem:[#allocation5 + $0x38] sm:$0xff]
    %v618 = vld [vmem:[#allocation5 + $0x40] sm:$0xff]
    %v619 = vld [vmem:[#allocation5 + $0x48] sm:$0xff]
    %v620 = vld [vmem:[#allocation5 + $0x50] sm:$0xff]
    %v621 = vld [vmem:[#allocation5 + $0x58] sm:$0xff]
    %v622 = vld [vmem:[#allocation5 + $0x60] sm:$0xff]
    %v623 = vld [vmem:[#allocation5 + $0x68] sm:$0xff]
    %v624 = vld [vmem:[#allocation5 + $0x70] sm:$0xff]
    %v625 = vld [vmem:[#allocation5 + $0x78] sm:$0xff]
    %v626 = vld [vmem:[#allocation5 + $0x80] sm:$0xff]
    %v627 = vld [vmem:[#allocation5 + $0x88] sm:$0xff]
    %v628 = vld [vmem:[#allocation5 + $0x90] sm:$0xff]
    %v629 = vld [vmem:[#allocation5 + $0x98] sm:$0xff]
    %v630 = vld [vmem:[#allocation5 + $0xa0] sm:$0xff]
    %v631 = vld [vmem:[#allocation5 + $0xa8] sm:$0xff]
    %v632 = vld [vmem:[#allocation5 + $0xb0] sm:$0xff]
    %v633 = vld [vmem:[#allocation5 + $0xb8] sm:$0xff]
    %v634 = vld [vmem:[#allocation5 + $0xc0] sm:$0xff]
    %v635 = vld [vmem:[#allocation5 + $0xc8] sm:$0xff]
    %v636 = vld [vmem:[#allocation5 + $0xd0] sm:$0xff]
    %v637 = vld [vmem:[#allocation5 + $0xd8] sm:$0xff]
    %v638 = vld [vmem:[#allocation5 + $0xe0] sm:$0xff]
    %v639 = vld [vmem:[#allocation5 + $0xe8] sm:$0xff]
    %v640 = vld [vmem:[#allocation5 + $0xf0] sm:$0xff]
    %v641 = vld [vmem:[#allocation5 + $0xf8] sm:$0xff]
    %v642 = vld [vmem:[#allocation5 + $0x100] sm:$0xff]
    %v643 = vld [vmem:[#allocation5 + $0x108] sm:$0xff]
    %v644 = vld [vmem:[#allocation5 + $0x110] sm:$0xff]
    %v645 = vld [vmem:[#allocation5 + $0x118] sm:$0xff]
    %v646 = vld [vmem:[#allocation5 + $0x120] sm:$0xff]
    %v647 = vld [vmem:[#allocation5 + $0x128] sm:$0xff]
    %v648 = vld [vmem:[#allocation5 + $0x130] sm:$0xff]
    %v649 = vld [vmem:[#allocation5 + $0x138] sm:$0xff]
    %v650 = vld [vmem:[#allocation5 + $0x140] sm:$0xff]
    %v651 = vld [vmem:[#allocation5 + $0x148] sm:$0xff]
    %v652 = vld [vmem:[#allocation5 + $0x150] sm:$0xff]
    %v653 = vld [vmem:[#allocation5 + $0x158] sm:$0xff]
    %v654 = vld [vmem:[#allocation5 + $0x160] sm:$0xff]
    %v655 = vld [vmem:[#allocation5 + $0x168] sm:$0xff]
    %v656 = vld [vmem:[#allocation5 + $0x170] sm:$0xff]
    %v657 = vld [vmem:[#allocation5 + $0x178] sm:$0xff]
    %v658 = vld [vmem:[#allocation5 + $0x180] sm:$0xff]
    %v659 = vld [vmem:[#allocation5 + $0x188] sm:$0xff]
    %v660 = vld [vmem:[#allocation5 + $0x190] sm:$0xff]
    %v661 = vld [vmem:[#allocation5 + $0x198] sm:$0xff]
    %v662 = vld [vmem:[#allocation5 + $0x1a0] sm:$0xff]
    %v663 = vld [vmem:[#allocation5 + $0x1a8] sm:$0xff]
    %v664 = vld [vmem:[#allocation5 + $0x1b0] sm:$0xff]
    %v665 = vld [vmem:[#allocation5 + $0x1b8] sm:$0xff]
    %v666 = vld [vmem:[#allocation5 + $0x1c0] sm:$0xff]
    %v667 = vld [vmem:[#allocation5 + $0x1c8] sm:$0xff]
    %v668 = vld [vmem:[#allocation5 + $0x1d0] sm:$0xff]
    %v669 = vld [vmem:[#allocation5 + $0x1d8] sm:$0xff]
    %v670 = vld [vmem:[#allocation5 + $0x1e0] sm:$0xff]
    %v671 = vld [vmem:[#allocation5 + $0x1e8] sm:$0xff]
    %v672 = vld [vmem:[#allocation5 + $0x1f0] sm:$0xff]
    %v673 = vld [vmem:[#allocation5 + $0x1f8] sm:$0xff]
    %v674 = vld [vmem:[#allocation5 + $0x200] sm:$0xff]
    %v675 = vld [vmem:[#allocation5 + $0x208] sm:$0xff]
    %v676 = vld [vmem:[#allocation5 + $0x210] sm:$0xff]
    %v677 = vld [vmem:[#allocation5 + $0x218] sm:$0xff]
    %v678 = vld [vmem:[#allocation5 + $0x220] sm:$0xff]
    %v679 = vld [vmem:[#allocation5 + $0x228] sm:$0xff]
    %v680 = vld [vmem:[#allocation5 + $0x230] sm:$0xff]
    %v681 = vld [vmem:[#allocation5 + $0x238] sm:$0xff]
    %v682 = vld [vmem:[#allocation5 + $0x240] sm:$0xff]
    %v683 = vld [vmem:[#allocation5 + $0x248] sm:$0xff]
    %v684 = vld [vmem:[#allocation5 + $0x250] sm:$0xff]
    %v685 = vld [vmem:[#allocation5 + $0x258] sm:$0xff]
    %v686 = vld [vmem:[#allocation5 + $0x260] sm:$0xff]
    %v687 = vld [vmem:[#allocation5 + $0x268] sm:$0xff]
    %v688 = vld [vmem:[#allocation5 + $0x270] sm:$0xff]
    %v689 = vld [vmem:[#allocation5 + $0x278] sm:$0xff]
    %v690 = vld [vmem:[#allocation5 + $0x280] sm:$0xff]
    %v691 = vld [vmem:[#allocation5 + $0x288] sm:$0xff]
    %v692 = vld [vmem:[#allocation5 + $0x290] sm:$0xff]
    %v693 = vld [vmem:[#allocation5 + $0x298] sm:$0xff]
    %v694 = vld [vmem:[#allocation5 + $0x2a0] sm:$0xff]
    %v695 = vld [vmem:[#allocation5 + $0x2a8] sm:$0xff]
    %v696 = vld [vmem:[#allocation5 + $0x2b0] sm:$0xff]
    %v697 = vld [vmem:[#allocation5 + $0x2b8] sm:$0xff]
    %v698 = vld [vmem:[#allocation5 + $0x2c0] sm:$0xff]
    %v699 = vld [vmem:[#allocation5 + $0x2c8] sm:$0xff]
    %v700 = vld [vmem:[#allocation5 + $0x2d0] sm:$0xff]
    %v701 = vld [vmem:[#allocation5 + $0x2d8] sm:$0xff]
    %v702 = vld [vmem:[#allocation5 + $0x2e0] sm:$0xff]
    %v703 = vld [vmem:[#allocation5 + $0x2e8] sm:$0xff]
    %v704 = vld [vmem:[#allocation5 + $0x2f0] sm:$0xff]
    %v705 = vld [vmem:[#allocation5 + $0x2f8] sm:$0xff]
    %v706 = vld [vmem:[#allocation7] sm:$0x3f]
    %v708 = vlaneseq
    %v709 = vshrl.u32 %v708, 7
    %v710 = vsub.s32 0, %v709
    %v711 = vrot.slane %v706, %v710
    %v712 = vlaneseq
    %v713 = vshrl.u32 %v712, 7
    %v714 = vsub.s32 1, %v713
    %v715 = vrot.slane %v706, %v714
    %v716 = vlaneseq
    %v717 = vshrl.u32 %v716, 7
    %v718 = vsub.s32 2, %v717
    %v719 = vrot.slane %v706, %v718
    %v720 = vlaneseq
    %v721 = vshrl.u32 %v720, 7
    %v722 = vsub.s32 3, %v721
    %v723 = vrot.slane %v706, %v722
    %v724 = vlaneseq
    %v725 = vshrl.u32 %v724, 7
    %v726 = vsub.s32 4, %v725
    %v727 = vrot.slane %v706, %v726
    %v728 = vlaneseq
    %v729 = vshrl.u32 %v728, 7
    %v730 = vsub.s32 5, %v729
    %v731 = vrot.slane %v706, %v730
    %v834 = vunpack.c.l.b16 %v610
    %v835 = vunpack.c.h.b16 %v610
    %v836 = vunpack.c.l.b16 %v611
    %v837 = vunpack.c.h.b16 %v611
    %v838 = vunpack.c.l.b16 %v612
    %v839 = vunpack.c.h.b16 %v612
    %v840 = vunpack.c.l.b16 %v613
    %v841 = vunpack.c.h.b16 %v613
    %v842 = vunpack.c.l.b16 %v614
    %v843 = vunpack.c.h.b16 %v614
    %v844 = vunpack.c.l.b16 %v615
    %v845 = vunpack.c.h.b16 %v615
    %v846 = vunpack.c.l.b16 %v616
    %v847 = vunpack.c.h.b16 %v616
    %v848 = vunpack.c.l.b16 %v617
    %v849 = vunpack.c.h.b16 %v617
    %v850 = vunpack.c.l.b16 %v618
    %v851 = vunpack.c.h.b16 %v618
    %v852 = vunpack.c.l.b16 %v619
    %v853 = vunpack.c.h.b16 %v619
    %v854 = vunpack.c.l.b16 %v620
    %v855 = vunpack.c.h.b16 %v620
    %v856 = vunpack.c.l.b16 %v621
    %v857 = vunpack.c.h.b16 %v621
    %v858 = vunpack.c.l.b16 %v622
    %v859 = vunpack.c.h.b16 %v622
    %v860 = vunpack.c.l.b16 %v623
    %v861 = vunpack.c.h.b16 %v623
    %v862 = vunpack.c.l.b16 %v624
    %v863 = vunpack.c.h.b16 %v624
    %v864 = vunpack.c.l.b16 %v625
    %v865 = vunpack.c.h.b16 %v625
    %v866 = vunpack.c.l.b16 %v626
    %v867 = vunpack.c.h.b16 %v626
    %v868 = vunpack.c.l.b16 %v627
    %v869 = vunpack.c.h.b16 %v627
    %v870 = vunpack.c.l.b16 %v628
    %v871 = vunpack.c.h.b16 %v628
    %v872 = vunpack.c.l.b16 %v629
    %v873 = vunpack.c.h.b16 %v629
    %v874 = vunpack.c.l.b16 %v630
    %v875 = vunpack.c.h.b16 %v630
    %v876 = vunpack.c.l.b16 %v631
    %v877 = vunpack.c.h.b16 %v631
    %v878 = vunpack.c.l.b16 %v632
    %v879 = vunpack.c.h.b16 %v632
    %v880 = vunpack.c.l.b16 %v633
    %v881 = vunpack.c.h.b16 %v633
    %v882 = vunpack.c.l.b16 %v634
    %v883 = vunpack.c.h.b16 %v634
    %v884 = vunpack.c.l.b16 %v635
    %v885 = vunpack.c.h.b16 %v635
    %v886 = vunpack.c.l.b16 %v636
    %v887 = vunpack.c.h.b16 %v636
    %v888 = vunpack.c.l.b16 %v637
    %v889 = vunpack.c.h.b16 %v637
    %v890 = vunpack.c.l.b16 %v638
    %v891 = vunpack.c.h.b16 %v638
    %v892 = vunpack.c.l.b16 %v639
    %v893 = vunpack.c.h.b16 %v639
    %v894 = vunpack.c.l.b16 %v640
    %v895 = vunpack.c.h.b16 %v640
    %v896 = vunpack.c.l.b16 %v641
    %v897 = vunpack.c.h.b16 %v641
    %v898 = vunpack.c.l.b16 %v642
    %v899 = vunpack.c.h.b16 %v642
    %v900 = vunpack.c.l.b16 %v643
    %v901 = vunpack.c.h.b16 %v643
    %v902 = vunpack.c.l.b16 %v644
    %v903 = vunpack.c.h.b16 %v644
    %v904 = vunpack.c.l.b16 %v645
    %v905 = vunpack.c.h.b16 %v645
    %v906 = vunpack.c.l.b16 %v646
    %v907 = vunpack.c.h.b16 %v646
    %v908 = vunpack.c.l.b16 %v647
    %v909 = vunpack.c.h.b16 %v647
    %v910 = vunpack.c.l.b16 %v648
    %v911 = vunpack.c.h.b16 %v648
    %v912 = vunpack.c.l.b16 %v649
    %v913 = vunpack.c.h.b16 %v649
    %v914 = vunpack.c.l.b16 %v650
    %v915 = vunpack.c.h.b16 %v650
    %v916 = vunpack.c.l.b16 %v651
    %v917 = vunpack.c.h.b16 %v651
    %v918 = vunpack.c.l.b16 %v652
    %v919 = vunpack.c.h.b16 %v652
    %v920 = vunpack.c.l.b16 %v653
    %v921 = vunpack.c.h.b16 %v653
    %v922 = vunpack.c.l.b16 %v654
    %v923 = vunpack.c.h.b16 %v654
    %v924 = vunpack.c.l.b16 %v655
    %v925 = vunpack.c.h.b16 %v655
    %v926 = vunpack.c.l.b16 %v656
    %v927 = vunpack.c.h.b16 %v656
    %v928 = vunpack.c.l.b16 %v657
    %v929 = vunpack.c.h.b16 %v657
    %v930 = vunpack.c.l.b16 %v658
    %v931 = vunpack.c.h.b16 %v658
    %v932 = vunpack.c.l.b16 %v659
    %v933 = vunpack.c.h.b16 %v659
    %v934 = vunpack.c.l.b16 %v660
    %v935 = vunpack.c.h.b16 %v660
    %v936 = vunpack.c.l.b16 %v661
    %v937 = vunpack.c.h.b16 %v661
    %v938 = vunpack.c.l.b16 %v662
    %v939 = vunpack.c.h.b16 %v662
    %v940 = vunpack.c.l.b16 %v663
    %v941 = vunpack.c.h.b16 %v663
    %v942 = vunpack.c.l.b16 %v664
    %v943 = vunpack.c.h.b16 %v664
    %v944 = vunpack.c.l.b16 %v665
    %v945 = vunpack.c.h.b16 %v665
    %v946 = vunpack.c.l.b16 %v666
    %v947 = vunpack.c.h.b16 %v666
    %v948 = vunpack.c.l.b16 %v667
    %v949 = vunpack.c.h.b16 %v667
    %v950 = vunpack.c.l.b16 %v668
    %v951 = vunpack.c.h.b16 %v668
    %v952 = vunpack.c.l.b16 %v669
    %v953 = vunpack.c.h.b16 %v669
    %v954 = vunpack.c.l.b16 %v670
    %v955 = vunpack.c.h.b16 %v670
    %v956 = vunpack.c.l.b16 %v671
    %v957 = vunpack.c.h.b16 %v671
    %v958 = vunpack.c.l.b16 %v672
    %v959 = vunpack.c.h.b16 %v672
    %v960 = vunpack.c.l.b16 %v673
    %v961 = vunpack.c.h.b16 %v673
    %v962 = vunpack.c.l.b16 %v674
    %v963 = vunpack.c.h.b16 %v674
    %v964 = vunpack.c.l.b16 %v675
    %v965 = vunpack.c.h.b16 %v675
    %v966 = vunpack.c.l.b16 %v676
    %v967 = vunpack.c.h.b16 %v676
    %v968 = vunpack.c.l.b16 %v677
    %v969 = vunpack.c.h.b16 %v677
    %v970 = vunpack.c.l.b16 %v678
    %v971 = vunpack.c.h.b16 %v678
    %v972 = vunpack.c.l.b16 %v679
    %v973 = vunpack.c.h.b16 %v679
    %v974 = vunpack.c.l.b16 %v680
    %v975 = vunpack.c.h.b16 %v680
    %v976 = vunpack.c.l.b16 %v681
    %v977 = vunpack.c.h.b16 %v681
    %v978 = vunpack.c.l.b16 %v682
    %v979 = vunpack.c.h.b16 %v682
    %v980 = vunpack.c.l.b16 %v683
    %v981 = vunpack.c.h.b16 %v683
    %v982 = vunpack.c.l.b16 %v684
    %v983 = vunpack.c.h.b16 %v684
    %v984 = vunpack.c.l.b16 %v685
    %v985 = vunpack.c.h.b16 %v685
    %v986 = vunpack.c.l.b16 %v686
    %v987 = vunpack.c.h.b16 %v686
    %v988 = vunpack.c.l.b16 %v687
    %v989 = vunpack.c.h.b16 %v687
    %v990 = vunpack.c.l.b16 %v688
    %v991 = vunpack.c.h.b16 %v688
    %v992 = vunpack.c.l.b16 %v689
    %v993 = vunpack.c.h.b16 %v689
    %v994 = vunpack.c.l.b16 %v690
    %v995 = vunpack.c.h.b16 %v690
    %v996 = vunpack.c.l.b16 %v691
    %v997 = vunpack.c.h.b16 %v691
    %v998 = vunpack.c.l.b16 %v692
    %v999 = vunpack.c.h.b16 %v692
    %v1000 = vunpack.c.l.b16 %v693
    %v1001 = vunpack.c.h.b16 %v693
    %v1002 = vunpack.c.l.b16 %v694
    %v1003 = vunpack.c.h.b16 %v694
    %v1004 = vunpack.c.l.b16 %v695
    %v1005 = vunpack.c.h.b16 %v695
    %v1006 = vunpack.c.l.b16 %v696
    %v1007 = vunpack.c.h.b16 %v696
    %v1008 = vunpack.c.l.b16 %v697
    %v1009 = vunpack.c.h.b16 %v697
    %v1010 = vunpack.c.l.b16 %v698
    %v1011 = vunpack.c.h.b16 %v698
    %v1012 = vunpack.c.l.b16 %v699
    %v1013 = vunpack.c.h.b16 %v699
    %v1014 = vunpack.c.l.b16 %v700
    %v1015 = vunpack.c.h.b16 %v700
    %v1016 = vunpack.c.l.b16 %v701
    %v1017 = vunpack.c.h.b16 %v701
    %v1018 = vunpack.c.l.b16 %v702
    %v1019 = vunpack.c.h.b16 %v702
    %v1020 = vunpack.c.l.b16 %v703
    %v1021 = vunpack.c.h.b16 %v703
    %v1022 = vunpack.c.l.b16 %v704
    %v1023 = vunpack.c.h.b16 %v704
    %v1024 = vunpack.c.l.b16 %v705
    %v1025 = vunpack.c.h.b16 %v705
    %v1026 = vpack.c.b16 %v840, %v834
    %v1027 = vpack.c.b16 %v841, %v835
    %v1028 = vpack.c.b16 %v842, %v836
    %v1029 = vpack.c.b16 %v843, %v837
    %v1030 = vpack.c.b16 %v844, %v838
    %v1031 = vpack.c.b16 %v845, %v839
    %v1032 = vpack.c.b16 %v852, %v846
    %v1033 = vpack.c.b16 %v853, %v847
    %v1034 = vpack.c.b16 %v854, %v848
    %v1035 = vpack.c.b16 %v855, %v849
    %v1036 = vpack.c.b16 %v856, %v850
    %v1037 = vpack.c.b16 %v857, %v851
    %v1038 = vpack.c.b16 %v864, %v858
    %v1039 = vpack.c.b16 %v865, %v859
    %v1040 = vpack.c.b16 %v866, %v860
    %v1041 = vpack.c.b16 %v867, %v861
    %v1042 = vpack.c.b16 %v868, %v862
    %v1043 = vpack.c.b16 %v869, %v863
    %v1044 = vpack.c.b16 %v876, %v870
    %v1045 = vpack.c.b16 %v877, %v871
    %v1046 = vpack.c.b16 %v878, %v872
    %v1047 = vpack.c.b16 %v879, %v873
    %v1048 = vpack.c.b16 %v880, %v874
    %v1049 = vpack.c.b16 %v881, %v875
    %v1050 = vpack.c.b16 %v888, %v882
    %v1051 = vpack.c.b16 %v889, %v883
    %v1052 = vpack.c.b16 %v890, %v884
    %v1053 = vpack.c.b16 %v891, %v885
    %v1054 = vpack.c.b16 %v892, %v886
    %v1055 = vpack.c.b16 %v893, %v887
    %v1056 = vpack.c.b16 %v900, %v894
    %v1057 = vpack.c.b16 %v901, %v895
    %v1058 = vpack.c.b16 %v902, %v896
    %v1059 = vpack.c.b16 %v903, %v897
    %v1060 = vpack.c.b16 %v904, %v898
    %v1061 = vpack.c.b16 %v905, %v899
    %v1062 = vpack.c.b16 %v912, %v906
    %v1063 = vpack.c.b16 %v913, %v907
    %v1064 = vpack.c.b16 %v914, %v908
    %v1065 = vpack.c.b16 %v915, %v909
    %v1066 = vpack.c.b16 %v916, %v910
    %v1067 = vpack.c.b16 %v917, %v911
    %v1068 = vpack.c.b16 %v924, %v918
    %v1069 = vpack.c.b16 %v925, %v919
    %v1070 = vpack.c.b16 %v926, %v920
    %v1071 = vpack.c.b16 %v927, %v921
    %v1072 = vpack.c.b16 %v928, %v922
    %v1073 = vpack.c.b16 %v929, %v923
    %v1074 = vpack.c.b16 %v936, %v930
    %v1075 = vpack.c.b16 %v937, %v931
    %v1076 = vpack.c.b16 %v938, %v932
    %v1077 = vpack.c.b16 %v939, %v933
    %v1078 = vpack.c.b16 %v940, %v934
    %v1079 = vpack.c.b16 %v941, %v935
    %v1080 = vpack.c.b16 %v948, %v942
    %v1081 = vpack.c.b16 %v949, %v943
    %v1082 = vpack.c.b16 %v950, %v944
    %v1083 = vpack.c.b16 %v951, %v945
    %v1084 = vpack.c.b16 %v952, %v946
    %v1085 = vpack.c.b16 %v953, %v947
    %v1086 = vpack.c.b16 %v960, %v954
    %v1087 = vpack.c.b16 %v961, %v955
    %v1088 = vpack.c.b16 %v962, %v956
    %v1089 = vpack.c.b16 %v963, %v957
    %v1090 = vpack.c.b16 %v964, %v958
    %v1091 = vpack.c.b16 %v965, %v959
    %v1092 = vpack.c.b16 %v972, %v966
    %v1093 = vpack.c.b16 %v973, %v967
    %v1094 = vpack.c.b16 %v974, %v968
    %v1095 = vpack.c.b16 %v975, %v969
    %v1096 = vpack.c.b16 %v976, %v970
    %v1097 = vpack.c.b16 %v977, %v971
    %v1098 = vpack.c.b16 %v984, %v978
    %v1099 = vpack.c.b16 %v985, %v979
    %v1100 = vpack.c.b16 %v986, %v980
    %v1101 = vpack.c.b16 %v987, %v981
    %v1102 = vpack.c.b16 %v988, %v982
    %v1103 = vpack.c.b16 %v989, %v983
    %v1104 = vpack.c.b16 %v996, %v990
    %v1105 = vpack.c.b16 %v997, %v991
    %v1106 = vpack.c.b16 %v998, %v992
    %v1107 = vpack.c.b16 %v999, %v993
    %v1108 = vpack.c.b16 %v1000, %v994
    %v1109 = vpack.c.b16 %v1001, %v995
    %v1110 = vpack.c.b16 %v1008, %v1002
    %v1111 = vpack.c.b16 %v1009, %v1003
    %v1112 = vpack.c.b16 %v1010, %v1004
    %v1113 = vpack.c.b16 %v1011, %v1005
    %v1114 = vpack.c.b16 %v1012, %v1006
    %v1115 = vpack.c.b16 %v1013, %v1007
    %v1116 = vpack.c.b16 %v1020, %v1014
    %v1117 = vpack.c.b16 %v1021, %v1015
    %v1118 = vpack.c.b16 %v1022, %v1016
    %v1119 = vpack.c.b16 %v1023, %v1017
    %v1120 = vpack.c.b16 %v1024, %v1018
    %v1121 = vpack.c.b16 %v1025, %v1019
    %1218 = vmatprep.subr.bf16.mxu0 %v1027
    %1219 = vmatpush1.bf16.msra.mxu0 %v1026
    %1220 = vmatprep.subr.bf16.mxu0 %v1033
    %1221 = vmatpush1.bf16.msra.mxu0 %v1032
    %1222 = vmatprep.subr.bf16.mxu0 %v1039
    %1223 = vmatpush1.bf16.msra.mxu0 %v1038
    %1224 = vmatprep.subr.bf16.mxu0 %v1045
    %1225 = vmatpush1.bf16.msra.mxu0 %v1044
    %1226 = vmatprep.subr.bf16.mxu0 %v1051
    %1227 = vmatpush1.bf16.msra.mxu0 %v1050
    %1228 = vmatprep.subr.bf16.mxu0 %v1057
    %1229 = vmatpush1.bf16.msra.mxu0 %v1056
    %1230 = vmatprep.subr.bf16.mxu0 %v1063
    %1231 = vmatpush1.bf16.msra.mxu0 %v1062
    %1232 = vmatprep.subr.bf16.mxu0 %v1069
    %1233 = vmatpush1.bf16.msra.mxu0 %v1068
    %1234 = vmatprep.subr.bf16.mxu0 %v1075
    %1235 = vmatpush1.bf16.msra.mxu0 %v1074
    %1236 = vmatprep.subr.bf16.mxu0 %v1081
    %1237 = vmatpush1.bf16.msra.mxu0 %v1080
    %1238 = vmatprep.subr.bf16.mxu0 %v1087
    %1239 = vmatpush1.bf16.msra.mxu0 %v1086
    %1240 = vmatprep.subr.bf16.mxu0 %v1093
    %1241 = vmatpush1.bf16.msra.mxu0 %v1092
    %1242 = vmatprep.subr.bf16.mxu0 %v1099
    %1243 = vmatpush1.bf16.msra.mxu0 %v1098
    %1244 = vmatprep.subr.bf16.mxu0 %v1105
    %1245 = vmatpush1.bf16.msra.mxu0 %v1104
    %1246 = vmatprep.subr.bf16.mxu0 %v1111
    %1247 = vmatpush1.bf16.msra.mxu0 %v1110
    %1248 = vmatprep.subr.bf16.mxu0 %v1117
    %1249 = vmatpush1.bf16.msra.mxu0 %v1116
    %1250 = vmatprep.mubr.bf16.mxu0 %v465
    %1251 = vmatmul.mubr.bf16.gmra.mrb[0].mxu0 %v464
    %v1252 = vpop.f32.mrb[0].mxu0
    %v1253 = vadd.f32 %v711, %v1252
    %v1254 = vpop.f32.mrb[0].mxu0
    %v1255 = vadd.f32 %v715, %v1254
    %v1256 = vpop.f32.mrb[0].mxu0
    %v1257 = vadd.f32 %v711, %v1256
    %v1258 = vpop.f32.mrb[0].mxu0
    %v1259 = vadd.f32 %v715, %v1258
    %1260 = vdwg.mxu0
    %1261 = vmatprep.subr.bf16.mxu0 %v1029
    %1262 = vmatpush1.bf16.msra.mxu0 %v1028
    %1263 = vmatprep.subr.bf16.mxu0 %v1035
    %1264 = vmatpush1.bf16.msra.mxu0 %v1034
    %1265 = vmatprep.subr.bf16.mxu0 %v1041
    %1266 = vmatpush1.bf16.msra.mxu0 %v1040
    %1267 = vmatprep.subr.bf16.mxu0 %v1047
    %1268 = vmatpush1.bf16.msra.mxu0 %v1046
    %1269 = vmatprep.subr.bf16.mxu0 %v1053
    %1270 = vmatpush1.bf16.msra.mxu0 %v1052
    %1271 = vmatprep.subr.bf16.mxu0 %v1059
    %1272 = vmatpush1.bf16.msra.mxu0 %v1058
    %1273 = vmatprep.subr.bf16.mxu0 %v1065
    %1274 = vmatpush1.bf16.msra.mxu0 %v1064
    %1275 = vmatprep.subr.bf16.mxu0 %v1071
    %1276 = vmatpush1.bf16.msra.mxu0 %v1070
    %1277 = vmatprep.subr.bf16.mxu0 %v1077
    %1278 = vmatpush1.bf16.msra.mxu0 %v1076
    %1279 = vmatprep.subr.bf16.mxu0 %v1083
    %1280 = vmatpush1.bf16.msra.mxu0 %v1082
    %1281 = vmatprep.subr.bf16.mxu0 %v1089
    %1282 = vmatpush1.bf16.msra.mxu0 %v1088
    %1283 = vmatprep.subr.bf16.mxu0 %v1095
    %1284 = vmatpush1.bf16.msra.mxu0 %v1094
    %1285 = vmatprep.subr.bf16.mxu0 %v1101
    %1286 = vmatpush1.bf16.msra.mxu0 %v1100
    %1287 = vmatprep.subr.bf16.mxu0 %v1107
    %1288 = vmatpush1.bf16.msra.mxu0 %v1106
    %1289 = vmatprep.subr.bf16.mxu0 %v1113
    %1290 = vmatpush1.bf16.msra.mxu0 %v1112
    %1291 = vmatprep.subr.bf16.mxu0 %v1119
    %1292 = vmatpush1.bf16.msra.mxu0 %v1118
    %1293 = vmatprep.mubr.bf16.mxu0 %v465
    %1294 = vmatmul.mubr.bf16.gmra.mrb[0].mxu0 %v464
    %v1295 = vpop.f32.mrb[0].mxu0
    %v1296 = vadd.f32 %v719, %v1295
    %v1297 = vpop.f32.mrb[0].mxu0
    %v1298 = vadd.f32 %v723, %v1297
    %v1299 = vpop.f32.mrb[0].mxu0
    %v1300 = vadd.f32 %v719, %v1299
    %v1301 = vpop.f32.mrb[0].mxu0
    %v1302 = vadd.f32 %v723, %v1301
    %1303 = vdwg.mxu0
    %1304 = vmatprep.subr.bf16.mxu0 %v1031
    %1305 = vmatpush1.bf16.msra.mxu0 %v1030
    %1306 = vmatprep.subr.bf16.mxu0 %v1037
    %1307 = vmatpush1.bf16.msra.mxu0 %v1036
    %1308 = vmatprep.subr.bf16.mxu0 %v1043
    %1309 = vmatpush1.bf16.msra.mxu0 %v1042
    %1310 = vmatprep.subr.bf16.mxu0 %v1049
    %1311 = vmatpush1.bf16.msra.mxu0 %v1048
    %1312 = vmatprep.subr.bf16.mxu0 %v1055
    %1313 = vmatpush1.bf16.msra.mxu0 %v1054
    %1314 = vmatprep.subr.bf16.mxu0 %v1061
    %1315 = vmatpush1.bf16.msra.mxu0 %v1060
    %1316 = vmatprep.subr.bf16.mxu0 %v1067
    %1317 = vmatpush1.bf16.msra.mxu0 %v1066
    %1318 = vmatprep.subr.bf16.mxu0 %v1073
    %1319 = vmatpush1.bf16.msra.mxu0 %v1072
    %1320 = vmatprep.subr.bf16.mxu0 %v1079
    %1321 = vmatpush1.bf16.msra.mxu0 %v1078
    %1322 = vmatprep.subr.bf16.mxu0 %v1085
    %1323 = vmatpush1.bf16.msra.mxu0 %v1084
    %1324 = vmatprep.subr.bf16.mxu0 %v1091
    %1325 = vmatpush1.bf16.msra.mxu0 %v1090
    %1326 = vmatprep.subr.bf16.mxu0 %v1097
    %1327 = vmatpush1.bf16.msra.mxu0 %v1096
    %1328 = vmatprep.subr.bf16.mxu0 %v1103
    %1329 = vmatpush1.bf16.msra.mxu0 %v1102
    %1330 = vmatprep.subr.bf16.mxu0 %v1109
    %1331 = vmatpush1.bf16.msra.mxu0 %v1108
    %1332 = vmatprep.subr.bf16.mxu0 %v1115
    %1333 = vmatpush1.bf16.msra.mxu0 %v1114
    %1334 = vmatprep.subr.bf16.mxu0 %v1121
    %1335 = vmatpush1.bf16.msra.mxu0 %v1120
    %1336 = vmatprep.mubr.bf16.mxu0 %v465
    %1337 = vmatmul.mubr.bf16.gmra.mrb[0].mxu0 %v464
    %v1338 = vpop.f32.mrb[0].mxu0
    %v1339 = vadd.f32 %v727, %v1338
    %v1340 = vpop.f32.mrb[0].mxu0
    %v1341 = vadd.f32 %v731, %v1340
    %v1342 = vpop.f32.mrb[0].mxu0
    %v1343 = vadd.f32 %v727, %v1342
    %v1344 = vpop.f32.mrb[0].mxu0
    %v1345 = vadd.f32 %v731, %v1344
    %1346 = vdwg.mxu0
    %v1347 = vlaneseq
    %v1348 = vshrl.u32 %v1347, 7
    %v1349 = vsub.s32 0, %v1348
    %v1350 = vrot.slane %v1253, %v1349
    %1352 = vbcast.lane.b32.xlu0 %v1350, 256
    %v1353 = vpop.permute.xlu0 %1352
    %s1355 = sor.u32 256, 8
    %1356 = vbcast.lane.b32.xlu0 %v1350, %s1355
    %v1357 = vpop.permute.xlu0 %1356
    %s1359 = sor.u32 256, 16
    %1360 = vbcast.lane.b32.xlu0 %v1350, %s1359
    %v1361 = vpop.permute.xlu0 %1360
    %s1363 = sor.u32 256, 24
    %1364 = vbcast.lane.b32.xlu0 %v1350, %s1363
    %v1365 = vpop.permute.xlu0 %1364
    %s1367 = sor.u32 256, 32
    %1368 = vbcast.lane.b32.xlu0 %v1350, %s1367
    %v1369 = vpop.permute.xlu0 %1368
    %s1371 = sor.u32 256, 40
    %1372 = vbcast.lane.b32.xlu0 %v1350, %s1371
    %v1373 = vpop.permute.xlu0 %1372
    %s1375 = sor.u32 256, 48
    %1376 = vbcast.lane.b32.xlu0 %v1350, %s1375
    %v1377 = vpop.permute.xlu0 %1376
    %s1379 = sor.u32 256, 56
    %1380 = vbcast.lane.b32.xlu0 %v1350, %s1379
    %v1381 = vpop.permute.xlu0 %1380
    %v1382 = vlaneseq
    %v1383 = vshrl.u32 %v1382, 7
    %v1384 = vsub.s32 1, %v1383
    %v1385 = vrot.slane %v1253, %v1384
    %1387 = vbcast.lane.b32.xlu0 %v1385, 256
    %v1388 = vpop.permute.xlu0 %1387
    %s1390 = sor.u32 256, 8
    %1391 = vbcast.lane.b32.xlu0 %v1385, %s1390
    %v1392 = vpop.permute.xlu0 %1391
    %s1394 = sor.u32 256, 16
    %1395 = vbcast.lane.b32.xlu0 %v1385, %s1394
    %v1396 = vpop.permute.xlu0 %1395
    %s1398 = sor.u32 256, 24
    %1399 = vbcast.lane.b32.xlu0 %v1385, %s1398
    %v1400 = vpop.permute.xlu0 %1399
    %s1402 = sor.u32 256, 32
    %1403 = vbcast.lane.b32.xlu0 %v1385, %s1402
    %v1404 = vpop.permute.xlu0 %1403
    %s1406 = sor.u32 256, 40
    %1407 = vbcast.lane.b32.xlu0 %v1385, %s1406
    %v1408 = vpop.permute.xlu0 %1407
    %s1410 = sor.u32 256, 48
    %1411 = vbcast.lane.b32.xlu0 %v1385, %s1410
    %v1412 = vpop.permute.xlu0 %1411
    %s1414 = sor.u32 256, 56
    %1415 = vbcast.lane.b32.xlu0 %v1385, %s1414
    %v1416 = vpop.permute.xlu0 %1415
    %v1417 = vlaneseq
    %v1418 = vshrl.u32 %v1417, 7
    %v1419 = vsub.s32 2, %v1418
    %v1420 = vrot.slane %v1253, %v1419
    %1422 = vbcast.lane.b32.xlu0 %v1420, 256
    %v1423 = vpop.permute.xlu0 %1422
    %s1425 = sor.u32 256, 8
    %1426 = vbcast.lane.b32.xlu0 %v1420, %s1425
    %v1427 = vpop.permute.xlu0 %1426
    %s1429 = sor.u32 256, 16
    %1430 = vbcast.lane.b32.xlu0 %v1420, %s1429
    %v1431 = vpop.permute.xlu0 %1430
    %s1433 = sor.u32 256, 24
    %1434 = vbcast.lane.b32.xlu0 %v1420, %s1433
    %v1435 = vpop.permute.xlu0 %1434
    %s1437 = sor.u32 256, 32
    %1438 = vbcast.lane.b32.xlu0 %v1420, %s1437
    %v1439 = vpop.permute.xlu0 %1438
    %s1441 = sor.u32 256, 40
    %1442 = vbcast.lane.b32.xlu0 %v1420, %s1441
    %v1443 = vpop.permute.xlu0 %1442
    %s1445 = sor.u32 256, 48
    %1446 = vbcast.lane.b32.xlu0 %v1420, %s1445
    %v1447 = vpop.permute.xlu0 %1446
    %s1449 = sor.u32 256, 56
    %1450 = vbcast.lane.b32.xlu0 %v1420, %s1449
    %v1451 = vpop.permute.xlu0 %1450
    %v1452 = vlaneseq
    %v1453 = vshrl.u32 %v1452, 7
    %v1454 = vsub.s32 3, %v1453
    %v1455 = vrot.slane %v1253, %v1454
    %1457 = vbcast.lane.b32.xlu0 %v1455, 256
    %v1458 = vpop.permute.xlu0 %1457
    %s1460 = sor.u32 256, 8
    %1461 = vbcast.lane.b32.xlu0 %v1455, %s1460
    %v1462 = vpop.permute.xlu0 %1461
    %s1464 = sor.u32 256, 16
    %1465 = vbcast.lane.b32.xlu0 %v1455, %s1464
    %v1466 = vpop.permute.xlu0 %1465
    %s1468 = sor.u32 256, 24
    %1469 = vbcast.lane.b32.xlu0 %v1455, %s1468
    %v1470 = vpop.permute.xlu0 %1469
    %s1472 = sor.u32 256, 32
    %1473 = vbcast.lane.b32.xlu0 %v1455, %s1472
    %v1474 = vpop.permute.xlu0 %1473
    %s1476 = sor.u32 256, 40
    %1477 = vbcast.lane.b32.xlu0 %v1455, %s1476
    %v1478 = vpop.permute.xlu0 %1477
    %s1480 = sor.u32 256, 48
    %1481 = vbcast.lane.b32.xlu0 %v1455, %s1480
    %v1482 = vpop.permute.xlu0 %1481
    %s1484 = sor.u32 256, 56
    %1485 = vbcast.lane.b32.xlu0 %v1455, %s1484
    %v1486 = vpop.permute.xlu0 %1485
    %v1487 = vlaneseq
    %v1488 = vshrl.u32 %v1487, 7
    %v1489 = vsub.s32 4, %v1488
    %v1490 = vrot.slane %v1253, %v1489
    %1492 = vbcast.lane.b32.xlu0 %v1490, 256
    %v1493 = vpop.permute.xlu0 %1492
    %s1495 = sor.u32 256, 8
    %1496 = vbcast.lane.b32.xlu0 %v1490, %s1495
    %v1497 = vpop.permute.xlu0 %1496
    %s1499 = sor.u32 256, 16
    %1500 = vbcast.lane.b32.xlu0 %v1490, %s1499
    %v1501 = vpop.permute.xlu0 %1500
    %s1503 = sor.u32 256, 24
    %1504 = vbcast.lane.b32.xlu0 %v1490, %s1503
    %v1505 = vpop.permute.xlu0 %1504
    %s1507 = sor.u32 256, 32
    %1508 = vbcast.lane.b32.xlu0 %v1490, %s1507
    %v1509 = vpop.permute.xlu0 %1508
    %s1511 = sor.u32 256, 40
    %1512 = vbcast.lane.b32.xlu0 %v1490, %s1511
    %v1513 = vpop.permute.xlu0 %1512
    %s1515 = sor.u32 256, 48
    %1516 = vbcast.lane.b32.xlu0 %v1490, %s1515
    %v1517 = vpop.permute.xlu0 %1516
    %s1519 = sor.u32 256, 56
    %1520 = vbcast.lane.b32.xlu0 %v1490, %s1519
    %v1521 = vpop.permute.xlu0 %1520
    %v1522 = vlaneseq
    %v1523 = vshrl.u32 %v1522, 7
    %v1524 = vsub.s32 5, %v1523
    %v1525 = vrot.slane %v1253, %v1524
    %1527 = vbcast.lane.b32.xlu0 %v1525, 256
    %v1528 = vpop.permute.xlu0 %1527
    %s1530 = sor.u32 256, 8
    %1531 = vbcast.lane.b32.xlu0 %v1525, %s1530
    %v1532 = vpop.permute.xlu0 %1531
    %s1534 = sor.u32 256, 16
    %1535 = vbcast.lane.b32.xlu0 %v1525, %s1534
    %v1536 = vpop.permute.xlu0 %1535
    %s1538 = sor.u32 256, 24
    %1539 = vbcast.lane.b32.xlu0 %v1525, %s1538
    %v1540 = vpop.permute.xlu0 %1539
    %s1542 = sor.u32 256, 32
    %1543 = vbcast.lane.b32.xlu0 %v1525, %s1542
    %v1544 = vpop.permute.xlu0 %1543
    %s1546 = sor.u32 256, 40
    %1547 = vbcast.lane.b32.xlu0 %v1525, %s1546
    %v1548 = vpop.permute.xlu0 %1547
    %s1550 = sor.u32 256, 48
    %1551 = vbcast.lane.b32.xlu0 %v1525, %s1550
    %v1552 = vpop.permute.xlu0 %1551
    %s1554 = sor.u32 256, 56
    %1555 = vbcast.lane.b32.xlu0 %v1525, %s1554
    %v1556 = vpop.permute.xlu0 %1555
    %v1557 = vlaneseq
    %v1558 = vshrl.u32 %v1557, 7
    %v1559 = vsub.s32 6, %v1558
    %v1560 = vrot.slane %v1253, %v1559
    %1562 = vbcast.lane.b32.xlu0 %v1560, 256
    %v1563 = vpop.permute.xlu0 %1562
    %s1565 = sor.u32 256, 8
    %1566 = vbcast.lane.b32.xlu0 %v1560, %s1565
    %v1567 = vpop.permute.xlu0 %1566
    %s1569 = sor.u32 256, 16
    %1570 = vbcast.lane.b32.xlu0 %v1560, %s1569
    %v1571 = vpop.permute.xlu0 %1570
    %s1573 = sor.u32 256, 24
    %1574 = vbcast.lane.b32.xlu0 %v1560, %s1573
    %v1575 = vpop.permute.xlu0 %1574
    %s1577 = sor.u32 256, 32
    %1578 = vbcast.lane.b32.xlu0 %v1560, %s1577
    %v1579 = vpop.permute.xlu0 %1578
    %s1581 = sor.u32 256, 40
    %1582 = vbcast.lane.b32.xlu0 %v1560, %s1581
    %v1583 = vpop.permute.xlu0 %1582
    %s1585 = sor.u32 256, 48
    %1586 = vbcast.lane.b32.xlu0 %v1560, %s1585
    %v1587 = vpop.permute.xlu0 %1586
    %s1589 = sor.u32 256, 56
    %1590 = vbcast.lane.b32.xlu0 %v1560, %s1589
    %v1591 = vpop.permute.xlu0 %1590
    %v1592 = vlaneseq
    %v1593 = vshrl.u32 %v1592, 7
    %v1594 = vsub.s32 7, %v1593
    %v1595 = vrot.slane %v1253, %v1594
    %1597 = vbcast.lane.b32.xlu0 %v1595, 256
    %v1598 = vpop.permute.xlu0 %1597
    %s1600 = sor.u32 256, 8
    %1601 = vbcast.lane.b32.xlu0 %v1595, %s1600
    %v1602 = vpop.permute.xlu0 %1601
    %s1604 = sor.u32 256, 16
    %1605 = vbcast.lane.b32.xlu0 %v1595, %s1604
    %v1606 = vpop.permute.xlu0 %1605
    %s1608 = sor.u32 256, 24
    %1609 = vbcast.lane.b32.xlu0 %v1595, %s1608
    %v1610 = vpop.permute.xlu0 %1609
    %s1612 = sor.u32 256, 32
    %1613 = vbcast.lane.b32.xlu0 %v1595, %s1612
    %v1614 = vpop.permute.xlu0 %1613
    %s1616 = sor.u32 256, 40
    %1617 = vbcast.lane.b32.xlu0 %v1595, %s1616
    %v1618 = vpop.permute.xlu0 %1617
    %s1620 = sor.u32 256, 48
    %1621 = vbcast.lane.b32.xlu0 %v1595, %s1620
    %v1622 = vpop.permute.xlu0 %1621
    %s1624 = sor.u32 256, 56
    %1625 = vbcast.lane.b32.xlu0 %v1595, %s1624
    %v1626 = vpop.permute.xlu0 %1625
    %v1627 = vlaneseq
    %v1628 = vshrl.u32 %v1627, 7
    %v1629 = vsub.s32 0, %v1628
    %v1630 = vrot.slane %v1257, %v1629
    %1632 = vbcast.lane.b32.xlu0 %v1630, 256
    %v1633 = vpop.permute.xlu0 %1632
    %s1635 = sor.u32 256, 8
    %1636 = vbcast.lane.b32.xlu0 %v1630, %s1635
    %v1637 = vpop.permute.xlu0 %1636
    %s1639 = sor.u32 256, 16
    %1640 = vbcast.lane.b32.xlu0 %v1630, %s1639
    %v1641 = vpop.permute.xlu0 %1640
    %s1643 = sor.u32 256, 24
    %1644 = vbcast.lane.b32.xlu0 %v1630, %s1643
    %v1645 = vpop.permute.xlu0 %1644
    %s1647 = sor.u32 256, 32
    %1648 = vbcast.lane.b32.xlu0 %v1630, %s1647
    %v1649 = vpop.permute.xlu0 %1648
    %s1651 = sor.u32 256, 40
    %1652 = vbcast.lane.b32.xlu0 %v1630, %s1651
    %v1653 = vpop.permute.xlu0 %1652
    %s1655 = sor.u32 256, 48
    %1656 = vbcast.lane.b32.xlu0 %v1630, %s1655
    %v1657 = vpop.permute.xlu0 %1656
    %s1659 = sor.u32 256, 56
    %1660 = vbcast.lane.b32.xlu0 %v1630, %s1659
    %v1661 = vpop.permute.xlu0 %1660
    %v1662 = vlaneseq
    %v1663 = vshrl.u32 %v1662, 7
    %v1664 = vsub.s32 1, %v1663
    %v1665 = vrot.slane %v1257, %v1664
    %1667 = vbcast.lane.b32.xlu0 %v1665, 256
    %v1668 = vpop.permute.xlu0 %1667
    %s1670 = sor.u32 256, 8
    %1671 = vbcast.lane.b32.xlu0 %v1665, %s1670
    %v1672 = vpop.permute.xlu0 %1671
    %s1674 = sor.u32 256, 16
    %1675 = vbcast.lane.b32.xlu0 %v1665, %s1674
    %v1676 = vpop.permute.xlu0 %1675
    %s1678 = sor.u32 256, 24
    %1679 = vbcast.lane.b32.xlu0 %v1665, %s1678
    %v1680 = vpop.permute.xlu0 %1679
    %s1682 = sor.u32 256, 32
    %1683 = vbcast.lane.b32.xlu0 %v1665, %s1682
    %v1684 = vpop.permute.xlu0 %1683
    %s1686 = sor.u32 256, 40
    %1687 = vbcast.lane.b32.xlu0 %v1665, %s1686
    %v1688 = vpop.permute.xlu0 %1687
    %s1690 = sor.u32 256, 48
    %1691 = vbcast.lane.b32.xlu0 %v1665, %s1690
    %v1692 = vpop.permute.xlu0 %1691
    %s1694 = sor.u32 256, 56
    %1695 = vbcast.lane.b32.xlu0 %v1665, %s1694
    %v1696 = vpop.permute.xlu0 %1695
    %v1697 = vlaneseq
    %v1698 = vshrl.u32 %v1697, 7
    %v1699 = vsub.s32 2, %v1698
    %v1700 = vrot.slane %v1257, %v1699
    %1702 = vbcast.lane.b32.xlu0 %v1700, 256
    %v1703 = vpop.permute.xlu0 %1702
    %s1705 = sor.u32 256, 8
    %1706 = vbcast.lane.b32.xlu0 %v1700, %s1705
    %v1707 = vpop.permute.xlu0 %1706
    %s1709 = sor.u32 256, 16
    %1710 = vbcast.lane.b32.xlu0 %v1700, %s1709
    %v1711 = vpop.permute.xlu0 %1710
    %s1713 = sor.u32 256, 24
    %1714 = vbcast.lane.b32.xlu0 %v1700, %s1713
    %v1715 = vpop.permute.xlu0 %1714
    %s1717 = sor.u32 256, 32
    %1718 = vbcast.lane.b32.xlu0 %v1700, %s1717
    %v1719 = vpop.permute.xlu0 %1718
    %s1721 = sor.u32 256, 40
    %1722 = vbcast.lane.b32.xlu0 %v1700, %s1721
    %v1723 = vpop.permute.xlu0 %1722
    %s1725 = sor.u32 256, 48
    %1726 = vbcast.lane.b32.xlu0 %v1700, %s1725
    %v1727 = vpop.permute.xlu0 %1726
    %s1729 = sor.u32 256, 56
    %1730 = vbcast.lane.b32.xlu0 %v1700, %s1729
    %v1731 = vpop.permute.xlu0 %1730
    %v1732 = vlaneseq
    %v1733 = vshrl.u32 %v1732, 7
    %v1734 = vsub.s32 3, %v1733
    %v1735 = vrot.slane %v1257, %v1734
    %1737 = vbcast.lane.b32.xlu0 %v1735, 256
    %v1738 = vpop.permute.xlu0 %1737
    %s1740 = sor.u32 256, 8
    %1741 = vbcast.lane.b32.xlu0 %v1735, %s1740
    %v1742 = vpop.permute.xlu0 %1741
    %s1744 = sor.u32 256, 16
    %1745 = vbcast.lane.b32.xlu0 %v1735, %s1744
    %v1746 = vpop.permute.xlu0 %1745
    %s1748 = sor.u32 256, 24
    %1749 = vbcast.lane.b32.xlu0 %v1735, %s1748
    %v1750 = vpop.permute.xlu0 %1749
    %s1752 = sor.u32 256, 32
    %1753 = vbcast.lane.b32.xlu0 %v1735, %s1752
    %v1754 = vpop.permute.xlu0 %1753
    %s1756 = sor.u32 256, 40
    %1757 = vbcast.lane.b32.xlu0 %v1735, %s1756
    %v1758 = vpop.permute.xlu0 %1757
    %s1760 = sor.u32 256, 48
    %1761 = vbcast.lane.b32.xlu0 %v1735, %s1760
    %v1762 = vpop.permute.xlu0 %1761
    %s1764 = sor.u32 256, 56
    %1765 = vbcast.lane.b32.xlu0 %v1735, %s1764
    %v1766 = vpop.permute.xlu0 %1765
    %v1767 = vlaneseq
    %v1768 = vshrl.u32 %v1767, 7
    %v1769 = vsub.s32 4, %v1768
    %v1770 = vrot.slane %v1257, %v1769
    %1772 = vbcast.lane.b32.xlu0 %v1770, 256
    %v1773 = vpop.permute.xlu0 %1772
    %s1775 = sor.u32 256, 8
    %1776 = vbcast.lane.b32.xlu0 %v1770, %s1775
    %v1777 = vpop.permute.xlu0 %1776
    %s1779 = sor.u32 256, 16
    %1780 = vbcast.lane.b32.xlu0 %v1770, %s1779
    %v1781 = vpop.permute.xlu0 %1780
    %s1783 = sor.u32 256, 24
    %1784 = vbcast.lane.b32.xlu0 %v1770, %s1783
    %v1785 = vpop.permute.xlu0 %1784
    %s1787 = sor.u32 256, 32
    %1788 = vbcast.lane.b32.xlu0 %v1770, %s1787
    %v1789 = vpop.permute.xlu0 %1788
    %s1791 = sor.u32 256, 40
    %1792 = vbcast.lane.b32.xlu0 %v1770, %s1791
    %v1793 = vpop.permute.xlu0 %1792
    %s1795 = sor.u32 256, 48
    %1796 = vbcast.lane.b32.xlu0 %v1770, %s1795
    %v1797 = vpop.permute.xlu0 %1796
    %s1799 = sor.u32 256, 56
    %1800 = vbcast.lane.b32.xlu0 %v1770, %s1799
    %v1801 = vpop.permute.xlu0 %1800
    %v1802 = vlaneseq
    %v1803 = vshrl.u32 %v1802, 7
    %v1804 = vsub.s32 5, %v1803
    %v1805 = vrot.slane %v1257, %v1804
    %1807 = vbcast.lane.b32.xlu0 %v1805, 256
    %v1808 = vpop.permute.xlu0 %1807
    %s1810 = sor.u32 256, 8
    %1811 = vbcast.lane.b32.xlu0 %v1805, %s1810
    %v1812 = vpop.permute.xlu0 %1811
    %s1814 = sor.u32 256, 16
    %1815 = vbcast.lane.b32.xlu0 %v1805, %s1814
    %v1816 = vpop.permute.xlu0 %1815
    %s1818 = sor.u32 256, 24
    %1819 = vbcast.lane.b32.xlu0 %v1805, %s1818
    %v1820 = vpop.permute.xlu0 %1819
    %s1822 = sor.u32 256, 32
    %1823 = vbcast.lane.b32.xlu0 %v1805, %s1822
    %v1824 = vpop.permute.xlu0 %1823
    %s1826 = sor.u32 256, 40
    %1827 = vbcast.lane.b32.xlu0 %v1805, %s1826
    %v1828 = vpop.permute.xlu0 %1827
    %s1830 = sor.u32 256, 48
    %1831 = vbcast.lane.b32.xlu0 %v1805, %s1830
    %v1832 = vpop.permute.xlu0 %1831
    %s1834 = sor.u32 256, 56
    %1835 = vbcast.lane.b32.xlu0 %v1805, %s1834
    %v1836 = vpop.permute.xlu0 %1835
    %v1837 = vlaneseq
    %v1838 = vshrl.u32 %v1837, 7
    %v1839 = vsub.s32 6, %v1838
    %v1840 = vrot.slane %v1257, %v1839
    %1842 = vbcast.lane.b32.xlu0 %v1840, 256
    %v1843 = vpop.permute.xlu0 %1842
    %s1845 = sor.u32 256, 8
    %1846 = vbcast.lane.b32.xlu0 %v1840, %s1845
    %v1847 = vpop.permute.xlu0 %1846
    %s1849 = sor.u32 256, 16
    %1850 = vbcast.lane.b32.xlu0 %v1840, %s1849
    %v1851 = vpop.permute.xlu0 %1850
    %s1853 = sor.u32 256, 24
    %1854 = vbcast.lane.b32.xlu0 %v1840, %s1853
    %v1855 = vpop.permute.xlu0 %1854
    %s1857 = sor.u32 256, 32
    %1858 = vbcast.lane.b32.xlu0 %v1840, %s1857
    %v1859 = vpop.permute.xlu0 %1858
    %s1861 = sor.u32 256, 40
    %1862 = vbcast.lane.b32.xlu0 %v1840, %s1861
    %v1863 = vpop.permute.xlu0 %1862
    %s1865 = sor.u32 256, 48
    %1866 = vbcast.lane.b32.xlu0 %v1840, %s1865
    %v1867 = vpop.permute.xlu0 %1866
    %s1869 = sor.u32 256, 56
    %1870 = vbcast.lane.b32.xlu0 %v1840, %s1869
    %v1871 = vpop.permute.xlu0 %1870
    %v1872 = vlaneseq
    %v1873 = vshrl.u32 %v1872, 7
    %v1874 = vsub.s32 7, %v1873
    %v1875 = vrot.slane %v1257, %v1874
    %1877 = vbcast.lane.b32.xlu0 %v1875, 256
    %v1878 = vpop.permute.xlu0 %1877
    %s1880 = sor.u32 256, 8
    %1881 = vbcast.lane.b32.xlu0 %v1875, %s1880
    %v1882 = vpop.permute.xlu0 %1881
    %s1884 = sor.u32 256, 16
    %1885 = vbcast.lane.b32.xlu0 %v1875, %s1884
    %v1886 = vpop.permute.xlu0 %1885
    %s1888 = sor.u32 256, 24
    %1889 = vbcast.lane.b32.xlu0 %v1875, %s1888
    %v1890 = vpop.permute.xlu0 %1889
    %s1892 = sor.u32 256, 32
    %1893 = vbcast.lane.b32.xlu0 %v1875, %s1892
    %v1894 = vpop.permute.xlu0 %1893
    %s1896 = sor.u32 256, 40
    %1897 = vbcast.lane.b32.xlu0 %v1875, %s1896
    %v1898 = vpop.permute.xlu0 %1897
    %s1900 = sor.u32 256, 48
    %1901 = vbcast.lane.b32.xlu0 %v1875, %s1900
    %v1902 = vpop.permute.xlu0 %1901
    %s1904 = sor.u32 256, 56
    %1905 = vbcast.lane.b32.xlu0 %v1875, %s1904
    %v1906 = vpop.permute.xlu0 %1905
    %v1909 = vcombine.high %v1296, %v1296
    %v1911 = vunpack.c.l.s4 1966171168
    %v1912 = vunpack.c.0.s8 %v1911
    %v1913 = vlaneseq
    %v1914 = vshrl.u32 %v1913, 7
    %v1915 = vsub.s32 %v1912, %v1914
    %v1916 = vrot.slane %v1296, %v1915
    %v1918 = vunpack.c.l.s4 1966171168
    %v1919 = vunpack.c.0.s8 %v1918
    %v1920 = vlaneseq
    %v1921 = vshrl.u32 %v1920, 7
    %v1922 = vsub.s32 %v1919, %v1921
    %v1923 = vrot.slane %v1909, %v1922
    %v1924 = vcombine.high %v1916, %v1916
    %v1925 = vcombine.high %v1923, %v1923
    %v1927 = vunpack.c.l.s4 1966171168
    %v1928 = vunpack.c.0.s8 %v1927
    %v1929 = vlaneseq
    %v1930 = vshrl.u32 %v1929, 7
    %v1931 = vsub.s32 %v1928, %v1930
    %v1932 = vrot.slane %v1916, %v1931
    %v1934 = vunpack.c.l.s4 1966171168
    %v1935 = vunpack.c.0.s8 %v1934
    %v1936 = vlaneseq
    %v1937 = vshrl.u32 %v1936, 7
    %v1938 = vsub.s32 %v1935, %v1937
    %v1939 = vrot.slane %v1923, %v1938
    %v1941 = vunpack.c.l.s4 1966171168
    %v1942 = vunpack.c.0.s8 %v1941
    %v1943 = vlaneseq
    %v1944 = vshrl.u32 %v1943, 7
    %v1945 = vsub.s32 %v1942, %v1944
    %v1946 = vrot.slane %v1924, %v1945
    %v1948 = vunpack.c.l.s4 1966171168
    %v1949 = vunpack.c.0.s8 %v1948
    %v1950 = vlaneseq
    %v1951 = vshrl.u32 %v1950, 7
    %v1952 = vsub.s32 %v1949, %v1951
    %v1953 = vrot.slane %v1925, %v1952
    %v1954 = vcombine.high %v1932, %v1932
    %v1955 = vcombine.high %v1939, %v1939
    %v1956 = vcombine.high %v1946, %v1946
    %v1957 = vcombine.high %v1953, %v1953
    %v1958 = vcombine.high %v1300, %v1300
    %v1960 = vunpack.c.l.s4 1966171168
    %v1961 = vunpack.c.0.s8 %v1960
    %v1962 = vlaneseq
    %v1963 = vshrl.u32 %v1962, 7
    %v1964 = vsub.s32 %v1961, %v1963
    %v1965 = vrot.slane %v1300, %v1964
    %v1967 = vunpack.c.l.s4 1966171168
    %v1968 = vunpack.c.0.s8 %v1967
    %v1969 = vlaneseq
    %v1970 = vshrl.u32 %v1969, 7
    %v1971 = vsub.s32 %v1968, %v1970
    %v1972 = vrot.slane %v1958, %v1971
    %v1973 = vcombine.high %v1965, %v1965
    %v1974 = vcombine.high %v1972, %v1972
    %v1976 = vunpack.c.l.s4 1966171168
    %v1977 = vunpack.c.0.s8 %v1976
    %v1978 = vlaneseq
    %v1979 = vshrl.u32 %v1978, 7
    %v1980 = vsub.s32 %v1977, %v1979
    %v1981 = vrot.slane %v1965, %v1980
    %v1983 = vunpack.c.l.s4 1966171168
    %v1984 = vunpack.c.0.s8 %v1983
    %v1985 = vlaneseq
    %v1986 = vshrl.u32 %v1985, 7
    %v1987 = vsub.s32 %v1984, %v1986
    %v1988 = vrot.slane %v1972, %v1987
    %v1990 = vunpack.c.l.s4 1966171168
    %v1991 = vunpack.c.0.s8 %v1990
    %v1992 = vlaneseq
    %v1993 = vshrl.u32 %v1992, 7
    %v1994 = vsub.s32 %v1991, %v1993
    %v1995 = vrot.slane %v1973, %v1994
    %v1997 = vunpack.c.l.s4 1966171168
    %v1998 = vunpack.c.0.s8 %v1997
    %v1999 = vlaneseq
    %v2000 = vshrl.u32 %v1999, 7
    %v2001 = vsub.s32 %v1998, %v2000
    %v2002 = vrot.slane %v1974, %v2001
    %v2003 = vcombine.high %v1981, %v1981
    %v2004 = vcombine.high %v1988, %v1988
    %v2005 = vcombine.high %v1995, %v1995
    %v2006 = vcombine.high %v2002, %v2002
    %v2007 = vlaneseq
    %v2008 = vshrl.u32 %v2007, 7
    %v2009 = vsub.s32 0, %v2008
    %v2010 = vrot.slane %v1932, %v2009
    %v2011 = vlaneseq
    %v2012 = vshrl.u32 %v2011, 7
    %v2013 = vsub.s32 0, %v2012
    %v2014 = vrot.slane %v1946, %v2013
    %v2015 = vlaneseq
    %v2016 = vshrl.u32 %v2015, 7
    %v2017 = vsub.s32 0, %v2016
    %v2018 = vrot.slane %v1954, %v2017
    %v2019 = vlaneseq
    %v2020 = vshrl.u32 %v2019, 7
    %v2021 = vsub.s32 0, %v2020
    %v2022 = vrot.slane %v1956, %v2021
    %v2023 = vlaneseq
    %v2024 = vshrl.u32 %v2023, 7
    %v2025 = vsub.s32 0, %v2024
    %v2026 = vrot.slane %v1939, %v2025
    %v2027 = vlaneseq
    %v2028 = vshrl.u32 %v2027, 7
    %v2029 = vsub.s32 0, %v2028
    %v2030 = vrot.slane %v1953, %v2029
    %v2031 = vlaneseq
    %v2032 = vshrl.u32 %v2031, 7
    %v2033 = vsub.s32 0, %v2032
    %v2034 = vrot.slane %v1955, %v2033
    %v2035 = vlaneseq
    %v2036 = vshrl.u32 %v2035, 7
    %v2037 = vsub.s32 0, %v2036
    %v2038 = vrot.slane %v1957, %v2037
    %v2039 = vlaneseq
    %v2040 = vshrl.u32 %v2039, 7
    %v2041 = vsub.s32 0, %v2040
    %v2042 = vrot.slane %v1981, %v2041
    %v2043 = vlaneseq
    %v2044 = vshrl.u32 %v2043, 7
    %v2045 = vsub.s32 0, %v2044
    %v2046 = vrot.slane %v1995, %v2045
    %v2047 = vlaneseq
    %v2048 = vshrl.u32 %v2047, 7
    %v2049 = vsub.s32 0, %v2048
    %v2050 = vrot.slane %v2003, %v2049
    %v2051 = vlaneseq
    %v2052 = vshrl.u32 %v2051, 7
    %v2053 = vsub.s32 0, %v2052
    %v2054 = vrot.slane %v2005, %v2053
    %v2055 = vlaneseq
    %v2056 = vshrl.u32 %v2055, 7
    %v2057 = vsub.s32 0, %v2056
    %v2058 = vrot.slane %v1988, %v2057
    %v2059 = vlaneseq
    %v2060 = vshrl.u32 %v2059, 7
    %v2061 = vsub.s32 0, %v2060
    %v2062 = vrot.slane %v2002, %v2061
    %v2063 = vlaneseq
    %v2064 = vshrl.u32 %v2063, 7
    %v2065 = vsub.s32 0, %v2064
    %v2066 = vrot.slane %v2004, %v2065
    %v2067 = vlaneseq
    %v2068 = vshrl.u32 %v2067, 7
    %v2069 = vsub.s32 0, %v2068
    %v2070 = vrot.slane %v2006, %v2069
    %v2087 = vmul.f32 %v1353, %v2010
    %v2088 = vmul.f32 %v1357, %v2010
    %v2089 = vmul.f32 %v1361, %v2010
    %v2090 = vmul.f32 %v1365, %v2010
    %v2091 = vmul.f32 %v1369, %v2010
    %v2092 = vmul.f32 %v1373, %v2010
    %v2093 = vmul.f32 %v1377, %v2010
    %v2094 = vmul.f32 %v1381, %v2010
    %v2095 = vmul.f32 %v1388, %v2014
    %v2096 = vmul.f32 %v1392, %v2014
    %v2097 = vmul.f32 %v1396, %v2014
    %v2098 = vmul.f32 %v1400, %v2014
    %v2099 = vmul.f32 %v1404, %v2014
    %v2100 = vmul.f32 %v1408, %v2014
    %v2101 = vmul.f32 %v1412, %v2014
    %v2102 = vmul.f32 %v1416, %v2014
    %v2103 = vmul.f32 %v1423, %v2018
    %v2104 = vmul.f32 %v1427, %v2018
    %v2105 = vmul.f32 %v1431, %v2018
    %v2106 = vmul.f32 %v1435, %v2018
    %v2107 = vmul.f32 %v1439, %v2018
    %v2108 = vmul.f32 %v1443, %v2018
    %v2109 = vmul.f32 %v1447, %v2018
    %v2110 = vmul.f32 %v1451, %v2018
    %v2111 = vmul.f32 %v1458, %v2022
    %v2112 = vmul.f32 %v1462, %v2022
    %v2113 = vmul.f32 %v1466, %v2022
    %v2114 = vmul.f32 %v1470, %v2022
    %v2115 = vmul.f32 %v1474, %v2022
    %v2116 = vmul.f32 %v1478, %v2022
    %v2117 = vmul.f32 %v1482, %v2022
    %v2118 = vmul.f32 %v1486, %v2022
    %v2119 = vmul.f32 %v1493, %v2026
    %v2120 = vmul.f32 %v1497, %v2026
    %v2121 = vmul.f32 %v1501, %v2026
    %v2122 = vmul.f32 %v1505, %v2026
    %v2123 = vmul.f32 %v1509, %v2026
    %v2124 = vmul.f32 %v1513, %v2026
    %v2125 = vmul.f32 %v1517, %v2026
    %v2126 = vmul.f32 %v1521, %v2026
    %v2127 = vmul.f32 %v1528, %v2030
    %v2128 = vmul.f32 %v1532, %v2030
    %v2129 = vmul.f32 %v1536, %v2030
    %v2130 = vmul.f32 %v1540, %v2030
    %v2131 = vmul.f32 %v1544, %v2030
    %v2132 = vmul.f32 %v1548, %v2030
    %v2133 = vmul.f32 %v1552, %v2030
    %v2134 = vmul.f32 %v1556, %v2030
    %v2135 = vmul.f32 %v1563, %v2034
    %v2136 = vmul.f32 %v1567, %v2034
    %v2137 = vmul.f32 %v1571, %v2034
    %v2138 = vmul.f32 %v1575, %v2034
    %v2139 = vmul.f32 %v1579, %v2034
    %v2140 = vmul.f32 %v1583, %v2034
    %v2141 = vmul.f32 %v1587, %v2034
    %v2142 = vmul.f32 %v1591, %v2034
    %v2143 = vmul.f32 %v1598, %v2038
    %v2144 = vmul.f32 %v1602, %v2038
    %v2145 = vmul.f32 %v1606, %v2038
    %v2146 = vmul.f32 %v1610, %v2038
    %v2147 = vmul.f32 %v1614, %v2038
    %v2148 = vmul.f32 %v1618, %v2038
    %v2149 = vmul.f32 %v1622, %v2038
    %v2150 = vmul.f32 %v1626, %v2038
    %v2151 = vmul.f32 %v1633, %v2042
    %v2152 = vmul.f32 %v1637, %v2042
    %v2153 = vmul.f32 %v1641, %v2042
    %v2154 = vmul.f32 %v1645, %v2042
    %v2155 = vmul.f32 %v1649, %v2042
    %v2156 = vmul.f32 %v1653, %v2042
    %v2157 = vmul.f32 %v1657, %v2042
    %v2158 = vmul.f32 %v1661, %v2042
    %v2159 = vmul.f32 %v1668, %v2046
    %v2160 = vmul.f32 %v1672, %v2046
    %v2161 = vmul.f32 %v1676, %v2046
    %v2162 = vmul.f32 %v1680, %v2046
    %v2163 = vmul.f32 %v1684, %v2046
    %v2164 = vmul.f32 %v1688, %v2046
    %v2165 = vmul.f32 %v1692, %v2046
    %v2166 = vmul.f32 %v1696, %v2046
    %v2167 = vmul.f32 %v1703, %v2050
    %v2168 = vmul.f32 %v1707, %v2050
    %v2169 = vmul.f32 %v1711, %v2050
    %v2170 = vmul.f32 %v1715, %v2050
    %v2171 = vmul.f32 %v1719, %v2050
    %v2172 = vmul.f32 %v1723, %v2050
    %v2173 = vmul.f32 %v1727, %v2050
    %v2174 = vmul.f32 %v1731, %v2050
    %v2175 = vmul.f32 %v1738, %v2054
    %v2176 = vmul.f32 %v1742, %v2054
    %v2177 = vmul.f32 %v1746, %v2054
    %v2178 = vmul.f32 %v1750, %v2054
    %v2179 = vmul.f32 %v1754, %v2054
    %v2180 = vmul.f32 %v1758, %v2054
    %v2181 = vmul.f32 %v1762, %v2054
    %v2182 = vmul.f32 %v1766, %v2054
    %v2183 = vmul.f32 %v1773, %v2058
    %v2184 = vmul.f32 %v1777, %v2058
    %v2185 = vmul.f32 %v1781, %v2058
    %v2186 = vmul.f32 %v1785, %v2058
    %v2187 = vmul.f32 %v1789, %v2058
    %v2188 = vmul.f32 %v1793, %v2058
    %v2189 = vmul.f32 %v1797, %v2058
    %v2190 = vmul.f32 %v1801, %v2058
    %v2191 = vmul.f32 %v1808, %v2062
    %v2192 = vmul.f32 %v1812, %v2062
    %v2193 = vmul.f32 %v1816, %v2062
    %v2194 = vmul.f32 %v1820, %v2062
    %v2195 = vmul.f32 %v1824, %v2062
    %v2196 = vmul.f32 %v1828, %v2062
    %v2197 = vmul.f32 %v1832, %v2062
    %v2198 = vmul.f32 %v1836, %v2062
    %v2199 = vmul.f32 %v1843, %v2066
    %v2200 = vmul.f32 %v1847, %v2066
    %v2201 = vmul.f32 %v1851, %v2066
    %v2202 = vmul.f32 %v1855, %v2066
    %v2203 = vmul.f32 %v1859, %v2066
    %v2204 = vmul.f32 %v1863, %v2066
    %v2205 = vmul.f32 %v1867, %v2066
    %v2206 = vmul.f32 %v1871, %v2066
    %v2207 = vmul.f32 %v1878, %v2070
    %v2208 = vmul.f32 %v1882, %v2070
    %v2209 = vmul.f32 %v1886, %v2070
    %v2210 = vmul.f32 %v1890, %v2070
    %v2211 = vmul.f32 %v1894, %v2070
    %v2212 = vmul.f32 %v1898, %v2070
    %v2213 = vmul.f32 %v1902, %v2070
    %v2214 = vmul.f32 %v1906, %v2070
    %v2215 = vadd.f32 %v2087, 0.0
    %v2216 = vadd.f32 %v2088, 0.0
    %v2217 = vadd.f32 %v2089, 0.0
    %v2218 = vadd.f32 %v2090, 0.0
    %v2219 = vadd.f32 %v2091, 0.0
    %v2220 = vadd.f32 %v2092, 0.0
    %v2221 = vadd.f32 %v2093, 0.0
    %v2222 = vadd.f32 %v2094, 0.0
    %v2223 = vadd.f32 %v2095, 0.0
    %v2224 = vadd.f32 %v2096, 0.0
    %v2225 = vadd.f32 %v2097, 0.0
    %v2226 = vadd.f32 %v2098, 0.0
    %v2227 = vadd.f32 %v2099, 0.0
    %v2228 = vadd.f32 %v2100, 0.0
    %v2229 = vadd.f32 %v2101, 0.0
    %v2230 = vadd.f32 %v2102, 0.0
    %v2231 = vadd.f32 %v2103, 0.0
    %v2232 = vadd.f32 %v2104, 0.0
    %v2233 = vadd.f32 %v2105, 0.0
    %v2234 = vadd.f32 %v2106, 0.0
    %v2235 = vadd.f32 %v2107, 0.0
    %v2236 = vadd.f32 %v2108, 0.0
    %v2237 = vadd.f32 %v2109, 0.0
    %v2238 = vadd.f32 %v2110, 0.0
    %v2239 = vadd.f32 %v2111, 0.0
    %v2240 = vadd.f32 %v2112, 0.0
    %v2241 = vadd.f32 %v2113, 0.0
    %v2242 = vadd.f32 %v2114, 0.0
    %v2243 = vadd.f32 %v2115, 0.0
    %v2244 = vadd.f32 %v2116, 0.0
    %v2245 = vadd.f32 %v2117, 0.0
    %v2246 = vadd.f32 %v2118, 0.0
    %v2247 = vadd.f32 %v2119, 0.0
    %v2248 = vadd.f32 %v2120, 0.0
    %v2249 = vadd.f32 %v2121, 0.0
    %v2250 = vadd.f32 %v2122, 0.0
    %v2251 = vadd.f32 %v2123, 0.0
    %v2252 = vadd.f32 %v2124, 0.0
    %v2253 = vadd.f32 %v2125, 0.0
    %v2254 = vadd.f32 %v2126, 0.0
    %v2255 = vadd.f32 %v2127, 0.0
    %v2256 = vadd.f32 %v2128, 0.0
    %v2257 = vadd.f32 %v2129, 0.0
    %v2258 = vadd.f32 %v2130, 0.0
    %v2259 = vadd.f32 %v2131, 0.0
    %v2260 = vadd.f32 %v2132, 0.0
    %v2261 = vadd.f32 %v2133, 0.0
    %v2262 = vadd.f32 %v2134, 0.0
    %v2263 = vadd.f32 %v2135, 0.0
    %v2264 = vadd.f32 %v2136, 0.0
    %v2265 = vadd.f32 %v2137, 0.0
    %v2266 = vadd.f32 %v2138, 0.0
    %v2267 = vadd.f32 %v2139, 0.0
    %v2268 = vadd.f32 %v2140, 0.0
    %v2269 = vadd.f32 %v2141, 0.0
    %v2270 = vadd.f32 %v2142, 0.0
    %v2271 = vadd.f32 %v2143, 0.0
    %v2272 = vadd.f32 %v2144, 0.0
    %v2273 = vadd.f32 %v2145, 0.0
    %v2274 = vadd.f32 %v2146, 0.0
    %v2275 = vadd.f32 %v2147, 0.0
    %v2276 = vadd.f32 %v2148, 0.0
    %v2277 = vadd.f32 %v2149, 0.0
    %v2278 = vadd.f32 %v2150, 0.0
    %v2279 = vadd.f32 %v2151, 0.0
    %v2280 = vadd.f32 %v2152, 0.0
    %v2281 = vadd.f32 %v2153, 0.0
    %v2282 = vadd.f32 %v2154, 0.0
    %v2283 = vadd.f32 %v2155, 0.0
    %v2284 = vadd.f32 %v2156, 0.0
    %v2285 = vadd.f32 %v2157, 0.0
    %v2286 = vadd.f32 %v2158, 0.0
    %v2287 = vadd.f32 %v2159, 0.0
    %v2288 = vadd.f32 %v2160, 0.0
    %v2289 = vadd.f32 %v2161, 0.0
    %v2290 = vadd.f32 %v2162, 0.0
    %v2291 = vadd.f32 %v2163, 0.0
    %v2292 = vadd.f32 %v2164, 0.0
    %v2293 = vadd.f32 %v2165, 0.0
    %v2294 = vadd.f32 %v2166, 0.0
    %v2295 = vadd.f32 %v2167, 0.0
    %v2296 = vadd.f32 %v2168, 0.0
    %v2297 = vadd.f32 %v2169, 0.0
    %v2298 = vadd.f32 %v2170, 0.0
    %v2299 = vadd.f32 %v2171, 0.0
    %v2300 = vadd.f32 %v2172, 0.0
    %v2301 = vadd.f32 %v2173, 0.0
    %v2302 = vadd.f32 %v2174, 0.0
    %v2303 = vadd.f32 %v2175, 0.0
    %v2304 = vadd.f32 %v2176, 0.0
    %v2305 = vadd.f32 %v2177, 0.0
    %v2306 = vadd.f32 %v2178, 0.0
    %v2307 = vadd.f32 %v2179, 0.0
    %v2308 = vadd.f32 %v2180, 0.0
    %v2309 = vadd.f32 %v2181, 0.0
    %v2310 = vadd.f32 %v2182, 0.0
    %v2311 = vadd.f32 %v2183, 0.0
    %v2312 = vadd.f32 %v2184, 0.0
    %v2313 = vadd.f32 %v2185, 0.0
    %v2314 = vadd.f32 %v2186, 0.0
    %v2315 = vadd.f32 %v2187, 0.0
    %v2316 = vadd.f32 %v2188, 0.0
    %v2317 = vadd.f32 %v2189, 0.0
    %v2318 = vadd.f32 %v2190, 0.0
    %v2319 = vadd.f32 %v2191, 0.0
    %v2320 = vadd.f32 %v2192, 0.0
    %v2321 = vadd.f32 %v2193, 0.0
    %v2322 = vadd.f32 %v2194, 0.0
    %v2323 = vadd.f32 %v2195, 0.0
    %v2324 = vadd.f32 %v2196, 0.0
    %v2325 = vadd.f32 %v2197, 0.0
    %v2326 = vadd.f32 %v2198, 0.0
    %v2327 = vadd.f32 %v2199, 0.0
    %v2328 = vadd.f32 %v2200, 0.0
    %v2329 = vadd.f32 %v2201, 0.0
    %v2330 = vadd.f32 %v2202, 0.0
    %v2331 = vadd.f32 %v2203, 0.0
    %v2332 = vadd.f32 %v2204, 0.0
    %v2333 = vadd.f32 %v2205, 0.0
    %v2334 = vadd.f32 %v2206, 0.0
    %v2335 = vadd.f32 %v2207, 0.0
    %v2336 = vadd.f32 %v2208, 0.0
    %v2337 = vadd.f32 %v2209, 0.0
    %v2338 = vadd.f32 %v2210, 0.0
    %v2339 = vadd.f32 %v2211, 0.0
    %v2340 = vadd.f32 %v2212, 0.0
    %v2341 = vadd.f32 %v2213, 0.0
    %v2342 = vadd.f32 %v2214, 0.0
    %s2344 = sor.u32 256, 64
    %2345 = vbcast.lane.b32.xlu0 %v1350, %s2344
    %v2346 = vpop.permute.xlu0 %2345
    %s2348 = sor.u32 256, 72
    %2349 = vbcast.lane.b32.xlu0 %v1350, %s2348
    %v2350 = vpop.permute.xlu0 %2349
    %s2352 = sor.u32 256, 80
    %2353 = vbcast.lane.b32.xlu0 %v1350, %s2352
    %v2354 = vpop.permute.xlu0 %2353
    %s2356 = sor.u32 256, 88
    %2357 = vbcast.lane.b32.xlu0 %v1350, %s2356
    %v2358 = vpop.permute.xlu0 %2357
    %s2360 = sor.u32 256, 96
    %2361 = vbcast.lane.b32.xlu0 %v1350, %s2360
    %v2362 = vpop.permute.xlu0 %2361
    %s2364 = sor.u32 256, 104
    %2365 = vbcast.lane.b32.xlu0 %v1350, %s2364
    %v2366 = vpop.permute.xlu0 %2365
    %s2368 = sor.u32 256, 112
    %2369 = vbcast.lane.b32.xlu0 %v1350, %s2368
    %v2370 = vpop.permute.xlu0 %2369
    %s2372 = sor.u32 256, 120
    %2373 = vbcast.lane.b32.xlu0 %v1350, %s2372
    %v2374 = vpop.permute.xlu0 %2373
    %s2376 = sor.u32 256, 64
    %2377 = vbcast.lane.b32.xlu0 %v1385, %s2376
    %v2378 = vpop.permute.xlu0 %2377
    %s2380 = sor.u32 256, 72
    %2381 = vbcast.lane.b32.xlu0 %v1385, %s2380
    %v2382 = vpop.permute.xlu0 %2381
    %s2384 = sor.u32 256, 80
    %2385 = vbcast.lane.b32.xlu0 %v1385, %s2384
    %v2386 = vpop.permute.xlu0 %2385
    %s2388 = sor.u32 256, 88
    %2389 = vbcast.lane.b32.xlu0 %v1385, %s2388
    %v2390 = vpop.permute.xlu0 %2389
    %s2392 = sor.u32 256, 96
    %2393 = vbcast.lane.b32.xlu0 %v1385, %s2392
    %v2394 = vpop.permute.xlu0 %2393
    %s2396 = sor.u32 256, 104
    %2397 = vbcast.lane.b32.xlu0 %v1385, %s2396
    %v2398 = vpop.permute.xlu0 %2397
    %s2400 = sor.u32 256, 112
    %2401 = vbcast.lane.b32.xlu0 %v1385, %s2400
    %v2402 = vpop.permute.xlu0 %2401
    %s2404 = sor.u32 256, 120
    %2405 = vbcast.lane.b32.xlu0 %v1385, %s2404
    %v2406 = vpop.permute.xlu0 %2405
    %s2408 = sor.u32 256, 64
    %2409 = vbcast.lane.b32.xlu0 %v1420, %s2408
    %v2410 = vpop.permute.xlu0 %2409
    %s2412 = sor.u32 256, 72
    %2413 = vbcast.lane.b32.xlu0 %v1420, %s2412
    %v2414 = vpop.permute.xlu0 %2413
    %s2416 = sor.u32 256, 80
    %2417 = vbcast.lane.b32.xlu0 %v1420, %s2416
    %v2418 = vpop.permute.xlu0 %2417
    %s2420 = sor.u32 256, 88
    %2421 = vbcast.lane.b32.xlu0 %v1420, %s2420
    %v2422 = vpop.permute.xlu0 %2421
    %s2424 = sor.u32 256, 96
    %2425 = vbcast.lane.b32.xlu0 %v1420, %s2424
    %v2426 = vpop.permute.xlu0 %2425
    %s2428 = sor.u32 256, 104
    %2429 = vbcast.lane.b32.xlu0 %v1420, %s2428
    %v2430 = vpop.permute.xlu0 %2429
    %s2432 = sor.u32 256, 112
    %2433 = vbcast.lane.b32.xlu0 %v1420, %s2432
    %v2434 = vpop.permute.xlu0 %2433
    %s2436 = sor.u32 256, 120
    %2437 = vbcast.lane.b32.xlu0 %v1420, %s2436
    %v2438 = vpop.permute.xlu0 %2437
    %s2440 = sor.u32 256, 64
    %2441 = vbcast.lane.b32.xlu0 %v1455, %s2440
    %v2442 = vpop.permute.xlu0 %2441
    %s2444 = sor.u32 256, 72
    %2445 = vbcast.lane.b32.xlu0 %v1455, %s2444
    %v2446 = vpop.permute.xlu0 %2445
    %s2448 = sor.u32 256, 80
    %2449 = vbcast.lane.b32.xlu0 %v1455, %s2448
    %v2450 = vpop.permute.xlu0 %2449
    %s2452 = sor.u32 256, 88
    %2453 = vbcast.lane.b32.xlu0 %v1455, %s2452
    %v2454 = vpop.permute.xlu0 %2453
    %s2456 = sor.u32 256, 96
    %2457 = vbcast.lane.b32.xlu0 %v1455, %s2456
    %v2458 = vpop.permute.xlu0 %2457
    %s2460 = sor.u32 256, 104
    %2461 = vbcast.lane.b32.xlu0 %v1455, %s2460
    %v2462 = vpop.permute.xlu0 %2461
    %s2464 = sor.u32 256, 112
    %2465 = vbcast.lane.b32.xlu0 %v1455, %s2464
    %v2466 = vpop.permute.xlu0 %2465
    %s2468 = sor.u32 256, 120
    %2469 = vbcast.lane.b32.xlu0 %v1455, %s2468
    %v2470 = vpop.permute.xlu0 %2469
    %s2472 = sor.u32 256, 64
    %2473 = vbcast.lane.b32.xlu0 %v1490, %s2472
    %v2474 = vpop.permute.xlu0 %2473
    %s2476 = sor.u32 256, 72
    %2477 = vbcast.lane.b32.xlu0 %v1490, %s2476
    %v2478 = vpop.permute.xlu0 %2477
    %s2480 = sor.u32 256, 80
    %2481 = vbcast.lane.b32.xlu0 %v1490, %s2480
    %v2482 = vpop.permute.xlu0 %2481
    %s2484 = sor.u32 256, 88
    %2485 = vbcast.lane.b32.xlu0 %v1490, %s2484
    %v2486 = vpop.permute.xlu0 %2485
    %s2488 = sor.u32 256, 96
    %2489 = vbcast.lane.b32.xlu0 %v1490, %s2488
    %v2490 = vpop.permute.xlu0 %2489
    %s2492 = sor.u32 256, 104
    %2493 = vbcast.lane.b32.xlu0 %v1490, %s2492
    %v2494 = vpop.permute.xlu0 %2493
    %s2496 = sor.u32 256, 112
    %2497 = vbcast.lane.b32.xlu0 %v1490, %s2496
    %v2498 = vpop.permute.xlu0 %2497
    %s2500 = sor.u32 256, 120
    %2501 = vbcast.lane.b32.xlu0 %v1490, %s2500
    %v2502 = vpop.permute.xlu0 %2501
    %s2504 = sor.u32 256, 64
    %2505 = vbcast.lane.b32.xlu0 %v1525, %s2504
    %v2506 = vpop.permute.xlu0 %2505
    %s2508 = sor.u32 256, 72
    %2509 = vbcast.lane.b32.xlu0 %v1525, %s2508
    %v2510 = vpop.permute.xlu0 %2509
    %s2512 = sor.u32 256, 80
    %2513 = vbcast.lane.b32.xlu0 %v1525, %s2512
    %v2514 = vpop.permute.xlu0 %2513
    %s2516 = sor.u32 256, 88
    %2517 = vbcast.lane.b32.xlu0 %v1525, %s2516
    %v2518 = vpop.permute.xlu0 %2517
    %s2520 = sor.u32 256, 96
    %2521 = vbcast.lane.b32.xlu0 %v1525, %s2520
    %v2522 = vpop.permute.xlu0 %2521
    %s2524 = sor.u32 256, 104
    %2525 = vbcast.lane.b32.xlu0 %v1525, %s2524
    %v2526 = vpop.permute.xlu0 %2525
    %s2528 = sor.u32 256, 112
    %2529 = vbcast.lane.b32.xlu0 %v1525, %s2528
    %v2530 = vpop.permute.xlu0 %2529
    %s2532 = sor.u32 256, 120
    %2533 = vbcast.lane.b32.xlu0 %v1525, %s2532
    %v2534 = vpop.permute.xlu0 %2533
    %s2536 = sor.u32 256, 64
    %2537 = vbcast.lane.b32.xlu0 %v1560, %s2536
    %v2538 = vpop.permute.xlu0 %2537
    %s2540 = sor.u32 256, 72
    %2541 = vbcast.lane.b32.xlu0 %v1560, %s2540
    %v2542 = vpop.permute.xlu0 %2541
    %s2544 = sor.u32 256, 80
    %2545 = vbcast.lane.b32.xlu0 %v1560, %s2544
    %v2546 = vpop.permute.xlu0 %2545
    %s2548 = sor.u32 256, 88
    %2549 = vbcast.lane.b32.xlu0 %v1560, %s2548
    %v2550 = vpop.permute.xlu0 %2549
    %s2552 = sor.u32 256, 96
    %2553 = vbcast.lane.b32.xlu0 %v1560, %s2552
    %v2554 = vpop.permute.xlu0 %2553
    %s2556 = sor.u32 256, 104
    %2557 = vbcast.lane.b32.xlu0 %v1560, %s2556
    %v2558 = vpop.permute.xlu0 %2557
    %s2560 = sor.u32 256, 112
    %2561 = vbcast.lane.b32.xlu0 %v1560, %s2560
    %v2562 = vpop.permute.xlu0 %2561
    %s2564 = sor.u32 256, 120
    %2565 = vbcast.lane.b32.xlu0 %v1560, %s2564
    %v2566 = vpop.permute.xlu0 %2565
    %s2568 = sor.u32 256, 64
    %2569 = vbcast.lane.b32.xlu0 %v1595, %s2568
    %v2570 = vpop.permute.xlu0 %2569
    %s2572 = sor.u32 256, 72
    %2573 = vbcast.lane.b32.xlu0 %v1595, %s2572
    %v2574 = vpop.permute.xlu0 %2573
    %s2576 = sor.u32 256, 80
    %2577 = vbcast.lane.b32.xlu0 %v1595, %s2576
    %v2578 = vpop.permute.xlu0 %2577
    %s2580 = sor.u32 256, 88
    %2581 = vbcast.lane.b32.xlu0 %v1595, %s2580
    %v2582 = vpop.permute.xlu0 %2581
    %s2584 = sor.u32 256, 96
    %2585 = vbcast.lane.b32.xlu0 %v1595, %s2584
    %v2586 = vpop.permute.xlu0 %2585
    %s2588 = sor.u32 256, 104
    %2589 = vbcast.lane.b32.xlu0 %v1595, %s2588
    %v2590 = vpop.permute.xlu0 %2589
    %s2592 = sor.u32 256, 112
    %2593 = vbcast.lane.b32.xlu0 %v1595, %s2592
    %v2594 = vpop.permute.xlu0 %2593
    %s2596 = sor.u32 256, 120
    %2597 = vbcast.lane.b32.xlu0 %v1595, %s2596
    %v2598 = vpop.permute.xlu0 %2597
    %s2600 = sor.u32 256, 64
    %2601 = vbcast.lane.b32.xlu0 %v1630, %s2600
    %v2602 = vpop.permute.xlu0 %2601
    %s2604 = sor.u32 256, 72
    %2605 = vbcast.lane.b32.xlu0 %v1630, %s2604
    %v2606 = vpop.permute.xlu0 %2605
    %s2608 = sor.u32 256, 80
    %2609 = vbcast.lane.b32.xlu0 %v1630, %s2608
    %v2610 = vpop.permute.xlu0 %2609
    %s2612 = sor.u32 256, 88
    %2613 = vbcast.lane.b32.xlu0 %v1630, %s2612
    %v2614 = vpop.permute.xlu0 %2613
    %s2616 = sor.u32 256, 96
    %2617 = vbcast.lane.b32.xlu0 %v1630, %s2616
    %v2618 = vpop.permute.xlu0 %2617
    %s2620 = sor.u32 256, 104
    %2621 = vbcast.lane.b32.xlu0 %v1630, %s2620
    %v2622 = vpop.permute.xlu0 %2621
    %s2624 = sor.u32 256, 112
    %2625 = vbcast.lane.b32.xlu0 %v1630, %s2624
    %v2626 = vpop.permute.xlu0 %2625
    %s2628 = sor.u32 256, 120
    %2629 = vbcast.lane.b32.xlu0 %v1630, %s2628
    %v2630 = vpop.permute.xlu0 %2629
    %s2632 = sor.u32 256, 64
    %2633 = vbcast.lane.b32.xlu0 %v1665, %s2632
    %v2634 = vpop.permute.xlu0 %2633
    %s2636 = sor.u32 256, 72
    %2637 = vbcast.lane.b32.xlu0 %v1665, %s2636
    %v2638 = vpop.permute.xlu0 %2637
    %s2640 = sor.u32 256, 80
    %2641 = vbcast.lane.b32.xlu0 %v1665, %s2640
    %v2642 = vpop.permute.xlu0 %2641
    %s2644 = sor.u32 256, 88
    %2645 = vbcast.lane.b32.xlu0 %v1665, %s2644
    %v2646 = vpop.permute.xlu0 %2645
    %s2648 = sor.u32 256, 96
    %2649 = vbcast.lane.b32.xlu0 %v1665, %s2648
    %v2650 = vpop.permute.xlu0 %2649
    %s2652 = sor.u32 256, 104
    %2653 = vbcast.lane.b32.xlu0 %v1665, %s2652
    %v2654 = vpop.permute.xlu0 %2653
    %s2656 = sor.u32 256, 112
    %2657 = vbcast.lane.b32.xlu0 %v1665, %s2656
    %v2658 = vpop.permute.xlu0 %2657
    %s2660 = sor.u32 256, 120
    %2661 = vbcast.lane.b32.xlu0 %v1665, %s2660
    %v2662 = vpop.permute.xlu0 %2661
    %s2664 = sor.u32 256, 64
    %2665 = vbcast.lane.b32.xlu0 %v1700, %s2664
    %v2666 = vpop.permute.xlu0 %2665
    %s2668 = sor.u32 256, 72
    %2669 = vbcast.lane.b32.xlu0 %v1700, %s2668
    %v2670 = vpop.permute.xlu0 %2669
    %s2672 = sor.u32 256, 80
    %2673 = vbcast.lane.b32.xlu0 %v1700, %s2672
    %v2674 = vpop.permute.xlu0 %2673
    %s2676 = sor.u32 256, 88
    %2677 = vbcast.lane.b32.xlu0 %v1700, %s2676
    %v2678 = vpop.permute.xlu0 %2677
    %s2680 = sor.u32 256, 96
    %2681 = vbcast.lane.b32.xlu0 %v1700, %s2680
    %v2682 = vpop.permute.xlu0 %2681
    %s2684 = sor.u32 256, 104
    %2685 = vbcast.lane.b32.xlu0 %v1700, %s2684
    %v2686 = vpop.permute.xlu0 %2685
    %s2688 = sor.u32 256, 112
    %2689 = vbcast.lane.b32.xlu0 %v1700, %s2688
    %v2690 = vpop.permute.xlu0 %2689
    %s2692 = sor.u32 256, 120
    %2693 = vbcast.lane.b32.xlu0 %v1700, %s2692
    %v2694 = vpop.permute.xlu0 %2693
    %s2696 = sor.u32 256, 64
    %2697 = vbcast.lane.b32.xlu0 %v1735, %s2696
    %v2698 = vpop.permute.xlu0 %2697
    %s2700 = sor.u32 256, 72
    %2701 = vbcast.lane.b32.xlu0 %v1735, %s2700
    %v2702 = vpop.permute.xlu0 %2701
    %s2704 = sor.u32 256, 80
    %2705 = vbcast.lane.b32.xlu0 %v1735, %s2704
    %v2706 = vpop.permute.xlu0 %2705
    %s2708 = sor.u32 256, 88
    %2709 = vbcast.lane.b32.xlu0 %v1735, %s2708
    %v2710 = vpop.permute.xlu0 %2709
    %s2712 = sor.u32 256, 96
    %2713 = vbcast.lane.b32.xlu0 %v1735, %s2712
    %v2714 = vpop.permute.xlu0 %2713
    %s2716 = sor.u32 256, 104
    %2717 = vbcast.lane.b32.xlu0 %v1735, %s2716
    %v2718 = vpop.permute.xlu0 %2717
    %s2720 = sor.u32 256, 112
    %2721 = vbcast.lane.b32.xlu0 %v1735, %s2720
    %v2722 = vpop.permute.xlu0 %2721
    %s2724 = sor.u32 256, 120
    %2725 = vbcast.lane.b32.xlu0 %v1735, %s2724
    %v2726 = vpop.permute.xlu0 %2725
    %s2728 = sor.u32 256, 64
    %2729 = vbcast.lane.b32.xlu0 %v1770, %s2728
    %v2730 = vpop.permute.xlu0 %2729
    %s2732 = sor.u32 256, 72
    %2733 = vbcast.lane.b32.xlu0 %v1770, %s2732
    %v2734 = vpop.permute.xlu0 %2733
    %s2736 = sor.u32 256, 80
    %2737 = vbcast.lane.b32.xlu0 %v1770, %s2736
    %v2738 = vpop.permute.xlu0 %2737
    %s2740 = sor.u32 256, 88
    %2741 = vbcast.lane.b32.xlu0 %v1770, %s2740
    %v2742 = vpop.permute.xlu0 %2741
    %s2744 = sor.u32 256, 96
    %2745 = vbcast.lane.b32.xlu0 %v1770, %s2744
    %v2746 = vpop.permute.xlu0 %2745
    %s2748 = sor.u32 256, 104
    %2749 = vbcast.lane.b32.xlu0 %v1770, %s2748
    %v2750 = vpop.permute.xlu0 %2749
    %s2752 = sor.u32 256, 112
    %2753 = vbcast.lane.b32.xlu0 %v1770, %s2752
    %v2754 = vpop.permute.xlu0 %2753
    %s2756 = sor.u32 256, 120
    %2757 = vbcast.lane.b32.xlu0 %v1770, %s2756
    %v2758 = vpop.permute.xlu0 %2757
    %s2760 = sor.u32 256, 64
    %2761 = vbcast.lane.b32.xlu0 %v1805, %s2760
    %v2762 = vpop.permute.xlu0 %2761
    %s2764 = sor.u32 256, 72
    %2765 = vbcast.lane.b32.xlu0 %v1805, %s2764
    %v2766 = vpop.permute.xlu0 %2765
    %s2768 = sor.u32 256, 80
    %2769 = vbcast.lane.b32.xlu0 %v1805, %s2768
    %v2770 = vpop.permute.xlu0 %2769
    %s2772 = sor.u32 256, 88
    %2773 = vbcast.lane.b32.xlu0 %v1805, %s2772
    %v2774 = vpop.permute.xlu0 %2773
    %s2776 = sor.u32 256, 96
    %2777 = vbcast.lane.b32.xlu0 %v1805, %s2776
    %v2778 = vpop.permute.xlu0 %2777
    %s2780 = sor.u32 256, 104
    %2781 = vbcast.lane.b32.xlu0 %v1805, %s2780
    %v2782 = vpop.permute.xlu0 %2781
    %s2784 = sor.u32 256, 112
    %2785 = vbcast.lane.b32.xlu0 %v1805, %s2784
    %v2786 = vpop.permute.xlu0 %2785
    %s2788 = sor.u32 256, 120
    %2789 = vbcast.lane.b32.xlu0 %v1805, %s2788
    %v2790 = vpop.permute.xlu0 %2789
    %s2792 = sor.u32 256, 64
    %2793 = vbcast.lane.b32.xlu0 %v1840, %s2792
    %v2794 = vpop.permute.xlu0 %2793
    %s2796 = sor.u32 256, 72
    %2797 = vbcast.lane.b32.xlu0 %v1840, %s2796
    %v2798 = vpop.permute.xlu0 %2797
    %s2800 = sor.u32 256, 80
    %2801 = vbcast.lane.b32.xlu0 %v1840, %s2800
    %v2802 = vpop.permute.xlu0 %2801
    %s2804 = sor.u32 256, 88
    %2805 = vbcast.lane.b32.xlu0 %v1840, %s2804
    %v2806 = vpop.permute.xlu0 %2805
    %s2808 = sor.u32 256, 96
    %2809 = vbcast.lane.b32.xlu0 %v1840, %s2808
    %v2810 = vpop.permute.xlu0 %2809
    %s2812 = sor.u32 256, 104
    %2813 = vbcast.lane.b32.xlu0 %v1840, %s2812
    %v2814 = vpop.permute.xlu0 %2813
    %s2816 = sor.u32 256, 112
    %2817 = vbcast.lane.b32.xlu0 %v1840, %s2816
    %v2818 = vpop.permute.xlu0 %2817
    %s2820 = sor.u32 256, 120
    %2821 = vbcast.lane.b32.xlu0 %v1840, %s2820
    %v2822 = vpop.permute.xlu0 %2821
    %s2824 = sor.u32 256, 64
    %2825 = vbcast.lane.b32.xlu0 %v1875, %s2824
    %v2826 = vpop.permute.xlu0 %2825
    %s2828 = sor.u32 256, 72
    %2829 = vbcast.lane.b32.xlu0 %v1875, %s2828
    %v2830 = vpop.permute.xlu0 %2829
    %s2832 = sor.u32 256, 80
    %2833 = vbcast.lane.b32.xlu0 %v1875, %s2832
    %v2834 = vpop.permute.xlu0 %2833
    %s2836 = sor.u32 256, 88
    %2837 = vbcast.lane.b32.xlu0 %v1875, %s2836
    %v2838 = vpop.permute.xlu0 %2837
    %s2840 = sor.u32 256, 96
    %2841 = vbcast.lane.b32.xlu0 %v1875, %s2840
    %v2842 = vpop.permute.xlu0 %2841
    %s2844 = sor.u32 256, 104
    %2845 = vbcast.lane.b32.xlu0 %v1875, %s2844
    %v2846 = vpop.permute.xlu0 %2845
    %s2848 = sor.u32 256, 112
    %2849 = vbcast.lane.b32.xlu0 %v1875, %s2848
    %v2850 = vpop.permute.xlu0 %2849
    %s2852 = sor.u32 256, 120
    %2853 = vbcast.lane.b32.xlu0 %v1875, %s2852
    %v2854 = vpop.permute.xlu0 %2853
    %v2855 = vmul.f32 %v2346, %v2010
    %v2856 = vmul.f32 %v2350, %v2010
    %v2857 = vmul.f32 %v2354, %v2010
    %v2858 = vmul.f32 %v2358, %v2010
    %v2859 = vmul.f32 %v2362, %v2010
    %v2860 = vmul.f32 %v2366, %v2010
    %v2861 = vmul.f32 %v2370, %v2010
    %v2862 = vmul.f32 %v2374, %v2010
    %v2863 = vmul.f32 %v2378, %v2014
    %v2864 = vmul.f32 %v2382, %v2014
    %v2865 = vmul.f32 %v2386, %v2014
    %v2866 = vmul.f32 %v2390, %v2014
    %v2867 = vmul.f32 %v2394, %v2014
    %v2868 = vmul.f32 %v2398, %v2014
    %v2869 = vmul.f32 %v2402, %v2014
    %v2870 = vmul.f32 %v2406, %v2014
    %v2871 = vmul.f32 %v2410, %v2018
    %v2872 = vmul.f32 %v2414, %v2018
    %v2873 = vmul.f32 %v2418, %v2018
    %v2874 = vmul.f32 %v2422, %v2018
    %v2875 = vmul.f32 %v2426, %v2018
    %v2876 = vmul.f32 %v2430, %v2018
    %v2877 = vmul.f32 %v2434, %v2018
    %v2878 = vmul.f32 %v2438, %v2018
    %v2879 = vmul.f32 %v2442, %v2022
    %v2880 = vmul.f32 %v2446, %v2022
    %v2881 = vmul.f32 %v2450, %v2022
    %v2882 = vmul.f32 %v2454, %v2022
    %v2883 = vmul.f32 %v2458, %v2022
    %v2884 = vmul.f32 %v2462, %v2022
    %v2885 = vmul.f32 %v2466, %v2022
    %v2886 = vmul.f32 %v2470, %v2022
    %v2887 = vmul.f32 %v2474, %v2026
    %v2888 = vmul.f32 %v2478, %v2026
    %v2889 = vmul.f32 %v2482, %v2026
    %v2890 = vmul.f32 %v2486, %v2026
    %v2891 = vmul.f32 %v2490, %v2026
    %v2892 = vmul.f32 %v2494, %v2026
    %v2893 = vmul.f32 %v2498, %v2026
    %v2894 = vmul.f32 %v2502, %v2026
    %v2895 = vmul.f32 %v2506, %v2030
    %v2896 = vmul.f32 %v2510, %v2030
    %v2897 = vmul.f32 %v2514, %v2030
    %v2898 = vmul.f32 %v2518, %v2030
    %v2899 = vmul.f32 %v2522, %v2030
    %v2900 = vmul.f32 %v2526, %v2030
    %v2901 = vmul.f32 %v2530, %v2030
    %v2902 = vmul.f32 %v2534, %v2030
    %v2903 = vmul.f32 %v2538, %v2034
    %v2904 = vmul.f32 %v2542, %v2034
    %v2905 = vmul.f32 %v2546, %v2034
    %v2906 = vmul.f32 %v2550, %v2034
    %v2907 = vmul.f32 %v2554, %v2034
    %v2908 = vmul.f32 %v2558, %v2034
    %v2909 = vmul.f32 %v2562, %v2034
    %v2910 = vmul.f32 %v2566, %v2034
    %v2911 = vmul.f32 %v2570, %v2038
    %v2912 = vmul.f32 %v2574, %v2038
    %v2913 = vmul.f32 %v2578, %v2038
    %v2914 = vmul.f32 %v2582, %v2038
    %v2915 = vmul.f32 %v2586, %v2038
    %v2916 = vmul.f32 %v2590, %v2038
    %v2917 = vmul.f32 %v2594, %v2038
    %v2918 = vmul.f32 %v2598, %v2038
    %v2919 = vmul.f32 %v2602, %v2042
    %v2920 = vmul.f32 %v2606, %v2042
    %v2921 = vmul.f32 %v2610, %v2042
    %v2922 = vmul.f32 %v2614, %v2042
    %v2923 = vmul.f32 %v2618, %v2042
    %v2924 = vmul.f32 %v2622, %v2042
    %v2925 = vmul.f32 %v2626, %v2042
    %v2926 = vmul.f32 %v2630, %v2042
    %v2927 = vmul.f32 %v2634, %v2046
    %v2928 = vmul.f32 %v2638, %v2046
    %v2929 = vmul.f32 %v2642, %v2046
    %v2930 = vmul.f32 %v2646, %v2046
    %v2931 = vmul.f32 %v2650, %v2046
    %v2932 = vmul.f32 %v2654, %v2046
    %v2933 = vmul.f32 %v2658, %v2046
    %v2934 = vmul.f32 %v2662, %v2046
    %v2935 = vmul.f32 %v2666, %v2050
    %v2936 = vmul.f32 %v2670, %v2050
    %v2937 = vmul.f32 %v2674, %v2050
    %v2938 = vmul.f32 %v2678, %v2050
    %v2939 = vmul.f32 %v2682, %v2050
    %v2940 = vmul.f32 %v2686, %v2050
    %v2941 = vmul.f32 %v2690, %v2050
    %v2942 = vmul.f32 %v2694, %v2050
    %v2943 = vmul.f32 %v2698, %v2054
    %v2944 = vmul.f32 %v2702, %v2054
    %v2945 = vmul.f32 %v2706, %v2054
    %v2946 = vmul.f32 %v2710, %v2054
    %v2947 = vmul.f32 %v2714, %v2054
    %v2948 = vmul.f32 %v2718, %v2054
    %v2949 = vmul.f32 %v2722, %v2054
    %v2950 = vmul.f32 %v2726, %v2054
    %v2951 = vmul.f32 %v2730, %v2058
    %v2952 = vmul.f32 %v2734, %v2058
    %v2953 = vmul.f32 %v2738, %v2058
    %v2954 = vmul.f32 %v2742, %v2058
    %v2955 = vmul.f32 %v2746, %v2058
    %v2956 = vmul.f32 %v2750, %v2058
    %v2957 = vmul.f32 %v2754, %v2058
    %v2958 = vmul.f32 %v2758, %v2058
    %v2959 = vmul.f32 %v2762, %v2062
    %v2960 = vmul.f32 %v2766, %v2062
    %v2961 = vmul.f32 %v2770, %v2062
    %v2962 = vmul.f32 %v2774, %v2062
    %v2963 = vmul.f32 %v2778, %v2062
    %v2964 = vmul.f32 %v2782, %v2062
    %v2965 = vmul.f32 %v2786, %v2062
    %v2966 = vmul.f32 %v2790, %v2062
    %v2967 = vmul.f32 %v2794, %v2066
    %v2968 = vmul.f32 %v2798, %v2066
    %v2969 = vmul.f32 %v2802, %v2066
    %v2970 = vmul.f32 %v2806, %v2066
    %v2971 = vmul.f32 %v2810, %v2066
    %v2972 = vmul.f32 %v2814, %v2066
    %v2973 = vmul.f32 %v2818, %v2066
    %v2974 = vmul.f32 %v2822, %v2066
    %v2975 = vmul.f32 %v2826, %v2070
    %v2976 = vmul.f32 %v2830, %v2070
    %v2977 = vmul.f32 %v2834, %v2070
    %v2978 = vmul.f32 %v2838, %v2070
    %v2979 = vmul.f32 %v2842, %v2070
    %v2980 = vmul.f32 %v2846, %v2070
    %v2981 = vmul.f32 %v2850, %v2070
    %v2982 = vmul.f32 %v2854, %v2070
    %3111 = vrot.lane.b32.xlu0 %v2855, 64
    %v3112 = vpop.permute.xlu0 %3111
    %3113 = vrot.lane.b32.xlu0 %v2856, 64
    %v3114 = vpop.permute.xlu0 %3113
    %3115 = vrot.lane.b32.xlu0 %v2857, 64
    %v3116 = vpop.permute.xlu0 %3115
    %3117 = vrot.lane.b32.xlu0 %v2858, 64
    %v3118 = vpop.permute.xlu0 %3117
    %3119 = vrot.lane.b32.xlu0 %v2859, 64
    %v3120 = vpop.permute.xlu0 %3119
    %3121 = vrot.lane.b32.xlu0 %v2860, 64
    %v3122 = vpop.permute.xlu0 %3121
    %3123 = vrot.lane.b32.xlu0 %v2861, 64
    %v3124 = vpop.permute.xlu0 %3123
    %3125 = vrot.lane.b32.xlu0 %v2862, 64
    %v3126 = vpop.permute.xlu0 %3125
    %3127 = vrot.lane.b32.xlu0 %v2863, 64
    %v3128 = vpop.permute.xlu0 %3127
    %3129 = vrot.lane.b32.xlu0 %v2864, 64
    %v3130 = vpop.permute.xlu0 %3129
    %3131 = vrot.lane.b32.xlu0 %v2865, 64
    %v3132 = vpop.permute.xlu0 %3131
    %3133 = vrot.lane.b32.xlu0 %v2866, 64
    %v3134 = vpop.permute.xlu0 %3133
    %3135 = vrot.lane.b32.xlu0 %v2867, 64
    %v3136 = vpop.permute.xlu0 %3135
    %3137 = vrot.lane.b32.xlu0 %v2868, 64
    %v3138 = vpop.permute.xlu0 %3137
    %3139 = vrot.lane.b32.xlu0 %v2869, 64
    %v3140 = vpop.permute.xlu0 %3139
    %3141 = vrot.lane.b32.xlu0 %v2870, 64
    %v3142 = vpop.permute.xlu0 %3141
    %3143 = vrot.lane.b32.xlu0 %v2871, 64
    %v3144 = vpop.permute.xlu0 %3143
    %3145 = vrot.lane.b32.xlu0 %v2872, 64
    %v3146 = vpop.permute.xlu0 %3145
    %3147 = vrot.lane.b32.xlu0 %v2873, 64
    %v3148 = vpop.permute.xlu0 %3147
    %3149 = vrot.lane.b32.xlu0 %v2874, 64
    %v3150 = vpop.permute.xlu0 %3149
    %3151 = vrot.lane.b32.xlu0 %v2875, 64
    %v3152 = vpop.permute.xlu0 %3151
    %3153 = vrot.lane.b32.xlu0 %v2876, 64
    %v3154 = vpop.permute.xlu0 %3153
    %3155 = vrot.lane.b32.xlu0 %v2877, 64
    %v3156 = vpop.permute.xlu0 %3155
    %3157 = vrot.lane.b32.xlu0 %v2878, 64
    %v3158 = vpop.permute.xlu0 %3157
    %3159 = vrot.lane.b32.xlu0 %v2879, 64
    %v3160 = vpop.permute.xlu0 %3159
    %3161 = vrot.lane.b32.xlu0 %v2880, 64
    %v3162 = vpop.permute.xlu0 %3161
    %3163 = vrot.lane.b32.xlu0 %v2881, 64
    %v3164 = vpop.permute.xlu0 %3163
    %3165 = vrot.lane.b32.xlu0 %v2882, 64
    %v3166 = vpop.permute.xlu0 %3165
    %3167 = vrot.lane.b32.xlu0 %v2883, 64
    %v3168 = vpop.permute.xlu0 %3167
    %3169 = vrot.lane.b32.xlu0 %v2884, 64
    %v3170 = vpop.permute.xlu0 %3169
    %3171 = vrot.lane.b32.xlu0 %v2885, 64
    %v3172 = vpop.permute.xlu0 %3171
    %3173 = vrot.lane.b32.xlu0 %v2886, 64
    %v3174 = vpop.permute.xlu0 %3173
    %3175 = vrot.lane.b32.xlu0 %v2887, 64
    %v3176 = vpop.permute.xlu0 %3175
    %3177 = vrot.lane.b32.xlu0 %v2888, 64
    %v3178 = vpop.permute.xlu0 %3177
    %3179 = vrot.lane.b32.xlu0 %v2889, 64
    %v3180 = vpop.permute.xlu0 %3179
    %3181 = vrot.lane.b32.xlu0 %v2890, 64
    %v3182 = vpop.permute.xlu0 %3181
    %3183 = vrot.lane.b32.xlu0 %v2891, 64
    %v3184 = vpop.permute.xlu0 %3183
    %3185 = vrot.lane.b32.xlu0 %v2892, 64
    %v3186 = vpop.permute.xlu0 %3185
    %3187 = vrot.lane.b32.xlu0 %v2893, 64
    %v3188 = vpop.permute.xlu0 %3187
    %3189 = vrot.lane.b32.xlu0 %v2894, 64
    %v3190 = vpop.permute.xlu0 %3189
    %3191 = vrot.lane.b32.xlu0 %v2895, 64
    %v3192 = vpop.permute.xlu0 %3191
    %3193 = vrot.lane.b32.xlu0 %v2896, 64
    %v3194 = vpop.permute.xlu0 %3193
    %3195 = vrot.lane.b32.xlu0 %v2897, 64
    %v3196 = vpop.permute.xlu0 %3195
    %3197 = vrot.lane.b32.xlu0 %v2898, 64
    %v3198 = vpop.permute.xlu0 %3197
    %3199 = vrot.lane.b32.xlu0 %v2899, 64
    %v3200 = vpop.permute.xlu0 %3199
    %3201 = vrot.lane.b32.xlu0 %v2900, 64
    %v3202 = vpop.permute.xlu0 %3201
    %3203 = vrot.lane.b32.xlu0 %v2901, 64
    %v3204 = vpop.permute.xlu0 %3203
    %3205 = vrot.lane.b32.xlu0 %v2902, 64
    %v3206 = vpop.permute.xlu0 %3205
    %3207 = vrot.lane.b32.xlu0 %v2903, 64
    %v3208 = vpop.permute.xlu0 %3207
    %3209 = vrot.lane.b32.xlu0 %v2904, 64
    %v3210 = vpop.permute.xlu0 %3209
    %3211 = vrot.lane.b32.xlu0 %v2905, 64
    %v3212 = vpop.permute.xlu0 %3211
    %3213 = vrot.lane.b32.xlu0 %v2906, 64
    %v3214 = vpop.permute.xlu0 %3213
    %3215 = vrot.lane.b32.xlu0 %v2907, 64
    %v3216 = vpop.permute.xlu0 %3215
    %3217 = vrot.lane.b32.xlu0 %v2908, 64
    %v3218 = vpop.permute.xlu0 %3217
    %3219 = vrot.lane.b32.xlu0 %v2909, 64
    %v3220 = vpop.permute.xlu0 %3219
    %3221 = vrot.lane.b32.xlu0 %v2910, 64
    %v3222 = vpop.permute.xlu0 %3221
    %3223 = vrot.lane.b32.xlu0 %v2911, 64
    %v3224 = vpop.permute.xlu0 %3223
    %3225 = vrot.lane.b32.xlu0 %v2912, 64
    %v3226 = vpop.permute.xlu0 %3225
    %3227 = vrot.lane.b32.xlu0 %v2913, 64
    %v3228 = vpop.permute.xlu0 %3227
    %3229 = vrot.lane.b32.xlu0 %v2914, 64
    %v3230 = vpop.permute.xlu0 %3229
    %3231 = vrot.lane.b32.xlu0 %v2915, 64
    %v3232 = vpop.permute.xlu0 %3231
    %3233 = vrot.lane.b32.xlu0 %v2916, 64
    %v3234 = vpop.permute.xlu0 %3233
    %3235 = vrot.lane.b32.xlu0 %v2917, 64
    %v3236 = vpop.permute.xlu0 %3235
    %3237 = vrot.lane.b32.xlu0 %v2918, 64
    %v3238 = vpop.permute.xlu0 %3237
    %3239 = vrot.lane.b32.xlu0 %v2919, 64
    %v3240 = vpop.permute.xlu0 %3239
    %3241 = vrot.lane.b32.xlu0 %v2920, 64
    %v3242 = vpop.permute.xlu0 %3241
    %3243 = vrot.lane.b32.xlu0 %v2921, 64
    %v3244 = vpop.permute.xlu0 %3243
    %3245 = vrot.lane.b32.xlu0 %v2922, 64
    %v3246 = vpop.permute.xlu0 %3245
    %3247 = vrot.lane.b32.xlu0 %v2923, 64
    %v3248 = vpop.permute.xlu0 %3247
    %3249 = vrot.lane.b32.xlu0 %v2924, 64
    %v3250 = vpop.permute.xlu0 %3249
    %3251 = vrot.lane.b32.xlu0 %v2925, 64
    %v3252 = vpop.permute.xlu0 %3251
    %3253 = vrot.lane.b32.xlu0 %v2926, 64
    %v3254 = vpop.permute.xlu0 %3253
    %3255 = vrot.lane.b32.xlu0 %v2927, 64
    %v3256 = vpop.permute.xlu0 %3255
    %3257 = vrot.lane.b32.xlu0 %v2928, 64
    %v3258 = vpop.permute.xlu0 %3257
    %3259 = vrot.lane.b32.xlu0 %v2929, 64
    %v3260 = vpop.permute.xlu0 %3259
    %3261 = vrot.lane.b32.xlu0 %v2930, 64
    %v3262 = vpop.permute.xlu0 %3261
    %3263 = vrot.lane.b32.xlu0 %v2931, 64
    %v3264 = vpop.permute.xlu0 %3263
    %3265 = vrot.lane.b32.xlu0 %v2932, 64
    %v3266 = vpop.permute.xlu0 %3265
    %3267 = vrot.lane.b32.xlu0 %v2933, 64
    %v3268 = vpop.permute.xlu0 %3267
    %3269 = vrot.lane.b32.xlu0 %v2934, 64
    %v3270 = vpop.permute.xlu0 %3269
    %3271 = vrot.lane.b32.xlu0 %v2935, 64
    %v3272 = vpop.permute.xlu0 %3271
    %3273 = vrot.lane.b32.xlu0 %v2936, 64
    %v3274 = vpop.permute.xlu0 %3273
    %3275 = vrot.lane.b32.xlu0 %v2937, 64
    %v3276 = vpop.permute.xlu0 %3275
    %3277 = vrot.lane.b32.xlu0 %v2938, 64
    %v3278 = vpop.permute.xlu0 %3277
    %3279 = vrot.lane.b32.xlu0 %v2939, 64
    %v3280 = vpop.permute.xlu0 %3279
    %3281 = vrot.lane.b32.xlu0 %v2940, 64
    %v3282 = vpop.permute.xlu0 %3281
    %3283 = vrot.lane.b32.xlu0 %v2941, 64
    %v3284 = vpop.permute.xlu0 %3283
    %3285 = vrot.lane.b32.xlu0 %v2942, 64
    %v3286 = vpop.permute.xlu0 %3285
    %3287 = vrot.lane.b32.xlu0 %v2943, 64
    %v3288 = vpop.permute.xlu0 %3287
    %3289 = vrot.lane.b32.xlu0 %v2944, 64
    %v3290 = vpop.permute.xlu0 %3289
    %3291 = vrot.lane.b32.xlu0 %v2945, 64
    %v3292 = vpop.permute.xlu0 %3291
    %3293 = vrot.lane.b32.xlu0 %v2946, 64
    %v3294 = vpop.permute.xlu0 %3293
    %3295 = vrot.lane.b32.xlu0 %v2947, 64
    %v3296 = vpop.permute.xlu0 %3295
    %3297 = vrot.lane.b32.xlu0 %v2948, 64
    %v3298 = vpop.permute.xlu0 %3297
    %3299 = vrot.lane.b32.xlu0 %v2949, 64
    %v3300 = vpop.permute.xlu0 %3299
    %3301 = vrot.lane.b32.xlu0 %v2950, 64
    %v3302 = vpop.permute.xlu0 %3301
    %3303 = vrot.lane.b32.xlu0 %v2951, 64
    %v3304 = vpop.permute.xlu0 %3303
    %3305 = vrot.lane.b32.xlu0 %v2952, 64
    %v3306 = vpop.permute.xlu0 %3305
    %3307 = vrot.lane.b32.xlu0 %v2953, 64
    %v3308 = vpop.permute.xlu0 %3307
    %3309 = vrot.lane.b32.xlu0 %v2954, 64
    %v3310 = vpop.permute.xlu0 %3309
    %3311 = vrot.lane.b32.xlu0 %v2955, 64
    %v3312 = vpop.permute.xlu0 %3311
    %3313 = vrot.lane.b32.xlu0 %v2956, 64
    %v3314 = vpop.permute.xlu0 %3313
    %3315 = vrot.lane.b32.xlu0 %v2957, 64
    %v3316 = vpop.permute.xlu0 %3315
    %3317 = vrot.lane.b32.xlu0 %v2958, 64
    %v3318 = vpop.permute.xlu0 %3317
    %3319 = vrot.lane.b32.xlu0 %v2959, 64
    %v3320 = vpop.permute.xlu0 %3319
    %3321 = vrot.lane.b32.xlu0 %v2960, 64
    %v3322 = vpop.permute.xlu0 %3321
    %3323 = vrot.lane.b32.xlu0 %v2961, 64
    %v3324 = vpop.permute.xlu0 %3323
    %3325 = vrot.lane.b32.xlu0 %v2962, 64
    %v3326 = vpop.permute.xlu0 %3325
    %3327 = vrot.lane.b32.xlu0 %v2963, 64
    %v3328 = vpop.permute.xlu0 %3327
    %3329 = vrot.lane.b32.xlu0 %v2964, 64
    %v3330 = vpop.permute.xlu0 %3329
    %3331 = vrot.lane.b32.xlu0 %v2965, 64
    %v3332 = vpop.permute.xlu0 %3331
    %3333 = vrot.lane.b32.xlu0 %v2966, 64
    %v3334 = vpop.permute.xlu0 %3333
    %3335 = vrot.lane.b32.xlu0 %v2967, 64
    %v3336 = vpop.permute.xlu0 %3335
    %3337 = vrot.lane.b32.xlu0 %v2968, 64
    %v3338 = vpop.permute.xlu0 %3337
    %3339 = vrot.lane.b32.xlu0 %v2969, 64
    %v3340 = vpop.permute.xlu0 %3339
    %3341 = vrot.lane.b32.xlu0 %v2970, 64
    %v3342 = vpop.permute.xlu0 %3341
    %3343 = vrot.lane.b32.xlu0 %v2971, 64
    %v3344 = vpop.permute.xlu0 %3343
    %3345 = vrot.lane.b32.xlu0 %v2972, 64
    %v3346 = vpop.permute.xlu0 %3345
    %3347 = vrot.lane.b32.xlu0 %v2973, 64
    %v3348 = vpop.permute.xlu0 %3347
    %3349 = vrot.lane.b32.xlu0 %v2974, 64
    %v3350 = vpop.permute.xlu0 %3349
    %3351 = vrot.lane.b32.xlu0 %v2975, 64
    %v3352 = vpop.permute.xlu0 %3351
    %3353 = vrot.lane.b32.xlu0 %v2976, 64
    %v3354 = vpop.permute.xlu0 %3353
    %3355 = vrot.lane.b32.xlu0 %v2977, 64
    %v3356 = vpop.permute.xlu0 %3355
    %3357 = vrot.lane.b32.xlu0 %v2978, 64
    %v3358 = vpop.permute.xlu0 %3357
    %3359 = vrot.lane.b32.xlu0 %v2979, 64
    %v3360 = vpop.permute.xlu0 %3359
    %3361 = vrot.lane.b32.xlu0 %v2980, 64
    %v3362 = vpop.permute.xlu0 %3361
    %3363 = vrot.lane.b32.xlu0 %v2981, 64
    %v3364 = vpop.permute.xlu0 %3363
    %3365 = vrot.lane.b32.xlu0 %v2982, 64
    %v3366 = vpop.permute.xlu0 %3365
    %v3495 = vadd.f32 %v2215, %v3112
    %v3496 = vadd.f32 %v2216, %v3114
    %v3497 = vadd.f32 %v2217, %v3116
    %v3498 = vadd.f32 %v2218, %v3118
    %v3499 = vadd.f32 %v2219, %v3120
    %v3500 = vadd.f32 %v2220, %v3122
    %v3501 = vadd.f32 %v2221, %v3124
    %v3502 = vadd.f32 %v2222, %v3126
    %v3503 = vadd.f32 %v2223, %v3128
    %v3504 = vadd.f32 %v2224, %v3130
    %v3505 = vadd.f32 %v2225, %v3132
    %v3506 = vadd.f32 %v2226, %v3134
    %v3507 = vadd.f32 %v2227, %v3136
    %v3508 = vadd.f32 %v2228, %v3138
    %v3509 = vadd.f32 %v2229, %v3140
    %v3510 = vadd.f32 %v2230, %v3142
    %v3511 = vadd.f32 %v2231, %v3144
    %v3512 = vadd.f32 %v2232, %v3146
    %v3513 = vadd.f32 %v2233, %v3148
    %v3514 = vadd.f32 %v2234, %v3150
    %v3515 = vadd.f32 %v2235, %v3152
    %v3516 = vadd.f32 %v2236, %v3154
    %v3517 = vadd.f32 %v2237, %v3156
    %v3518 = vadd.f32 %v2238, %v3158
    %v3519 = vadd.f32 %v2239, %v3160
    %v3520 = vadd.f32 %v2240, %v3162
    %v3521 = vadd.f32 %v2241, %v3164
    %v3522 = vadd.f32 %v2242, %v3166
    %v3523 = vadd.f32 %v2243, %v3168
    %v3524 = vadd.f32 %v2244, %v3170
    %v3525 = vadd.f32 %v2245, %v3172
    %v3526 = vadd.f32 %v2246, %v3174
    %v3527 = vadd.f32 %v2247, %v3176
    %v3528 = vadd.f32 %v2248, %v3178
    %v3529 = vadd.f32 %v2249, %v3180
    %v3530 = vadd.f32 %v2250, %v3182
    %v3531 = vadd.f32 %v2251, %v3184
    %v3532 = vadd.f32 %v2252, %v3186
    %v3533 = vadd.f32 %v2253, %v3188
    %v3534 = vadd.f32 %v2254, %v3190
    %v3535 = vadd.f32 %v2255, %v3192
    %v3536 = vadd.f32 %v2256, %v3194
    %v3537 = vadd.f32 %v2257, %v3196
    %v3538 = vadd.f32 %v2258, %v3198
    %v3539 = vadd.f32 %v2259, %v3200
    %v3540 = vadd.f32 %v2260, %v3202
    %v3541 = vadd.f32 %v2261, %v3204
    %v3542 = vadd.f32 %v2262, %v3206
    %v3543 = vadd.f32 %v2263, %v3208
    %v3544 = vadd.f32 %v2264, %v3210
    %v3545 = vadd.f32 %v2265, %v3212
    %v3546 = vadd.f32 %v2266, %v3214
    %v3547 = vadd.f32 %v2267, %v3216
    %v3548 = vadd.f32 %v2268, %v3218
    %v3549 = vadd.f32 %v2269, %v3220
    %v3550 = vadd.f32 %v2270, %v3222
    %v3551 = vadd.f32 %v2271, %v3224
    %v3552 = vadd.f32 %v2272, %v3226
    %v3553 = vadd.f32 %v2273, %v3228
    %v3554 = vadd.f32 %v2274, %v3230
    %v3555 = vadd.f32 %v2275, %v3232
    %v3556 = vadd.f32 %v2276, %v3234
    %v3557 = vadd.f32 %v2277, %v3236
    %v3558 = vadd.f32 %v2278, %v3238
    %v3559 = vadd.f32 %v2279, %v3240
    %v3560 = vadd.f32 %v2280, %v3242
    %v3561 = vadd.f32 %v2281, %v3244
    %v3562 = vadd.f32 %v2282, %v3246
    %v3563 = vadd.f32 %v2283, %v3248
    %v3564 = vadd.f32 %v2284, %v3250
    %v3565 = vadd.f32 %v2285, %v3252
    %v3566 = vadd.f32 %v2286, %v3254
    %v3567 = vadd.f32 %v2287, %v3256
    %v3568 = vadd.f32 %v2288, %v3258
    %v3569 = vadd.f32 %v2289, %v3260
    %v3570 = vadd.f32 %v2290, %v3262
    %v3571 = vadd.f32 %v2291, %v3264
    %v3572 = vadd.f32 %v2292, %v3266
    %v3573 = vadd.f32 %v2293, %v3268
    %v3574 = vadd.f32 %v2294, %v3270
    %v3575 = vadd.f32 %v2295, %v3272
    %v3576 = vadd.f32 %v2296, %v3274
    %v3577 = vadd.f32 %v2297, %v3276
    %v3578 = vadd.f32 %v2298, %v3278
    %v3579 = vadd.f32 %v2299, %v3280
    %v3580 = vadd.f32 %v2300, %v3282
    %v3581 = vadd.f32 %v2301, %v3284
    %v3582 = vadd.f32 %v2302, %v3286
    %v3583 = vadd.f32 %v2303, %v3288
    %v3584 = vadd.f32 %v2304, %v3290
    %v3585 = vadd.f32 %v2305, %v3292
    %v3586 = vadd.f32 %v2306, %v3294
    %v3587 = vadd.f32 %v2307, %v3296
    %v3588 = vadd.f32 %v2308, %v3298
    %v3589 = vadd.f32 %v2309, %v3300
    %v3590 = vadd.f32 %v2310, %v3302
    %v3591 = vadd.f32 %v2311, %v3304
    %v3592 = vadd.f32 %v2312, %v3306
    %v3593 = vadd.f32 %v2313, %v3308
    %v3594 = vadd.f32 %v2314, %v3310
    %v3595 = vadd.f32 %v2315, %v3312
    %v3596 = vadd.f32 %v2316, %v3314
    %v3597 = vadd.f32 %v2317, %v3316
    %v3598 = vadd.f32 %v2318, %v3318
    %v3599 = vadd.f32 %v2319, %v3320
    %v3600 = vadd.f32 %v2320, %v3322
    %v3601 = vadd.f32 %v2321, %v3324
    %v3602 = vadd.f32 %v2322, %v3326
    %v3603 = vadd.f32 %v2323, %v3328
    %v3604 = vadd.f32 %v2324, %v3330
    %v3605 = vadd.f32 %v2325, %v3332
    %v3606 = vadd.f32 %v2326, %v3334
    %v3607 = vadd.f32 %v2327, %v3336
    %v3608 = vadd.f32 %v2328, %v3338
    %v3609 = vadd.f32 %v2329, %v3340
    %v3610 = vadd.f32 %v2330, %v3342
    %v3611 = vadd.f32 %v2331, %v3344
    %v3612 = vadd.f32 %v2332, %v3346
    %v3613 = vadd.f32 %v2333, %v3348
    %v3614 = vadd.f32 %v2334, %v3350
    %v3615 = vadd.f32 %v2335, %v3352
    %v3616 = vadd.f32 %v2336, %v3354
    %v3617 = vadd.f32 %v2337, %v3356
    %v3618 = vadd.f32 %v2338, %v3358
    %v3619 = vadd.f32 %v2339, %v3360
    %v3620 = vadd.f32 %v2340, %v3362
    %v3621 = vadd.f32 %v2341, %v3364
    %v3622 = vadd.f32 %v2342, %v3366
    %v3623 = vlaneseq
    %v3624 = vshrl.u32 %v3623, 7
    %v3625 = vsub.s32 0, %v3624
    %v3626 = vrot.slane %v1255, %v3625
    %3628 = vbcast.lane.b32.xlu0 %v3626, 256
    %v3629 = vpop.permute.xlu0 %3628
    %s3631 = sor.u32 256, 8
    %3632 = vbcast.lane.b32.xlu0 %v3626, %s3631
    %v3633 = vpop.permute.xlu0 %3632
    %s3635 = sor.u32 256, 16
    %3636 = vbcast.lane.b32.xlu0 %v3626, %s3635
    %v3637 = vpop.permute.xlu0 %3636
    %s3639 = sor.u32 256, 24
    %3640 = vbcast.lane.b32.xlu0 %v3626, %s3639
    %v3641 = vpop.permute.xlu0 %3640
    %s3643 = sor.u32 256, 32
    %3644 = vbcast.lane.b32.xlu0 %v3626, %s3643
    %v3645 = vpop.permute.xlu0 %3644
    %s3647 = sor.u32 256, 40
    %3648 = vbcast.lane.b32.xlu0 %v3626, %s3647
    %v3649 = vpop.permute.xlu0 %3648
    %s3651 = sor.u32 256, 48
    %3652 = vbcast.lane.b32.xlu0 %v3626, %s3651
    %v3653 = vpop.permute.xlu0 %3652
    %s3655 = sor.u32 256, 56
    %3656 = vbcast.lane.b32.xlu0 %v3626, %s3655
    %v3657 = vpop.permute.xlu0 %3656
    %v3658 = vlaneseq
    %v3659 = vshrl.u32 %v3658, 7
    %v3660 = vsub.s32 1, %v3659
    %v3661 = vrot.slane %v1255, %v3660
    %3663 = vbcast.lane.b32.xlu0 %v3661, 256
    %v3664 = vpop.permute.xlu0 %3663
    %s3666 = sor.u32 256, 8
    %3667 = vbcast.lane.b32.xlu0 %v3661, %s3666
    %v3668 = vpop.permute.xlu0 %3667
    %s3670 = sor.u32 256, 16
    %3671 = vbcast.lane.b32.xlu0 %v3661, %s3670
    %v3672 = vpop.permute.xlu0 %3671
    %s3674 = sor.u32 256, 24
    %3675 = vbcast.lane.b32.xlu0 %v3661, %s3674
    %v3676 = vpop.permute.xlu0 %3675
    %s3678 = sor.u32 256, 32
    %3679 = vbcast.lane.b32.xlu0 %v3661, %s3678
    %v3680 = vpop.permute.xlu0 %3679
    %s3682 = sor.u32 256, 40
    %3683 = vbcast.lane.b32.xlu0 %v3661, %s3682
    %v3684 = vpop.permute.xlu0 %3683
    %s3686 = sor.u32 256, 48
    %3687 = vbcast.lane.b32.xlu0 %v3661, %s3686
    %v3688 = vpop.permute.xlu0 %3687
    %s3690 = sor.u32 256, 56
    %3691 = vbcast.lane.b32.xlu0 %v3661, %s3690
    %v3692 = vpop.permute.xlu0 %3691
    %v3693 = vlaneseq
    %v3694 = vshrl.u32 %v3693, 7
    %v3695 = vsub.s32 2, %v3694
    %v3696 = vrot.slane %v1255, %v3695
    %3698 = vbcast.lane.b32.xlu0 %v3696, 256
    %v3699 = vpop.permute.xlu0 %3698
    %s3701 = sor.u32 256, 8
    %3702 = vbcast.lane.b32.xlu0 %v3696, %s3701
    %v3703 = vpop.permute.xlu0 %3702
    %s3705 = sor.u32 256, 16
    %3706 = vbcast.lane.b32.xlu0 %v3696, %s3705
    %v3707 = vpop.permute.xlu0 %3706
    %s3709 = sor.u32 256, 24
    %3710 = vbcast.lane.b32.xlu0 %v3696, %s3709
    %v3711 = vpop.permute.xlu0 %3710
    %s3713 = sor.u32 256, 32
    %3714 = vbcast.lane.b32.xlu0 %v3696, %s3713
    %v3715 = vpop.permute.xlu0 %3714
    %s3717 = sor.u32 256, 40
    %3718 = vbcast.lane.b32.xlu0 %v3696, %s3717
    %v3719 = vpop.permute.xlu0 %3718
    %s3721 = sor.u32 256, 48
    %3722 = vbcast.lane.b32.xlu0 %v3696, %s3721
    %v3723 = vpop.permute.xlu0 %3722
    %s3725 = sor.u32 256, 56
    %3726 = vbcast.lane.b32.xlu0 %v3696, %s3725
    %v3727 = vpop.permute.xlu0 %3726
    %v3728 = vlaneseq
    %v3729 = vshrl.u32 %v3728, 7
    %v3730 = vsub.s32 3, %v3729
    %v3731 = vrot.slane %v1255, %v3730
    %3733 = vbcast.lane.b32.xlu0 %v3731, 256
    %v3734 = vpop.permute.xlu0 %3733
    %s3736 = sor.u32 256, 8
    %3737 = vbcast.lane.b32.xlu0 %v3731, %s3736
    %v3738 = vpop.permute.xlu0 %3737
    %s3740 = sor.u32 256, 16
    %3741 = vbcast.lane.b32.xlu0 %v3731, %s3740
    %v3742 = vpop.permute.xlu0 %3741
    %s3744 = sor.u32 256, 24
    %3745 = vbcast.lane.b32.xlu0 %v3731, %s3744
    %v3746 = vpop.permute.xlu0 %3745
    %s3748 = sor.u32 256, 32
    %3749 = vbcast.lane.b32.xlu0 %v3731, %s3748
    %v3750 = vpop.permute.xlu0 %3749
    %s3752 = sor.u32 256, 40
    %3753 = vbcast.lane.b32.xlu0 %v3731, %s3752
    %v3754 = vpop.permute.xlu0 %3753
    %s3756 = sor.u32 256, 48
    %3757 = vbcast.lane.b32.xlu0 %v3731, %s3756
    %v3758 = vpop.permute.xlu0 %3757
    %s3760 = sor.u32 256, 56
    %3761 = vbcast.lane.b32.xlu0 %v3731, %s3760
    %v3762 = vpop.permute.xlu0 %3761
    %v3763 = vlaneseq
    %v3764 = vshrl.u32 %v3763, 7
    %v3765 = vsub.s32 4, %v3764
    %v3766 = vrot.slane %v1255, %v3765
    %3768 = vbcast.lane.b32.xlu0 %v3766, 256
    %v3769 = vpop.permute.xlu0 %3768
    %s3771 = sor.u32 256, 8
    %3772 = vbcast.lane.b32.xlu0 %v3766, %s3771
    %v3773 = vpop.permute.xlu0 %3772
    %s3775 = sor.u32 256, 16
    %3776 = vbcast.lane.b32.xlu0 %v3766, %s3775
    %v3777 = vpop.permute.xlu0 %3776
    %s3779 = sor.u32 256, 24
    %3780 = vbcast.lane.b32.xlu0 %v3766, %s3779
    %v3781 = vpop.permute.xlu0 %3780
    %s3783 = sor.u32 256, 32
    %3784 = vbcast.lane.b32.xlu0 %v3766, %s3783
    %v3785 = vpop.permute.xlu0 %3784
    %s3787 = sor.u32 256, 40
    %3788 = vbcast.lane.b32.xlu0 %v3766, %s3787
    %v3789 = vpop.permute.xlu0 %3788
    %s3791 = sor.u32 256, 48
    %3792 = vbcast.lane.b32.xlu0 %v3766, %s3791
    %v3793 = vpop.permute.xlu0 %3792
    %s3795 = sor.u32 256, 56
    %3796 = vbcast.lane.b32.xlu0 %v3766, %s3795
    %v3797 = vpop.permute.xlu0 %3796
    %v3798 = vlaneseq
    %v3799 = vshrl.u32 %v3798, 7
    %v3800 = vsub.s32 5, %v3799
    %v3801 = vrot.slane %v1255, %v3800
    %3803 = vbcast.lane.b32.xlu0 %v3801, 256
    %v3804 = vpop.permute.xlu0 %3803
    %s3806 = sor.u32 256, 8
    %3807 = vbcast.lane.b32.xlu0 %v3801, %s3806
    %v3808 = vpop.permute.xlu0 %3807
    %s3810 = sor.u32 256, 16
    %3811 = vbcast.lane.b32.xlu0 %v3801, %s3810
    %v3812 = vpop.permute.xlu0 %3811
    %s3814 = sor.u32 256, 24
    %3815 = vbcast.lane.b32.xlu0 %v3801, %s3814
    %v3816 = vpop.permute.xlu0 %3815
    %s3818 = sor.u32 256, 32
    %3819 = vbcast.lane.b32.xlu0 %v3801, %s3818
    %v3820 = vpop.permute.xlu0 %3819
    %s3822 = sor.u32 256, 40
    %3823 = vbcast.lane.b32.xlu0 %v3801, %s3822
    %v3824 = vpop.permute.xlu0 %3823
    %s3826 = sor.u32 256, 48
    %3827 = vbcast.lane.b32.xlu0 %v3801, %s3826
    %v3828 = vpop.permute.xlu0 %3827
    %s3830 = sor.u32 256, 56
    %3831 = vbcast.lane.b32.xlu0 %v3801, %s3830
    %v3832 = vpop.permute.xlu0 %3831
    %v3833 = vlaneseq
    %v3834 = vshrl.u32 %v3833, 7
    %v3835 = vsub.s32 6, %v3834
    %v3836 = vrot.slane %v1255, %v3835
    %3838 = vbcast.lane.b32.xlu0 %v3836, 256
    %v3839 = vpop.permute.xlu0 %3838
    %s3841 = sor.u32 256, 8
    %3842 = vbcast.lane.b32.xlu0 %v3836, %s3841
    %v3843 = vpop.permute.xlu0 %3842
    %s3845 = sor.u32 256, 16
    %3846 = vbcast.lane.b32.xlu0 %v3836, %s3845
    %v3847 = vpop.permute.xlu0 %3846
    %s3849 = sor.u32 256, 24
    %3850 = vbcast.lane.b32.xlu0 %v3836, %s3849
    %v3851 = vpop.permute.xlu0 %3850
    %s3853 = sor.u32 256, 32
    %3854 = vbcast.lane.b32.xlu0 %v3836, %s3853
    %v3855 = vpop.permute.xlu0 %3854
    %s3857 = sor.u32 256, 40
    %3858 = vbcast.lane.b32.xlu0 %v3836, %s3857
    %v3859 = vpop.permute.xlu0 %3858
    %s3861 = sor.u32 256, 48
    %3862 = vbcast.lane.b32.xlu0 %v3836, %s3861
    %v3863 = vpop.permute.xlu0 %3862
    %s3865 = sor.u32 256, 56
    %3866 = vbcast.lane.b32.xlu0 %v3836, %s3865
    %v3867 = vpop.permute.xlu0 %3866
    %v3868 = vlaneseq
    %v3869 = vshrl.u32 %v3868, 7
    %v3870 = vsub.s32 7, %v3869
    %v3871 = vrot.slane %v1255, %v3870
    %3873 = vbcast.lane.b32.xlu0 %v3871, 256
    %v3874 = vpop.permute.xlu0 %3873
    %s3876 = sor.u32 256, 8
    %3877 = vbcast.lane.b32.xlu0 %v3871, %s3876
    %v3878 = vpop.permute.xlu0 %3877
    %s3880 = sor.u32 256, 16
    %3881 = vbcast.lane.b32.xlu0 %v3871, %s3880
    %v3882 = vpop.permute.xlu0 %3881
    %s3884 = sor.u32 256, 24
    %3885 = vbcast.lane.b32.xlu0 %v3871, %s3884
    %v3886 = vpop.permute.xlu0 %3885
    %s3888 = sor.u32 256, 32
    %3889 = vbcast.lane.b32.xlu0 %v3871, %s3888
    %v3890 = vpop.permute.xlu0 %3889
    %s3892 = sor.u32 256, 40
    %3893 = vbcast.lane.b32.xlu0 %v3871, %s3892
    %v3894 = vpop.permute.xlu0 %3893
    %s3896 = sor.u32 256, 48
    %3897 = vbcast.lane.b32.xlu0 %v3871, %s3896
    %v3898 = vpop.permute.xlu0 %3897
    %s3900 = sor.u32 256, 56
    %3901 = vbcast.lane.b32.xlu0 %v3871, %s3900
    %v3902 = vpop.permute.xlu0 %3901
    %v3903 = vlaneseq
    %v3904 = vshrl.u32 %v3903, 7
    %v3905 = vsub.s32 0, %v3904
    %v3906 = vrot.slane %v1259, %v3905
    %3908 = vbcast.lane.b32.xlu0 %v3906, 256
    %v3909 = vpop.permute.xlu0 %3908
    %s3911 = sor.u32 256, 8
    %3912 = vbcast.lane.b32.xlu0 %v3906, %s3911
    %v3913 = vpop.permute.xlu0 %3912
    %s3915 = sor.u32 256, 16
    %3916 = vbcast.lane.b32.xlu0 %v3906, %s3915
    %v3917 = vpop.permute.xlu0 %3916
    %s3919 = sor.u32 256, 24
    %3920 = vbcast.lane.b32.xlu0 %v3906, %s3919
    %v3921 = vpop.permute.xlu0 %3920
    %s3923 = sor.u32 256, 32
    %3924 = vbcast.lane.b32.xlu0 %v3906, %s3923
    %v3925 = vpop.permute.xlu0 %3924
    %s3927 = sor.u32 256, 40
    %3928 = vbcast.lane.b32.xlu0 %v3906, %s3927
    %v3929 = vpop.permute.xlu0 %3928
    %s3931 = sor.u32 256, 48
    %3932 = vbcast.lane.b32.xlu0 %v3906, %s3931
    %v3933 = vpop.permute.xlu0 %3932
    %s3935 = sor.u32 256, 56
    %3936 = vbcast.lane.b32.xlu0 %v3906, %s3935
    %v3937 = vpop.permute.xlu0 %3936
    %v3938 = vlaneseq
    %v3939 = vshrl.u32 %v3938, 7
    %v3940 = vsub.s32 1, %v3939
    %v3941 = vrot.slane %v1259, %v3940
    %3943 = vbcast.lane.b32.xlu0 %v3941, 256
    %v3944 = vpop.permute.xlu0 %3943
    %s3946 = sor.u32 256, 8
    %3947 = vbcast.lane.b32.xlu0 %v3941, %s3946
    %v3948 = vpop.permute.xlu0 %3947
    %s3950 = sor.u32 256, 16
    %3951 = vbcast.lane.b32.xlu0 %v3941, %s3950
    %v3952 = vpop.permute.xlu0 %3951
    %s3954 = sor.u32 256, 24
    %3955 = vbcast.lane.b32.xlu0 %v3941, %s3954
    %v3956 = vpop.permute.xlu0 %3955
    %s3958 = sor.u32 256, 32
    %3959 = vbcast.lane.b32.xlu0 %v3941, %s3958
    %v3960 = vpop.permute.xlu0 %3959
    %s3962 = sor.u32 256, 40
    %3963 = vbcast.lane.b32.xlu0 %v3941, %s3962
    %v3964 = vpop.permute.xlu0 %3963
    %s3966 = sor.u32 256, 48
    %3967 = vbcast.lane.b32.xlu0 %v3941, %s3966
    %v3968 = vpop.permute.xlu0 %3967
    %s3970 = sor.u32 256, 56
    %3971 = vbcast.lane.b32.xlu0 %v3941, %s3970
    %v3972 = vpop.permute.xlu0 %3971
    %v3973 = vlaneseq
    %v3974 = vshrl.u32 %v3973, 7
    %v3975 = vsub.s32 2, %v3974
    %v3976 = vrot.slane %v1259, %v3975
    %3978 = vbcast.lane.b32.xlu0 %v3976, 256
    %v3979 = vpop.permute.xlu0 %3978
    %s3981 = sor.u32 256, 8
    %3982 = vbcast.lane.b32.xlu0 %v3976, %s3981
    %v3983 = vpop.permute.xlu0 %3982
    %s3985 = sor.u32 256, 16
    %3986 = vbcast.lane.b32.xlu0 %v3976, %s3985
    %v3987 = vpop.permute.xlu0 %3986
    %s3989 = sor.u32 256, 24
    %3990 = vbcast.lane.b32.xlu0 %v3976, %s3989
    %v3991 = vpop.permute.xlu0 %3990
    %s3993 = sor.u32 256, 32
    %3994 = vbcast.lane.b32.xlu0 %v3976, %s3993
    %v3995 = vpop.permute.xlu0 %3994
    %s3997 = sor.u32 256, 40
    %3998 = vbcast.lane.b32.xlu0 %v3976, %s3997
    %v3999 = vpop.permute.xlu0 %3998
    %s4001 = sor.u32 256, 48
    %4002 = vbcast.lane.b32.xlu0 %v3976, %s4001
    %v4003 = vpop.permute.xlu0 %4002
    %s4005 = sor.u32 256, 56
    %4006 = vbcast.lane.b32.xlu0 %v3976, %s4005
    %v4007 = vpop.permute.xlu0 %4006
    %v4008 = vlaneseq
    %v4009 = vshrl.u32 %v4008, 7
    %v4010 = vsub.s32 3, %v4009
    %v4011 = vrot.slane %v1259, %v4010
    %4013 = vbcast.lane.b32.xlu0 %v4011, 256
    %v4014 = vpop.permute.xlu0 %4013
    %s4016 = sor.u32 256, 8
    %4017 = vbcast.lane.b32.xlu0 %v4011, %s4016
    %v4018 = vpop.permute.xlu0 %4017
    %s4020 = sor.u32 256, 16
    %4021 = vbcast.lane.b32.xlu0 %v4011, %s4020
    %v4022 = vpop.permute.xlu0 %4021
    %s4024 = sor.u32 256, 24
    %4025 = vbcast.lane.b32.xlu0 %v4011, %s4024
    %v4026 = vpop.permute.xlu0 %4025
    %s4028 = sor.u32 256, 32
    %4029 = vbcast.lane.b32.xlu0 %v4011, %s4028
    %v4030 = vpop.permute.xlu0 %4029
    %s4032 = sor.u32 256, 40
    %4033 = vbcast.lane.b32.xlu0 %v4011, %s4032
    %v4034 = vpop.permute.xlu0 %4033
    %s4036 = sor.u32 256, 48
    %4037 = vbcast.lane.b32.xlu0 %v4011, %s4036
    %v4038 = vpop.permute.xlu0 %4037
    %s4040 = sor.u32 256, 56
    %4041 = vbcast.lane.b32.xlu0 %v4011, %s4040
    %v4042 = vpop.permute.xlu0 %4041
    %v4043 = vlaneseq
    %v4044 = vshrl.u32 %v4043, 7
    %v4045 = vsub.s32 4, %v4044
    %v4046 = vrot.slane %v1259, %v4045
    %4048 = vbcast.lane.b32.xlu0 %v4046, 256
    %v4049 = vpop.permute.xlu0 %4048
    %s4051 = sor.u32 256, 8
    %4052 = vbcast.lane.b32.xlu0 %v4046, %s4051
    %v4053 = vpop.permute.xlu0 %4052
    %s4055 = sor.u32 256, 16
    %4056 = vbcast.lane.b32.xlu0 %v4046, %s4055
    %v4057 = vpop.permute.xlu0 %4056
    %s4059 = sor.u32 256, 24
    %4060 = vbcast.lane.b32.xlu0 %v4046, %s4059
    %v4061 = vpop.permute.xlu0 %4060
    %s4063 = sor.u32 256, 32
    %4064 = vbcast.lane.b32.xlu0 %v4046, %s4063
    %v4065 = vpop.permute.xlu0 %4064
    %s4067 = sor.u32 256, 40
    %4068 = vbcast.lane.b32.xlu0 %v4046, %s4067
    %v4069 = vpop.permute.xlu0 %4068
    %s4071 = sor.u32 256, 48
    %4072 = vbcast.lane.b32.xlu0 %v4046, %s4071
    %v4073 = vpop.permute.xlu0 %4072
    %s4075 = sor.u32 256, 56
    %4076 = vbcast.lane.b32.xlu0 %v4046, %s4075
    %v4077 = vpop.permute.xlu0 %4076
    %v4078 = vlaneseq
    %v4079 = vshrl.u32 %v4078, 7
    %v4080 = vsub.s32 5, %v4079
    %v4081 = vrot.slane %v1259, %v4080
    %4083 = vbcast.lane.b32.xlu0 %v4081, 256
    %v4084 = vpop.permute.xlu0 %4083
    %s4086 = sor.u32 256, 8
    %4087 = vbcast.lane.b32.xlu0 %v4081, %s4086
    %v4088 = vpop.permute.xlu0 %4087
    %s4090 = sor.u32 256, 16
    %4091 = vbcast.lane.b32.xlu0 %v4081, %s4090
    %v4092 = vpop.permute.xlu0 %4091
    %s4094 = sor.u32 256, 24
    %4095 = vbcast.lane.b32.xlu0 %v4081, %s4094
    %v4096 = vpop.permute.xlu0 %4095
    %s4098 = sor.u32 256, 32
    %4099 = vbcast.lane.b32.xlu0 %v4081, %s4098
    %v4100 = vpop.permute.xlu0 %4099
    %s4102 = sor.u32 256, 40
    %4103 = vbcast.lane.b32.xlu0 %v4081, %s4102
    %v4104 = vpop.permute.xlu0 %4103
    %s4106 = sor.u32 256, 48
    %4107 = vbcast.lane.b32.xlu0 %v4081, %s4106
    %v4108 = vpop.permute.xlu0 %4107
    %s4110 = sor.u32 256, 56
    %4111 = vbcast.lane.b32.xlu0 %v4081, %s4110
    %v4112 = vpop.permute.xlu0 %4111
    %v4113 = vlaneseq
    %v4114 = vshrl.u32 %v4113, 7
    %v4115 = vsub.s32 6, %v4114
    %v4116 = vrot.slane %v1259, %v4115
    %4118 = vbcast.lane.b32.xlu0 %v4116, 256
    %v4119 = vpop.permute.xlu0 %4118
    %s4121 = sor.u32 256, 8
    %4122 = vbcast.lane.b32.xlu0 %v4116, %s4121
    %v4123 = vpop.permute.xlu0 %4122
    %s4125 = sor.u32 256, 16
    %4126 = vbcast.lane.b32.xlu0 %v4116, %s4125
    %v4127 = vpop.permute.xlu0 %4126
    %s4129 = sor.u32 256, 24
    %4130 = vbcast.lane.b32.xlu0 %v4116, %s4129
    %v4131 = vpop.permute.xlu0 %4130
    %s4133 = sor.u32 256, 32
    %4134 = vbcast.lane.b32.xlu0 %v4116, %s4133
    %v4135 = vpop.permute.xlu0 %4134
    %s4137 = sor.u32 256, 40
    %4138 = vbcast.lane.b32.xlu0 %v4116, %s4137
    %v4139 = vpop.permute.xlu0 %4138
    %s4141 = sor.u32 256, 48
    %4142 = vbcast.lane.b32.xlu0 %v4116, %s4141
    %v4143 = vpop.permute.xlu0 %4142
    %s4145 = sor.u32 256, 56
    %4146 = vbcast.lane.b32.xlu0 %v4116, %s4145
    %v4147 = vpop.permute.xlu0 %4146
    %v4148 = vlaneseq
    %v4149 = vshrl.u32 %v4148, 7
    %v4150 = vsub.s32 7, %v4149
    %v4151 = vrot.slane %v1259, %v4150
    %4153 = vbcast.lane.b32.xlu0 %v4151, 256
    %v4154 = vpop.permute.xlu0 %4153
    %s4156 = sor.u32 256, 8
    %4157 = vbcast.lane.b32.xlu0 %v4151, %s4156
    %v4158 = vpop.permute.xlu0 %4157
    %s4160 = sor.u32 256, 16
    %4161 = vbcast.lane.b32.xlu0 %v4151, %s4160
    %v4162 = vpop.permute.xlu0 %4161
    %s4164 = sor.u32 256, 24
    %4165 = vbcast.lane.b32.xlu0 %v4151, %s4164
    %v4166 = vpop.permute.xlu0 %4165
    %s4168 = sor.u32 256, 32
    %4169 = vbcast.lane.b32.xlu0 %v4151, %s4168
    %v4170 = vpop.permute.xlu0 %4169
    %s4172 = sor.u32 256, 40
    %4173 = vbcast.lane.b32.xlu0 %v4151, %s4172
    %v4174 = vpop.permute.xlu0 %4173
    %s4176 = sor.u32 256, 48
    %4177 = vbcast.lane.b32.xlu0 %v4151, %s4176
    %v4178 = vpop.permute.xlu0 %4177
    %s4180 = sor.u32 256, 56
    %4181 = vbcast.lane.b32.xlu0 %v4151, %s4180
    %v4182 = vpop.permute.xlu0 %4181
    %v4185 = vcombine.high %v1298, %v1298
    %v4187 = vunpack.c.l.s4 1966171168
    %v4188 = vunpack.c.0.s8 %v4187
    %v4189 = vlaneseq
    %v4190 = vshrl.u32 %v4189, 7
    %v4191 = vsub.s32 %v4188, %v4190
    %v4192 = vrot.slane %v1298, %v4191
    %v4194 = vunpack.c.l.s4 1966171168
    %v4195 = vunpack.c.0.s8 %v4194
    %v4196 = vlaneseq
    %v4197 = vshrl.u32 %v4196, 7
    %v4198 = vsub.s32 %v4195, %v4197
    %v4199 = vrot.slane %v4185, %v4198
    %v4200 = vcombine.high %v4192, %v4192
    %v4201 = vcombine.high %v4199, %v4199
    %v4203 = vunpack.c.l.s4 1966171168
    %v4204 = vunpack.c.0.s8 %v4203
    %v4205 = vlaneseq
    %v4206 = vshrl.u32 %v4205, 7
    %v4207 = vsub.s32 %v4204, %v4206
    %v4208 = vrot.slane %v4192, %v4207
    %v4210 = vunpack.c.l.s4 1966171168
    %v4211 = vunpack.c.0.s8 %v4210
    %v4212 = vlaneseq
    %v4213 = vshrl.u32 %v4212, 7
    %v4214 = vsub.s32 %v4211, %v4213
    %v4215 = vrot.slane %v4199, %v4214
    %v4217 = vunpack.c.l.s4 1966171168
    %v4218 = vunpack.c.0.s8 %v4217
    %v4219 = vlaneseq
    %v4220 = vshrl.u32 %v4219, 7
    %v4221 = vsub.s32 %v4218, %v4220
    %v4222 = vrot.slane %v4200, %v4221
    %v4224 = vunpack.c.l.s4 1966171168
    %v4225 = vunpack.c.0.s8 %v4224
    %v4226 = vlaneseq
    %v4227 = vshrl.u32 %v4226, 7
    %v4228 = vsub.s32 %v4225, %v4227
    %v4229 = vrot.slane %v4201, %v4228
    %v4230 = vcombine.high %v4208, %v4208
    %v4231 = vcombine.high %v4215, %v4215
    %v4232 = vcombine.high %v4222, %v4222
    %v4233 = vcombine.high %v4229, %v4229
    %v4234 = vcombine.high %v1302, %v1302
    %v4236 = vunpack.c.l.s4 1966171168
    %v4237 = vunpack.c.0.s8 %v4236
    %v4238 = vlaneseq
    %v4239 = vshrl.u32 %v4238, 7
    %v4240 = vsub.s32 %v4237, %v4239
    %v4241 = vrot.slane %v1302, %v4240
    %v4243 = vunpack.c.l.s4 1966171168
    %v4244 = vunpack.c.0.s8 %v4243
    %v4245 = vlaneseq
    %v4246 = vshrl.u32 %v4245, 7
    %v4247 = vsub.s32 %v4244, %v4246
    %v4248 = vrot.slane %v4234, %v4247
    %v4249 = vcombine.high %v4241, %v4241
    %v4250 = vcombine.high %v4248, %v4248
    %v4252 = vunpack.c.l.s4 1966171168
    %v4253 = vunpack.c.0.s8 %v4252
    %v4254 = vlaneseq
    %v4255 = vshrl.u32 %v4254, 7
    %v4256 = vsub.s32 %v4253, %v4255
    %v4257 = vrot.slane %v4241, %v4256
    %v4259 = vunpack.c.l.s4 1966171168
    %v4260 = vunpack.c.0.s8 %v4259
    %v4261 = vlaneseq
    %v4262 = vshrl.u32 %v4261, 7
    %v4263 = vsub.s32 %v4260, %v4262
    %v4264 = vrot.slane %v4248, %v4263
    %v4266 = vunpack.c.l.s4 1966171168
    %v4267 = vunpack.c.0.s8 %v4266
    %v4268 = vlaneseq
    %v4269 = vshrl.u32 %v4268, 7
    %v4270 = vsub.s32 %v4267, %v4269
    %v4271 = vrot.slane %v4249, %v4270
    %v4273 = vunpack.c.l.s4 1966171168
    %v4274 = vunpack.c.0.s8 %v4273
    %v4275 = vlaneseq
    %v4276 = vshrl.u32 %v4275, 7
    %v4277 = vsub.s32 %v4274, %v4276
    %v4278 = vrot.slane %v4250, %v4277
    %v4279 = vcombine.high %v4257, %v4257
    %v4280 = vcombine.high %v4264, %v4264
    %v4281 = vcombine.high %v4271, %v4271
    %v4282 = vcombine.high %v4278, %v4278
    %v4283 = vlaneseq
    %v4284 = vshrl.u32 %v4283, 7
    %v4285 = vsub.s32 0, %v4284
    %v4286 = vrot.slane %v4208, %v4285
    %v4287 = vlaneseq
    %v4288 = vshrl.u32 %v4287, 7
    %v4289 = vsub.s32 0, %v4288
    %v4290 = vrot.slane %v4222, %v4289
    %v4291 = vlaneseq
    %v4292 = vshrl.u32 %v4291, 7
    %v4293 = vsub.s32 0, %v4292
    %v4294 = vrot.slane %v4230, %v4293
    %v4295 = vlaneseq
    %v4296 = vshrl.u32 %v4295, 7
    %v4297 = vsub.s32 0, %v4296
    %v4298 = vrot.slane %v4232, %v4297
    %v4299 = vlaneseq
    %v4300 = vshrl.u32 %v4299, 7
    %v4301 = vsub.s32 0, %v4300
    %v4302 = vrot.slane %v4215, %v4301
    %v4303 = vlaneseq
    %v4304 = vshrl.u32 %v4303, 7
    %v4305 = vsub.s32 0, %v4304
    %v4306 = vrot.slane %v4229, %v4305
    %v4307 = vlaneseq
    %v4308 = vshrl.u32 %v4307, 7
    %v4309 = vsub.s32 0, %v4308
    %v4310 = vrot.slane %v4231, %v4309
    %v4311 = vlaneseq
    %v4312 = vshrl.u32 %v4311, 7
    %v4313 = vsub.s32 0, %v4312
    %v4314 = vrot.slane %v4233, %v4313
    %v4315 = vlaneseq
    %v4316 = vshrl.u32 %v4315, 7
    %v4317 = vsub.s32 0, %v4316
    %v4318 = vrot.slane %v4257, %v4317
    %v4319 = vlaneseq
    %v4320 = vshrl.u32 %v4319, 7
    %v4321 = vsub.s32 0, %v4320
    %v4322 = vrot.slane %v4271, %v4321
    %v4323 = vlaneseq
    %v4324 = vshrl.u32 %v4323, 7
    %v4325 = vsub.s32 0, %v4324
    %v4326 = vrot.slane %v4279, %v4325
    %v4327 = vlaneseq
    %v4328 = vshrl.u32 %v4327, 7
    %v4329 = vsub.s32 0, %v4328
    %v4330 = vrot.slane %v4281, %v4329
    %v4331 = vlaneseq
    %v4332 = vshrl.u32 %v4331, 7
    %v4333 = vsub.s32 0, %v4332
    %v4334 = vrot.slane %v4264, %v4333
    %v4335 = vlaneseq
    %v4336 = vshrl.u32 %v4335, 7
    %v4337 = vsub.s32 0, %v4336
    %v4338 = vrot.slane %v4278, %v4337
    %v4339 = vlaneseq
    %v4340 = vshrl.u32 %v4339, 7
    %v4341 = vsub.s32 0, %v4340
    %v4342 = vrot.slane %v4280, %v4341
    %v4343 = vlaneseq
    %v4344 = vshrl.u32 %v4343, 7
    %v4345 = vsub.s32 0, %v4344
    %v4346 = vrot.slane %v4282, %v4345
    %v4363 = vmul.f32 %v3629, %v4286
    %v4364 = vmul.f32 %v3633, %v4286
    %v4365 = vmul.f32 %v3637, %v4286
    %v4366 = vmul.f32 %v3641, %v4286
    %v4367 = vmul.f32 %v3645, %v4286
    %v4368 = vmul.f32 %v3649, %v4286
    %v4369 = vmul.f32 %v3653, %v4286
    %v4370 = vmul.f32 %v3657, %v4286
    %v4371 = vmul.f32 %v3664, %v4290
    %v4372 = vmul.f32 %v3668, %v4290
    %v4373 = vmul.f32 %v3672, %v4290
    %v4374 = vmul.f32 %v3676, %v4290
    %v4375 = vmul.f32 %v3680, %v4290
    %v4376 = vmul.f32 %v3684, %v4290
    %v4377 = vmul.f32 %v3688, %v4290
    %v4378 = vmul.f32 %v3692, %v4290
    %v4379 = vmul.f32 %v3699, %v4294
    %v4380 = vmul.f32 %v3703, %v4294
    %v4381 = vmul.f32 %v3707, %v4294
    %v4382 = vmul.f32 %v3711, %v4294
    %v4383 = vmul.f32 %v3715, %v4294
    %v4384 = vmul.f32 %v3719, %v4294
    %v4385 = vmul.f32 %v3723, %v4294
    %v4386 = vmul.f32 %v3727, %v4294
    %v4387 = vmul.f32 %v3734, %v4298
    %v4388 = vmul.f32 %v3738, %v4298
    %v4389 = vmul.f32 %v3742, %v4298
    %v4390 = vmul.f32 %v3746, %v4298
    %v4391 = vmul.f32 %v3750, %v4298
    %v4392 = vmul.f32 %v3754, %v4298
    %v4393 = vmul.f32 %v3758, %v4298
    %v4394 = vmul.f32 %v3762, %v4298
    %v4395 = vmul.f32 %v3769, %v4302
    %v4396 = vmul.f32 %v3773, %v4302
    %v4397 = vmul.f32 %v3777, %v4302
    %v4398 = vmul.f32 %v3781, %v4302
    %v4399 = vmul.f32 %v3785, %v4302
    %v4400 = vmul.f32 %v3789, %v4302
    %v4401 = vmul.f32 %v3793, %v4302
    %v4402 = vmul.f32 %v3797, %v4302
    %v4403 = vmul.f32 %v3804, %v4306
    %v4404 = vmul.f32 %v3808, %v4306
    %v4405 = vmul.f32 %v3812, %v4306
    %v4406 = vmul.f32 %v3816, %v4306
    %v4407 = vmul.f32 %v3820, %v4306
    %v4408 = vmul.f32 %v3824, %v4306
    %v4409 = vmul.f32 %v3828, %v4306
    %v4410 = vmul.f32 %v3832, %v4306
    %v4411 = vmul.f32 %v3839, %v4310
    %v4412 = vmul.f32 %v3843, %v4310
    %v4413 = vmul.f32 %v3847, %v4310
    %v4414 = vmul.f32 %v3851, %v4310
    %v4415 = vmul.f32 %v3855, %v4310
    %v4416 = vmul.f32 %v3859, %v4310
    %v4417 = vmul.f32 %v3863, %v4310
    %v4418 = vmul.f32 %v3867, %v4310
    %v4419 = vmul.f32 %v3874, %v4314
    %v4420 = vmul.f32 %v3878, %v4314
    %v4421 = vmul.f32 %v3882, %v4314
    %v4422 = vmul.f32 %v3886, %v4314
    %v4423 = vmul.f32 %v3890, %v4314
    %v4424 = vmul.f32 %v3894, %v4314
    %v4425 = vmul.f32 %v3898, %v4314
    %v4426 = vmul.f32 %v3902, %v4314
    %v4427 = vmul.f32 %v3909, %v4318
    %v4428 = vmul.f32 %v3913, %v4318
    %v4429 = vmul.f32 %v3917, %v4318
    %v4430 = vmul.f32 %v3921, %v4318
    %v4431 = vmul.f32 %v3925, %v4318
    %v4432 = vmul.f32 %v3929, %v4318
    %v4433 = vmul.f32 %v3933, %v4318
    %v4434 = vmul.f32 %v3937, %v4318
    %v4435 = vmul.f32 %v3944, %v4322
    %v4436 = vmul.f32 %v3948, %v4322
    %v4437 = vmul.f32 %v3952, %v4322
    %v4438 = vmul.f32 %v3956, %v4322
    %v4439 = vmul.f32 %v3960, %v4322
    %v4440 = vmul.f32 %v3964, %v4322
    %v4441 = vmul.f32 %v3968, %v4322
    %v4442 = vmul.f32 %v3972, %v4322
    %v4443 = vmul.f32 %v3979, %v4326
    %v4444 = vmul.f32 %v3983, %v4326
    %v4445 = vmul.f32 %v3987, %v4326
    %v4446 = vmul.f32 %v3991, %v4326
    %v4447 = vmul.f32 %v3995, %v4326
    %v4448 = vmul.f32 %v3999, %v4326
    %v4449 = vmul.f32 %v4003, %v4326
    %v4450 = vmul.f32 %v4007, %v4326
    %v4451 = vmul.f32 %v4014, %v4330
    %v4452 = vmul.f32 %v4018, %v4330
    %v4453 = vmul.f32 %v4022, %v4330
    %v4454 = vmul.f32 %v4026, %v4330
    %v4455 = vmul.f32 %v4030, %v4330
    %v4456 = vmul.f32 %v4034, %v4330
    %v4457 = vmul.f32 %v4038, %v4330
    %v4458 = vmul.f32 %v4042, %v4330
    %v4459 = vmul.f32 %v4049, %v4334
    %v4460 = vmul.f32 %v4053, %v4334
    %v4461 = vmul.f32 %v4057, %v4334
    %v4462 = vmul.f32 %v4061, %v4334
    %v4463 = vmul.f32 %v4065, %v4334
    %v4464 = vmul.f32 %v4069, %v4334
    %v4465 = vmul.f32 %v4073, %v4334
    %v4466 = vmul.f32 %v4077, %v4334
    %v4467 = vmul.f32 %v4084, %v4338
    %v4468 = vmul.f32 %v4088, %v4338
    %v4469 = vmul.f32 %v4092, %v4338
    %v4470 = vmul.f32 %v4096, %v4338
    %v4471 = vmul.f32 %v4100, %v4338
    %v4472 = vmul.f32 %v4104, %v4338
    %v4473 = vmul.f32 %v4108, %v4338
    %v4474 = vmul.f32 %v4112, %v4338
    %v4475 = vmul.f32 %v4119, %v4342
    %v4476 = vmul.f32 %v4123, %v4342
    %v4477 = vmul.f32 %v4127, %v4342
    %v4478 = vmul.f32 %v4131, %v4342
    %v4479 = vmul.f32 %v4135, %v4342
    %v4480 = vmul.f32 %v4139, %v4342
    %v4481 = vmul.f32 %v4143, %v4342
    %v4482 = vmul.f32 %v4147, %v4342
    %v4483 = vmul.f32 %v4154, %v4346
    %v4484 = vmul.f32 %v4158, %v4346
    %v4485 = vmul.f32 %v4162, %v4346
    %v4486 = vmul.f32 %v4166, %v4346
    %v4487 = vmul.f32 %v4170, %v4346
    %v4488 = vmul.f32 %v4174, %v4346
    %v4489 = vmul.f32 %v4178, %v4346
    %v4490 = vmul.f32 %v4182, %v4346
    %v4491 = vadd.f32 %v3495, %v4363
    %v4492 = vadd.f32 %v3496, %v4364
    %v4493 = vadd.f32 %v3497, %v4365
    %v4494 = vadd.f32 %v3498, %v4366
    %v4495 = vadd.f32 %v3499, %v4367
    %v4496 = vadd.f32 %v3500, %v4368
    %v4497 = vadd.f32 %v3501, %v4369
    %v4498 = vadd.f32 %v3502, %v4370
    %v4499 = vadd.f32 %v3503, %v4371
    %v4500 = vadd.f32 %v3504, %v4372
    %v4501 = vadd.f32 %v3505, %v4373
    %v4502 = vadd.f32 %v3506, %v4374
    %v4503 = vadd.f32 %v3507, %v4375
    %v4504 = vadd.f32 %v3508, %v4376
    %v4505 = vadd.f32 %v3509, %v4377
    %v4506 = vadd.f32 %v3510, %v4378
    %v4507 = vadd.f32 %v3511, %v4379
    %v4508 = vadd.f32 %v3512, %v4380
    %v4509 = vadd.f32 %v3513, %v4381
    %v4510 = vadd.f32 %v3514, %v4382
    %v4511 = vadd.f32 %v3515, %v4383
    %v4512 = vadd.f32 %v3516, %v4384
    %v4513 = vadd.f32 %v3517, %v4385
    %v4514 = vadd.f32 %v3518, %v4386
    %v4515 = vadd.f32 %v3519, %v4387
    %v4516 = vadd.f32 %v3520, %v4388
    %v4517 = vadd.f32 %v3521, %v4389
    %v4518 = vadd.f32 %v3522, %v4390
    %v4519 = vadd.f32 %v3523, %v4391
    %v4520 = vadd.f32 %v3524, %v4392
    %v4521 = vadd.f32 %v3525, %v4393
    %v4522 = vadd.f32 %v3526, %v4394
    %v4523 = vadd.f32 %v3527, %v4395
    %v4524 = vadd.f32 %v3528, %v4396
    %v4525 = vadd.f32 %v3529, %v4397
    %v4526 = vadd.f32 %v3530, %v4398
    %v4527 = vadd.f32 %v3531, %v4399
    %v4528 = vadd.f32 %v3532, %v4400
    %v4529 = vadd.f32 %v3533, %v4401
    %v4530 = vadd.f32 %v3534, %v4402
    %v4531 = vadd.f32 %v3535, %v4403
    %v4532 = vadd.f32 %v3536, %v4404
    %v4533 = vadd.f32 %v3537, %v4405
    %v4534 = vadd.f32 %v3538, %v4406
    %v4535 = vadd.f32 %v3539, %v4407
    %v4536 = vadd.f32 %v3540, %v4408
    %v4537 = vadd.f32 %v3541, %v4409
    %v4538 = vadd.f32 %v3542, %v4410
    %v4539 = vadd.f32 %v3543, %v4411
    %v4540 = vadd.f32 %v3544, %v4412
    %v4541 = vadd.f32 %v3545, %v4413
    %v4542 = vadd.f32 %v3546, %v4414
    %v4543 = vadd.f32 %v3547, %v4415
    %v4544 = vadd.f32 %v3548, %v4416
    %v4545 = vadd.f32 %v3549, %v4417
    %v4546 = vadd.f32 %v3550, %v4418
    %v4547 = vadd.f32 %v3551, %v4419
    %v4548 = vadd.f32 %v3552, %v4420
    %v4549 = vadd.f32 %v3553, %v4421
    %v4550 = vadd.f32 %v3554, %v4422
    %v4551 = vadd.f32 %v3555, %v4423
    %v4552 = vadd.f32 %v3556, %v4424
    %v4553 = vadd.f32 %v3557, %v4425
    %v4554 = vadd.f32 %v3558, %v4426
    %v4555 = vadd.f32 %v3559, %v4427
    %v4556 = vadd.f32 %v3560, %v4428
    %v4557 = vadd.f32 %v3561, %v4429
    %v4558 = vadd.f32 %v3562, %v4430
    %v4559 = vadd.f32 %v3563, %v4431
    %v4560 = vadd.f32 %v3564, %v4432
    %v4561 = vadd.f32 %v3565, %v4433
    %v4562 = vadd.f32 %v3566, %v4434
    %v4563 = vadd.f32 %v3567, %v4435
    %v4564 = vadd.f32 %v3568, %v4436
    %v4565 = vadd.f32 %v3569, %v4437
    %v4566 = vadd.f32 %v3570, %v4438
    %v4567 = vadd.f32 %v3571, %v4439
    %v4568 = vadd.f32 %v3572, %v4440
    %v4569 = vadd.f32 %v3573, %v4441
    %v4570 = vadd.f32 %v3574, %v4442
    %v4571 = vadd.f32 %v3575, %v4443
    %v4572 = vadd.f32 %v3576, %v4444
    %v4573 = vadd.f32 %v3577, %v4445
    %v4574 = vadd.f32 %v3578, %v4446
    %v4575 = vadd.f32 %v3579, %v4447
    %v4576 = vadd.f32 %v3580, %v4448
    %v4577 = vadd.f32 %v3581, %v4449
    %v4578 = vadd.f32 %v3582, %v4450
    %v4579 = vadd.f32 %v3583, %v4451
    %v4580 = vadd.f32 %v3584, %v4452
    %v4581 = vadd.f32 %v3585, %v4453
    %v4582 = vadd.f32 %v3586, %v4454
    %v4583 = vadd.f32 %v3587, %v4455
    %v4584 = vadd.f32 %v3588, %v4456
    %v4585 = vadd.f32 %v3589, %v4457
    %v4586 = vadd.f32 %v3590, %v4458
    %v4587 = vadd.f32 %v3591, %v4459
    %v4588 = vadd.f32 %v3592, %v4460
    %v4589 = vadd.f32 %v3593, %v4461
    %v4590 = vadd.f32 %v3594, %v4462
    %v4591 = vadd.f32 %v3595, %v4463
    %v4592 = vadd.f32 %v3596, %v4464
    %v4593 = vadd.f32 %v3597, %v4465
    %v4594 = vadd.f32 %v3598, %v4466
    %v4595 = vadd.f32 %v3599, %v4467
    %v4596 = vadd.f32 %v3600, %v4468
    %v4597 = vadd.f32 %v3601, %v4469
    %v4598 = vadd.f32 %v3602, %v4470
    %v4599 = vadd.f32 %v3603, %v4471
    %v4600 = vadd.f32 %v3604, %v4472
    %v4601 = vadd.f32 %v3605, %v4473
    %v4602 = vadd.f32 %v3606, %v4474
    %v4603 = vadd.f32 %v3607, %v4475
    %v4604 = vadd.f32 %v3608, %v4476
    %v4605 = vadd.f32 %v3609, %v4477
    %v4606 = vadd.f32 %v3610, %v4478
    %v4607 = vadd.f32 %v3611, %v4479
    %v4608 = vadd.f32 %v3612, %v4480
    %v4609 = vadd.f32 %v3613, %v4481
    %v4610 = vadd.f32 %v3614, %v4482
    %v4611 = vadd.f32 %v3615, %v4483
    %v4612 = vadd.f32 %v3616, %v4484
    %v4613 = vadd.f32 %v3617, %v4485
    %v4614 = vadd.f32 %v3618, %v4486
    %v4615 = vadd.f32 %v3619, %v4487
    %v4616 = vadd.f32 %v3620, %v4488
    %v4617 = vadd.f32 %v3621, %v4489
    %v4618 = vadd.f32 %v3622, %v4490
    %s4620 = sor.u32 256, 64
    %4621 = vbcast.lane.b32.xlu0 %v3626, %s4620
    %v4622 = vpop.permute.xlu0 %4621
    %s4624 = sor.u32 256, 72
    %4625 = vbcast.lane.b32.xlu0 %v3626, %s4624
    %v4626 = vpop.permute.xlu0 %4625
    %s4628 = sor.u32 256, 80
    %4629 = vbcast.lane.b32.xlu0 %v3626, %s4628
    %v4630 = vpop.permute.xlu0 %4629
    %s4632 = sor.u32 256, 88
    %4633 = vbcast.lane.b32.xlu0 %v3626, %s4632
    %v4634 = vpop.permute.xlu0 %4633
    %s4636 = sor.u32 256, 96
    %4637 = vbcast.lane.b32.xlu0 %v3626, %s4636
    %v4638 = vpop.permute.xlu0 %4637
    %s4640 = sor.u32 256, 104
    %4641 = vbcast.lane.b32.xlu0 %v3626, %s4640
    %v4642 = vpop.permute.xlu0 %4641
    %s4644 = sor.u32 256, 112
    %4645 = vbcast.lane.b32.xlu0 %v3626, %s4644
    %v4646 = vpop.permute.xlu0 %4645
    %s4648 = sor.u32 256, 120
    %4649 = vbcast.lane.b32.xlu0 %v3626, %s4648
    %v4650 = vpop.permute.xlu0 %4649
    %s4652 = sor.u32 256, 64
    %4653 = vbcast.lane.b32.xlu0 %v3661, %s4652
    %v4654 = vpop.permute.xlu0 %4653
    %s4656 = sor.u32 256, 72
    %4657 = vbcast.lane.b32.xlu0 %v3661, %s4656
    %v4658 = vpop.permute.xlu0 %4657
    %s4660 = sor.u32 256, 80
    %4661 = vbcast.lane.b32.xlu0 %v3661, %s4660
    %v4662 = vpop.permute.xlu0 %4661
    %s4664 = sor.u32 256, 88
    %4665 = vbcast.lane.b32.xlu0 %v3661, %s4664
    %v4666 = vpop.permute.xlu0 %4665
    %s4668 = sor.u32 256, 96
    %4669 = vbcast.lane.b32.xlu0 %v3661, %s4668
    %v4670 = vpop.permute.xlu0 %4669
    %s4672 = sor.u32 256, 104
    %4673 = vbcast.lane.b32.xlu0 %v3661, %s4672
    %v4674 = vpop.permute.xlu0 %4673
    %s4676 = sor.u32 256, 112
    %4677 = vbcast.lane.b32.xlu0 %v3661, %s4676
    %v4678 = vpop.permute.xlu0 %4677
    %s4680 = sor.u32 256, 120
    %4681 = vbcast.lane.b32.xlu0 %v3661, %s4680
    %v4682 = vpop.permute.xlu0 %4681
    %s4684 = sor.u32 256, 64
    %4685 = vbcast.lane.b32.xlu0 %v3696, %s4684
    %v4686 = vpop.permute.xlu0 %4685
    %s4688 = sor.u32 256, 72
    %4689 = vbcast.lane.b32.xlu0 %v3696, %s4688
    %v4690 = vpop.permute.xlu0 %4689
    %s4692 = sor.u32 256, 80
    %4693 = vbcast.lane.b32.xlu0 %v3696, %s4692
    %v4694 = vpop.permute.xlu0 %4693
    %s4696 = sor.u32 256, 88
    %4697 = vbcast.lane.b32.xlu0 %v3696, %s4696
    %v4698 = vpop.permute.xlu0 %4697
    %s4700 = sor.u32 256, 96
    %4701 = vbcast.lane.b32.xlu0 %v3696, %s4700
    %v4702 = vpop.permute.xlu0 %4701
    %s4704 = sor.u32 256, 104
    %4705 = vbcast.lane.b32.xlu0 %v3696, %s4704
    %v4706 = vpop.permute.xlu0 %4705
    %s4708 = sor.u32 256, 112
    %4709 = vbcast.lane.b32.xlu0 %v3696, %s4708
    %v4710 = vpop.permute.xlu0 %4709
    %s4712 = sor.u32 256, 120
    %4713 = vbcast.lane.b32.xlu0 %v3696, %s4712
    %v4714 = vpop.permute.xlu0 %4713
    %s4716 = sor.u32 256, 64
    %4717 = vbcast.lane.b32.xlu0 %v3731, %s4716
    %v4718 = vpop.permute.xlu0 %4717
    %s4720 = sor.u32 256, 72
    %4721 = vbcast.lane.b32.xlu0 %v3731, %s4720
    %v4722 = vpop.permute.xlu0 %4721
    %s4724 = sor.u32 256, 80
    %4725 = vbcast.lane.b32.xlu0 %v3731, %s4724
    %v4726 = vpop.permute.xlu0 %4725
    %s4728 = sor.u32 256, 88
    %4729 = vbcast.lane.b32.xlu0 %v3731, %s4728
    %v4730 = vpop.permute.xlu0 %4729
    %s4732 = sor.u32 256, 96
    %4733 = vbcast.lane.b32.xlu0 %v3731, %s4732
    %v4734 = vpop.permute.xlu0 %4733
    %s4736 = sor.u32 256, 104
    %4737 = vbcast.lane.b32.xlu0 %v3731, %s4736
    %v4738 = vpop.permute.xlu0 %4737
    %s4740 = sor.u32 256, 112
    %4741 = vbcast.lane.b32.xlu0 %v3731, %s4740
    %v4742 = vpop.permute.xlu0 %4741
    %s4744 = sor.u32 256, 120
    %4745 = vbcast.lane.b32.xlu0 %v3731, %s4744
    %v4746 = vpop.permute.xlu0 %4745
    %s4748 = sor.u32 256, 64
    %4749 = vbcast.lane.b32.xlu0 %v3766, %s4748
    %v4750 = vpop.permute.xlu0 %4749
    %s4752 = sor.u32 256, 72
    %4753 = vbcast.lane.b32.xlu0 %v3766, %s4752
    %v4754 = vpop.permute.xlu0 %4753
    %s4756 = sor.u32 256, 80
    %4757 = vbcast.lane.b32.xlu0 %v3766, %s4756
    %v4758 = vpop.permute.xlu0 %4757
    %s4760 = sor.u32 256, 88
    %4761 = vbcast.lane.b32.xlu0 %v3766, %s4760
    %v4762 = vpop.permute.xlu0 %4761
    %s4764 = sor.u32 256, 96
    %4765 = vbcast.lane.b32.xlu0 %v3766, %s4764
    %v4766 = vpop.permute.xlu0 %4765
    %s4768 = sor.u32 256, 104
    %4769 = vbcast.lane.b32.xlu0 %v3766, %s4768
    %v4770 = vpop.permute.xlu0 %4769
    %s4772 = sor.u32 256, 112
    %4773 = vbcast.lane.b32.xlu0 %v3766, %s4772
    %v4774 = vpop.permute.xlu0 %4773
    %s4776 = sor.u32 256, 120
    %4777 = vbcast.lane.b32.xlu0 %v3766, %s4776
    %v4778 = vpop.permute.xlu0 %4777
    %s4780 = sor.u32 256, 64
    %4781 = vbcast.lane.b32.xlu0 %v3801, %s4780
    %v4782 = vpop.permute.xlu0 %4781
    %s4784 = sor.u32 256, 72
    %4785 = vbcast.lane.b32.xlu0 %v3801, %s4784
    %v4786 = vpop.permute.xlu0 %4785
    %s4788 = sor.u32 256, 80
    %4789 = vbcast.lane.b32.xlu0 %v3801, %s4788
    %v4790 = vpop.permute.xlu0 %4789
    %s4792 = sor.u32 256, 88
    %4793 = vbcast.lane.b32.xlu0 %v3801, %s4792
    %v4794 = vpop.permute.xlu0 %4793
    %s4796 = sor.u32 256, 96
    %4797 = vbcast.lane.b32.xlu0 %v3801, %s4796
    %v4798 = vpop.permute.xlu0 %4797
    %s4800 = sor.u32 256, 104
    %4801 = vbcast.lane.b32.xlu0 %v3801, %s4800
    %v4802 = vpop.permute.xlu0 %4801
    %s4804 = sor.u32 256, 112
    %4805 = vbcast.lane.b32.xlu0 %v3801, %s4804
    %v4806 = vpop.permute.xlu0 %4805
    %s4808 = sor.u32 256, 120
    %4809 = vbcast.lane.b32.xlu0 %v3801, %s4808
    %v4810 = vpop.permute.xlu0 %4809
    %s4812 = sor.u32 256, 64
    %4813 = vbcast.lane.b32.xlu0 %v3836, %s4812
    %v4814 = vpop.permute.xlu0 %4813
    %s4816 = sor.u32 256, 72
    %4817 = vbcast.lane.b32.xlu0 %v3836, %s4816
    %v4818 = vpop.permute.xlu0 %4817
    %s4820 = sor.u32 256, 80
    %4821 = vbcast.lane.b32.xlu0 %v3836, %s4820
    %v4822 = vpop.permute.xlu0 %4821
    %s4824 = sor.u32 256, 88
    %4825 = vbcast.lane.b32.xlu0 %v3836, %s4824
    %v4826 = vpop.permute.xlu0 %4825
    %s4828 = sor.u32 256, 96
    %4829 = vbcast.lane.b32.xlu0 %v3836, %s4828
    %v4830 = vpop.permute.xlu0 %4829
    %s4832 = sor.u32 256, 104
    %4833 = vbcast.lane.b32.xlu0 %v3836, %s4832
    %v4834 = vpop.permute.xlu0 %4833
    %s4836 = sor.u32 256, 112
    %4837 = vbcast.lane.b32.xlu0 %v3836, %s4836
    %v4838 = vpop.permute.xlu0 %4837
    %s4840 = sor.u32 256, 120
    %4841 = vbcast.lane.b32.xlu0 %v3836, %s4840
    %v4842 = vpop.permute.xlu0 %4841
    %s4844 = sor.u32 256, 64
    %4845 = vbcast.lane.b32.xlu0 %v3871, %s4844
    %v4846 = vpop.permute.xlu0 %4845
    %s4848 = sor.u32 256, 72
    %4849 = vbcast.lane.b32.xlu0 %v3871, %s4848
    %v4850 = vpop.permute.xlu0 %4849
    %s4852 = sor.u32 256, 80
    %4853 = vbcast.lane.b32.xlu0 %v3871, %s4852
    %v4854 = vpop.permute.xlu0 %4853
    %s4856 = sor.u32 256, 88
    %4857 = vbcast.lane.b32.xlu0 %v3871, %s4856
    %v4858 = vpop.permute.xlu0 %4857
    %s4860 = sor.u32 256, 96
    %4861 = vbcast.lane.b32.xlu0 %v3871, %s4860
    %v4862 = vpop.permute.xlu0 %4861
    %s4864 = sor.u32 256, 104
    %4865 = vbcast.lane.b32.xlu0 %v3871, %s4864
    %v4866 = vpop.permute.xlu0 %4865
    %s4868 = sor.u32 256, 112
    %4869 = vbcast.lane.b32.xlu0 %v3871, %s4868
    %v4870 = vpop.permute.xlu0 %4869
    %s4872 = sor.u32 256, 120
    %4873 = vbcast.lane.b32.xlu0 %v3871, %s4872
    %v4874 = vpop.permute.xlu0 %4873
    %s4876 = sor.u32 256, 64
    %4877 = vbcast.lane.b32.xlu0 %v3906, %s4876
    %v4878 = vpop.permute.xlu0 %4877
    %s4880 = sor.u32 256, 72
    %4881 = vbcast.lane.b32.xlu0 %v3906, %s4880
    %v4882 = vpop.permute.xlu0 %4881
    %s4884 = sor.u32 256, 80
    %4885 = vbcast.lane.b32.xlu0 %v3906, %s4884
    %v4886 = vpop.permute.xlu0 %4885
    %s4888 = sor.u32 256, 88
    %4889 = vbcast.lane.b32.xlu0 %v3906, %s4888
    %v4890 = vpop.permute.xlu0 %4889
    %s4892 = sor.u32 256, 96
    %4893 = vbcast.lane.b32.xlu0 %v3906, %s4892
    %v4894 = vpop.permute.xlu0 %4893
    %s4896 = sor.u32 256, 104
    %4897 = vbcast.lane.b32.xlu0 %v3906, %s4896
    %v4898 = vpop.permute.xlu0 %4897
    %s4900 = sor.u32 256, 112
    %4901 = vbcast.lane.b32.xlu0 %v3906, %s4900
    %v4902 = vpop.permute.xlu0 %4901
    %s4904 = sor.u32 256, 120
    %4905 = vbcast.lane.b32.xlu0 %v3906, %s4904
    %v4906 = vpop.permute.xlu0 %4905
    %s4908 = sor.u32 256, 64
    %4909 = vbcast.lane.b32.xlu0 %v3941, %s4908
    %v4910 = vpop.permute.xlu0 %4909
    %s4912 = sor.u32 256, 72
    %4913 = vbcast.lane.b32.xlu0 %v3941, %s4912
    %v4914 = vpop.permute.xlu0 %4913
    %s4916 = sor.u32 256, 80
    %4917 = vbcast.lane.b32.xlu0 %v3941, %s4916
    %v4918 = vpop.permute.xlu0 %4917
    %s4920 = sor.u32 256, 88
    %4921 = vbcast.lane.b32.xlu0 %v3941, %s4920
    %v4922 = vpop.permute.xlu0 %4921
    %s4924 = sor.u32 256, 96
    %4925 = vbcast.lane.b32.xlu0 %v3941, %s4924
    %v4926 = vpop.permute.xlu0 %4925
    %s4928 = sor.u32 256, 104
    %4929 = vbcast.lane.b32.xlu0 %v3941, %s4928
    %v4930 = vpop.permute.xlu0 %4929
    %s4932 = sor.u32 256, 112
    %4933 = vbcast.lane.b32.xlu0 %v3941, %s4932
    %v4934 = vpop.permute.xlu0 %4933
    %s4936 = sor.u32 256, 120
    %4937 = vbcast.lane.b32.xlu0 %v3941, %s4936
    %v4938 = vpop.permute.xlu0 %4937
    %s4940 = sor.u32 256, 64
    %4941 = vbcast.lane.b32.xlu0 %v3976, %s4940
    %v4942 = vpop.permute.xlu0 %4941
    %s4944 = sor.u32 256, 72
    %4945 = vbcast.lane.b32.xlu0 %v3976, %s4944
    %v4946 = vpop.permute.xlu0 %4945
    %s4948 = sor.u32 256, 80
    %4949 = vbcast.lane.b32.xlu0 %v3976, %s4948
    %v4950 = vpop.permute.xlu0 %4949
    %s4952 = sor.u32 256, 88
    %4953 = vbcast.lane.b32.xlu0 %v3976, %s4952
    %v4954 = vpop.permute.xlu0 %4953
    %s4956 = sor.u32 256, 96
    %4957 = vbcast.lane.b32.xlu0 %v3976, %s4956
    %v4958 = vpop.permute.xlu0 %4957
    %s4960 = sor.u32 256, 104
    %4961 = vbcast.lane.b32.xlu0 %v3976, %s4960
    %v4962 = vpop.permute.xlu0 %4961
    %s4964 = sor.u32 256, 112
    %4965 = vbcast.lane.b32.xlu0 %v3976, %s4964
    %v4966 = vpop.permute.xlu0 %4965
    %s4968 = sor.u32 256, 120
    %4969 = vbcast.lane.b32.xlu0 %v3976, %s4968
    %v4970 = vpop.permute.xlu0 %4969
    %s4972 = sor.u32 256, 64
    %4973 = vbcast.lane.b32.xlu0 %v4011, %s4972
    %v4974 = vpop.permute.xlu0 %4973
    %s4976 = sor.u32 256, 72
    %4977 = vbcast.lane.b32.xlu0 %v4011, %s4976
    %v4978 = vpop.permute.xlu0 %4977
    %s4980 = sor.u32 256, 80
    %4981 = vbcast.lane.b32.xlu0 %v4011, %s4980
    %v4982 = vpop.permute.xlu0 %4981
    %s4984 = sor.u32 256, 88
    %4985 = vbcast.lane.b32.xlu0 %v4011, %s4984
    %v4986 = vpop.permute.xlu0 %4985
    %s4988 = sor.u32 256, 96
    %4989 = vbcast.lane.b32.xlu0 %v4011, %s4988
    %v4990 = vpop.permute.xlu0 %4989
    %s4992 = sor.u32 256, 104
    %4993 = vbcast.lane.b32.xlu0 %v4011, %s4992
    %v4994 = vpop.permute.xlu0 %4993
    %s4996 = sor.u32 256, 112
    %4997 = vbcast.lane.b32.xlu0 %v4011, %s4996
    %v4998 = vpop.permute.xlu0 %4997
    %s5000 = sor.u32 256, 120
    %5001 = vbcast.lane.b32.xlu0 %v4011, %s5000
    %v5002 = vpop.permute.xlu0 %5001
    %s5004 = sor.u32 256, 64
    %5005 = vbcast.lane.b32.xlu0 %v4046, %s5004
    %v5006 = vpop.permute.xlu0 %5005
    %s5008 = sor.u32 256, 72
    %5009 = vbcast.lane.b32.xlu0 %v4046, %s5008
    %v5010 = vpop.permute.xlu0 %5009
    %s5012 = sor.u32 256, 80
    %5013 = vbcast.lane.b32.xlu0 %v4046, %s5012
    %v5014 = vpop.permute.xlu0 %5013
    %s5016 = sor.u32 256, 88
    %5017 = vbcast.lane.b32.xlu0 %v4046, %s5016
    %v5018 = vpop.permute.xlu0 %5017
    %s5020 = sor.u32 256, 96
    %5021 = vbcast.lane.b32.xlu0 %v4046, %s5020
    %v5022 = vpop.permute.xlu0 %5021
    %s5024 = sor.u32 256, 104
    %5025 = vbcast.lane.b32.xlu0 %v4046, %s5024
    %v5026 = vpop.permute.xlu0 %5025
    %s5028 = sor.u32 256, 112
    %5029 = vbcast.lane.b32.xlu0 %v4046, %s5028
    %v5030 = vpop.permute.xlu0 %5029
    %s5032 = sor.u32 256, 120
    %5033 = vbcast.lane.b32.xlu0 %v4046, %s5032
    %v5034 = vpop.permute.xlu0 %5033
    %s5036 = sor.u32 256, 64
    %5037 = vbcast.lane.b32.xlu0 %v4081, %s5036
    %v5038 = vpop.permute.xlu0 %5037
    %s5040 = sor.u32 256, 72
    %5041 = vbcast.lane.b32.xlu0 %v4081, %s5040
    %v5042 = vpop.permute.xlu0 %5041
    %s5044 = sor.u32 256, 80
    %5045 = vbcast.lane.b32.xlu0 %v4081, %s5044
    %v5046 = vpop.permute.xlu0 %5045
    %s5048 = sor.u32 256, 88
    %5049 = vbcast.lane.b32.xlu0 %v4081, %s5048
    %v5050 = vpop.permute.xlu0 %5049
    %s5052 = sor.u32 256, 96
    %5053 = vbcast.lane.b32.xlu0 %v4081, %s5052
    %v5054 = vpop.permute.xlu0 %5053
    %s5056 = sor.u32 256, 104
    %5057 = vbcast.lane.b32.xlu0 %v4081, %s5056
    %v5058 = vpop.permute.xlu0 %5057
    %s5060 = sor.u32 256, 112
    %5061 = vbcast.lane.b32.xlu0 %v4081, %s5060
    %v5062 = vpop.permute.xlu0 %5061
    %s5064 = sor.u32 256, 120
    %5065 = vbcast.lane.b32.xlu0 %v4081, %s5064
    %v5066 = vpop.permute.xlu0 %5065
    %s5068 = sor.u32 256, 64
    %5069 = vbcast.lane.b32.xlu0 %v4116, %s5068
    %v5070 = vpop.permute.xlu0 %5069
    %s5072 = sor.u32 256, 72
    %5073 = vbcast.lane.b32.xlu0 %v4116, %s5072
    %v5074 = vpop.permute.xlu0 %5073
    %s5076 = sor.u32 256, 80
    %5077 = vbcast.lane.b32.xlu0 %v4116, %s5076
    %v5078 = vpop.permute.xlu0 %5077
    %s5080 = sor.u32 256, 88
    %5081 = vbcast.lane.b32.xlu0 %v4116, %s5080
    %v5082 = vpop.permute.xlu0 %5081
    %s5084 = sor.u32 256, 96
    %5085 = vbcast.lane.b32.xlu0 %v4116, %s5084
    %v5086 = vpop.permute.xlu0 %5085
    %s5088 = sor.u32 256, 104
    %5089 = vbcast.lane.b32.xlu0 %v4116, %s5088
    %v5090 = vpop.permute.xlu0 %5089
    %s5092 = sor.u32 256, 112
    %5093 = vbcast.lane.b32.xlu0 %v4116, %s5092
    %v5094 = vpop.permute.xlu0 %5093
    %s5096 = sor.u32 256, 120
    %5097 = vbcast.lane.b32.xlu0 %v4116, %s5096
    %v5098 = vpop.permute.xlu0 %5097
    %s5100 = sor.u32 256, 64
    %5101 = vbcast.lane.b32.xlu0 %v4151, %s5100
    %v5102 = vpop.permute.xlu0 %5101
    %s5104 = sor.u32 256, 72
    %5105 = vbcast.lane.b32.xlu0 %v4151, %s5104
    %v5106 = vpop.permute.xlu0 %5105
    %s5108 = sor.u32 256, 80
    %5109 = vbcast.lane.b32.xlu0 %v4151, %s5108
    %v5110 = vpop.permute.xlu0 %5109
    %s5112 = sor.u32 256, 88
    %5113 = vbcast.lane.b32.xlu0 %v4151, %s5112
    %v5114 = vpop.permute.xlu0 %5113
    %s5116 = sor.u32 256, 96
    %5117 = vbcast.lane.b32.xlu0 %v4151, %s5116
    %v5118 = vpop.permute.xlu0 %5117
    %s5120 = sor.u32 256, 104
    %5121 = vbcast.lane.b32.xlu0 %v4151, %s5120
    %v5122 = vpop.permute.xlu0 %5121
    %s5124 = sor.u32 256, 112
    %5125 = vbcast.lane.b32.xlu0 %v4151, %s5124
    %v5126 = vpop.permute.xlu0 %5125
    %s5128 = sor.u32 256, 120
    %5129 = vbcast.lane.b32.xlu0 %v4151, %s5128
    %v5130 = vpop.permute.xlu0 %5129
    %v5131 = vmul.f32 %v4622, %v4286
    %v5132 = vmul.f32 %v4626, %v4286
    %v5133 = vmul.f32 %v4630, %v4286
    %v5134 = vmul.f32 %v4634, %v4286
    %v5135 = vmul.f32 %v4638, %v4286
    %v5136 = vmul.f32 %v4642, %v4286
    %v5137 = vmul.f32 %v4646, %v4286
    %v5138 = vmul.f32 %v4650, %v4286
    %v5139 = vmul.f32 %v4654, %v4290
    %v5140 = vmul.f32 %v4658, %v4290
    %v5141 = vmul.f32 %v4662, %v4290
    %v5142 = vmul.f32 %v4666, %v4290
    %v5143 = vmul.f32 %v4670, %v4290
    %v5144 = vmul.f32 %v4674, %v4290
    %v5145 = vmul.f32 %v4678, %v4290
    %v5146 = vmul.f32 %v4682, %v4290
    %v5147 = vmul.f32 %v4686, %v4294
    %v5148 = vmul.f32 %v4690, %v4294
    %v5149 = vmul.f32 %v4694, %v4294
    %v5150 = vmul.f32 %v4698, %v4294
    %v5151 = vmul.f32 %v4702, %v4294
    %v5152 = vmul.f32 %v4706, %v4294
    %v5153 = vmul.f32 %v4710, %v4294
    %v5154 = vmul.f32 %v4714, %v4294
    %v5155 = vmul.f32 %v4718, %v4298
    %v5156 = vmul.f32 %v4722, %v4298
    %v5157 = vmul.f32 %v4726, %v4298
    %v5158 = vmul.f32 %v4730, %v4298
    %v5159 = vmul.f32 %v4734, %v4298
    %v5160 = vmul.f32 %v4738, %v4298
    %v5161 = vmul.f32 %v4742, %v4298
    %v5162 = vmul.f32 %v4746, %v4298
    %v5163 = vmul.f32 %v4750, %v4302
    %v5164 = vmul.f32 %v4754, %v4302
    %v5165 = vmul.f32 %v4758, %v4302
    %v5166 = vmul.f32 %v4762, %v4302
    %v5167 = vmul.f32 %v4766, %v4302
    %v5168 = vmul.f32 %v4770, %v4302
    %v5169 = vmul.f32 %v4774, %v4302
    %v5170 = vmul.f32 %v4778, %v4302
    %v5171 = vmul.f32 %v4782, %v4306
    %v5172 = vmul.f32 %v4786, %v4306
    %v5173 = vmul.f32 %v4790, %v4306
    %v5174 = vmul.f32 %v4794, %v4306
    %v5175 = vmul.f32 %v4798, %v4306
    %v5176 = vmul.f32 %v4802, %v4306
    %v5177 = vmul.f32 %v4806, %v4306
    %v5178 = vmul.f32 %v4810, %v4306
    %v5179 = vmul.f32 %v4814, %v4310
    %v5180 = vmul.f32 %v4818, %v4310
    %v5181 = vmul.f32 %v4822, %v4310
    %v5182 = vmul.f32 %v4826, %v4310
    %v5183 = vmul.f32 %v4830, %v4310
    %v5184 = vmul.f32 %v4834, %v4310
    %v5185 = vmul.f32 %v4838, %v4310
    %v5186 = vmul.f32 %v4842, %v4310
    %v5187 = vmul.f32 %v4846, %v4314
    %v5188 = vmul.f32 %v4850, %v4314
    %v5189 = vmul.f32 %v4854, %v4314
    %v5190 = vmul.f32 %v4858, %v4314
    %v5191 = vmul.f32 %v4862, %v4314
    %v5192 = vmul.f32 %v4866, %v4314
    %v5193 = vmul.f32 %v4870, %v4314
    %v5194 = vmul.f32 %v4874, %v4314
    %v5195 = vmul.f32 %v4878, %v4318
    %v5196 = vmul.f32 %v4882, %v4318
    %v5197 = vmul.f32 %v4886, %v4318
    %v5198 = vmul.f32 %v4890, %v4318
    %v5199 = vmul.f32 %v4894, %v4318
    %v5200 = vmul.f32 %v4898, %v4318
    %v5201 = vmul.f32 %v4902, %v4318
    %v5202 = vmul.f32 %v4906, %v4318
    %v5203 = vmul.f32 %v4910, %v4322
    %v5204 = vmul.f32 %v4914, %v4322
    %v5205 = vmul.f32 %v4918, %v4322
    %v5206 = vmul.f32 %v4922, %v4322
    %v5207 = vmul.f32 %v4926, %v4322
    %v5208 = vmul.f32 %v4930, %v4322
    %v5209 = vmul.f32 %v4934, %v4322
    %v5210 = vmul.f32 %v4938, %v4322
    %v5211 = vmul.f32 %v4942, %v4326
    %v5212 = vmul.f32 %v4946, %v4326
    %v5213 = vmul.f32 %v4950, %v4326
    %v5214 = vmul.f32 %v4954, %v4326
    %v5215 = vmul.f32 %v4958, %v4326
    %v5216 = vmul.f32 %v4962, %v4326
    %v5217 = vmul.f32 %v4966, %v4326
    %v5218 = vmul.f32 %v4970, %v4326
    %v5219 = vmul.f32 %v4974, %v4330
    %v5220 = vmul.f32 %v4978, %v4330
    %v5221 = vmul.f32 %v4982, %v4330
    %v5222 = vmul.f32 %v4986, %v4330
    %v5223 = vmul.f32 %v4990, %v4330
    %v5224 = vmul.f32 %v4994, %v4330
    %v5225 = vmul.f32 %v4998, %v4330
    %v5226 = vmul.f32 %v5002, %v4330
    %v5227 = vmul.f32 %v5006, %v4334
    %v5228 = vmul.f32 %v5010, %v4334
    %v5229 = vmul.f32 %v5014, %v4334
    %v5230 = vmul.f32 %v5018, %v4334
    %v5231 = vmul.f32 %v5022, %v4334
    %v5232 = vmul.f32 %v5026, %v4334
    %v5233 = vmul.f32 %v5030, %v4334
    %v5234 = vmul.f32 %v5034, %v4334
    %v5235 = vmul.f32 %v5038, %v4338
    %v5236 = vmul.f32 %v5042, %v4338
    %v5237 = vmul.f32 %v5046, %v4338
    %v5238 = vmul.f32 %v5050, %v4338
    %v5239 = vmul.f32 %v5054, %v4338
    %v5240 = vmul.f32 %v5058, %v4338
    %v5241 = vmul.f32 %v5062, %v4338
    %v5242 = vmul.f32 %v5066, %v4338
    %v5243 = vmul.f32 %v5070, %v4342
    %v5244 = vmul.f32 %v5074, %v4342
    %v5245 = vmul.f32 %v5078, %v4342
    %v5246 = vmul.f32 %v5082, %v4342
    %v5247 = vmul.f32 %v5086, %v4342
    %v5248 = vmul.f32 %v5090, %v4342
    %v5249 = vmul.f32 %v5094, %v4342
    %v5250 = vmul.f32 %v5098, %v4342
    %v5251 = vmul.f32 %v5102, %v4346
    %v5252 = vmul.f32 %v5106, %v4346
    %v5253 = vmul.f32 %v5110, %v4346
    %v5254 = vmul.f32 %v5114, %v4346
    %v5255 = vmul.f32 %v5118, %v4346
    %v5256 = vmul.f32 %v5122, %v4346
    %v5257 = vmul.f32 %v5126, %v4346
    %v5258 = vmul.f32 %v5130, %v4346
    %5387 = vrot.lane.b32.xlu0 %v5131, 64
    %v5388 = vpop.permute.xlu0 %5387
    %5389 = vrot.lane.b32.xlu0 %v5132, 64
    %v5390 = vpop.permute.xlu0 %5389
    %5391 = vrot.lane.b32.xlu0 %v5133, 64
    %v5392 = vpop.permute.xlu0 %5391
    %5393 = vrot.lane.b32.xlu0 %v5134, 64
    %v5394 = vpop.permute.xlu0 %5393
    %5395 = vrot.lane.b32.xlu0 %v5135, 64
    %v5396 = vpop.permute.xlu0 %5395
    %5397 = vrot.lane.b32.xlu0 %v5136, 64
    %v5398 = vpop.permute.xlu0 %5397
    %5399 = vrot.lane.b32.xlu0 %v5137, 64
    %v5400 = vpop.permute.xlu0 %5399
    %5401 = vrot.lane.b32.xlu0 %v5138, 64
    %v5402 = vpop.permute.xlu0 %5401
    %5403 = vrot.lane.b32.xlu0 %v5139, 64
    %v5404 = vpop.permute.xlu0 %5403
    %5405 = vrot.lane.b32.xlu0 %v5140, 64
    %v5406 = vpop.permute.xlu0 %5405
    %5407 = vrot.lane.b32.xlu0 %v5141, 64
    %v5408 = vpop.permute.xlu0 %5407
    %5409 = vrot.lane.b32.xlu0 %v5142, 64
    %v5410 = vpop.permute.xlu0 %5409
    %5411 = vrot.lane.b32.xlu0 %v5143, 64
    %v5412 = vpop.permute.xlu0 %5411
    %5413 = vrot.lane.b32.xlu0 %v5144, 64
    %v5414 = vpop.permute.xlu0 %5413
    %5415 = vrot.lane.b32.xlu0 %v5145, 64
    %v5416 = vpop.permute.xlu0 %5415
    %5417 = vrot.lane.b32.xlu0 %v5146, 64
    %v5418 = vpop.permute.xlu0 %5417
    %5419 = vrot.lane.b32.xlu0 %v5147, 64
    %v5420 = vpop.permute.xlu0 %5419
    %5421 = vrot.lane.b32.xlu0 %v5148, 64
    %v5422 = vpop.permute.xlu0 %5421
    %5423 = vrot.lane.b32.xlu0 %v5149, 64
    %v5424 = vpop.permute.xlu0 %5423
    %5425 = vrot.lane.b32.xlu0 %v5150, 64
    %v5426 = vpop.permute.xlu0 %5425
    %5427 = vrot.lane.b32.xlu0 %v5151, 64
    %v5428 = vpop.permute.xlu0 %5427
    %5429 = vrot.lane.b32.xlu0 %v5152, 64
    %v5430 = vpop.permute.xlu0 %5429
    %5431 = vrot.lane.b32.xlu0 %v5153, 64
    %v5432 = vpop.permute.xlu0 %5431
    %5433 = vrot.lane.b32.xlu0 %v5154, 64
    %v5434 = vpop.permute.xlu0 %5433
    %5435 = vrot.lane.b32.xlu0 %v5155, 64
    %v5436 = vpop.permute.xlu0 %5435
    %5437 = vrot.lane.b32.xlu0 %v5156, 64
    %v5438 = vpop.permute.xlu0 %5437
    %5439 = vrot.lane.b32.xlu0 %v5157, 64
    %v5440 = vpop.permute.xlu0 %5439
    %5441 = vrot.lane.b32.xlu0 %v5158, 64
    %v5442 = vpop.permute.xlu0 %5441
    %5443 = vrot.lane.b32.xlu0 %v5159, 64
    %v5444 = vpop.permute.xlu0 %5443
    %5445 = vrot.lane.b32.xlu0 %v5160, 64
    %v5446 = vpop.permute.xlu0 %5445
    %5447 = vrot.lane.b32.xlu0 %v5161, 64
    %v5448 = vpop.permute.xlu0 %5447
    %5449 = vrot.lane.b32.xlu0 %v5162, 64
    %v5450 = vpop.permute.xlu0 %5449
    %5451 = vrot.lane.b32.xlu0 %v5163, 64
    %v5452 = vpop.permute.xlu0 %5451
    %5453 = vrot.lane.b32.xlu0 %v5164, 64
    %v5454 = vpop.permute.xlu0 %5453
    %5455 = vrot.lane.b32.xlu0 %v5165, 64
    %v5456 = vpop.permute.xlu0 %5455
    %5457 = vrot.lane.b32.xlu0 %v5166, 64
    %v5458 = vpop.permute.xlu0 %5457
    %5459 = vrot.lane.b32.xlu0 %v5167, 64
    %v5460 = vpop.permute.xlu0 %5459
    %5461 = vrot.lane.b32.xlu0 %v5168, 64
    %v5462 = vpop.permute.xlu0 %5461
    %5463 = vrot.lane.b32.xlu0 %v5169, 64
    %v5464 = vpop.permute.xlu0 %5463
    %5465 = vrot.lane.b32.xlu0 %v5170, 64
    %v5466 = vpop.permute.xlu0 %5465
    %5467 = vrot.lane.b32.xlu0 %v5171, 64
    %v5468 = vpop.permute.xlu0 %5467
    %5469 = vrot.lane.b32.xlu0 %v5172, 64
    %v5470 = vpop.permute.xlu0 %5469
    %5471 = vrot.lane.b32.xlu0 %v5173, 64
    %v5472 = vpop.permute.xlu0 %5471
    %5473 = vrot.lane.b32.xlu0 %v5174, 64
    %v5474 = vpop.permute.xlu0 %5473
    %5475 = vrot.lane.b32.xlu0 %v5175, 64
    %v5476 = vpop.permute.xlu0 %5475
    %5477 = vrot.lane.b32.xlu0 %v5176, 64
    %v5478 = vpop.permute.xlu0 %5477
    %5479 = vrot.lane.b32.xlu0 %v5177, 64
    %v5480 = vpop.permute.xlu0 %5479
    %5481 = vrot.lane.b32.xlu0 %v5178, 64
    %v5482 = vpop.permute.xlu0 %5481
    %5483 = vrot.lane.b32.xlu0 %v5179, 64
    %v5484 = vpop.permute.xlu0 %5483
    %5485 = vrot.lane.b32.xlu0 %v5180, 64
    %v5486 = vpop.permute.xlu0 %5485
    %5487 = vrot.lane.b32.xlu0 %v5181, 64
    %v5488 = vpop.permute.xlu0 %5487
    %5489 = vrot.lane.b32.xlu0 %v5182, 64
    %v5490 = vpop.permute.xlu0 %5489
    %5491 = vrot.lane.b32.xlu0 %v5183, 64
    %v5492 = vpop.permute.xlu0 %5491
    %5493 = vrot.lane.b32.xlu0 %v5184, 64
    %v5494 = vpop.permute.xlu0 %5493
    %5495 = vrot.lane.b32.xlu0 %v5185, 64
    %v5496 = vpop.permute.xlu0 %5495
    %5497 = vrot.lane.b32.xlu0 %v5186, 64
    %v5498 = vpop.permute.xlu0 %5497
    %5499 = vrot.lane.b32.xlu0 %v5187, 64
    %v5500 = vpop.permute.xlu0 %5499
    %5501 = vrot.lane.b32.xlu0 %v5188, 64
    %v5502 = vpop.permute.xlu0 %5501
    %5503 = vrot.lane.b32.xlu0 %v5189, 64
    %v5504 = vpop.permute.xlu0 %5503
    %5505 = vrot.lane.b32.xlu0 %v5190, 64
    %v5506 = vpop.permute.xlu0 %5505
    %5507 = vrot.lane.b32.xlu0 %v5191, 64
    %v5508 = vpop.permute.xlu0 %5507
    %5509 = vrot.lane.b32.xlu0 %v5192, 64
    %v5510 = vpop.permute.xlu0 %5509
    %5511 = vrot.lane.b32.xlu0 %v5193, 64
    %v5512 = vpop.permute.xlu0 %5511
    %5513 = vrot.lane.b32.xlu0 %v5194, 64
    %v5514 = vpop.permute.xlu0 %5513
    %5515 = vrot.lane.b32.xlu0 %v5195, 64
    %v5516 = vpop.permute.xlu0 %5515
    %5517 = vrot.lane.b32.xlu0 %v5196, 64
    %v5518 = vpop.permute.xlu0 %5517
    %5519 = vrot.lane.b32.xlu0 %v5197, 64
    %v5520 = vpop.permute.xlu0 %5519
    %5521 = vrot.lane.b32.xlu0 %v5198, 64
    %v5522 = vpop.permute.xlu0 %5521
    %5523 = vrot.lane.b32.xlu0 %v5199, 64
    %v5524 = vpop.permute.xlu0 %5523
    %5525 = vrot.lane.b32.xlu0 %v5200, 64
    %v5526 = vpop.permute.xlu0 %5525
    %5527 = vrot.lane.b32.xlu0 %v5201, 64
    %v5528 = vpop.permute.xlu0 %5527
    %5529 = vrot.lane.b32.xlu0 %v5202, 64
    %v5530 = vpop.permute.xlu0 %5529
    %5531 = vrot.lane.b32.xlu0 %v5203, 64
    %v5532 = vpop.permute.xlu0 %5531
    %5533 = vrot.lane.b32.xlu0 %v5204, 64
    %v5534 = vpop.permute.xlu0 %5533
    %5535 = vrot.lane.b32.xlu0 %v5205, 64
    %v5536 = vpop.permute.xlu0 %5535
    %5537 = vrot.lane.b32.xlu0 %v5206, 64
    %v5538 = vpop.permute.xlu0 %5537
    %5539 = vrot.lane.b32.xlu0 %v5207, 64
    %v5540 = vpop.permute.xlu0 %5539
    %5541 = vrot.lane.b32.xlu0 %v5208, 64
    %v5542 = vpop.permute.xlu0 %5541
    %5543 = vrot.lane.b32.xlu0 %v5209, 64
    %v5544 = vpop.permute.xlu0 %5543
    %5545 = vrot.lane.b32.xlu0 %v5210, 64
    %v5546 = vpop.permute.xlu0 %5545
    %5547 = vrot.lane.b32.xlu0 %v5211, 64
    %v5548 = vpop.permute.xlu0 %5547
    %5549 = vrot.lane.b32.xlu0 %v5212, 64
    %v5550 = vpop.permute.xlu0 %5549
    %5551 = vrot.lane.b32.xlu0 %v5213, 64
    %v5552 = vpop.permute.xlu0 %5551
    %5553 = vrot.lane.b32.xlu0 %v5214, 64
    %v5554 = vpop.permute.xlu0 %5553
    %5555 = vrot.lane.b32.xlu0 %v5215, 64
    %v5556 = vpop.permute.xlu0 %5555
    %5557 = vrot.lane.b32.xlu0 %v5216, 64
    %v5558 = vpop.permute.xlu0 %5557
    %5559 = vrot.lane.b32.xlu0 %v5217, 64
    %v5560 = vpop.permute.xlu0 %5559
    %5561 = vrot.lane.b32.xlu0 %v5218, 64
    %v5562 = vpop.permute.xlu0 %5561
    %5563 = vrot.lane.b32.xlu0 %v5219, 64
    %v5564 = vpop.permute.xlu0 %5563
    %5565 = vrot.lane.b32.xlu0 %v5220, 64
    %v5566 = vpop.permute.xlu0 %5565
    %5567 = vrot.lane.b32.xlu0 %v5221, 64
    %v5568 = vpop.permute.xlu0 %5567
    %5569 = vrot.lane.b32.xlu0 %v5222, 64
    %v5570 = vpop.permute.xlu0 %5569
    %5571 = vrot.lane.b32.xlu0 %v5223, 64
    %v5572 = vpop.permute.xlu0 %5571
    %5573 = vrot.lane.b32.xlu0 %v5224, 64
    %v5574 = vpop.permute.xlu0 %5573
    %5575 = vrot.lane.b32.xlu0 %v5225, 64
    %v5576 = vpop.permute.xlu0 %5575
    %5577 = vrot.lane.b32.xlu0 %v5226, 64
    %v5578 = vpop.permute.xlu0 %5577
    %5579 = vrot.lane.b32.xlu0 %v5227, 64
    %v5580 = vpop.permute.xlu0 %5579
    %5581 = vrot.lane.b32.xlu0 %v5228, 64
    %v5582 = vpop.permute.xlu0 %5581
    %5583 = vrot.lane.b32.xlu0 %v5229, 64
    %v5584 = vpop.permute.xlu0 %5583
    %5585 = vrot.lane.b32.xlu0 %v5230, 64
    %v5586 = vpop.permute.xlu0 %5585
    %5587 = vrot.lane.b32.xlu0 %v5231, 64
    %v5588 = vpop.permute.xlu0 %5587
    %5589 = vrot.lane.b32.xlu0 %v5232, 64
    %v5590 = vpop.permute.xlu0 %5589
    %5591 = vrot.lane.b32.xlu0 %v5233, 64
    %v5592 = vpop.permute.xlu0 %5591
    %5593 = vrot.lane.b32.xlu0 %v5234, 64
    %v5594 = vpop.permute.xlu0 %5593
    %5595 = vrot.lane.b32.xlu0 %v5235, 64
    %v5596 = vpop.permute.xlu0 %5595
    %5597 = vrot.lane.b32.xlu0 %v5236, 64
    %v5598 = vpop.permute.xlu0 %5597
    %5599 = vrot.lane.b32.xlu0 %v5237, 64
    %v5600 = vpop.permute.xlu0 %5599
    %5601 = vrot.lane.b32.xlu0 %v5238, 64
    %v5602 = vpop.permute.xlu0 %5601
    %5603 = vrot.lane.b32.xlu0 %v5239, 64
    %v5604 = vpop.permute.xlu0 %5603
    %5605 = vrot.lane.b32.xlu0 %v5240, 64
    %v5606 = vpop.permute.xlu0 %5605
    %5607 = vrot.lane.b32.xlu0 %v5241, 64
    %v5608 = vpop.permute.xlu0 %5607
    %5609 = vrot.lane.b32.xlu0 %v5242, 64
    %v5610 = vpop.permute.xlu0 %5609
    %5611 = vrot.lane.b32.xlu0 %v5243, 64
    %v5612 = vpop.permute.xlu0 %5611
    %5613 = vrot.lane.b32.xlu0 %v5244, 64
    %v5614 = vpop.permute.xlu0 %5613
    %5615 = vrot.lane.b32.xlu0 %v5245, 64
    %v5616 = vpop.permute.xlu0 %5615
    %5617 = vrot.lane.b32.xlu0 %v5246, 64
    %v5618 = vpop.permute.xlu0 %5617
    %5619 = vrot.lane.b32.xlu0 %v5247, 64
    %v5620 = vpop.permute.xlu0 %5619
    %5621 = vrot.lane.b32.xlu0 %v5248, 64
    %v5622 = vpop.permute.xlu0 %5621
    %5623 = vrot.lane.b32.xlu0 %v5249, 64
    %v5624 = vpop.permute.xlu0 %5623
    %5625 = vrot.lane.b32.xlu0 %v5250, 64
    %v5626 = vpop.permute.xlu0 %5625
    %5627 = vrot.lane.b32.xlu0 %v5251, 64
    %v5628 = vpop.permute.xlu0 %5627
    %5629 = vrot.lane.b32.xlu0 %v5252, 64
    %v5630 = vpop.permute.xlu0 %5629
    %5631 = vrot.lane.b32.xlu0 %v5253, 64
    %v5632 = vpop.permute.xlu0 %5631
    %5633 = vrot.lane.b32.xlu0 %v5254, 64
    %v5634 = vpop.permute.xlu0 %5633
    %5635 = vrot.lane.b32.xlu0 %v5255, 64
    %v5636 = vpop.permute.xlu0 %5635
    %5637 = vrot.lane.b32.xlu0 %v5256, 64
    %v5638 = vpop.permute.xlu0 %5637
    %5639 = vrot.lane.b32.xlu0 %v5257, 64
    %v5640 = vpop.permute.xlu0 %5639
    %5641 = vrot.lane.b32.xlu0 %v5258, 64
    %v5642 = vpop.permute.xlu0 %5641
    %v5771 = vadd.f32 %v4491, %v5388
    %v5772 = vadd.f32 %v4492, %v5390
    %v5773 = vadd.f32 %v4493, %v5392
    %v5774 = vadd.f32 %v4494, %v5394
    %v5775 = vadd.f32 %v4495, %v5396
    %v5776 = vadd.f32 %v4496, %v5398
    %v5777 = vadd.f32 %v4497, %v5400
    %v5778 = vadd.f32 %v4498, %v5402
    %v5779 = vadd.f32 %v4499, %v5404
    %v5780 = vadd.f32 %v4500, %v5406
    %v5781 = vadd.f32 %v4501, %v5408
    %v5782 = vadd.f32 %v4502, %v5410
    %v5783 = vadd.f32 %v4503, %v5412
    %v5784 = vadd.f32 %v4504, %v5414
    %v5785 = vadd.f32 %v4505, %v5416
    %v5786 = vadd.f32 %v4506, %v5418
    %v5787 = vadd.f32 %v4507, %v5420
    %v5788 = vadd.f32 %v4508, %v5422
    %v5789 = vadd.f32 %v4509, %v5424
    %v5790 = vadd.f32 %v4510, %v5426
    %v5791 = vadd.f32 %v4511, %v5428
    %v5792 = vadd.f32 %v4512, %v5430
    %v5793 = vadd.f32 %v4513, %v5432
    %v5794 = vadd.f32 %v4514, %v5434
    %v5795 = vadd.f32 %v4515, %v5436
    %v5796 = vadd.f32 %v4516, %v5438
    %v5797 = vadd.f32 %v4517, %v5440
    %v5798 = vadd.f32 %v4518, %v5442
    %v5799 = vadd.f32 %v4519, %v5444
    %v5800 = vadd.f32 %v4520, %v5446
    %v5801 = vadd.f32 %v4521, %v5448
    %v5802 = vadd.f32 %v4522, %v5450
    %v5803 = vadd.f32 %v4523, %v5452
    %v5804 = vadd.f32 %v4524, %v5454
    %v5805 = vadd.f32 %v4525, %v5456
    %v5806 = vadd.f32 %v4526, %v5458
    %v5807 = vadd.f32 %v4527, %v5460
    %v5808 = vadd.f32 %v4528, %v5462
    %v5809 = vadd.f32 %v4529, %v5464
    %v5810 = vadd.f32 %v4530, %v5466
    %v5811 = vadd.f32 %v4531, %v5468
    %v5812 = vadd.f32 %v4532, %v5470
    %v5813 = vadd.f32 %v4533, %v5472
    %v5814 = vadd.f32 %v4534, %v5474
    %v5815 = vadd.f32 %v4535, %v5476
    %v5816 = vadd.f32 %v4536, %v5478
    %v5817 = vadd.f32 %v4537, %v5480
    %v5818 = vadd.f32 %v4538, %v5482
    %v5819 = vadd.f32 %v4539, %v5484
    %v5820 = vadd.f32 %v4540, %v5486
    %v5821 = vadd.f32 %v4541, %v5488
    %v5822 = vadd.f32 %v4542, %v5490
    %v5823 = vadd.f32 %v4543, %v5492
    %v5824 = vadd.f32 %v4544, %v5494
    %v5825 = vadd.f32 %v4545, %v5496
    %v5826 = vadd.f32 %v4546, %v5498
    %v5827 = vadd.f32 %v4547, %v5500
    %v5828 = vadd.f32 %v4548, %v5502
    %v5829 = vadd.f32 %v4549, %v5504
    %v5830 = vadd.f32 %v4550, %v5506
    %v5831 = vadd.f32 %v4551, %v5508
    %v5832 = vadd.f32 %v4552, %v5510
    %v5833 = vadd.f32 %v4553, %v5512
    %v5834 = vadd.f32 %v4554, %v5514
    %v5835 = vadd.f32 %v4555, %v5516
    %v5836 = vadd.f32 %v4556, %v5518
    %v5837 = vadd.f32 %v4557, %v5520
    %v5838 = vadd.f32 %v4558, %v5522
    %v5839 = vadd.f32 %v4559, %v5524
    %v5840 = vadd.f32 %v4560, %v5526
    %v5841 = vadd.f32 %v4561, %v5528
    %v5842 = vadd.f32 %v4562, %v5530
    %v5843 = vadd.f32 %v4563, %v5532
    %v5844 = vadd.f32 %v4564, %v5534
    %v5845 = vadd.f32 %v4565, %v5536
    %v5846 = vadd.f32 %v4566, %v5538
    %v5847 = vadd.f32 %v4567, %v5540
    %v5848 = vadd.f32 %v4568, %v5542
    %v5849 = vadd.f32 %v4569, %v5544
    %v5850 = vadd.f32 %v4570, %v5546
    %v5851 = vadd.f32 %v4571, %v5548
    %v5852 = vadd.f32 %v4572, %v5550
    %v5853 = vadd.f32 %v4573, %v5552
    %v5854 = vadd.f32 %v4574, %v5554
    %v5855 = vadd.f32 %v4575, %v5556
    %v5856 = vadd.f32 %v4576, %v5558
    %v5857 = vadd.f32 %v4577, %v5560
    %v5858 = vadd.f32 %v4578, %v5562
    %v5859 = vadd.f32 %v4579, %v5564
    %v5860 = vadd.f32 %v4580, %v5566
    %v5861 = vadd.f32 %v4581, %v5568
    %v5862 = vadd.f32 %v4582, %v5570
    %v5863 = vadd.f32 %v4583, %v5572
    %v5864 = vadd.f32 %v4584, %v5574
    %v5865 = vadd.f32 %v4585, %v5576
    %v5866 = vadd.f32 %v4586, %v5578
    %v5867 = vadd.f32 %v4587, %v5580
    %v5868 = vadd.f32 %v4588, %v5582
    %v5869 = vadd.f32 %v4589, %v5584
    %v5870 = vadd.f32 %v4590, %v5586
    %v5871 = vadd.f32 %v4591, %v5588
    %v5872 = vadd.f32 %v4592, %v5590
    %v5873 = vadd.f32 %v4593, %v5592
    %v5874 = vadd.f32 %v4594, %v5594
    %v5875 = vadd.f32 %v4595, %v5596
    %v5876 = vadd.f32 %v4596, %v5598
    %v5877 = vadd.f32 %v4597, %v5600
    %v5878 = vadd.f32 %v4598, %v5602
    %v5879 = vadd.f32 %v4599, %v5604
    %v5880 = vadd.f32 %v4600, %v5606
    %v5881 = vadd.f32 %v4601, %v5608
    %v5882 = vadd.f32 %v4602, %v5610
    %v5883 = vadd.f32 %v4603, %v5612
    %v5884 = vadd.f32 %v4604, %v5614
    %v5885 = vadd.f32 %v4605, %v5616
    %v5886 = vadd.f32 %v4606, %v5618
    %v5887 = vadd.f32 %v4607, %v5620
    %v5888 = vadd.f32 %v4608, %v5622
    %v5889 = vadd.f32 %v4609, %v5624
    %v5890 = vadd.f32 %v4610, %v5626
    %v5891 = vadd.f32 %v4611, %v5628
    %v5892 = vadd.f32 %v4612, %v5630
    %v5893 = vadd.f32 %v4613, %v5632
    %v5894 = vadd.f32 %v4614, %v5634
    %v5895 = vadd.f32 %v4615, %v5636
    %v5896 = vadd.f32 %v4616, %v5638
    %v5897 = vadd.f32 %v4617, %v5640
    %v5898 = vadd.f32 %v4618, %v5642
    %vm5899 = vcmask 523264
    %v5900 = vsel %vm5899, %v5771, -inf
    %v5901 = vsel %vm5899, %v5779, -inf
    %v5902 = vmax.f32 %v5900, %v5901
    %v5903 = vsel %vm5899, %v5787, -inf
    %v5904 = vmax.f32 %v5902, %v5903
    %v5905 = vsel %vm5899, %v5795, -inf
    %v5906 = vmax.f32 %v5904, %v5905
    %v5907 = vsel %vm5899, %v5803, -inf
    %v5908 = vmax.f32 %v5906, %v5907
    %v5909 = vsel %vm5899, %v5811, -inf
    %v5910 = vmax.f32 %v5908, %v5909
    %v5911 = vsel %vm5899, %v5819, -inf
    %v5912 = vmax.f32 %v5910, %v5911
    %v5913 = vsel %vm5899, %v5827, -inf
    %v5914 = vmax.f32 %v5912, %v5913
    %v5915 = vsel %vm5899, %v5835, -inf
    %v5916 = vmax.f32 %v5914, %v5915
    %v5917 = vsel %vm5899, %v5843, -inf
    %v5918 = vmax.f32 %v5916, %v5917
    %v5919 = vsel %vm5899, %v5851, -inf
    %v5920 = vmax.f32 %v5918, %v5919
    %v5921 = vsel %vm5899, %v5859, -inf
    %v5922 = vmax.f32 %v5920, %v5921
    %v5923 = vsel %vm5899, %v5867, -inf
    %v5924 = vmax.f32 %v5922, %v5923
    %v5925 = vsel %vm5899, %v5875, -inf
    %v5926 = vmax.f32 %v5924, %v5925
    %v5927 = vsel %vm5899, %v5883, -inf
    %v5928 = vmax.f32 %v5926, %v5927
    %v5929 = vsel %vm5899, %v5891, -inf
    %v5930 = vmax.f32 %v5928, %v5929
    %v5931 = vsel %vm5899, %v5772, -inf
    %v5932 = vsel %vm5899, %v5780, -inf
    %v5933 = vmax.f32 %v5931, %v5932
    %v5934 = vsel %vm5899, %v5788, -inf
    %v5935 = vmax.f32 %v5933, %v5934
    %v5936 = vsel %vm5899, %v5796, -inf
    %v5937 = vmax.f32 %v5935, %v5936
    %v5938 = vsel %vm5899, %v5804, -inf
    %v5939 = vmax.f32 %v5937, %v5938
    %v5940 = vsel %vm5899, %v5812, -inf
    %v5941 = vmax.f32 %v5939, %v5940
    %v5942 = vsel %vm5899, %v5820, -inf
    %v5943 = vmax.f32 %v5941, %v5942
    %v5944 = vsel %vm5899, %v5828, -inf
    %v5945 = vmax.f32 %v5943, %v5944
    %v5946 = vsel %vm5899, %v5836, -inf
    %v5947 = vmax.f32 %v5945, %v5946
    %v5948 = vsel %vm5899, %v5844, -inf
    %v5949 = vmax.f32 %v5947, %v5948
    %v5950 = vsel %vm5899, %v5852, -inf
    %v5951 = vmax.f32 %v5949, %v5950
    %v5952 = vsel %vm5899, %v5860, -inf
    %v5953 = vmax.f32 %v5951, %v5952
    %v5954 = vsel %vm5899, %v5868, -inf
    %v5955 = vmax.f32 %v5953, %v5954
    %v5956 = vsel %vm5899, %v5876, -inf
    %v5957 = vmax.f32 %v5955, %v5956
    %v5958 = vsel %vm5899, %v5884, -inf
    %v5959 = vmax.f32 %v5957, %v5958
    %v5960 = vsel %vm5899, %v5892, -inf
    %v5961 = vmax.f32 %v5959, %v5960
    %v5962 = vsel %vm5899, %v5773, -inf
    %v5963 = vsel %vm5899, %v5781, -inf
    %v5964 = vmax.f32 %v5962, %v5963
    %v5965 = vsel %vm5899, %v5789, -inf
    %v5966 = vmax.f32 %v5964, %v5965
    %v5967 = vsel %vm5899, %v5797, -inf
    %v5968 = vmax.f32 %v5966, %v5967
    %v5969 = vsel %vm5899, %v5805, -inf
    %v5970 = vmax.f32 %v5968, %v5969
    %v5971 = vsel %vm5899, %v5813, -inf
    %v5972 = vmax.f32 %v5970, %v5971
    %v5973 = vsel %vm5899, %v5821, -inf
    %v5974 = vmax.f32 %v5972, %v5973
    %v5975 = vsel %vm5899, %v5829, -inf
    %v5976 = vmax.f32 %v5974, %v5975
    %v5977 = vsel %vm5899, %v5837, -inf
    %v5978 = vmax.f32 %v5976, %v5977
    %v5979 = vsel %vm5899, %v5845, -inf
    %v5980 = vmax.f32 %v5978, %v5979
    %v5981 = vsel %vm5899, %v5853, -inf
    %v5982 = vmax.f32 %v5980, %v5981
    %v5983 = vsel %vm5899, %v5861, -inf
    %v5984 = vmax.f32 %v5982, %v5983
    %v5985 = vsel %vm5899, %v5869, -inf
    %v5986 = vmax.f32 %v5984, %v5985
    %v5987 = vsel %vm5899, %v5877, -inf
    %v5988 = vmax.f32 %v5986, %v5987
    %v5989 = vsel %vm5899, %v5885, -inf
    %v5990 = vmax.f32 %v5988, %v5989
    %v5991 = vsel %vm5899, %v5893, -inf
    %v5992 = vmax.f32 %v5990, %v5991
    %v5993 = vsel %vm5899, %v5774, -inf
    %v5994 = vsel %vm5899, %v5782, -inf
    %v5995 = vmax.f32 %v5993, %v5994
    %v5996 = vsel %vm5899, %v5790, -inf
    %v5997 = vmax.f32 %v5995, %v5996
    %v5998 = vsel %vm5899, %v5798, -inf
    %v5999 = vmax.f32 %v5997, %v5998
    %v6000 = vsel %vm5899, %v5806, -inf
    %v6001 = vmax.f32 %v5999, %v6000
    %v6002 = vsel %vm5899, %v5814, -inf
    %v6003 = vmax.f32 %v6001, %v6002
    %v6004 = vsel %vm5899, %v5822, -inf
    %v6005 = vmax.f32 %v6003, %v6004
    %v6006 = vsel %vm5899, %v5830, -inf
    %v6007 = vmax.f32 %v6005, %v6006
    %v6008 = vsel %vm5899, %v5838, -inf
    %v6009 = vmax.f32 %v6007, %v6008
    %v6010 = vsel %vm5899, %v5846, -inf
    %v6011 = vmax.f32 %v6009, %v6010
    %v6012 = vsel %vm5899, %v5854, -inf
    %v6013 = vmax.f32 %v6011, %v6012
    %v6014 = vsel %vm5899, %v5862, -inf
    %v6015 = vmax.f32 %v6013, %v6014
    %v6016 = vsel %vm5899, %v5870, -inf
    %v6017 = vmax.f32 %v6015, %v6016
    %v6018 = vsel %vm5899, %v5878, -inf
    %v6019 = vmax.f32 %v6017, %v6018
    %v6020 = vsel %vm5899, %v5886, -inf
    %v6021 = vmax.f32 %v6019, %v6020
    %v6022 = vsel %vm5899, %v5894, -inf
    %v6023 = vmax.f32 %v6021, %v6022
    %v6024 = vsel %vm5899, %v5775, -inf
    %v6025 = vsel %vm5899, %v5783, -inf
    %v6026 = vmax.f32 %v6024, %v6025
    %v6027 = vsel %vm5899, %v5791, -inf
    %v6028 = vmax.f32 %v6026, %v6027
    %v6029 = vsel %vm5899, %v5799, -inf
    %v6030 = vmax.f32 %v6028, %v6029
    %v6031 = vsel %vm5899, %v5807, -inf
    %v6032 = vmax.f32 %v6030, %v6031
    %v6033 = vsel %vm5899, %v5815, -inf
    %v6034 = vmax.f32 %v6032, %v6033
    %v6035 = vsel %vm5899, %v5823, -inf
    %v6036 = vmax.f32 %v6034, %v6035
    %v6037 = vsel %vm5899, %v5831, -inf
    %v6038 = vmax.f32 %v6036, %v6037
    %v6039 = vsel %vm5899, %v5839, -inf
    %v6040 = vmax.f32 %v6038, %v6039
    %v6041 = vsel %vm5899, %v5847, -inf
    %v6042 = vmax.f32 %v6040, %v6041
    %v6043 = vsel %vm5899, %v5855, -inf
    %v6044 = vmax.f32 %v6042, %v6043
    %v6045 = vsel %vm5899, %v5863, -inf
    %v6046 = vmax.f32 %v6044, %v6045
    %v6047 = vsel %vm5899, %v5871, -inf
    %v6048 = vmax.f32 %v6046, %v6047
    %v6049 = vsel %vm5899, %v5879, -inf
    %v6050 = vmax.f32 %v6048, %v6049
    %v6051 = vsel %vm5899, %v5887, -inf
    %v6052 = vmax.f32 %v6050, %v6051
    %v6053 = vsel %vm5899, %v5895, -inf
    %v6054 = vmax.f32 %v6052, %v6053
    %v6055 = vsel %vm5899, %v5776, -inf
    %v6056 = vsel %vm5899, %v5784, -inf
    %v6057 = vmax.f32 %v6055, %v6056
    %v6058 = vsel %vm5899, %v5792, -inf
    %v6059 = vmax.f32 %v6057, %v6058
    %v6060 = vsel %vm5899, %v5800, -inf
    %v6061 = vmax.f32 %v6059, %v6060
    %v6062 = vsel %vm5899, %v5808, -inf
    %v6063 = vmax.f32 %v6061, %v6062
    %v6064 = vsel %vm5899, %v5816, -inf
    %v6065 = vmax.f32 %v6063, %v6064
    %v6066 = vsel %vm5899, %v5824, -inf
    %v6067 = vmax.f32 %v6065, %v6066
    %v6068 = vsel %vm5899, %v5832, -inf
    %v6069 = vmax.f32 %v6067, %v6068
    %v6070 = vsel %vm5899, %v5840, -inf
    %v6071 = vmax.f32 %v6069, %v6070
    %v6072 = vsel %vm5899, %v5848, -inf
    %v6073 = vmax.f32 %v6071, %v6072
    %v6074 = vsel %vm5899, %v5856, -inf
    %v6075 = vmax.f32 %v6073, %v6074
    %v6076 = vsel %vm5899, %v5864, -inf
    %v6077 = vmax.f32 %v6075, %v6076
    %v6078 = vsel %vm5899, %v5872, -inf
    %v6079 = vmax.f32 %v6077, %v6078
    %v6080 = vsel %vm5899, %v5880, -inf
    %v6081 = vmax.f32 %v6079, %v6080
    %v6082 = vsel %vm5899, %v5888, -inf
    %v6083 = vmax.f32 %v6081, %v6082
    %v6084 = vsel %vm5899, %v5896, -inf
    %v6085 = vmax.f32 %v6083, %v6084
    %v6086 = vsel %vm5899, %v5777, -inf
    %v6087 = vsel %vm5899, %v5785, -inf
    %v6088 = vmax.f32 %v6086, %v6087
    %v6089 = vsel %vm5899, %v5793, -inf
    %v6090 = vmax.f32 %v6088, %v6089
    %v6091 = vsel %vm5899, %v5801, -inf
    %v6092 = vmax.f32 %v6090, %v6091
    %v6093 = vsel %vm5899, %v5809, -inf
    %v6094 = vmax.f32 %v6092, %v6093
    %v6095 = vsel %vm5899, %v5817, -inf
    %v6096 = vmax.f32 %v6094, %v6095
    %v6097 = vsel %vm5899, %v5825, -inf
    %v6098 = vmax.f32 %v6096, %v6097
    %v6099 = vsel %vm5899, %v5833, -inf
    %v6100 = vmax.f32 %v6098, %v6099
    %v6101 = vsel %vm5899, %v5841, -inf
    %v6102 = vmax.f32 %v6100, %v6101
    %v6103 = vsel %vm5899, %v5849, -inf
    %v6104 = vmax.f32 %v6102, %v6103
    %v6105 = vsel %vm5899, %v5857, -inf
    %v6106 = vmax.f32 %v6104, %v6105
    %v6107 = vsel %vm5899, %v5865, -inf
    %v6108 = vmax.f32 %v6106, %v6107
    %v6109 = vsel %vm5899, %v5873, -inf
    %v6110 = vmax.f32 %v6108, %v6109
    %v6111 = vsel %vm5899, %v5881, -inf
    %v6112 = vmax.f32 %v6110, %v6111
    %v6113 = vsel %vm5899, %v5889, -inf
    %v6114 = vmax.f32 %v6112, %v6113
    %v6115 = vsel %vm5899, %v5897, -inf
    %v6116 = vmax.f32 %v6114, %v6115
    %v6117 = vsel %vm5899, %v5778, -inf
    %v6118 = vsel %vm5899, %v5786, -inf
    %v6119 = vmax.f32 %v6117, %v6118
    %v6120 = vsel %vm5899, %v5794, -inf
    %v6121 = vmax.f32 %v6119, %v6120
    %v6122 = vsel %vm5899, %v5802, -inf
    %v6123 = vmax.f32 %v6121, %v6122
    %v6124 = vsel %vm5899, %v5810, -inf
    %v6125 = vmax.f32 %v6123, %v6124
    %v6126 = vsel %vm5899, %v5818, -inf
    %v6127 = vmax.f32 %v6125, %v6126
    %v6128 = vsel %vm5899, %v5826, -inf
    %v6129 = vmax.f32 %v6127, %v6128
    %v6130 = vsel %vm5899, %v5834, -inf
    %v6131 = vmax.f32 %v6129, %v6130
    %v6132 = vsel %vm5899, %v5842, -inf
    %v6133 = vmax.f32 %v6131, %v6132
    %v6134 = vsel %vm5899, %v5850, -inf
    %v6135 = vmax.f32 %v6133, %v6134
    %v6136 = vsel %vm5899, %v5858, -inf
    %v6137 = vmax.f32 %v6135, %v6136
    %v6138 = vsel %vm5899, %v5866, -inf
    %v6139 = vmax.f32 %v6137, %v6138
    %v6140 = vsel %vm5899, %v5874, -inf
    %v6141 = vmax.f32 %v6139, %v6140
    %v6142 = vsel %vm5899, %v5882, -inf
    %v6143 = vmax.f32 %v6141, %v6142
    %v6144 = vsel %vm5899, %v5890, -inf
    %v6145 = vmax.f32 %v6143, %v6144
    %v6146 = vsel %vm5899, %v5898, -inf
    %v6147 = vmax.f32 %v6145, %v6146
    %v6148 = vsub.f32 %v5771, %v5930
    %v6149 = vsub.f32 %v5772, %v5961
    %v6150 = vsub.f32 %v5773, %v5992
    %v6151 = vsub.f32 %v5774, %v6023
    %v6152 = vsub.f32 %v5775, %v6054
    %v6153 = vsub.f32 %v5776, %v6085
    %v6154 = vsub.f32 %v5777, %v6116
    %v6155 = vsub.f32 %v5778, %v6147
    %v6156 = vsub.f32 %v5779, %v5930
    %v6157 = vsub.f32 %v5780, %v5961
    %v6158 = vsub.f32 %v5781, %v5992
    %v6159 = vsub.f32 %v5782, %v6023
    %v6160 = vsub.f32 %v5783, %v6054
    %v6161 = vsub.f32 %v5784, %v6085
    %v6162 = vsub.f32 %v5785, %v6116
    %v6163 = vsub.f32 %v5786, %v6147
    %v6164 = vsub.f32 %v5787, %v5930
    %v6165 = vsub.f32 %v5788, %v5961
    %v6166 = vsub.f32 %v5789, %v5992
    %v6167 = vsub.f32 %v5790, %v6023
    %v6168 = vsub.f32 %v5791, %v6054
    %v6169 = vsub.f32 %v5792, %v6085
    %v6170 = vsub.f32 %v5793, %v6116
    %v6171 = vsub.f32 %v5794, %v6147
    %v6172 = vsub.f32 %v5795, %v5930
    %v6173 = vsub.f32 %v5796, %v5961
    %v6174 = vsub.f32 %v5797, %v5992
    %v6175 = vsub.f32 %v5798, %v6023
    %v6176 = vsub.f32 %v5799, %v6054
    %v6177 = vsub.f32 %v5800, %v6085
    %v6178 = vsub.f32 %v5801, %v6116
    %v6179 = vsub.f32 %v5802, %v6147
    %v6180 = vsub.f32 %v5803, %v5930
    %v6181 = vsub.f32 %v5804, %v5961
    %v6182 = vsub.f32 %v5805, %v5992
    %v6183 = vsub.f32 %v5806, %v6023
    %v6184 = vsub.f32 %v5807, %v6054
    %v6185 = vsub.f32 %v5808, %v6085
    %v6186 = vsub.f32 %v5809, %v6116
    %v6187 = vsub.f32 %v5810, %v6147
    %v6188 = vsub.f32 %v5811, %v5930
    %v6189 = vsub.f32 %v5812, %v5961
    %v6190 = vsub.f32 %v5813, %v5992
    %v6191 = vsub.f32 %v5814, %v6023
    %v6192 = vsub.f32 %v5815, %v6054
    %v6193 = vsub.f32 %v5816, %v6085
    %v6194 = vsub.f32 %v5817, %v6116
    %v6195 = vsub.f32 %v5818, %v6147
    %v6196 = vsub.f32 %v5819, %v5930
    %v6197 = vsub.f32 %v5820, %v5961
    %v6198 = vsub.f32 %v5821, %v5992
    %v6199 = vsub.f32 %v5822, %v6023
    %v6200 = vsub.f32 %v5823, %v6054
    %v6201 = vsub.f32 %v5824, %v6085
    %v6202 = vsub.f32 %v5825, %v6116
    %v6203 = vsub.f32 %v5826, %v6147
    %v6204 = vsub.f32 %v5827, %v5930
    %v6205 = vsub.f32 %v5828, %v5961
    %v6206 = vsub.f32 %v5829, %v5992
    %v6207 = vsub.f32 %v5830, %v6023
    %v6208 = vsub.f32 %v5831, %v6054
    %v6209 = vsub.f32 %v5832, %v6085
    %v6210 = vsub.f32 %v5833, %v6116
    %v6211 = vsub.f32 %v5834, %v6147
    %v6212 = vsub.f32 %v5835, %v5930
    %v6213 = vsub.f32 %v5836, %v5961
    %v6214 = vsub.f32 %v5837, %v5992
    %v6215 = vsub.f32 %v5838, %v6023
    %v6216 = vsub.f32 %v5839, %v6054
    %v6217 = vsub.f32 %v5840, %v6085
    %v6218 = vsub.f32 %v5841, %v6116
    %v6219 = vsub.f32 %v5842, %v6147
    %v6220 = vsub.f32 %v5843, %v5930
    %v6221 = vsub.f32 %v5844, %v5961
    %v6222 = vsub.f32 %v5845, %v5992
    %v6223 = vsub.f32 %v5846, %v6023
    %v6224 = vsub.f32 %v5847, %v6054
    %v6225 = vsub.f32 %v5848, %v6085
    %v6226 = vsub.f32 %v5849, %v6116
    %v6227 = vsub.f32 %v5850, %v6147
    %v6228 = vsub.f32 %v5851, %v5930
    %v6229 = vsub.f32 %v5852, %v5961
    %v6230 = vsub.f32 %v5853, %v5992
    %v6231 = vsub.f32 %v5854, %v6023
    %v6232 = vsub.f32 %v5855, %v6054
    %v6233 = vsub.f32 %v5856, %v6085
    %v6234 = vsub.f32 %v5857, %v6116
    %v6235 = vsub.f32 %v5858, %v6147
    %v6236 = vsub.f32 %v5859, %v5930
    %v6237 = vsub.f32 %v5860, %v5961
    %v6238 = vsub.f32 %v5861, %v5992
    %v6239 = vsub.f32 %v5862, %v6023
    %v6240 = vsub.f32 %v5863, %v6054
    %v6241 = vsub.f32 %v5864, %v6085
    %v6242 = vsub.f32 %v5865, %v6116
    %v6243 = vsub.f32 %v5866, %v6147
    %v6244 = vsub.f32 %v5867, %v5930
    %v6245 = vsub.f32 %v5868, %v5961
    %v6246 = vsub.f32 %v5869, %v5992
    %v6247 = vsub.f32 %v5870, %v6023
    %v6248 = vsub.f32 %v5871, %v6054
    %v6249 = vsub.f32 %v5872, %v6085
    %v6250 = vsub.f32 %v5873, %v6116
    %v6251 = vsub.f32 %v5874, %v6147
    %v6252 = vsub.f32 %v5875, %v5930
    %v6253 = vsub.f32 %v5876, %v5961
    %v6254 = vsub.f32 %v5877, %v5992
    %v6255 = vsub.f32 %v5878, %v6023
    %v6256 = vsub.f32 %v5879, %v6054
    %v6257 = vsub.f32 %v5880, %v6085
    %v6258 = vsub.f32 %v5881, %v6116
    %v6259 = vsub.f32 %v5882, %v6147
    %v6260 = vsub.f32 %v5883, %v5930
    %v6261 = vsub.f32 %v5884, %v5961
    %v6262 = vsub.f32 %v5885, %v5992
    %v6263 = vsub.f32 %v5886, %v6023
    %v6264 = vsub.f32 %v5887, %v6054
    %v6265 = vsub.f32 %v5888, %v6085
    %v6266 = vsub.f32 %v5889, %v6116
    %v6267 = vsub.f32 %v5890, %v6147
    %v6268 = vsub.f32 %v5891, %v5930
    %v6269 = vsub.f32 %v5892, %v5961
    %v6270 = vsub.f32 %v5893, %v5992
    %v6271 = vsub.f32 %v5894, %v6023
    %v6272 = vsub.f32 %v5895, %v6054
    %v6273 = vsub.f32 %v5896, %v6085
    %v6274 = vsub.f32 %v5897, %v6116
    %v6275 = vsub.f32 %v5898, %v6147
    %v6276 = vmul.f32 %v6148, 1.442695
    %v6277 = vpow.pop %v6276
    %v6278 = vmul.f32 %v6149, 1.442695
    %v6279 = vpow.pop %v6278
    %v6280 = vmul.f32 %v6150, 1.442695
    %v6281 = vpow.pop %v6280
    %v6282 = vmul.f32 %v6151, 1.442695
    %v6283 = vpow.pop %v6282
    %v6284 = vmul.f32 %v6152, 1.442695
    %v6285 = vpow.pop %v6284
    %v6286 = vmul.f32 %v6153, 1.442695
    %v6287 = vpow.pop %v6286
    %v6288 = vmul.f32 %v6154, 1.442695
    %v6289 = vpow.pop %v6288
    %v6290 = vmul.f32 %v6155, 1.442695
    %v6291 = vpow.pop %v6290
    %v6292 = vmul.f32 %v6156, 1.442695
    %v6293 = vpow.pop %v6292
    %v6294 = vmul.f32 %v6157, 1.442695
    %v6295 = vpow.pop %v6294
    %v6296 = vmul.f32 %v6158, 1.442695
    %v6297 = vpow.pop %v6296
    %v6298 = vmul.f32 %v6159, 1.442695
    %v6299 = vpow.pop %v6298
    %v6300 = vmul.f32 %v6160, 1.442695
    %v6301 = vpow.pop %v6300
    %v6302 = vmul.f32 %v6161, 1.442695
    %v6303 = vpow.pop %v6302
    %v6304 = vmul.f32 %v6162, 1.442695
    %v6305 = vpow.pop %v6304
    %v6306 = vmul.f32 %v6163, 1.442695
    %v6307 = vpow.pop %v6306
    %v6308 = vmul.f32 %v6164, 1.442695
    %v6309 = vpow.pop %v6308
    %v6310 = vmul.f32 %v6165, 1.442695
    %v6311 = vpow.pop %v6310
    %v6312 = vmul.f32 %v6166, 1.442695
    %v6313 = vpow.pop %v6312
    %v6314 = vmul.f32 %v6167, 1.442695
    %v6315 = vpow.pop %v6314
    %v6316 = vmul.f32 %v6168, 1.442695
    %v6317 = vpow.pop %v6316
    %v6318 = vmul.f32 %v6169, 1.442695
    %v6319 = vpow.pop %v6318
    %v6320 = vmul.f32 %v6170, 1.442695
    %v6321 = vpow.pop %v6320
    %v6322 = vmul.f32 %v6171, 1.442695
    %v6323 = vpow.pop %v6322
    %v6324 = vmul.f32 %v6172, 1.442695
    %v6325 = vpow.pop %v6324
    %v6326 = vmul.f32 %v6173, 1.442695
    %v6327 = vpow.pop %v6326
    %v6328 = vmul.f32 %v6174, 1.442695
    %v6329 = vpow.pop %v6328
    %v6330 = vmul.f32 %v6175, 1.442695
    %v6331 = vpow.pop %v6330
    %v6332 = vmul.f32 %v6176, 1.442695
    %v6333 = vpow.pop %v6332
    %v6334 = vmul.f32 %v6177, 1.442695
    %v6335 = vpow.pop %v6334
    %v6336 = vmul.f32 %v6178, 1.442695
    %v6337 = vpow.pop %v6336
    %v6338 = vmul.f32 %v6179, 1.442695
    %v6339 = vpow.pop %v6338
    %v6340 = vmul.f32 %v6180, 1.442695
    %v6341 = vpow.pop %v6340
    %v6342 = vmul.f32 %v6181, 1.442695
    %v6343 = vpow.pop %v6342
    %v6344 = vmul.f32 %v6182, 1.442695
    %v6345 = vpow.pop %v6344
    %v6346 = vmul.f32 %v6183, 1.442695
    %v6347 = vpow.pop %v6346
    %v6348 = vmul.f32 %v6184, 1.442695
    %v6349 = vpow.pop %v6348
    %v6350 = vmul.f32 %v6185, 1.442695
    %v6351 = vpow.pop %v6350
    %v6352 = vmul.f32 %v6186, 1.442695
    %v6353 = vpow.pop %v6352
    %v6354 = vmul.f32 %v6187, 1.442695
    %v6355 = vpow.pop %v6354
    %v6356 = vmul.f32 %v6188, 1.442695
    %v6357 = vpow.pop %v6356
    %v6358 = vmul.f32 %v6189, 1.442695
    %v6359 = vpow.pop %v6358
    %v6360 = vmul.f32 %v6190, 1.442695
    %v6361 = vpow.pop %v6360
    %v6362 = vmul.f32 %v6191, 1.442695
    %v6363 = vpow.pop %v6362
    %v6364 = vmul.f32 %v6192, 1.442695
    %v6365 = vpow.pop %v6364
    %v6366 = vmul.f32 %v6193, 1.442695
    %v6367 = vpow.pop %v6366
    %v6368 = vmul.f32 %v6194, 1.442695
    %v6369 = vpow.pop %v6368
    %v6370 = vmul.f32 %v6195, 1.442695
    %v6371 = vpow.pop %v6370
    %v6372 = vmul.f32 %v6196, 1.442695
    %v6373 = vpow.pop %v6372
    %v6374 = vmul.f32 %v6197, 1.442695
    %v6375 = vpow.pop %v6374
    %v6376 = vmul.f32 %v6198, 1.442695
    %v6377 = vpow.pop %v6376
    %v6378 = vmul.f32 %v6199, 1.442695
    %v6379 = vpow.pop %v6378
    %v6380 = vmul.f32 %v6200, 1.442695
    %v6381 = vpow.pop %v6380
    %v6382 = vmul.f32 %v6201, 1.442695
    %v6383 = vpow.pop %v6382
    %v6384 = vmul.f32 %v6202, 1.442695
    %v6385 = vpow.pop %v6384
    %v6386 = vmul.f32 %v6203, 1.442695
    %v6387 = vpow.pop %v6386
    %v6388 = vmul.f32 %v6204, 1.442695
    %v6389 = vpow.pop %v6388
    %v6390 = vmul.f32 %v6205, 1.442695
    %v6391 = vpow.pop %v6390
    %v6392 = vmul.f32 %v6206, 1.442695
    %v6393 = vpow.pop %v6392
    %v6394 = vmul.f32 %v6207, 1.442695
    %v6395 = vpow.pop %v6394
    %v6396 = vmul.f32 %v6208, 1.442695
    %v6397 = vpow.pop %v6396
    %v6398 = vmul.f32 %v6209, 1.442695
    %v6399 = vpow.pop %v6398
    %v6400 = vmul.f32 %v6210, 1.442695
    %v6401 = vpow.pop %v6400
    %v6402 = vmul.f32 %v6211, 1.442695
    %v6403 = vpow.pop %v6402
    %v6404 = vmul.f32 %v6212, 1.442695
    %v6405 = vpow.pop %v6404
    %v6406 = vmul.f32 %v6213, 1.442695
    %v6407 = vpow.pop %v6406
    %v6408 = vmul.f32 %v6214, 1.442695
    %v6409 = vpow.pop %v6408
    %v6410 = vmul.f32 %v6215, 1.442695
    %v6411 = vpow.pop %v6410
    %v6412 = vmul.f32 %v6216, 1.442695
    %v6413 = vpow.pop %v6412
    %v6414 = vmul.f32 %v6217, 1.442695
    %v6415 = vpow.pop %v6414
    %v6416 = vmul.f32 %v6218, 1.442695
    %v6417 = vpow.pop %v6416
    %v6418 = vmul.f32 %v6219, 1.442695
    %v6419 = vpow.pop %v6418
    %v6420 = vmul.f32 %v6220, 1.442695
    %v6421 = vpow.pop %v6420
    %v6422 = vmul.f32 %v6221, 1.442695
    %v6423 = vpow.pop %v6422
    %v6424 = vmul.f32 %v6222, 1.442695
    %v6425 = vpow.pop %v6424
    %v6426 = vmul.f32 %v6223, 1.442695
    %v6427 = vpow.pop %v6426
    %v6428 = vmul.f32 %v6224, 1.442695
    %v6429 = vpow.pop %v6428
    %v6430 = vmul.f32 %v6225, 1.442695
    %v6431 = vpow.pop %v6430
    %v6432 = vmul.f32 %v6226, 1.442695
    %v6433 = vpow.pop %v6432
    %v6434 = vmul.f32 %v6227, 1.442695
    %v6435 = vpow.pop %v6434
    %v6436 = vmul.f32 %v6228, 1.442695
    %v6437 = vpow.pop %v6436
    %v6438 = vmul.f32 %v6229, 1.442695
    %v6439 = vpow.pop %v6438
    %v6440 = vmul.f32 %v6230, 1.442695
    %v6441 = vpow.pop %v6440
    %v6442 = vmul.f32 %v6231, 1.442695
    %v6443 = vpow.pop %v6442
    %v6444 = vmul.f32 %v6232, 1.442695
    %v6445 = vpow.pop %v6444
    %v6446 = vmul.f32 %v6233, 1.442695
    %v6447 = vpow.pop %v6446
    %v6448 = vmul.f32 %v6234, 1.442695
    %v6449 = vpow.pop %v6448
    %v6450 = vmul.f32 %v6235, 1.442695
    %v6451 = vpow.pop %v6450
    %v6452 = vmul.f32 %v6236, 1.442695
    %v6453 = vpow.pop %v6452
    %v6454 = vmul.f32 %v6237, 1.442695
    %v6455 = vpow.pop %v6454
    %v6456 = vmul.f32 %v6238, 1.442695
    %v6457 = vpow.pop %v6456
    %v6458 = vmul.f32 %v6239, 1.442695
    %v6459 = vpow.pop %v6458
    %v6460 = vmul.f32 %v6240, 1.442695
    %v6461 = vpow.pop %v6460
    %v6462 = vmul.f32 %v6241, 1.442695
    %v6463 = vpow.pop %v6462
    %v6464 = vmul.f32 %v6242, 1.442695
    %v6465 = vpow.pop %v6464
    %v6466 = vmul.f32 %v6243, 1.442695
    %v6467 = vpow.pop %v6466
    %v6468 = vmul.f32 %v6244, 1.442695
    %v6469 = vpow.pop %v6468
    %v6470 = vmul.f32 %v6245, 1.442695
    %v6471 = vpow.pop %v6470
    %v6472 = vmul.f32 %v6246, 1.442695
    %v6473 = vpow.pop %v6472
    %v6474 = vmul.f32 %v6247, 1.442695
    %v6475 = vpow.pop %v6474
    %v6476 = vmul.f32 %v6248, 1.442695
    %v6477 = vpow.pop %v6476
    %v6478 = vmul.f32 %v6249, 1.442695
    %v6479 = vpow.pop %v6478
    %v6480 = vmul.f32 %v6250, 1.442695
    %v6481 = vpow.pop %v6480
    %v6482 = vmul.f32 %v6251, 1.442695
    %v6483 = vpow.pop %v6482
    %v6484 = vmul.f32 %v6252, 1.442695
    %v6485 = vpow.pop %v6484
    %v6486 = vmul.f32 %v6253, 1.442695
    %v6487 = vpow.pop %v6486
    %v6488 = vmul.f32 %v6254, 1.442695
    %v6489 = vpow.pop %v6488
    %v6490 = vmul.f32 %v6255, 1.442695
    %v6491 = vpow.pop %v6490
    %v6492 = vmul.f32 %v6256, 1.442695
    %v6493 = vpow.pop %v6492
    %v6494 = vmul.f32 %v6257, 1.442695
    %v6495 = vpow.pop %v6494
    %v6496 = vmul.f32 %v6258, 1.442695
    %v6497 = vpow.pop %v6496
    %v6498 = vmul.f32 %v6259, 1.442695
    %v6499 = vpow.pop %v6498
    %v6500 = vmul.f32 %v6260, 1.442695
    %v6501 = vpow.pop %v6500
    %v6502 = vmul.f32 %v6261, 1.442695
    %v6503 = vpow.pop %v6502
    %v6504 = vmul.f32 %v6262, 1.442695
    %v6505 = vpow.pop %v6504
    %v6506 = vmul.f32 %v6263, 1.442695
    %v6507 = vpow.pop %v6506
    %v6508 = vmul.f32 %v6264, 1.442695
    %v6509 = vpow.pop %v6508
    %v6510 = vmul.f32 %v6265, 1.442695
    %v6511 = vpow.pop %v6510
    %v6512 = vmul.f32 %v6266, 1.442695
    %v6513 = vpow.pop %v6512
    %v6514 = vmul.f32 %v6267, 1.442695
    %v6515 = vpow.pop %v6514
    %v6516 = vmul.f32 %v6268, 1.442695
    %v6517 = vpow.pop %v6516
    %v6518 = vmul.f32 %v6269, 1.442695
    %v6519 = vpow.pop %v6518
    %v6520 = vmul.f32 %v6270, 1.442695
    %v6521 = vpow.pop %v6520
    %v6522 = vmul.f32 %v6271, 1.442695
    %v6523 = vpow.pop %v6522
    %v6524 = vmul.f32 %v6272, 1.442695
    %v6525 = vpow.pop %v6524
    %v6526 = vmul.f32 %v6273, 1.442695
    %v6527 = vpow.pop %v6526
    %v6528 = vmul.f32 %v6274, 1.442695
    %v6529 = vpow.pop %v6528
    %v6530 = vmul.f32 %v6275, 1.442695
    %v6531 = vpow.pop %v6530
    %v6532 = vsel %vm5899, %v6277, 0.0
    %v6533 = vsel %vm5899, %v6293, 0.0
    %v6534 = vadd.f32 %v6532, %v6533
    %v6535 = vsel %vm5899, %v6309, 0.0
    %v6536 = vadd.f32 %v6534, %v6535
    %v6537 = vsel %vm5899, %v6325, 0.0
    %v6538 = vadd.f32 %v6536, %v6537
    %v6539 = vsel %vm5899, %v6341, 0.0
    %v6540 = vadd.f32 %v6538, %v6539
    %v6541 = vsel %vm5899, %v6357, 0.0
    %v6542 = vadd.f32 %v6540, %v6541
    %v6543 = vsel %vm5899, %v6373, 0.0
    %v6544 = vadd.f32 %v6542, %v6543
    %v6545 = vsel %vm5899, %v6389, 0.0
    %v6546 = vadd.f32 %v6544, %v6545
    %v6547 = vsel %vm5899, %v6405, 0.0
    %v6548 = vadd.f32 %v6546, %v6547
    %v6549 = vsel %vm5899, %v6421, 0.0
    %v6550 = vadd.f32 %v6548, %v6549
    %v6551 = vsel %vm5899, %v6437, 0.0
    %v6552 = vadd.f32 %v6550, %v6551
    %v6553 = vsel %vm5899, %v6453, 0.0
    %v6554 = vadd.f32 %v6552, %v6553
    %v6555 = vsel %vm5899, %v6469, 0.0
    %v6556 = vadd.f32 %v6554, %v6555
    %v6557 = vsel %vm5899, %v6485, 0.0
    %v6558 = vadd.f32 %v6556, %v6557
    %v6559 = vsel %vm5899, %v6501, 0.0
    %v6560 = vadd.f32 %v6558, %v6559
    %v6561 = vsel %vm5899, %v6517, 0.0
    %v6562 = vadd.f32 %v6560, %v6561
    %v6563 = vsel %vm5899, %v6279, 0.0
    %v6564 = vsel %vm5899, %v6295, 0.0
    %v6565 = vadd.f32 %v6563, %v6564
    %v6566 = vsel %vm5899, %v6311, 0.0
    %v6567 = vadd.f32 %v6565, %v6566
    %v6568 = vsel %vm5899, %v6327, 0.0
    %v6569 = vadd.f32 %v6567, %v6568
    %v6570 = vsel %vm5899, %v6343, 0.0
    %v6571 = vadd.f32 %v6569, %v6570
    %v6572 = vsel %vm5899, %v6359, 0.0
    %v6573 = vadd.f32 %v6571, %v6572
    %v6574 = vsel %vm5899, %v6375, 0.0
    %v6575 = vadd.f32 %v6573, %v6574
    %v6576 = vsel %vm5899, %v6391, 0.0
    %v6577 = vadd.f32 %v6575, %v6576
    %v6578 = vsel %vm5899, %v6407, 0.0
    %v6579 = vadd.f32 %v6577, %v6578
    %v6580 = vsel %vm5899, %v6423, 0.0
    %v6581 = vadd.f32 %v6579, %v6580
    %v6582 = vsel %vm5899, %v6439, 0.0
    %v6583 = vadd.f32 %v6581, %v6582
    %v6584 = vsel %vm5899, %v6455, 0.0
    %v6585 = vadd.f32 %v6583, %v6584
    %v6586 = vsel %vm5899, %v6471, 0.0
    %v6587 = vadd.f32 %v6585, %v6586
    %v6588 = vsel %vm5899, %v6487, 0.0
    %v6589 = vadd.f32 %v6587, %v6588
    %v6590 = vsel %vm5899, %v6503, 0.0
    %v6591 = vadd.f32 %v6589, %v6590
    %v6592 = vsel %vm5899, %v6519, 0.0
    %v6593 = vadd.f32 %v6591, %v6592
    %v6594 = vsel %vm5899, %v6281, 0.0
    %v6595 = vsel %vm5899, %v6297, 0.0
    %v6596 = vadd.f32 %v6594, %v6595
    %v6597 = vsel %vm5899, %v6313, 0.0
    %v6598 = vadd.f32 %v6596, %v6597
    %v6599 = vsel %vm5899, %v6329, 0.0
    %v6600 = vadd.f32 %v6598, %v6599
    %v6601 = vsel %vm5899, %v6345, 0.0
    %v6602 = vadd.f32 %v6600, %v6601
    %v6603 = vsel %vm5899, %v6361, 0.0
    %v6604 = vadd.f32 %v6602, %v6603
    %v6605 = vsel %vm5899, %v6377, 0.0
    %v6606 = vadd.f32 %v6604, %v6605
    %v6607 = vsel %vm5899, %v6393, 0.0
    %v6608 = vadd.f32 %v6606, %v6607
    %v6609 = vsel %vm5899, %v6409, 0.0
    %v6610 = vadd.f32 %v6608, %v6609
    %v6611 = vsel %vm5899, %v6425, 0.0
    %v6612 = vadd.f32 %v6610, %v6611
    %v6613 = vsel %vm5899, %v6441, 0.0
    %v6614 = vadd.f32 %v6612, %v6613
    %v6615 = vsel %vm5899, %v6457, 0.0
    %v6616 = vadd.f32 %v6614, %v6615
    %v6617 = vsel %vm5899, %v6473, 0.0
    %v6618 = vadd.f32 %v6616, %v6617
    %v6619 = vsel %vm5899, %v6489, 0.0
    %v6620 = vadd.f32 %v6618, %v6619
    %v6621 = vsel %vm5899, %v6505, 0.0
    %v6622 = vadd.f32 %v6620, %v6621
    %v6623 = vsel %vm5899, %v6521, 0.0
    %v6624 = vadd.f32 %v6622, %v6623
    %v6625 = vsel %vm5899, %v6283, 0.0
    %v6626 = vsel %vm5899, %v6299, 0.0
    %v6627 = vadd.f32 %v6625, %v6626
    %v6628 = vsel %vm5899, %v6315, 0.0
    %v6629 = vadd.f32 %v6627, %v6628
    %v6630 = vsel %vm5899, %v6331, 0.0
    %v6631 = vadd.f32 %v6629, %v6630
    %v6632 = vsel %vm5899, %v6347, 0.0
    %v6633 = vadd.f32 %v6631, %v6632
    %v6634 = vsel %vm5899, %v6363, 0.0
    %v6635 = vadd.f32 %v6633, %v6634
    %v6636 = vsel %vm5899, %v6379, 0.0
    %v6637 = vadd.f32 %v6635, %v6636
    %v6638 = vsel %vm5899, %v6395, 0.0
    %v6639 = vadd.f32 %v6637, %v6638
    %v6640 = vsel %vm5899, %v6411, 0.0
    %v6641 = vadd.f32 %v6639, %v6640
    %v6642 = vsel %vm5899, %v6427, 0.0
    %v6643 = vadd.f32 %v6641, %v6642
    %v6644 = vsel %vm5899, %v6443, 0.0
    %v6645 = vadd.f32 %v6643, %v6644
    %v6646 = vsel %vm5899, %v6459, 0.0
    %v6647 = vadd.f32 %v6645, %v6646
    %v6648 = vsel %vm5899, %v6475, 0.0
    %v6649 = vadd.f32 %v6647, %v6648
    %v6650 = vsel %vm5899, %v6491, 0.0
    %v6651 = vadd.f32 %v6649, %v6650
    %v6652 = vsel %vm5899, %v6507, 0.0
    %v6653 = vadd.f32 %v6651, %v6652
    %v6654 = vsel %vm5899, %v6523, 0.0
    %v6655 = vadd.f32 %v6653, %v6654
    %v6656 = vsel %vm5899, %v6285, 0.0
    %v6657 = vsel %vm5899, %v6301, 0.0
    %v6658 = vadd.f32 %v6656, %v6657
    %v6659 = vsel %vm5899, %v6317, 0.0
    %v6660 = vadd.f32 %v6658, %v6659
    %v6661 = vsel %vm5899, %v6333, 0.0
    %v6662 = vadd.f32 %v6660, %v6661
    %v6663 = vsel %vm5899, %v6349, 0.0
    %v6664 = vadd.f32 %v6662, %v6663
    %v6665 = vsel %vm5899, %v6365, 0.0
    %v6666 = vadd.f32 %v6664, %v6665
    %v6667 = vsel %vm5899, %v6381, 0.0
    %v6668 = vadd.f32 %v6666, %v6667
    %v6669 = vsel %vm5899, %v6397, 0.0
    %v6670 = vadd.f32 %v6668, %v6669
    %v6671 = vsel %vm5899, %v6413, 0.0
    %v6672 = vadd.f32 %v6670, %v6671
    %v6673 = vsel %vm5899, %v6429, 0.0
    %v6674 = vadd.f32 %v6672, %v6673
    %v6675 = vsel %vm5899, %v6445, 0.0
    %v6676 = vadd.f32 %v6674, %v6675
    %v6677 = vsel %vm5899, %v6461, 0.0
    %v6678 = vadd.f32 %v6676, %v6677
    %v6679 = vsel %vm5899, %v6477, 0.0
    %v6680 = vadd.f32 %v6678, %v6679
    %v6681 = vsel %vm5899, %v6493, 0.0
    %v6682 = vadd.f32 %v6680, %v6681
    %v6683 = vsel %vm5899, %v6509, 0.0
    %v6684 = vadd.f32 %v6682, %v6683
    %v6685 = vsel %vm5899, %v6525, 0.0
    %v6686 = vadd.f32 %v6684, %v6685
    %v6687 = vsel %vm5899, %v6287, 0.0
    %v6688 = vsel %vm5899, %v6303, 0.0
    %v6689 = vadd.f32 %v6687, %v6688
    %v6690 = vsel %vm5899, %v6319, 0.0
    %v6691 = vadd.f32 %v6689, %v6690
    %v6692 = vsel %vm5899, %v6335, 0.0
    %v6693 = vadd.f32 %v6691, %v6692
    %v6694 = vsel %vm5899, %v6351, 0.0
    %v6695 = vadd.f32 %v6693, %v6694
    %v6696 = vsel %vm5899, %v6367, 0.0
    %v6697 = vadd.f32 %v6695, %v6696
    %v6698 = vsel %vm5899, %v6383, 0.0
    %v6699 = vadd.f32 %v6697, %v6698
    %v6700 = vsel %vm5899, %v6399, 0.0
    %v6701 = vadd.f32 %v6699, %v6700
    %v6702 = vsel %vm5899, %v6415, 0.0
    %v6703 = vadd.f32 %v6701, %v6702
    %v6704 = vsel %vm5899, %v6431, 0.0
    %v6705 = vadd.f32 %v6703, %v6704
    %v6706 = vsel %vm5899, %v6447, 0.0
    %v6707 = vadd.f32 %v6705, %v6706
    %v6708 = vsel %vm5899, %v6463, 0.0
    %v6709 = vadd.f32 %v6707, %v6708
    %v6710 = vsel %vm5899, %v6479, 0.0
    %v6711 = vadd.f32 %v6709, %v6710
    %v6712 = vsel %vm5899, %v6495, 0.0
    %v6713 = vadd.f32 %v6711, %v6712
    %v6714 = vsel %vm5899, %v6511, 0.0
    %v6715 = vadd.f32 %v6713, %v6714
    %v6716 = vsel %vm5899, %v6527, 0.0
    %v6717 = vadd.f32 %v6715, %v6716
    %v6718 = vsel %vm5899, %v6289, 0.0
    %v6719 = vsel %vm5899, %v6305, 0.0
    %v6720 = vadd.f32 %v6718, %v6719
    %v6721 = vsel %vm5899, %v6321, 0.0
    %v6722 = vadd.f32 %v6720, %v6721
    %v6723 = vsel %vm5899, %v6337, 0.0
    %v6724 = vadd.f32 %v6722, %v6723
    %v6725 = vsel %vm5899, %v6353, 0.0
    %v6726 = vadd.f32 %v6724, %v6725
    %v6727 = vsel %vm5899, %v6369, 0.0
    %v6728 = vadd.f32 %v6726, %v6727
    %v6729 = vsel %vm5899, %v6385, 0.0
    %v6730 = vadd.f32 %v6728, %v6729
    %v6731 = vsel %vm5899, %v6401, 0.0
    %v6732 = vadd.f32 %v6730, %v6731
    %v6733 = vsel %vm5899, %v6417, 0.0
    %v6734 = vadd.f32 %v6732, %v6733
    %v6735 = vsel %vm5899, %v6433, 0.0
    %v6736 = vadd.f32 %v6734, %v6735
    %v6737 = vsel %vm5899, %v6449, 0.0
    %v6738 = vadd.f32 %v6736, %v6737
    %v6739 = vsel %vm5899, %v6465, 0.0
    %v6740 = vadd.f32 %v6738, %v6739
    %v6741 = vsel %vm5899, %v6481, 0.0
    %v6742 = vadd.f32 %v6740, %v6741
    %v6743 = vsel %vm5899, %v6497, 0.0
    %v6744 = vadd.f32 %v6742, %v6743
    %v6745 = vsel %vm5899, %v6513, 0.0
    %v6746 = vadd.f32 %v6744, %v6745
    %v6747 = vsel %vm5899, %v6529, 0.0
    %v6748 = vadd.f32 %v6746, %v6747
    %v6749 = vsel %vm5899, %v6291, 0.0
    %v6750 = vsel %vm5899, %v6307, 0.0
    %v6751 = vadd.f32 %v6749, %v6750
    %v6752 = vsel %vm5899, %v6323, 0.0
    %v6753 = vadd.f32 %v6751, %v6752
    %v6754 = vsel %vm5899, %v6339, 0.0
    %v6755 = vadd.f32 %v6753, %v6754
    %v6756 = vsel %vm5899, %v6355, 0.0
    %v6757 = vadd.f32 %v6755, %v6756
    %v6758 = vsel %vm5899, %v6371, 0.0
    %v6759 = vadd.f32 %v6757, %v6758
    %v6760 = vsel %vm5899, %v6387, 0.0
    %v6761 = vadd.f32 %v6759, %v6760
    %v6762 = vsel %vm5899, %v6403, 0.0
    %v6763 = vadd.f32 %v6761, %v6762
    %v6764 = vsel %vm5899, %v6419, 0.0
    %v6765 = vadd.f32 %v6763, %v6764
    %v6766 = vsel %vm5899, %v6435, 0.0
    %v6767 = vadd.f32 %v6765, %v6766
    %v6768 = vsel %vm5899, %v6451, 0.0
    %v6769 = vadd.f32 %v6767, %v6768
    %v6770 = vsel %vm5899, %v6467, 0.0
    %v6771 = vadd.f32 %v6769, %v6770
    %v6772 = vsel %vm5899, %v6483, 0.0
    %v6773 = vadd.f32 %v6771, %v6772
    %v6774 = vsel %vm5899, %v6499, 0.0
    %v6775 = vadd.f32 %v6773, %v6774
    %v6776 = vsel %vm5899, %v6515, 0.0
    %v6777 = vadd.f32 %v6775, %v6776
    %v6778 = vsel %vm5899, %v6531, 0.0
    %v6779 = vadd.f32 %v6777, %v6778
    %v6780 = vrcp.pop %v6562
    %v6781 = vrcp.pop %v6593
    %v6782 = vrcp.pop %v6624
    %v6783 = vrcp.pop %v6655
    %v6784 = vrcp.pop %v6686
    %v6785 = vrcp.pop %v6717
    %v6786 = vrcp.pop %v6748
    %v6787 = vrcp.pop %v6779
    %v6788 = vmul.f32 %v6277, %v6780
    %v6789 = vmul.f32 %v6279, %v6781
    %v6790 = vmul.f32 %v6281, %v6782
    %v6791 = vmul.f32 %v6283, %v6783
    %v6792 = vmul.f32 %v6285, %v6784
    %v6793 = vmul.f32 %v6287, %v6785
    %v6794 = vmul.f32 %v6289, %v6786
    %v6795 = vmul.f32 %v6291, %v6787
    %v6796 = vmul.f32 %v6293, %v6780
    %v6797 = vmul.f32 %v6295, %v6781
    %v6798 = vmul.f32 %v6297, %v6782
    %v6799 = vmul.f32 %v6299, %v6783
    %v6800 = vmul.f32 %v6301, %v6784
    %v6801 = vmul.f32 %v6303, %v6785
    %v6802 = vmul.f32 %v6305, %v6786
    %v6803 = vmul.f32 %v6307, %v6787
    %v6804 = vmul.f32 %v6309, %v6780
    %v6805 = vmul.f32 %v6311, %v6781
    %v6806 = vmul.f32 %v6313, %v6782
    %v6807 = vmul.f32 %v6315, %v6783
    %v6808 = vmul.f32 %v6317, %v6784
    %v6809 = vmul.f32 %v6319, %v6785
    %v6810 = vmul.f32 %v6321, %v6786
    %v6811 = vmul.f32 %v6323, %v6787
    %v6812 = vmul.f32 %v6325, %v6780
    %v6813 = vmul.f32 %v6327, %v6781
    %v6814 = vmul.f32 %v6329, %v6782
    %v6815 = vmul.f32 %v6331, %v6783
    %v6816 = vmul.f32 %v6333, %v6784
    %v6817 = vmul.f32 %v6335, %v6785
    %v6818 = vmul.f32 %v6337, %v6786
    %v6819 = vmul.f32 %v6339, %v6787
    %v6820 = vmul.f32 %v6341, %v6780
    %v6821 = vmul.f32 %v6343, %v6781
    %v6822 = vmul.f32 %v6345, %v6782
    %v6823 = vmul.f32 %v6347, %v6783
    %v6824 = vmul.f32 %v6349, %v6784
    %v6825 = vmul.f32 %v6351, %v6785
    %v6826 = vmul.f32 %v6353, %v6786
    %v6827 = vmul.f32 %v6355, %v6787
    %v6828 = vmul.f32 %v6357, %v6780
    %v6829 = vmul.f32 %v6359, %v6781
    %v6830 = vmul.f32 %v6361, %v6782
    %v6831 = vmul.f32 %v6363, %v6783
    %v6832 = vmul.f32 %v6365, %v6784
    %v6833 = vmul.f32 %v6367, %v6785
    %v6834 = vmul.f32 %v6369, %v6786
    %v6835 = vmul.f32 %v6371, %v6787
    %v6836 = vmul.f32 %v6373, %v6780
    %v6837 = vmul.f32 %v6375, %v6781
    %v6838 = vmul.f32 %v6377, %v6782
    %v6839 = vmul.f32 %v6379, %v6783
    %v6840 = vmul.f32 %v6381, %v6784
    %v6841 = vmul.f32 %v6383, %v6785
    %v6842 = vmul.f32 %v6385, %v6786
    %v6843 = vmul.f32 %v6387, %v6787
    %v6844 = vmul.f32 %v6389, %v6780
    %v6845 = vmul.f32 %v6391, %v6781
    %v6846 = vmul.f32 %v6393, %v6782
    %v6847 = vmul.f32 %v6395, %v6783
    %v6848 = vmul.f32 %v6397, %v6784
    %v6849 = vmul.f32 %v6399, %v6785
    %v6850 = vmul.f32 %v6401, %v6786
    %v6851 = vmul.f32 %v6403, %v6787
    %v6852 = vmul.f32 %v6405, %v6780
    %v6853 = vmul.f32 %v6407, %v6781
    %v6854 = vmul.f32 %v6409, %v6782
    %v6855 = vmul.f32 %v6411, %v6783
    %v6856 = vmul.f32 %v6413, %v6784
    %v6857 = vmul.f32 %v6415, %v6785
    %v6858 = vmul.f32 %v6417, %v6786
    %v6859 = vmul.f32 %v6419, %v6787
    %v6860 = vmul.f32 %v6421, %v6780
    %v6861 = vmul.f32 %v6423, %v6781
    %v6862 = vmul.f32 %v6425, %v6782
    %v6863 = vmul.f32 %v6427, %v6783
    %v6864 = vmul.f32 %v6429, %v6784
    %v6865 = vmul.f32 %v6431, %v6785
    %v6866 = vmul.f32 %v6433, %v6786
    %v6867 = vmul.f32 %v6435, %v6787
    %v6868 = vmul.f32 %v6437, %v6780
    %v6869 = vmul.f32 %v6439, %v6781
    %v6870 = vmul.f32 %v6441, %v6782
    %v6871 = vmul.f32 %v6443, %v6783
    %v6872 = vmul.f32 %v6445, %v6784
    %v6873 = vmul.f32 %v6447, %v6785
    %v6874 = vmul.f32 %v6449, %v6786
    %v6875 = vmul.f32 %v6451, %v6787
    %v6876 = vmul.f32 %v6453, %v6780
    %v6877 = vmul.f32 %v6455, %v6781
    %v6878 = vmul.f32 %v6457, %v6782
    %v6879 = vmul.f32 %v6459, %v6783
    %v6880 = vmul.f32 %v6461, %v6784
    %v6881 = vmul.f32 %v6463, %v6785
    %v6882 = vmul.f32 %v6465, %v6786
    %v6883 = vmul.f32 %v6467, %v6787
    %v6884 = vmul.f32 %v6469, %v6780
    %v6885 = vmul.f32 %v6471, %v6781
    %v6886 = vmul.f32 %v6473, %v6782
    %v6887 = vmul.f32 %v6475, %v6783
    %v6888 = vmul.f32 %v6477, %v6784
    %v6889 = vmul.f32 %v6479, %v6785
    %v6890 = vmul.f32 %v6481, %v6786
    %v6891 = vmul.f32 %v6483, %v6787
    %v6892 = vmul.f32 %v6485, %v6780
    %v6893 = vmul.f32 %v6487, %v6781
    %v6894 = vmul.f32 %v6489, %v6782
    %v6895 = vmul.f32 %v6491, %v6783
    %v6896 = vmul.f32 %v6493, %v6784
    %v6897 = vmul.f32 %v6495, %v6785
    %v6898 = vmul.f32 %v6497, %v6786
    %v6899 = vmul.f32 %v6499, %v6787
    %v6900 = vmul.f32 %v6501, %v6780
    %v6901 = vmul.f32 %v6503, %v6781
    %v6902 = vmul.f32 %v6505, %v6782
    %v6903 = vmul.f32 %v6507, %v6783
    %v6904 = vmul.f32 %v6509, %v6784
    %v6905 = vmul.f32 %v6511, %v6785
    %v6906 = vmul.f32 %v6513, %v6786
    %v6907 = vmul.f32 %v6515, %v6787
    %v6908 = vmul.f32 %v6517, %v6780
    %v6909 = vmul.f32 %v6519, %v6781
    %v6910 = vmul.f32 %v6521, %v6782
    %v6911 = vmul.f32 %v6523, %v6783
    %v6912 = vmul.f32 %v6525, %v6784
    %v6913 = vmul.f32 %v6527, %v6785
    %v6914 = vmul.f32 %v6529, %v6786
    %v6915 = vmul.f32 %v6531, %v6787
    %v6918 = vcombine.high %v1339, %v1339
    %v6920 = vunpack.c.l.s4 1966171168
    %v6921 = vunpack.c.0.s8 %v6920
    %v6922 = vlaneseq
    %v6923 = vshrl.u32 %v6922, 7
    %v6924 = vsub.s32 %v6921, %v6923
    %v6925 = vrot.slane %v1339, %v6924
    %v6927 = vunpack.c.l.s4 1966171168
    %v6928 = vunpack.c.0.s8 %v6927
    %v6929 = vlaneseq
    %v6930 = vshrl.u32 %v6929, 7
    %v6931 = vsub.s32 %v6928, %v6930
    %v6932 = vrot.slane %v6918, %v6931
    %v6933 = vcombine.high %v6925, %v6925
    %v6934 = vcombine.high %v6932, %v6932
    %v6936 = vunpack.c.l.s4 1966171168
    %v6937 = vunpack.c.0.s8 %v6936
    %v6938 = vlaneseq
    %v6939 = vshrl.u32 %v6938, 7
    %v6940 = vsub.s32 %v6937, %v6939
    %v6941 = vrot.slane %v6925, %v6940
    %v6943 = vunpack.c.l.s4 1966171168
    %v6944 = vunpack.c.0.s8 %v6943
    %v6945 = vlaneseq
    %v6946 = vshrl.u32 %v6945, 7
    %v6947 = vsub.s32 %v6944, %v6946
    %v6948 = vrot.slane %v6932, %v6947
    %v6950 = vunpack.c.l.s4 1966171168
    %v6951 = vunpack.c.0.s8 %v6950
    %v6952 = vlaneseq
    %v6953 = vshrl.u32 %v6952, 7
    %v6954 = vsub.s32 %v6951, %v6953
    %v6955 = vrot.slane %v6933, %v6954
    %v6957 = vunpack.c.l.s4 1966171168
    %v6958 = vunpack.c.0.s8 %v6957
    %v6959 = vlaneseq
    %v6960 = vshrl.u32 %v6959, 7
    %v6961 = vsub.s32 %v6958, %v6960
    %v6962 = vrot.slane %v6934, %v6961
    %v6963 = vcombine.high %v6941, %v6941
    %v6964 = vcombine.high %v6948, %v6948
    %v6965 = vcombine.high %v6955, %v6955
    %v6966 = vcombine.high %v6962, %v6962
    %v6967 = vcombine.high %v1343, %v1343
    %v6969 = vunpack.c.l.s4 1966171168
    %v6970 = vunpack.c.0.s8 %v6969
    %v6971 = vlaneseq
    %v6972 = vshrl.u32 %v6971, 7
    %v6973 = vsub.s32 %v6970, %v6972
    %v6974 = vrot.slane %v1343, %v6973
    %v6976 = vunpack.c.l.s4 1966171168
    %v6977 = vunpack.c.0.s8 %v6976
    %v6978 = vlaneseq
    %v6979 = vshrl.u32 %v6978, 7
    %v6980 = vsub.s32 %v6977, %v6979
    %v6981 = vrot.slane %v6967, %v6980
    %v6982 = vcombine.high %v6974, %v6974
    %v6983 = vcombine.high %v6981, %v6981
    %v6985 = vunpack.c.l.s4 1966171168
    %v6986 = vunpack.c.0.s8 %v6985
    %v6987 = vlaneseq
    %v6988 = vshrl.u32 %v6987, 7
    %v6989 = vsub.s32 %v6986, %v6988
    %v6990 = vrot.slane %v6974, %v6989
    %v6992 = vunpack.c.l.s4 1966171168
    %v6993 = vunpack.c.0.s8 %v6992
    %v6994 = vlaneseq
    %v6995 = vshrl.u32 %v6994, 7
    %v6996 = vsub.s32 %v6993, %v6995
    %v6997 = vrot.slane %v6981, %v6996
    %v6999 = vunpack.c.l.s4 1966171168
    %v7000 = vunpack.c.0.s8 %v6999
    %v7001 = vlaneseq
    %v7002 = vshrl.u32 %v7001, 7
    %v7003 = vsub.s32 %v7000, %v7002
    %v7004 = vrot.slane %v6982, %v7003
    %v7006 = vunpack.c.l.s4 1966171168
    %v7007 = vunpack.c.0.s8 %v7006
    %v7008 = vlaneseq
    %v7009 = vshrl.u32 %v7008, 7
    %v7010 = vsub.s32 %v7007, %v7009
    %v7011 = vrot.slane %v6983, %v7010
    %v7012 = vcombine.high %v6990, %v6990
    %v7013 = vcombine.high %v6997, %v6997
    %v7014 = vcombine.high %v7004, %v7004
    %v7015 = vcombine.high %v7011, %v7011
    %v7016 = vlaneseq
    %v7017 = vshrl.u32 %v7016, 7
    %v7018 = vsub.s32 0, %v7017
    %v7019 = vrot.slane %v6941, %v7018
    %v7020 = vlaneseq
    %v7021 = vshrl.u32 %v7020, 7
    %v7022 = vsub.s32 0, %v7021
    %v7023 = vrot.slane %v6955, %v7022
    %v7024 = vlaneseq
    %v7025 = vshrl.u32 %v7024, 7
    %v7026 = vsub.s32 0, %v7025
    %v7027 = vrot.slane %v6963, %v7026
    %v7028 = vlaneseq
    %v7029 = vshrl.u32 %v7028, 7
    %v7030 = vsub.s32 0, %v7029
    %v7031 = vrot.slane %v6965, %v7030
    %v7032 = vlaneseq
    %v7033 = vshrl.u32 %v7032, 7
    %v7034 = vsub.s32 0, %v7033
    %v7035 = vrot.slane %v6948, %v7034
    %v7036 = vlaneseq
    %v7037 = vshrl.u32 %v7036, 7
    %v7038 = vsub.s32 0, %v7037
    %v7039 = vrot.slane %v6962, %v7038
    %v7040 = vlaneseq
    %v7041 = vshrl.u32 %v7040, 7
    %v7042 = vsub.s32 0, %v7041
    %v7043 = vrot.slane %v6964, %v7042
    %v7044 = vlaneseq
    %v7045 = vshrl.u32 %v7044, 7
    %v7046 = vsub.s32 0, %v7045
    %v7047 = vrot.slane %v6966, %v7046
    %v7048 = vlaneseq
    %v7049 = vshrl.u32 %v7048, 7
    %v7050 = vsub.s32 0, %v7049
    %v7051 = vrot.slane %v6990, %v7050
    %v7052 = vlaneseq
    %v7053 = vshrl.u32 %v7052, 7
    %v7054 = vsub.s32 0, %v7053
    %v7055 = vrot.slane %v7004, %v7054
    %v7056 = vlaneseq
    %v7057 = vshrl.u32 %v7056, 7
    %v7058 = vsub.s32 0, %v7057
    %v7059 = vrot.slane %v7012, %v7058
    %v7060 = vlaneseq
    %v7061 = vshrl.u32 %v7060, 7
    %v7062 = vsub.s32 0, %v7061
    %v7063 = vrot.slane %v7014, %v7062
    %v7064 = vlaneseq
    %v7065 = vshrl.u32 %v7064, 7
    %v7066 = vsub.s32 0, %v7065
    %v7067 = vrot.slane %v6997, %v7066
    %v7068 = vlaneseq
    %v7069 = vshrl.u32 %v7068, 7
    %v7070 = vsub.s32 0, %v7069
    %v7071 = vrot.slane %v7011, %v7070
    %v7072 = vlaneseq
    %v7073 = vshrl.u32 %v7072, 7
    %v7074 = vsub.s32 0, %v7073
    %v7075 = vrot.slane %v7013, %v7074
    %v7076 = vlaneseq
    %v7077 = vshrl.u32 %v7076, 7
    %v7078 = vsub.s32 0, %v7077
    %v7079 = vrot.slane %v7015, %v7078
    %v7096 = vmul.f32 %v6788, %v7019
    %v7097 = vmul.f32 %v6789, %v7019
    %v7098 = vmul.f32 %v6790, %v7019
    %v7099 = vmul.f32 %v6791, %v7019
    %v7100 = vmul.f32 %v6792, %v7019
    %v7101 = vmul.f32 %v6793, %v7019
    %v7102 = vmul.f32 %v6794, %v7019
    %v7103 = vmul.f32 %v6795, %v7019
    %v7104 = vmul.f32 %v6796, %v7023
    %v7105 = vmul.f32 %v6797, %v7023
    %v7106 = vmul.f32 %v6798, %v7023
    %v7107 = vmul.f32 %v6799, %v7023
    %v7108 = vmul.f32 %v6800, %v7023
    %v7109 = vmul.f32 %v6801, %v7023
    %v7110 = vmul.f32 %v6802, %v7023
    %v7111 = vmul.f32 %v6803, %v7023
    %v7112 = vmul.f32 %v6804, %v7027
    %v7113 = vmul.f32 %v6805, %v7027
    %v7114 = vmul.f32 %v6806, %v7027
    %v7115 = vmul.f32 %v6807, %v7027
    %v7116 = vmul.f32 %v6808, %v7027
    %v7117 = vmul.f32 %v6809, %v7027
    %v7118 = vmul.f32 %v6810, %v7027
    %v7119 = vmul.f32 %v6811, %v7027
    %v7120 = vmul.f32 %v6812, %v7031
    %v7121 = vmul.f32 %v6813, %v7031
    %v7122 = vmul.f32 %v6814, %v7031
    %v7123 = vmul.f32 %v6815, %v7031
    %v7124 = vmul.f32 %v6816, %v7031
    %v7125 = vmul.f32 %v6817, %v7031
    %v7126 = vmul.f32 %v6818, %v7031
    %v7127 = vmul.f32 %v6819, %v7031
    %v7128 = vmul.f32 %v6820, %v7035
    %v7129 = vmul.f32 %v6821, %v7035
    %v7130 = vmul.f32 %v6822, %v7035
    %v7131 = vmul.f32 %v6823, %v7035
    %v7132 = vmul.f32 %v6824, %v7035
    %v7133 = vmul.f32 %v6825, %v7035
    %v7134 = vmul.f32 %v6826, %v7035
    %v7135 = vmul.f32 %v6827, %v7035
    %v7136 = vmul.f32 %v6828, %v7039
    %v7137 = vmul.f32 %v6829, %v7039
    %v7138 = vmul.f32 %v6830, %v7039
    %v7139 = vmul.f32 %v6831, %v7039
    %v7140 = vmul.f32 %v6832, %v7039
    %v7141 = vmul.f32 %v6833, %v7039
    %v7142 = vmul.f32 %v6834, %v7039
    %v7143 = vmul.f32 %v6835, %v7039
    %v7144 = vmul.f32 %v6836, %v7043
    %v7145 = vmul.f32 %v6837, %v7043
    %v7146 = vmul.f32 %v6838, %v7043
    %v7147 = vmul.f32 %v6839, %v7043
    %v7148 = vmul.f32 %v6840, %v7043
    %v7149 = vmul.f32 %v6841, %v7043
    %v7150 = vmul.f32 %v6842, %v7043
    %v7151 = vmul.f32 %v6843, %v7043
    %v7152 = vmul.f32 %v6844, %v7047
    %v7153 = vmul.f32 %v6845, %v7047
    %v7154 = vmul.f32 %v6846, %v7047
    %v7155 = vmul.f32 %v6847, %v7047
    %v7156 = vmul.f32 %v6848, %v7047
    %v7157 = vmul.f32 %v6849, %v7047
    %v7158 = vmul.f32 %v6850, %v7047
    %v7159 = vmul.f32 %v6851, %v7047
    %v7160 = vmul.f32 %v6852, %v7051
    %v7161 = vmul.f32 %v6853, %v7051
    %v7162 = vmul.f32 %v6854, %v7051
    %v7163 = vmul.f32 %v6855, %v7051
    %v7164 = vmul.f32 %v6856, %v7051
    %v7165 = vmul.f32 %v6857, %v7051
    %v7166 = vmul.f32 %v6858, %v7051
    %v7167 = vmul.f32 %v6859, %v7051
    %v7168 = vmul.f32 %v6860, %v7055
    %v7169 = vmul.f32 %v6861, %v7055
    %v7170 = vmul.f32 %v6862, %v7055
    %v7171 = vmul.f32 %v6863, %v7055
    %v7172 = vmul.f32 %v6864, %v7055
    %v7173 = vmul.f32 %v6865, %v7055
    %v7174 = vmul.f32 %v6866, %v7055
    %v7175 = vmul.f32 %v6867, %v7055
    %v7176 = vmul.f32 %v6868, %v7059
    %v7177 = vmul.f32 %v6869, %v7059
    %v7178 = vmul.f32 %v6870, %v7059
    %v7179 = vmul.f32 %v6871, %v7059
    %v7180 = vmul.f32 %v6872, %v7059
    %v7181 = vmul.f32 %v6873, %v7059
    %v7182 = vmul.f32 %v6874, %v7059
    %v7183 = vmul.f32 %v6875, %v7059
    %v7184 = vmul.f32 %v6876, %v7063
    %v7185 = vmul.f32 %v6877, %v7063
    %v7186 = vmul.f32 %v6878, %v7063
    %v7187 = vmul.f32 %v6879, %v7063
    %v7188 = vmul.f32 %v6880, %v7063
    %v7189 = vmul.f32 %v6881, %v7063
    %v7190 = vmul.f32 %v6882, %v7063
    %v7191 = vmul.f32 %v6883, %v7063
    %v7192 = vmul.f32 %v6884, %v7067
    %v7193 = vmul.f32 %v6885, %v7067
    %v7194 = vmul.f32 %v6886, %v7067
    %v7195 = vmul.f32 %v6887, %v7067
    %v7196 = vmul.f32 %v6888, %v7067
    %v7197 = vmul.f32 %v6889, %v7067
    %v7198 = vmul.f32 %v6890, %v7067
    %v7199 = vmul.f32 %v6891, %v7067
    %v7200 = vmul.f32 %v6892, %v7071
    %v7201 = vmul.f32 %v6893, %v7071
    %v7202 = vmul.f32 %v6894, %v7071
    %v7203 = vmul.f32 %v6895, %v7071
    %v7204 = vmul.f32 %v6896, %v7071
    %v7205 = vmul.f32 %v6897, %v7071
    %v7206 = vmul.f32 %v6898, %v7071
    %v7207 = vmul.f32 %v6899, %v7071
    %v7208 = vmul.f32 %v6900, %v7075
    %v7209 = vmul.f32 %v6901, %v7075
    %v7210 = vmul.f32 %v6902, %v7075
    %v7211 = vmul.f32 %v6903, %v7075
    %v7212 = vmul.f32 %v6904, %v7075
    %v7213 = vmul.f32 %v6905, %v7075
    %v7214 = vmul.f32 %v6906, %v7075
    %v7215 = vmul.f32 %v6907, %v7075
    %v7216 = vmul.f32 %v6908, %v7079
    %v7217 = vmul.f32 %v6909, %v7079
    %v7218 = vmul.f32 %v6910, %v7079
    %v7219 = vmul.f32 %v6911, %v7079
    %v7220 = vmul.f32 %v6912, %v7079
    %v7221 = vmul.f32 %v6913, %v7079
    %v7222 = vmul.f32 %v6914, %v7079
    %v7223 = vmul.f32 %v6915, %v7079
    %v7224 = vsel %vm5899, %v7096, 0.0
    %7225 = vadd.xlane.f32.xlu0 %v7224
    %v7226 = vpop.xlane.xlu0 %7225
    %v7227 = vsel %vm5899, %v7097, 0.0
    %7228 = vadd.xlane.f32.xlu0 %v7227
    %v7229 = vpop.xlane.xlu0 %7228
    %v7230 = vsel %vm5899, %v7098, 0.0
    %7231 = vadd.xlane.f32.xlu0 %v7230
    %v7232 = vpop.xlane.xlu0 %7231
    %v7233 = vsel %vm5899, %v7099, 0.0
    %7234 = vadd.xlane.f32.xlu0 %v7233
    %v7235 = vpop.xlane.xlu0 %7234
    %v7236 = vsel %vm5899, %v7100, 0.0
    %7237 = vadd.xlane.f32.xlu0 %v7236
    %v7238 = vpop.xlane.xlu0 %7237
    %v7239 = vsel %vm5899, %v7101, 0.0
    %7240 = vadd.xlane.f32.xlu0 %v7239
    %v7241 = vpop.xlane.xlu0 %7240
    %v7242 = vsel %vm5899, %v7102, 0.0
    %7243 = vadd.xlane.f32.xlu0 %v7242
    %v7244 = vpop.xlane.xlu0 %7243
    %v7245 = vsel %vm5899, %v7103, 0.0
    %7246 = vadd.xlane.f32.xlu0 %v7245
    %v7247 = vpop.xlane.xlu0 %7246
    %v7248 = vsel %vm5899, %v7104, 0.0
    %7249 = vadd.xlane.f32.xlu0 %v7248
    %v7250 = vpop.xlane.xlu0 %7249
    %v7251 = vsel %vm5899, %v7105, 0.0
    %7252 = vadd.xlane.f32.xlu0 %v7251
    %v7253 = vpop.xlane.xlu0 %7252
    %v7254 = vsel %vm5899, %v7106, 0.0
    %7255 = vadd.xlane.f32.xlu0 %v7254
    %v7256 = vpop.xlane.xlu0 %7255
    %v7257 = vsel %vm5899, %v7107, 0.0
    %7258 = vadd.xlane.f32.xlu0 %v7257
    %v7259 = vpop.xlane.xlu0 %7258
    %v7260 = vsel %vm5899, %v7108, 0.0
    %7261 = vadd.xlane.f32.xlu0 %v7260
    %v7262 = vpop.xlane.xlu0 %7261
    %v7263 = vsel %vm5899, %v7109, 0.0
    %7264 = vadd.xlane.f32.xlu0 %v7263
    %v7265 = vpop.xlane.xlu0 %7264
    %v7266 = vsel %vm5899, %v7110, 0.0
    %7267 = vadd.xlane.f32.xlu0 %v7266
    %v7268 = vpop.xlane.xlu0 %7267
    %v7269 = vsel %vm5899, %v7111, 0.0
    %7270 = vadd.xlane.f32.xlu0 %v7269
    %v7271 = vpop.xlane.xlu0 %7270
    %v7272 = vsel %vm5899, %v7112, 0.0
    %7273 = vadd.xlane.f32.xlu0 %v7272
    %v7274 = vpop.xlane.xlu0 %7273
    %v7275 = vsel %vm5899, %v7113, 0.0
    %7276 = vadd.xlane.f32.xlu0 %v7275
    %v7277 = vpop.xlane.xlu0 %7276
    %v7278 = vsel %vm5899, %v7114, 0.0
    %7279 = vadd.xlane.f32.xlu0 %v7278
    %v7280 = vpop.xlane.xlu0 %7279
    %v7281 = vsel %vm5899, %v7115, 0.0
    %7282 = vadd.xlane.f32.xlu0 %v7281
    %v7283 = vpop.xlane.xlu0 %7282
    %v7284 = vsel %vm5899, %v7116, 0.0
    %7285 = vadd.xlane.f32.xlu0 %v7284
    %v7286 = vpop.xlane.xlu0 %7285
    %v7287 = vsel %vm5899, %v7117, 0.0
    %7288 = vadd.xlane.f32.xlu0 %v7287
    %v7289 = vpop.xlane.xlu0 %7288
    %v7290 = vsel %vm5899, %v7118, 0.0
    %7291 = vadd.xlane.f32.xlu0 %v7290
    %v7292 = vpop.xlane.xlu0 %7291
    %v7293 = vsel %vm5899, %v7119, 0.0
    %7294 = vadd.xlane.f32.xlu0 %v7293
    %v7295 = vpop.xlane.xlu0 %7294
    %v7296 = vsel %vm5899, %v7120, 0.0
    %7297 = vadd.xlane.f32.xlu0 %v7296
    %v7298 = vpop.xlane.xlu0 %7297
    %v7299 = vsel %vm5899, %v7121, 0.0
    %7300 = vadd.xlane.f32.xlu0 %v7299
    %v7301 = vpop.xlane.xlu0 %7300
    %v7302 = vsel %vm5899, %v7122, 0.0
    %7303 = vadd.xlane.f32.xlu0 %v7302
    %v7304 = vpop.xlane.xlu0 %7303
    %v7305 = vsel %vm5899, %v7123, 0.0
    %7306 = vadd.xlane.f32.xlu0 %v7305
    %v7307 = vpop.xlane.xlu0 %7306
    %v7308 = vsel %vm5899, %v7124, 0.0
    %7309 = vadd.xlane.f32.xlu0 %v7308
    %v7310 = vpop.xlane.xlu0 %7309
    %v7311 = vsel %vm5899, %v7125, 0.0
    %7312 = vadd.xlane.f32.xlu0 %v7311
    %v7313 = vpop.xlane.xlu0 %7312
    %v7314 = vsel %vm5899, %v7126, 0.0
    %7315 = vadd.xlane.f32.xlu0 %v7314
    %v7316 = vpop.xlane.xlu0 %7315
    %v7317 = vsel %vm5899, %v7127, 0.0
    %7318 = vadd.xlane.f32.xlu0 %v7317
    %v7319 = vpop.xlane.xlu0 %7318
    %v7320 = vsel %vm5899, %v7128, 0.0
    %7321 = vadd.xlane.f32.xlu0 %v7320
    %v7322 = vpop.xlane.xlu0 %7321
    %v7323 = vsel %vm5899, %v7129, 0.0
    %7324 = vadd.xlane.f32.xlu0 %v7323
    %v7325 = vpop.xlane.xlu0 %7324
    %v7326 = vsel %vm5899, %v7130, 0.0
    %7327 = vadd.xlane.f32.xlu0 %v7326
    %v7328 = vpop.xlane.xlu0 %7327
    %v7329 = vsel %vm5899, %v7131, 0.0
    %7330 = vadd.xlane.f32.xlu0 %v7329
    %v7331 = vpop.xlane.xlu0 %7330
    %v7332 = vsel %vm5899, %v7132, 0.0
    %7333 = vadd.xlane.f32.xlu0 %v7332
    %v7334 = vpop.xlane.xlu0 %7333
    %v7335 = vsel %vm5899, %v7133, 0.0
    %7336 = vadd.xlane.f32.xlu0 %v7335
    %v7337 = vpop.xlane.xlu0 %7336
    %v7338 = vsel %vm5899, %v7134, 0.0
    %7339 = vadd.xlane.f32.xlu0 %v7338
    %v7340 = vpop.xlane.xlu0 %7339
    %v7341 = vsel %vm5899, %v7135, 0.0
    %7342 = vadd.xlane.f32.xlu0 %v7341
    %v7343 = vpop.xlane.xlu0 %7342
    %v7344 = vsel %vm5899, %v7136, 0.0
    %7345 = vadd.xlane.f32.xlu0 %v7344
    %v7346 = vpop.xlane.xlu0 %7345
    %v7347 = vsel %vm5899, %v7137, 0.0
    %7348 = vadd.xlane.f32.xlu0 %v7347
    %v7349 = vpop.xlane.xlu0 %7348
    %v7350 = vsel %vm5899, %v7138, 0.0
    %7351 = vadd.xlane.f32.xlu0 %v7350
    %v7352 = vpop.xlane.xlu0 %7351
    %v7353 = vsel %vm5899, %v7139, 0.0
    %7354 = vadd.xlane.f32.xlu0 %v7353
    %v7355 = vpop.xlane.xlu0 %7354
    %v7356 = vsel %vm5899, %v7140, 0.0
    %7357 = vadd.xlane.f32.xlu0 %v7356
    %v7358 = vpop.xlane.xlu0 %7357
    %v7359 = vsel %vm5899, %v7141, 0.0
    %7360 = vadd.xlane.f32.xlu0 %v7359
    %v7361 = vpop.xlane.xlu0 %7360
    %v7362 = vsel %vm5899, %v7142, 0.0
    %7363 = vadd.xlane.f32.xlu0 %v7362
    %v7364 = vpop.xlane.xlu0 %7363
    %v7365 = vsel %vm5899, %v7143, 0.0
    %7366 = vadd.xlane.f32.xlu0 %v7365
    %v7367 = vpop.xlane.xlu0 %7366
    %v7368 = vsel %vm5899, %v7144, 0.0
    %7369 = vadd.xlane.f32.xlu0 %v7368
    %v7370 = vpop.xlane.xlu0 %7369
    %v7371 = vsel %vm5899, %v7145, 0.0
    %7372 = vadd.xlane.f32.xlu0 %v7371
    %v7373 = vpop.xlane.xlu0 %7372
    %v7374 = vsel %vm5899, %v7146, 0.0
    %7375 = vadd.xlane.f32.xlu0 %v7374
    %v7376 = vpop.xlane.xlu0 %7375
    %v7377 = vsel %vm5899, %v7147, 0.0
    %7378 = vadd.xlane.f32.xlu0 %v7377
    %v7379 = vpop.xlane.xlu0 %7378
    %v7380 = vsel %vm5899, %v7148, 0.0
    %7381 = vadd.xlane.f32.xlu0 %v7380
    %v7382 = vpop.xlane.xlu0 %7381
    %v7383 = vsel %vm5899, %v7149, 0.0
    %7384 = vadd.xlane.f32.xlu0 %v7383
    %v7385 = vpop.xlane.xlu0 %7384
    %v7386 = vsel %vm5899, %v7150, 0.0
    %7387 = vadd.xlane.f32.xlu0 %v7386
    %v7388 = vpop.xlane.xlu0 %7387
    %v7389 = vsel %vm5899, %v7151, 0.0
    %7390 = vadd.xlane.f32.xlu0 %v7389
    %v7391 = vpop.xlane.xlu0 %7390
    %v7392 = vsel %vm5899, %v7152, 0.0
    %7393 = vadd.xlane.f32.xlu0 %v7392
    %v7394 = vpop.xlane.xlu0 %7393
    %v7395 = vsel %vm5899, %v7153, 0.0
    %7396 = vadd.xlane.f32.xlu0 %v7395
    %v7397 = vpop.xlane.xlu0 %7396
    %v7398 = vsel %vm5899, %v7154, 0.0
    %7399 = vadd.xlane.f32.xlu0 %v7398
    %v7400 = vpop.xlane.xlu0 %7399
    %v7401 = vsel %vm5899, %v7155, 0.0
    %7402 = vadd.xlane.f32.xlu0 %v7401
    %v7403 = vpop.xlane.xlu0 %7402
    %v7404 = vsel %vm5899, %v7156, 0.0
    %7405 = vadd.xlane.f32.xlu0 %v7404
    %v7406 = vpop.xlane.xlu0 %7405
    %v7407 = vsel %vm5899, %v7157, 0.0
    %7408 = vadd.xlane.f32.xlu0 %v7407
    %v7409 = vpop.xlane.xlu0 %7408
    %v7410 = vsel %vm5899, %v7158, 0.0
    %7411 = vadd.xlane.f32.xlu0 %v7410
    %v7412 = vpop.xlane.xlu0 %7411
    %v7413 = vsel %vm5899, %v7159, 0.0
    %7414 = vadd.xlane.f32.xlu0 %v7413
    %v7415 = vpop.xlane.xlu0 %7414
    %v7416 = vsel %vm5899, %v7160, 0.0
    %7417 = vadd.xlane.f32.xlu0 %v7416
    %v7418 = vpop.xlane.xlu0 %7417
    %v7419 = vsel %vm5899, %v7161, 0.0
    %7420 = vadd.xlane.f32.xlu0 %v7419
    %v7421 = vpop.xlane.xlu0 %7420
    %v7422 = vsel %vm5899, %v7162, 0.0
    %7423 = vadd.xlane.f32.xlu0 %v7422
    %v7424 = vpop.xlane.xlu0 %7423
    %v7425 = vsel %vm5899, %v7163, 0.0
    %7426 = vadd.xlane.f32.xlu0 %v7425
    %v7427 = vpop.xlane.xlu0 %7426
    %v7428 = vsel %vm5899, %v7164, 0.0
    %7429 = vadd.xlane.f32.xlu0 %v7428
    %v7430 = vpop.xlane.xlu0 %7429
    %v7431 = vsel %vm5899, %v7165, 0.0
    %7432 = vadd.xlane.f32.xlu0 %v7431
    %v7433 = vpop.xlane.xlu0 %7432
    %v7434 = vsel %vm5899, %v7166, 0.0
    %7435 = vadd.xlane.f32.xlu0 %v7434
    %v7436 = vpop.xlane.xlu0 %7435
    %v7437 = vsel %vm5899, %v7167, 0.0
    %7438 = vadd.xlane.f32.xlu0 %v7437
    %v7439 = vpop.xlane.xlu0 %7438
    %v7440 = vsel %vm5899, %v7168, 0.0
    %7441 = vadd.xlane.f32.xlu0 %v7440
    %v7442 = vpop.xlane.xlu0 %7441
    %v7443 = vsel %vm5899, %v7169, 0.0
    %7444 = vadd.xlane.f32.xlu0 %v7443
    %v7445 = vpop.xlane.xlu0 %7444
    %v7446 = vsel %vm5899, %v7170, 0.0
    %7447 = vadd.xlane.f32.xlu0 %v7446
    %v7448 = vpop.xlane.xlu0 %7447
    %v7449 = vsel %vm5899, %v7171, 0.0
    %7450 = vadd.xlane.f32.xlu0 %v7449
    %v7451 = vpop.xlane.xlu0 %7450
    %v7452 = vsel %vm5899, %v7172, 0.0
    %7453 = vadd.xlane.f32.xlu0 %v7452
    %v7454 = vpop.xlane.xlu0 %7453
    %v7455 = vsel %vm5899, %v7173, 0.0
    %7456 = vadd.xlane.f32.xlu0 %v7455
    %v7457 = vpop.xlane.xlu0 %7456
    %v7458 = vsel %vm5899, %v7174, 0.0
    %7459 = vadd.xlane.f32.xlu0 %v7458
    %v7460 = vpop.xlane.xlu0 %7459
    %v7461 = vsel %vm5899, %v7175, 0.0
    %7462 = vadd.xlane.f32.xlu0 %v7461
    %v7463 = vpop.xlane.xlu0 %7462
    %v7464 = vsel %vm5899, %v7176, 0.0
    %7465 = vadd.xlane.f32.xlu0 %v7464
    %v7466 = vpop.xlane.xlu0 %7465
    %v7467 = vsel %vm5899, %v7177, 0.0
    %7468 = vadd.xlane.f32.xlu0 %v7467
    %v7469 = vpop.xlane.xlu0 %7468
    %v7470 = vsel %vm5899, %v7178, 0.0
    %7471 = vadd.xlane.f32.xlu0 %v7470
    %v7472 = vpop.xlane.xlu0 %7471
    %v7473 = vsel %vm5899, %v7179, 0.0
    %7474 = vadd.xlane.f32.xlu0 %v7473
    %v7475 = vpop.xlane.xlu0 %7474
    %v7476 = vsel %vm5899, %v7180, 0.0
    %7477 = vadd.xlane.f32.xlu0 %v7476
    %v7478 = vpop.xlane.xlu0 %7477
    %v7479 = vsel %vm5899, %v7181, 0.0
    %7480 = vadd.xlane.f32.xlu0 %v7479
    %v7481 = vpop.xlane.xlu0 %7480
    %v7482 = vsel %vm5899, %v7182, 0.0
    %7483 = vadd.xlane.f32.xlu0 %v7482
    %v7484 = vpop.xlane.xlu0 %7483
    %v7485 = vsel %vm5899, %v7183, 0.0
    %7486 = vadd.xlane.f32.xlu0 %v7485
    %v7487 = vpop.xlane.xlu0 %7486
    %v7488 = vsel %vm5899, %v7184, 0.0
    %7489 = vadd.xlane.f32.xlu0 %v7488
    %v7490 = vpop.xlane.xlu0 %7489
    %v7491 = vsel %vm5899, %v7185, 0.0
    %7492 = vadd.xlane.f32.xlu0 %v7491
    %v7493 = vpop.xlane.xlu0 %7492
    %v7494 = vsel %vm5899, %v7186, 0.0
    %7495 = vadd.xlane.f32.xlu0 %v7494
    %v7496 = vpop.xlane.xlu0 %7495
    %v7497 = vsel %vm5899, %v7187, 0.0
    %7498 = vadd.xlane.f32.xlu0 %v7497
    %v7499 = vpop.xlane.xlu0 %7498
    %v7500 = vsel %vm5899, %v7188, 0.0
    %7501 = vadd.xlane.f32.xlu0 %v7500
    %v7502 = vpop.xlane.xlu0 %7501
    %v7503 = vsel %vm5899, %v7189, 0.0
    %7504 = vadd.xlane.f32.xlu0 %v7503
    %v7505 = vpop.xlane.xlu0 %7504
    %v7506 = vsel %vm5899, %v7190, 0.0
    %7507 = vadd.xlane.f32.xlu0 %v7506
    %v7508 = vpop.xlane.xlu0 %7507
    %v7509 = vsel %vm5899, %v7191, 0.0
    %7510 = vadd.xlane.f32.xlu0 %v7509
    %v7511 = vpop.xlane.xlu0 %7510
    %v7512 = vsel %vm5899, %v7192, 0.0
    %7513 = vadd.xlane.f32.xlu0 %v7512
    %v7514 = vpop.xlane.xlu0 %7513
    %v7515 = vsel %vm5899, %v7193, 0.0
    %7516 = vadd.xlane.f32.xlu0 %v7515
    %v7517 = vpop.xlane.xlu0 %7516
    %v7518 = vsel %vm5899, %v7194, 0.0
    %7519 = vadd.xlane.f32.xlu0 %v7518
    %v7520 = vpop.xlane.xlu0 %7519
    %v7521 = vsel %vm5899, %v7195, 0.0
    %7522 = vadd.xlane.f32.xlu0 %v7521
    %v7523 = vpop.xlane.xlu0 %7522
    %v7524 = vsel %vm5899, %v7196, 0.0
    %7525 = vadd.xlane.f32.xlu0 %v7524
    %v7526 = vpop.xlane.xlu0 %7525
    %v7527 = vsel %vm5899, %v7197, 0.0
    %7528 = vadd.xlane.f32.xlu0 %v7527
    %v7529 = vpop.xlane.xlu0 %7528
    %v7530 = vsel %vm5899, %v7198, 0.0
    %7531 = vadd.xlane.f32.xlu0 %v7530
    %v7532 = vpop.xlane.xlu0 %7531
    %v7533 = vsel %vm5899, %v7199, 0.0
    %7534 = vadd.xlane.f32.xlu0 %v7533
    %v7535 = vpop.xlane.xlu0 %7534
    %v7536 = vsel %vm5899, %v7200, 0.0
    %7537 = vadd.xlane.f32.xlu0 %v7536
    %v7538 = vpop.xlane.xlu0 %7537
    %v7539 = vsel %vm5899, %v7201, 0.0
    %7540 = vadd.xlane.f32.xlu0 %v7539
    %v7541 = vpop.xlane.xlu0 %7540
    %v7542 = vsel %vm5899, %v7202, 0.0
    %7543 = vadd.xlane.f32.xlu0 %v7542
    %v7544 = vpop.xlane.xlu0 %7543
    %v7545 = vsel %vm5899, %v7203, 0.0
    %7546 = vadd.xlane.f32.xlu0 %v7545
    %v7547 = vpop.xlane.xlu0 %7546
    %v7548 = vsel %vm5899, %v7204, 0.0
    %7549 = vadd.xlane.f32.xlu0 %v7548
    %v7550 = vpop.xlane.xlu0 %7549
    %v7551 = vsel %vm5899, %v7205, 0.0
    %7552 = vadd.xlane.f32.xlu0 %v7551
    %v7553 = vpop.xlane.xlu0 %7552
    %v7554 = vsel %vm5899, %v7206, 0.0
    %7555 = vadd.xlane.f32.xlu0 %v7554
    %v7556 = vpop.xlane.xlu0 %7555
    %v7557 = vsel %vm5899, %v7207, 0.0
    %7558 = vadd.xlane.f32.xlu0 %v7557
    %v7559 = vpop.xlane.xlu0 %7558
    %v7560 = vsel %vm5899, %v7208, 0.0
    %7561 = vadd.xlane.f32.xlu0 %v7560
    %v7562 = vpop.xlane.xlu0 %7561
    %v7563 = vsel %vm5899, %v7209, 0.0
    %7564 = vadd.xlane.f32.xlu0 %v7563
    %v7565 = vpop.xlane.xlu0 %7564
    %v7566 = vsel %vm5899, %v7210, 0.0
    %7567 = vadd.xlane.f32.xlu0 %v7566
    %v7568 = vpop.xlane.xlu0 %7567
    %v7569 = vsel %vm5899, %v7211, 0.0
    %7570 = vadd.xlane.f32.xlu0 %v7569
    %v7571 = vpop.xlane.xlu0 %7570
    %v7572 = vsel %vm5899, %v7212, 0.0
    %7573 = vadd.xlane.f32.xlu0 %v7572
    %v7574 = vpop.xlane.xlu0 %7573
    %v7575 = vsel %vm5899, %v7213, 0.0
    %7576 = vadd.xlane.f32.xlu0 %v7575
    %v7577 = vpop.xlane.xlu0 %7576
    %v7578 = vsel %vm5899, %v7214, 0.0
    %7579 = vadd.xlane.f32.xlu0 %v7578
    %v7580 = vpop.xlane.xlu0 %7579
    %v7581 = vsel %vm5899, %v7215, 0.0
    %7582 = vadd.xlane.f32.xlu0 %v7581
    %v7583 = vpop.xlane.xlu0 %7582
    %v7584 = vsel %vm5899, %v7216, 0.0
    %7585 = vadd.xlane.f32.xlu0 %v7584
    %v7586 = vpop.xlane.xlu0 %7585
    %v7587 = vsel %vm5899, %v7217, 0.0
    %7588 = vadd.xlane.f32.xlu0 %v7587
    %v7589 = vpop.xlane.xlu0 %7588
    %v7590 = vsel %vm5899, %v7218, 0.0
    %7591 = vadd.xlane.f32.xlu0 %v7590
    %v7592 = vpop.xlane.xlu0 %7591
    %v7593 = vsel %vm5899, %v7219, 0.0
    %7594 = vadd.xlane.f32.xlu0 %v7593
    %v7595 = vpop.xlane.xlu0 %7594
    %v7596 = vsel %vm5899, %v7220, 0.0
    %7597 = vadd.xlane.f32.xlu0 %v7596
    %v7598 = vpop.xlane.xlu0 %7597
    %v7599 = vsel %vm5899, %v7221, 0.0
    %7600 = vadd.xlane.f32.xlu0 %v7599
    %v7601 = vpop.xlane.xlu0 %7600
    %v7602 = vsel %vm5899, %v7222, 0.0
    %7603 = vadd.xlane.f32.xlu0 %v7602
    %v7604 = vpop.xlane.xlu0 %7603
    %v7605 = vsel %vm5899, %v7223, 0.0
    %7606 = vadd.xlane.f32.xlu0 %v7605
    %v7607 = vpop.xlane.xlu0 %7606
    %v7608 = vld [vmem:[%s5] sm:$0xf]
    %v7609 = vld [vmem:[%s5 + $0x4] sm:$0xf]
    %v7610 = vld [vmem:[%s5 + $0x8] sm:$0xf]
    %v7611 = vld [vmem:[%s5 + $0xc] sm:$0xf]
    %v7612 = vld [vmem:[%s5 + $0x10] sm:$0xf]
    %v7613 = vld [vmem:[%s5 + $0x14] sm:$0xf]
    %v7614 = vld [vmem:[%s5 + $0x18] sm:$0xf]
    %v7615 = vld [vmem:[%s5 + $0x1c] sm:$0xf]
    %v7616 = vpack.c.bf16 %v7229, %v7226
    %v7617 = vpack.c.bf16 %v7235, %v7232
    %v7618 = vpack.c.bf16 %v7241, %v7238
    %v7619 = vpack.c.bf16 %v7247, %v7244
    %v7620 = vpack.c.bf16 %v7253, %v7250
    %v7621 = vpack.c.bf16 %v7259, %v7256
    %v7622 = vpack.c.bf16 %v7265, %v7262
    %v7623 = vpack.c.bf16 %v7271, %v7268
    %v7624 = vpack.c.bf16 %v7277, %v7274
    %v7625 = vpack.c.bf16 %v7283, %v7280
    %v7626 = vpack.c.bf16 %v7289, %v7286
    %v7627 = vpack.c.bf16 %v7295, %v7292
    %v7628 = vpack.c.bf16 %v7301, %v7298
    %v7629 = vpack.c.bf16 %v7307, %v7304
    %v7630 = vpack.c.bf16 %v7313, %v7310
    %v7631 = vpack.c.bf16 %v7319, %v7316
    %v7632 = vpack.c.bf16 %v7325, %v7322
    %v7633 = vpack.c.bf16 %v7331, %v7328
    %v7634 = vpack.c.bf16 %v7337, %v7334
    %v7635 = vpack.c.bf16 %v7343, %v7340
    %v7636 = vpack.c.bf16 %v7349, %v7346
    %v7637 = vpack.c.bf16 %v7355, %v7352
    %v7638 = vpack.c.bf16 %v7361, %v7358
    %v7639 = vpack.c.bf16 %v7367, %v7364
    %v7640 = vpack.c.bf16 %v7373, %v7370
    %v7641 = vpack.c.bf16 %v7379, %v7376
    %v7642 = vpack.c.bf16 %v7385, %v7382
    %v7643 = vpack.c.bf16 %v7391, %v7388
    %v7644 = vpack.c.bf16 %v7397, %v7394
    %v7645 = vpack.c.bf16 %v7403, %v7400
    %v7646 = vpack.c.bf16 %v7409, %v7406
    %v7647 = vpack.c.bf16 %v7415, %v7412
    %v7648 = vpack.c.bf16 %v7421, %v7418
    %v7649 = vpack.c.bf16 %v7427, %v7424
    %v7650 = vpack.c.bf16 %v7433, %v7430
    %v7651 = vpack.c.bf16 %v7439, %v7436
    %v7652 = vpack.c.bf16 %v7445, %v7442
    %v7653 = vpack.c.bf16 %v7451, %v7448
    %v7654 = vpack.c.bf16 %v7457, %v7454
    %v7655 = vpack.c.bf16 %v7463, %v7460
    %v7656 = vpack.c.bf16 %v7469, %v7466
    %v7657 = vpack.c.bf16 %v7475, %v7472
    %v7658 = vpack.c.bf16 %v7481, %v7478
    %v7659 = vpack.c.bf16 %v7487, %v7484
    %v7660 = vpack.c.bf16 %v7493, %v7490
    %v7661 = vpack.c.bf16 %v7499, %v7496
    %v7662 = vpack.c.bf16 %v7505, %v7502
    %v7663 = vpack.c.bf16 %v7511, %v7508
    %v7664 = vpack.c.bf16 %v7517, %v7514
    %v7665 = vpack.c.bf16 %v7523, %v7520
    %v7666 = vpack.c.bf16 %v7529, %v7526
    %v7667 = vpack.c.bf16 %v7535, %v7532
    %v7668 = vpack.c.bf16 %v7541, %v7538
    %v7669 = vpack.c.bf16 %v7547, %v7544
    %v7670 = vpack.c.bf16 %v7553, %v7550
    %v7671 = vpack.c.bf16 %v7559, %v7556
    %v7672 = vpack.c.bf16 %v7565, %v7562
    %v7673 = vpack.c.bf16 %v7571, %v7568
    %v7674 = vpack.c.bf16 %v7577, %v7574
    %v7675 = vpack.c.bf16 %v7583, %v7580
    %v7676 = vpack.c.bf16 %v7589, %v7586
    %v7677 = vpack.c.bf16 %v7595, %v7592
    %v7678 = vpack.c.bf16 %v7601, %v7598
    %v7679 = vpack.c.bf16 %v7607, %v7604
    %7680 = vrot.lane.b32.xlu0 %v7019, 64
    %v7681 = vpop.permute.xlu0 %7680
    %7682 = vrot.lane.b32.xlu0 %v7023, 64
    %v7683 = vpop.permute.xlu0 %7682
    %7684 = vrot.lane.b32.xlu0 %v7027, 64
    %v7685 = vpop.permute.xlu0 %7684
    %7686 = vrot.lane.b32.xlu0 %v7031, 64
    %v7687 = vpop.permute.xlu0 %7686
    %7688 = vrot.lane.b32.xlu0 %v7035, 64
    %v7689 = vpop.permute.xlu0 %7688
    %7690 = vrot.lane.b32.xlu0 %v7039, 64
    %v7691 = vpop.permute.xlu0 %7690
    %7692 = vrot.lane.b32.xlu0 %v7043, 64
    %v7693 = vpop.permute.xlu0 %7692
    %7694 = vrot.lane.b32.xlu0 %v7047, 64
    %v7695 = vpop.permute.xlu0 %7694
    %7696 = vrot.lane.b32.xlu0 %v7051, 64
    %v7697 = vpop.permute.xlu0 %7696
    %7698 = vrot.lane.b32.xlu0 %v7055, 64
    %v7699 = vpop.permute.xlu0 %7698
    %7700 = vrot.lane.b32.xlu0 %v7059, 64
    %v7701 = vpop.permute.xlu0 %7700
    %7702 = vrot.lane.b32.xlu0 %v7063, 64
    %v7703 = vpop.permute.xlu0 %7702
    %7704 = vrot.lane.b32.xlu0 %v7067, 64
    %v7705 = vpop.permute.xlu0 %7704
    %7706 = vrot.lane.b32.xlu0 %v7071, 64
    %v7707 = vpop.permute.xlu0 %7706
    %7708 = vrot.lane.b32.xlu0 %v7075, 64
    %v7709 = vpop.permute.xlu0 %7708
    %7710 = vrot.lane.b32.xlu0 %v7079, 64
    %v7711 = vpop.permute.xlu0 %7710
    %v7728 = vmul.f32 %v6788, %v7681
    %v7729 = vmul.f32 %v6789, %v7681
    %v7730 = vmul.f32 %v6790, %v7681
    %v7731 = vmul.f32 %v6791, %v7681
    %v7732 = vmul.f32 %v6792, %v7681
    %v7733 = vmul.f32 %v6793, %v7681
    %v7734 = vmul.f32 %v6794, %v7681
    %v7735 = vmul.f32 %v6795, %v7681
    %v7736 = vmul.f32 %v6796, %v7683
    %v7737 = vmul.f32 %v6797, %v7683
    %v7738 = vmul.f32 %v6798, %v7683
    %v7739 = vmul.f32 %v6799, %v7683
    %v7740 = vmul.f32 %v6800, %v7683
    %v7741 = vmul.f32 %v6801, %v7683
    %v7742 = vmul.f32 %v6802, %v7683
    %v7743 = vmul.f32 %v6803, %v7683
    %v7744 = vmul.f32 %v6804, %v7685
    %v7745 = vmul.f32 %v6805, %v7685
    %v7746 = vmul.f32 %v6806, %v7685
    %v7747 = vmul.f32 %v6807, %v7685
    %v7748 = vmul.f32 %v6808, %v7685
    %v7749 = vmul.f32 %v6809, %v7685
    %v7750 = vmul.f32 %v6810, %v7685
    %v7751 = vmul.f32 %v6811, %v7685
    %v7752 = vmul.f32 %v6812, %v7687
    %v7753 = vmul.f32 %v6813, %v7687
    %v7754 = vmul.f32 %v6814, %v7687
    %v7755 = vmul.f32 %v6815, %v7687
    %v7756 = vmul.f32 %v6816, %v7687
    %v7757 = vmul.f32 %v6817, %v7687
    %v7758 = vmul.f32 %v6818, %v7687
    %v7759 = vmul.f32 %v6819, %v7687
    %v7760 = vmul.f32 %v6820, %v7689
    %v7761 = vmul.f32 %v6821, %v7689
    %v7762 = vmul.f32 %v6822, %v7689
    %v7763 = vmul.f32 %v6823, %v7689
    %v7764 = vmul.f32 %v6824, %v7689
    %v7765 = vmul.f32 %v6825, %v7689
    %v7766 = vmul.f32 %v6826, %v7689
    %v7767 = vmul.f32 %v6827, %v7689
    %v7768 = vmul.f32 %v6828, %v7691
    %v7769 = vmul.f32 %v6829, %v7691
    %v7770 = vmul.f32 %v6830, %v7691
    %v7771 = vmul.f32 %v6831, %v7691
    %v7772 = vmul.f32 %v6832, %v7691
    %v7773 = vmul.f32 %v6833, %v7691
    %v7774 = vmul.f32 %v6834, %v7691
    %v7775 = vmul.f32 %v6835, %v7691
    %v7776 = vmul.f32 %v6836, %v7693
    %v7777 = vmul.f32 %v6837, %v7693
    %v7778 = vmul.f32 %v6838, %v7693
    %v7779 = vmul.f32 %v6839, %v7693
    %v7780 = vmul.f32 %v6840, %v7693
    %v7781 = vmul.f32 %v6841, %v7693
    %v7782 = vmul.f32 %v6842, %v7693
    %v7783 = vmul.f32 %v6843, %v7693
    %v7784 = vmul.f32 %v6844, %v7695
    %v7785 = vmul.f32 %v6845, %v7695
    %v7786 = vmul.f32 %v6846, %v7695
    %v7787 = vmul.f32 %v6847, %v7695
    %v7788 = vmul.f32 %v6848, %v7695
    %v7789 = vmul.f32 %v6849, %v7695
    %v7790 = vmul.f32 %v6850, %v7695
    %v7791 = vmul.f32 %v6851, %v7695
    %v7792 = vmul.f32 %v6852, %v7697
    %v7793 = vmul.f32 %v6853, %v7697
    %v7794 = vmul.f32 %v6854, %v7697
    %v7795 = vmul.f32 %v6855, %v7697
    %v7796 = vmul.f32 %v6856, %v7697
    %v7797 = vmul.f32 %v6857, %v7697
    %v7798 = vmul.f32 %v6858, %v7697
    %v7799 = vmul.f32 %v6859, %v7697
    %v7800 = vmul.f32 %v6860, %v7699
    %v7801 = vmul.f32 %v6861, %v7699
    %v7802 = vmul.f32 %v6862, %v7699
    %v7803 = vmul.f32 %v6863, %v7699
    %v7804 = vmul.f32 %v6864, %v7699
    %v7805 = vmul.f32 %v6865, %v7699
    %v7806 = vmul.f32 %v6866, %v7699
    %v7807 = vmul.f32 %v6867, %v7699
    %v7808 = vmul.f32 %v6868, %v7701
    %v7809 = vmul.f32 %v6869, %v7701
    %v7810 = vmul.f32 %v6870, %v7701
    %v7811 = vmul.f32 %v6871, %v7701
    %v7812 = vmul.f32 %v6872, %v7701
    %v7813 = vmul.f32 %v6873, %v7701
    %v7814 = vmul.f32 %v6874, %v7701
    %v7815 = vmul.f32 %v6875, %v7701
    %v7816 = vmul.f32 %v6876, %v7703
    %v7817 = vmul.f32 %v6877, %v7703
    %v7818 = vmul.f32 %v6878, %v7703
    %v7819 = vmul.f32 %v6879, %v7703
    %v7820 = vmul.f32 %v6880, %v7703
    %v7821 = vmul.f32 %v6881, %v7703
    %v7822 = vmul.f32 %v6882, %v7703
    %v7823 = vmul.f32 %v6883, %v7703
    %v7824 = vmul.f32 %v6884, %v7705
    %v7825 = vmul.f32 %v6885, %v7705
    %v7826 = vmul.f32 %v6886, %v7705
    %v7827 = vmul.f32 %v6887, %v7705
    %v7828 = vmul.f32 %v6888, %v7705
    %v7829 = vmul.f32 %v6889, %v7705
    %v7830 = vmul.f32 %v6890, %v7705
    %v7831 = vmul.f32 %v6891, %v7705
    %v7832 = vmul.f32 %v6892, %v7707
    %v7833 = vmul.f32 %v6893, %v7707
    %v7834 = vmul.f32 %v6894, %v7707
    %v7835 = vmul.f32 %v6895, %v7707
    %v7836 = vmul.f32 %v6896, %v7707
    %v7837 = vmul.f32 %v6897, %v7707
    %v7838 = vmul.f32 %v6898, %v7707
    %v7839 = vmul.f32 %v6899, %v7707
    %v7840 = vmul.f32 %v6900, %v7709
    %v7841 = vmul.f32 %v6901, %v7709
    %v7842 = vmul.f32 %v6902, %v7709
    %v7843 = vmul.f32 %v6903, %v7709
    %v7844 = vmul.f32 %v6904, %v7709
    %v7845 = vmul.f32 %v6905, %v7709
    %v7846 = vmul.f32 %v6906, %v7709
    %v7847 = vmul.f32 %v6907, %v7709
    %v7848 = vmul.f32 %v6908, %v7711
    %v7849 = vmul.f32 %v6909, %v7711
    %v7850 = vmul.f32 %v6910, %v7711
    %v7851 = vmul.f32 %v6911, %v7711
    %v7852 = vmul.f32 %v6912, %v7711
    %v7853 = vmul.f32 %v6913, %v7711
    %v7854 = vmul.f32 %v6914, %v7711
    %v7855 = vmul.f32 %v6915, %v7711
    %v7856 = vsel %vm5899, %v7728, 0.0
    %7857 = vadd.xlane.f32.xlu0 %v7856
    %v7858 = vpop.xlane.xlu0 %7857
    %v7859 = vsel %vm5899, %v7729, 0.0
    %7860 = vadd.xlane.f32.xlu0 %v7859
    %v7861 = vpop.xlane.xlu0 %7860
    %v7862 = vsel %vm5899, %v7730, 0.0
    %7863 = vadd.xlane.f32.xlu0 %v7862
    %v7864 = vpop.xlane.xlu0 %7863
    %v7865 = vsel %vm5899, %v7731, 0.0
    %7866 = vadd.xlane.f32.xlu0 %v7865
    %v7867 = vpop.xlane.xlu0 %7866
    %v7868 = vsel %vm5899, %v7732, 0.0
    %7869 = vadd.xlane.f32.xlu0 %v7868
    %v7870 = vpop.xlane.xlu0 %7869
    %v7871 = vsel %vm5899, %v7733, 0.0
    %7872 = vadd.xlane.f32.xlu0 %v7871
    %v7873 = vpop.xlane.xlu0 %7872
    %v7874 = vsel %vm5899, %v7734, 0.0
    %7875 = vadd.xlane.f32.xlu0 %v7874
    %v7876 = vpop.xlane.xlu0 %7875
    %v7877 = vsel %vm5899, %v7735, 0.0
    %7878 = vadd.xlane.f32.xlu0 %v7877
    %v7879 = vpop.xlane.xlu0 %7878
    %v7880 = vsel %vm5899, %v7736, 0.0
    %7881 = vadd.xlane.f32.xlu0 %v7880
    %v7882 = vpop.xlane.xlu0 %7881
    %v7883 = vsel %vm5899, %v7737, 0.0
    %7884 = vadd.xlane.f32.xlu0 %v7883
    %v7885 = vpop.xlane.xlu0 %7884
    %v7886 = vsel %vm5899, %v7738, 0.0
    %7887 = vadd.xlane.f32.xlu0 %v7886
    %v7888 = vpop.xlane.xlu0 %7887
    %v7889 = vsel %vm5899, %v7739, 0.0
    %7890 = vadd.xlane.f32.xlu0 %v7889
    %v7891 = vpop.xlane.xlu0 %7890
    %v7892 = vsel %vm5899, %v7740, 0.0
    %7893 = vadd.xlane.f32.xlu0 %v7892
    %v7894 = vpop.xlane.xlu0 %7893
    %v7895 = vsel %vm5899, %v7741, 0.0
    %7896 = vadd.xlane.f32.xlu0 %v7895
    %v7897 = vpop.xlane.xlu0 %7896
    %v7898 = vsel %vm5899, %v7742, 0.0
    %7899 = vadd.xlane.f32.xlu0 %v7898
    %v7900 = vpop.xlane.xlu0 %7899
    %v7901 = vsel %vm5899, %v7743, 0.0
    %7902 = vadd.xlane.f32.xlu0 %v7901
    %v7903 = vpop.xlane.xlu0 %7902
    %v7904 = vsel %vm5899, %v7744, 0.0
    %7905 = vadd.xlane.f32.xlu0 %v7904
    %v7906 = vpop.xlane.xlu0 %7905
    %v7907 = vsel %vm5899, %v7745, 0.0
    %7908 = vadd.xlane.f32.xlu0 %v7907
    %v7909 = vpop.xlane.xlu0 %7908
    %v7910 = vsel %vm5899, %v7746, 0.0
    %7911 = vadd.xlane.f32.xlu0 %v7910
    %v7912 = vpop.xlane.xlu0 %7911
    %v7913 = vsel %vm5899, %v7747, 0.0
    %7914 = vadd.xlane.f32.xlu0 %v7913
    %v7915 = vpop.xlane.xlu0 %7914
    %v7916 = vsel %vm5899, %v7748, 0.0
    %7917 = vadd.xlane.f32.xlu0 %v7916
    %v7918 = vpop.xlane.xlu0 %7917
    %v7919 = vsel %vm5899, %v7749, 0.0
    %7920 = vadd.xlane.f32.xlu0 %v7919
    %v7921 = vpop.xlane.xlu0 %7920
    %v7922 = vsel %vm5899, %v7750, 0.0
    %7923 = vadd.xlane.f32.xlu0 %v7922
    %v7924 = vpop.xlane.xlu0 %7923
    %v7925 = vsel %vm5899, %v7751, 0.0
    %7926 = vadd.xlane.f32.xlu0 %v7925
    %v7927 = vpop.xlane.xlu0 %7926
    %v7928 = vsel %vm5899, %v7752, 0.0
    %7929 = vadd.xlane.f32.xlu0 %v7928
    %v7930 = vpop.xlane.xlu0 %7929
    %v7931 = vsel %vm5899, %v7753, 0.0
    %7932 = vadd.xlane.f32.xlu0 %v7931
    %v7933 = vpop.xlane.xlu0 %7932
    %v7934 = vsel %vm5899, %v7754, 0.0
    %7935 = vadd.xlane.f32.xlu0 %v7934
    %v7936 = vpop.xlane.xlu0 %7935
    %v7937 = vsel %vm5899, %v7755, 0.0
    %7938 = vadd.xlane.f32.xlu0 %v7937
    %v7939 = vpop.xlane.xlu0 %7938
    %v7940 = vsel %vm5899, %v7756, 0.0
    %7941 = vadd.xlane.f32.xlu0 %v7940
    %v7942 = vpop.xlane.xlu0 %7941
    %v7943 = vsel %vm5899, %v7757, 0.0
    %7944 = vadd.xlane.f32.xlu0 %v7943
    %v7945 = vpop.xlane.xlu0 %7944
    %v7946 = vsel %vm5899, %v7758, 0.0
    %7947 = vadd.xlane.f32.xlu0 %v7946
    %v7948 = vpop.xlane.xlu0 %7947
    %v7949 = vsel %vm5899, %v7759, 0.0
    %7950 = vadd.xlane.f32.xlu0 %v7949
    %v7951 = vpop.xlane.xlu0 %7950
    %v7952 = vsel %vm5899, %v7760, 0.0
    %7953 = vadd.xlane.f32.xlu0 %v7952
    %v7954 = vpop.xlane.xlu0 %7953
    %v7955 = vsel %vm5899, %v7761, 0.0
    %7956 = vadd.xlane.f32.xlu0 %v7955
    %v7957 = vpop.xlane.xlu0 %7956
    %v7958 = vsel %vm5899, %v7762, 0.0
    %7959 = vadd.xlane.f32.xlu0 %v7958
    %v7960 = vpop.xlane.xlu0 %7959
    %v7961 = vsel %vm5899, %v7763, 0.0
    %7962 = vadd.xlane.f32.xlu0 %v7961
    %v7963 = vpop.xlane.xlu0 %7962
    %v7964 = vsel %vm5899, %v7764, 0.0
    %7965 = vadd.xlane.f32.xlu0 %v7964
    %v7966 = vpop.xlane.xlu0 %7965
    %v7967 = vsel %vm5899, %v7765, 0.0
    %7968 = vadd.xlane.f32.xlu0 %v7967
    %v7969 = vpop.xlane.xlu0 %7968
    %v7970 = vsel %vm5899, %v7766, 0.0
    %7971 = vadd.xlane.f32.xlu0 %v7970
    %v7972 = vpop.xlane.xlu0 %7971
    %v7973 = vsel %vm5899, %v7767, 0.0
    %7974 = vadd.xlane.f32.xlu0 %v7973
    %v7975 = vpop.xlane.xlu0 %7974
    %v7976 = vsel %vm5899, %v7768, 0.0
    %7977 = vadd.xlane.f32.xlu0 %v7976
    %v7978 = vpop.xlane.xlu0 %7977
    %v7979 = vsel %vm5899, %v7769, 0.0
    %7980 = vadd.xlane.f32.xlu0 %v7979
    %v7981 = vpop.xlane.xlu0 %7980
    %v7982 = vsel %vm5899, %v7770, 0.0
    %7983 = vadd.xlane.f32.xlu0 %v7982
    %v7984 = vpop.xlane.xlu0 %7983
    %v7985 = vsel %vm5899, %v7771, 0.0
    %7986 = vadd.xlane.f32.xlu0 %v7985
    %v7987 = vpop.xlane.xlu0 %7986
    %v7988 = vsel %vm5899, %v7772, 0.0
    %7989 = vadd.xlane.f32.xlu0 %v7988
    %v7990 = vpop.xlane.xlu0 %7989
    %v7991 = vsel %vm5899, %v7773, 0.0
    %7992 = vadd.xlane.f32.xlu0 %v7991
    %v7993 = vpop.xlane.xlu0 %7992
    %v7994 = vsel %vm5899, %v7774, 0.0
    %7995 = vadd.xlane.f32.xlu0 %v7994
    %v7996 = vpop.xlane.xlu0 %7995
    %v7997 = vsel %vm5899, %v7775, 0.0
    %7998 = vadd.xlane.f32.xlu0 %v7997
    %v7999 = vpop.xlane.xlu0 %7998
    %v8000 = vsel %vm5899, %v7776, 0.0
    %8001 = vadd.xlane.f32.xlu0 %v8000
    %v8002 = vpop.xlane.xlu0 %8001
    %v8003 = vsel %vm5899, %v7777, 0.0
    %8004 = vadd.xlane.f32.xlu0 %v8003
    %v8005 = vpop.xlane.xlu0 %8004
    %v8006 = vsel %vm5899, %v7778, 0.0
    %8007 = vadd.xlane.f32.xlu0 %v8006
    %v8008 = vpop.xlane.xlu0 %8007
    %v8009 = vsel %vm5899, %v7779, 0.0
    %8010 = vadd.xlane.f32.xlu0 %v8009
    %v8011 = vpop.xlane.xlu0 %8010
    %v8012 = vsel %vm5899, %v7780, 0.0
    %8013 = vadd.xlane.f32.xlu0 %v8012
    %v8014 = vpop.xlane.xlu0 %8013
    %v8015 = vsel %vm5899, %v7781, 0.0
    %8016 = vadd.xlane.f32.xlu0 %v8015
    %v8017 = vpop.xlane.xlu0 %8016
    %v8018 = vsel %vm5899, %v7782, 0.0
    %8019 = vadd.xlane.f32.xlu0 %v8018
    %v8020 = vpop.xlane.xlu0 %8019
    %v8021 = vsel %vm5899, %v7783, 0.0
    %8022 = vadd.xlane.f32.xlu0 %v8021
    %v8023 = vpop.xlane.xlu0 %8022
    %v8024 = vsel %vm5899, %v7784, 0.0
    %8025 = vadd.xlane.f32.xlu0 %v8024
    %v8026 = vpop.xlane.xlu0 %8025
    %v8027 = vsel %vm5899, %v7785, 0.0
    %8028 = vadd.xlane.f32.xlu0 %v8027
    %v8029 = vpop.xlane.xlu0 %8028
    %v8030 = vsel %vm5899, %v7786, 0.0
    %8031 = vadd.xlane.f32.xlu0 %v8030
    %v8032 = vpop.xlane.xlu0 %8031
    %v8033 = vsel %vm5899, %v7787, 0.0
    %8034 = vadd.xlane.f32.xlu0 %v8033
    %v8035 = vpop.xlane.xlu0 %8034
    %v8036 = vsel %vm5899, %v7788, 0.0
    %8037 = vadd.xlane.f32.xlu0 %v8036
    %v8038 = vpop.xlane.xlu0 %8037
    %v8039 = vsel %vm5899, %v7789, 0.0
    %8040 = vadd.xlane.f32.xlu0 %v8039
    %v8041 = vpop.xlane.xlu0 %8040
    %v8042 = vsel %vm5899, %v7790, 0.0
    %8043 = vadd.xlane.f32.xlu0 %v8042
    %v8044 = vpop.xlane.xlu0 %8043
    %v8045 = vsel %vm5899, %v7791, 0.0
    %8046 = vadd.xlane.f32.xlu0 %v8045
    %v8047 = vpop.xlane.xlu0 %8046
    %v8048 = vsel %vm5899, %v7792, 0.0
    %8049 = vadd.xlane.f32.xlu0 %v8048
    %v8050 = vpop.xlane.xlu0 %8049
    %v8051 = vsel %vm5899, %v7793, 0.0
    %8052 = vadd.xlane.f32.xlu0 %v8051
    %v8053 = vpop.xlane.xlu0 %8052
    %v8054 = vsel %vm5899, %v7794, 0.0
    %8055 = vadd.xlane.f32.xlu0 %v8054
    %v8056 = vpop.xlane.xlu0 %8055
    %v8057 = vsel %vm5899, %v7795, 0.0
    %8058 = vadd.xlane.f32.xlu0 %v8057
    %v8059 = vpop.xlane.xlu0 %8058
    %v8060 = vsel %vm5899, %v7796, 0.0
    %8061 = vadd.xlane.f32.xlu0 %v8060
    %v8062 = vpop.xlane.xlu0 %8061
    %v8063 = vsel %vm5899, %v7797, 0.0
    %8064 = vadd.xlane.f32.xlu0 %v8063
    %v8065 = vpop.xlane.xlu0 %8064
    %v8066 = vsel %vm5899, %v7798, 0.0
    %8067 = vadd.xlane.f32.xlu0 %v8066
    %v8068 = vpop.xlane.xlu0 %8067
    %v8069 = vsel %vm5899, %v7799, 0.0
    %8070 = vadd.xlane.f32.xlu0 %v8069
    %v8071 = vpop.xlane.xlu0 %8070
    %v8072 = vsel %vm5899, %v7800, 0.0
    %8073 = vadd.xlane.f32.xlu0 %v8072
    %v8074 = vpop.xlane.xlu0 %8073
    %v8075 = vsel %vm5899, %v7801, 0.0
    %8076 = vadd.xlane.f32.xlu0 %v8075
    %v8077 = vpop.xlane.xlu0 %8076
    %v8078 = vsel %vm5899, %v7802, 0.0
    %8079 = vadd.xlane.f32.xlu0 %v8078
    %v8080 = vpop.xlane.xlu0 %8079
    %v8081 = vsel %vm5899, %v7803, 0.0
    %8082 = vadd.xlane.f32.xlu0 %v8081
    %v8083 = vpop.xlane.xlu0 %8082
    %v8084 = vsel %vm5899, %v7804, 0.0
    %8085 = vadd.xlane.f32.xlu0 %v8084
    %v8086 = vpop.xlane.xlu0 %8085
    %v8087 = vsel %vm5899, %v7805, 0.0
    %8088 = vadd.xlane.f32.xlu0 %v8087
    %v8089 = vpop.xlane.xlu0 %8088
    %v8090 = vsel %vm5899, %v7806, 0.0
    %8091 = vadd.xlane.f32.xlu0 %v8090
    %v8092 = vpop.xlane.xlu0 %8091
    %v8093 = vsel %vm5899, %v7807, 0.0
    %8094 = vadd.xlane.f32.xlu0 %v8093
    %v8095 = vpop.xlane.xlu0 %8094
    %v8096 = vsel %vm5899, %v7808, 0.0
    %8097 = vadd.xlane.f32.xlu0 %v8096
    %v8098 = vpop.xlane.xlu0 %8097
    %v8099 = vsel %vm5899, %v7809, 0.0
    %8100 = vadd.xlane.f32.xlu0 %v8099
    %v8101 = vpop.xlane.xlu0 %8100
    %v8102 = vsel %vm5899, %v7810, 0.0
    %8103 = vadd.xlane.f32.xlu0 %v8102
    %v8104 = vpop.xlane.xlu0 %8103
    %v8105 = vsel %vm5899, %v7811, 0.0
    %8106 = vadd.xlane.f32.xlu0 %v8105
    %v8107 = vpop.xlane.xlu0 %8106
    %v8108 = vsel %vm5899, %v7812, 0.0
    %8109 = vadd.xlane.f32.xlu0 %v8108
    %v8110 = vpop.xlane.xlu0 %8109
    %v8111 = vsel %vm5899, %v7813, 0.0
    %8112 = vadd.xlane.f32.xlu0 %v8111
    %v8113 = vpop.xlane.xlu0 %8112
    %v8114 = vsel %vm5899, %v7814, 0.0
    %8115 = vadd.xlane.f32.xlu0 %v8114
    %v8116 = vpop.xlane.xlu0 %8115
    %v8117 = vsel %vm5899, %v7815, 0.0
    %8118 = vadd.xlane.f32.xlu0 %v8117
    %v8119 = vpop.xlane.xlu0 %8118
    %v8120 = vsel %vm5899, %v7816, 0.0
    %8121 = vadd.xlane.f32.xlu0 %v8120
    %v8122 = vpop.xlane.xlu0 %8121
    %v8123 = vsel %vm5899, %v7817, 0.0
    %8124 = vadd.xlane.f32.xlu0 %v8123
    %v8125 = vpop.xlane.xlu0 %8124
    %v8126 = vsel %vm5899, %v7818, 0.0
    %8127 = vadd.xlane.f32.xlu0 %v8126
    %v8128 = vpop.xlane.xlu0 %8127
    %v8129 = vsel %vm5899, %v7819, 0.0
    %8130 = vadd.xlane.f32.xlu0 %v8129
    %v8131 = vpop.xlane.xlu0 %8130
    %v8132 = vsel %vm5899, %v7820, 0.0
    %8133 = vadd.xlane.f32.xlu0 %v8132
    %v8134 = vpop.xlane.xlu0 %8133
    %v8135 = vsel %vm5899, %v7821, 0.0
    %8136 = vadd.xlane.f32.xlu0 %v8135
    %v8137 = vpop.xlane.xlu0 %8136
    %v8138 = vsel %vm5899, %v7822, 0.0
    %8139 = vadd.xlane.f32.xlu0 %v8138
    %v8140 = vpop.xlane.xlu0 %8139
    %v8141 = vsel %vm5899, %v7823, 0.0
    %8142 = vadd.xlane.f32.xlu0 %v8141
    %v8143 = vpop.xlane.xlu0 %8142
    %v8144 = vsel %vm5899, %v7824, 0.0
    %8145 = vadd.xlane.f32.xlu0 %v8144
    %v8146 = vpop.xlane.xlu0 %8145
    %v8147 = vsel %vm5899, %v7825, 0.0
    %8148 = vadd.xlane.f32.xlu0 %v8147
    %v8149 = vpop.xlane.xlu0 %8148
    %v8150 = vsel %vm5899, %v7826, 0.0
    %8151 = vadd.xlane.f32.xlu0 %v8150
    %v8152 = vpop.xlane.xlu0 %8151
    %v8153 = vsel %vm5899, %v7827, 0.0
    %8154 = vadd.xlane.f32.xlu0 %v8153
    %v8155 = vpop.xlane.xlu0 %8154
    %v8156 = vsel %vm5899, %v7828, 0.0
    %8157 = vadd.xlane.f32.xlu0 %v8156
    %v8158 = vpop.xlane.xlu0 %8157
    %v8159 = vsel %vm5899, %v7829, 0.0
    %8160 = vadd.xlane.f32.xlu0 %v8159
    %v8161 = vpop.xlane.xlu0 %8160
    %v8162 = vsel %vm5899, %v7830, 0.0
    %8163 = vadd.xlane.f32.xlu0 %v8162
    %v8164 = vpop.xlane.xlu0 %8163
    %v8165 = vsel %vm5899, %v7831, 0.0
    %8166 = vadd.xlane.f32.xlu0 %v8165
    %v8167 = vpop.xlane.xlu0 %8166
    %v8168 = vsel %vm5899, %v7832, 0.0
    %8169 = vadd.xlane.f32.xlu0 %v8168
    %v8170 = vpop.xlane.xlu0 %8169
    %v8171 = vsel %vm5899, %v7833, 0.0
    %8172 = vadd.xlane.f32.xlu0 %v8171
    %v8173 = vpop.xlane.xlu0 %8172
    %v8174 = vsel %vm5899, %v7834, 0.0
    %8175 = vadd.xlane.f32.xlu0 %v8174
    %v8176 = vpop.xlane.xlu0 %8175
    %v8177 = vsel %vm5899, %v7835, 0.0
    %8178 = vadd.xlane.f32.xlu0 %v8177
    %v8179 = vpop.xlane.xlu0 %8178
    %v8180 = vsel %vm5899, %v7836, 0.0
    %8181 = vadd.xlane.f32.xlu0 %v8180
    %v8182 = vpop.xlane.xlu0 %8181
    %v8183 = vsel %vm5899, %v7837, 0.0
    %8184 = vadd.xlane.f32.xlu0 %v8183
    %v8185 = vpop.xlane.xlu0 %8184
    %v8186 = vsel %vm5899, %v7838, 0.0
    %8187 = vadd.xlane.f32.xlu0 %v8186
    %v8188 = vpop.xlane.xlu0 %8187
    %v8189 = vsel %vm5899, %v7839, 0.0
    %8190 = vadd.xlane.f32.xlu0 %v8189
    %v8191 = vpop.xlane.xlu0 %8190
    %v8192 = vsel %vm5899, %v7840, 0.0
    %8193 = vadd.xlane.f32.xlu0 %v8192
    %v8194 = vpop.xlane.xlu0 %8193
    %v8195 = vsel %vm5899, %v7841, 0.0
    %8196 = vadd.xlane.f32.xlu0 %v8195
    %v8197 = vpop.xlane.xlu0 %8196
    %v8198 = vsel %vm5899, %v7842, 0.0
    %8199 = vadd.xlane.f32.xlu0 %v8198
    %v8200 = vpop.xlane.xlu0 %8199
    %v8201 = vsel %vm5899, %v7843, 0.0
    %8202 = vadd.xlane.f32.xlu0 %v8201
    %v8203 = vpop.xlane.xlu0 %8202
    %v8204 = vsel %vm5899, %v7844, 0.0
    %8205 = vadd.xlane.f32.xlu0 %v8204
    %v8206 = vpop.xlane.xlu0 %8205
    %v8207 = vsel %vm5899, %v7845, 0.0
    %8208 = vadd.xlane.f32.xlu0 %v8207
    %v8209 = vpop.xlane.xlu0 %8208
    %v8210 = vsel %vm5899, %v7846, 0.0
    %8211 = vadd.xlane.f32.xlu0 %v8210
    %v8212 = vpop.xlane.xlu0 %8211
    %v8213 = vsel %vm5899, %v7847, 0.0
    %8214 = vadd.xlane.f32.xlu0 %v8213
    %v8215 = vpop.xlane.xlu0 %8214
    %v8216 = vsel %vm5899, %v7848, 0.0
    %8217 = vadd.xlane.f32.xlu0 %v8216
    %v8218 = vpop.xlane.xlu0 %8217
    %v8219 = vsel %vm5899, %v7849, 0.0
    %8220 = vadd.xlane.f32.xlu0 %v8219
    %v8221 = vpop.xlane.xlu0 %8220
    %v8222 = vsel %vm5899, %v7850, 0.0
    %8223 = vadd.xlane.f32.xlu0 %v8222
    %v8224 = vpop.xlane.xlu0 %8223
    %v8225 = vsel %vm5899, %v7851, 0.0
    %8226 = vadd.xlane.f32.xlu0 %v8225
    %v8227 = vpop.xlane.xlu0 %8226
    %v8228 = vsel %vm5899, %v7852, 0.0
    %8229 = vadd.xlane.f32.xlu0 %v8228
    %v8230 = vpop.xlane.xlu0 %8229
    %v8231 = vsel %vm5899, %v7853, 0.0
    %8232 = vadd.xlane.f32.xlu0 %v8231
    %v8233 = vpop.xlane.xlu0 %8232
    %v8234 = vsel %vm5899, %v7854, 0.0
    %8235 = vadd.xlane.f32.xlu0 %v8234
    %v8236 = vpop.xlane.xlu0 %8235
    %v8237 = vsel %vm5899, %v7855, 0.0
    %8238 = vadd.xlane.f32.xlu0 %v8237
    %v8239 = vpop.xlane.xlu0 %8238
    %s8240 = scalar_lea.vmem %s5, 32
    %v8241 = vld [vmem:[%s8240] sm:$0xf]
    %v8242 = vld [vmem:[%s8240 + $0x4] sm:$0xf]
    %v8243 = vld [vmem:[%s8240 + $0x8] sm:$0xf]
    %v8244 = vld [vmem:[%s8240 + $0xc] sm:$0xf]
    %v8245 = vld [vmem:[%s8240 + $0x10] sm:$0xf]
    %v8246 = vld [vmem:[%s8240 + $0x14] sm:$0xf]
    %v8247 = vld [vmem:[%s8240 + $0x18] sm:$0xf]
    %v8248 = vld [vmem:[%s8240 + $0x1c] sm:$0xf]
    %v8249 = vpack.c.bf16 %v7861, %v7858
    %v8250 = vpack.c.bf16 %v7867, %v7864
    %v8251 = vpack.c.bf16 %v7873, %v7870
    %v8252 = vpack.c.bf16 %v7879, %v7876
    %v8253 = vpack.c.bf16 %v7885, %v7882
    %v8254 = vpack.c.bf16 %v7891, %v7888
    %v8255 = vpack.c.bf16 %v7897, %v7894
    %v8256 = vpack.c.bf16 %v7903, %v7900
    %v8257 = vpack.c.bf16 %v7909, %v7906
    %v8258 = vpack.c.bf16 %v7915, %v7912
    %v8259 = vpack.c.bf16 %v7921, %v7918
    %v8260 = vpack.c.bf16 %v7927, %v7924
    %v8261 = vpack.c.bf16 %v7933, %v7930
    %v8262 = vpack.c.bf16 %v7939, %v7936
    %v8263 = vpack.c.bf16 %v7945, %v7942
    %v8264 = vpack.c.bf16 %v7951, %v7948
    %v8265 = vpack.c.bf16 %v7957, %v7954
    %v8266 = vpack.c.bf16 %v7963, %v7960
    %v8267 = vpack.c.bf16 %v7969, %v7966
    %v8268 = vpack.c.bf16 %v7975, %v7972
    %v8269 = vpack.c.bf16 %v7981, %v7978
    %v8270 = vpack.c.bf16 %v7987, %v7984
    %v8271 = vpack.c.bf16 %v7993, %v7990
    %v8272 = vpack.c.bf16 %v7999, %v7996
    %v8273 = vpack.c.bf16 %v8005, %v8002
    %v8274 = vpack.c.bf16 %v8011, %v8008
    %v8275 = vpack.c.bf16 %v8017, %v8014
    %v8276 = vpack.c.bf16 %v8023, %v8020
    %v8277 = vpack.c.bf16 %v8029, %v8026
    %v8278 = vpack.c.bf16 %v8035, %v8032
    %v8279 = vpack.c.bf16 %v8041, %v8038
    %v8280 = vpack.c.bf16 %v8047, %v8044
    %v8281 = vpack.c.bf16 %v8053, %v8050
    %v8282 = vpack.c.bf16 %v8059, %v8056
    %v8283 = vpack.c.bf16 %v8065, %v8062
    %v8284 = vpack.c.bf16 %v8071, %v8068
    %v8285 = vpack.c.bf16 %v8077, %v8074
    %v8286 = vpack.c.bf16 %v8083, %v8080
    %v8287 = vpack.c.bf16 %v8089, %v8086
    %v8288 = vpack.c.bf16 %v8095, %v8092
    %v8289 = vpack.c.bf16 %v8101, %v8098
    %v8290 = vpack.c.bf16 %v8107, %v8104
    %v8291 = vpack.c.bf16 %v8113, %v8110
    %v8292 = vpack.c.bf16 %v8119, %v8116
    %v8293 = vpack.c.bf16 %v8125, %v8122
    %v8294 = vpack.c.bf16 %v8131, %v8128
    %v8295 = vpack.c.bf16 %v8137, %v8134
    %v8296 = vpack.c.bf16 %v8143, %v8140
    %v8297 = vpack.c.bf16 %v8149, %v8146
    %v8298 = vpack.c.bf16 %v8155, %v8152
    %v8299 = vpack.c.bf16 %v8161, %v8158
    %v8300 = vpack.c.bf16 %v8167, %v8164
    %v8301 = vpack.c.bf16 %v8173, %v8170
    %v8302 = vpack.c.bf16 %v8179, %v8176
    %v8303 = vpack.c.bf16 %v8185, %v8182
    %v8304 = vpack.c.bf16 %v8191, %v8188
    %v8305 = vpack.c.bf16 %v8197, %v8194
    %v8306 = vpack.c.bf16 %v8203, %v8200
    %v8307 = vpack.c.bf16 %v8209, %v8206
    %v8308 = vpack.c.bf16 %v8215, %v8212
    %v8309 = vpack.c.bf16 %v8221, %v8218
    %v8310 = vpack.c.bf16 %v8227, %v8224
    %v8311 = vpack.c.bf16 %v8233, %v8230
    %v8312 = vpack.c.bf16 %v8239, %v8236
    %v8377 = vunpack.c.l.b16 %v8249
    %v8378 = vunpack.c.h.b16 %v8249
    %v8379 = vunpack.c.l.b16 %v8250
    %v8380 = vunpack.c.h.b16 %v8250
    %v8381 = vunpack.c.l.b16 %v8251
    %v8382 = vunpack.c.h.b16 %v8251
    %v8383 = vunpack.c.l.b16 %v8252
    %v8384 = vunpack.c.h.b16 %v8252
    %v8385 = vunpack.c.l.b16 %v8253
    %v8386 = vunpack.c.h.b16 %v8253
    %v8387 = vunpack.c.l.b16 %v8254
    %v8388 = vunpack.c.h.b16 %v8254
    %v8389 = vunpack.c.l.b16 %v8255
    %v8390 = vunpack.c.h.b16 %v8255
    %v8391 = vunpack.c.l.b16 %v8256
    %v8392 = vunpack.c.h.b16 %v8256
    %v8393 = vunpack.c.l.b16 %v8257
    %v8394 = vunpack.c.h.b16 %v8257
    %v8395 = vunpack.c.l.b16 %v8258
    %v8396 = vunpack.c.h.b16 %v8258
    %v8397 = vunpack.c.l.b16 %v8259
    %v8398 = vunpack.c.h.b16 %v8259
    %v8399 = vunpack.c.l.b16 %v8260
    %v8400 = vunpack.c.h.b16 %v8260
    %v8401 = vunpack.c.l.b16 %v8261
    %v8402 = vunpack.c.h.b16 %v8261
    %v8403 = vunpack.c.l.b16 %v8262
    %v8404 = vunpack.c.h.b16 %v8262
    %v8405 = vunpack.c.l.b16 %v8263
    %v8406 = vunpack.c.h.b16 %v8263
    %v8407 = vunpack.c.l.b16 %v8264
    %v8408 = vunpack.c.h.b16 %v8264
    %v8409 = vunpack.c.l.b16 %v8265
    %v8410 = vunpack.c.h.b16 %v8265
    %v8411 = vunpack.c.l.b16 %v8266
    %v8412 = vunpack.c.h.b16 %v8266
    %v8413 = vunpack.c.l.b16 %v8267
    %v8414 = vunpack.c.h.b16 %v8267
    %v8415 = vunpack.c.l.b16 %v8268
    %v8416 = vunpack.c.h.b16 %v8268
    %v8417 = vunpack.c.l.b16 %v8269
    %v8418 = vunpack.c.h.b16 %v8269
    %v8419 = vunpack.c.l.b16 %v8270
    %v8420 = vunpack.c.h.b16 %v8270
    %v8421 = vunpack.c.l.b16 %v8271
    %v8422 = vunpack.c.h.b16 %v8271
    %v8423 = vunpack.c.l.b16 %v8272
    %v8424 = vunpack.c.h.b16 %v8272
    %v8425 = vunpack.c.l.b16 %v8273
    %v8426 = vunpack.c.h.b16 %v8273
    %v8427 = vunpack.c.l.b16 %v8274
    %v8428 = vunpack.c.h.b16 %v8274
    %v8429 = vunpack.c.l.b16 %v8275
    %v8430 = vunpack.c.h.b16 %v8275
    %v8431 = vunpack.c.l.b16 %v8276
    %v8432 = vunpack.c.h.b16 %v8276
    %v8433 = vunpack.c.l.b16 %v8277
    %v8434 = vunpack.c.h.b16 %v8277
    %v8435 = vunpack.c.l.b16 %v8278
    %v8436 = vunpack.c.h.b16 %v8278
    %v8437 = vunpack.c.l.b16 %v8279
    %v8438 = vunpack.c.h.b16 %v8279
    %v8439 = vunpack.c.l.b16 %v8280
    %v8440 = vunpack.c.h.b16 %v8280
    %v8441 = vunpack.c.l.b16 %v8281
    %v8442 = vunpack.c.h.b16 %v8281
    %v8443 = vunpack.c.l.b16 %v8282
    %v8444 = vunpack.c.h.b16 %v8282
    %v8445 = vunpack.c.l.b16 %v8283
    %v8446 = vunpack.c.h.b16 %v8283
    %v8447 = vunpack.c.l.b16 %v8284
    %v8448 = vunpack.c.h.b16 %v8284
    %v8449 = vunpack.c.l.b16 %v8285
    %v8450 = vunpack.c.h.b16 %v8285
    %v8451 = vunpack.c.l.b16 %v8286
    %v8452 = vunpack.c.h.b16 %v8286
    %v8453 = vunpack.c.l.b16 %v8287
    %v8454 = vunpack.c.h.b16 %v8287
    %v8455 = vunpack.c.l.b16 %v8288
    %v8456 = vunpack.c.h.b16 %v8288
    %v8457 = vunpack.c.l.b16 %v8289
    %v8458 = vunpack.c.h.b16 %v8289
    %v8459 = vunpack.c.l.b16 %v8290
    %v8460 = vunpack.c.h.b16 %v8290
    %v8461 = vunpack.c.l.b16 %v8291
    %v8462 = vunpack.c.h.b16 %v8291
    %v8463 = vunpack.c.l.b16 %v8292
    %v8464 = vunpack.c.h.b16 %v8292
    %v8465 = vunpack.c.l.b16 %v8293
    %v8466 = vunpack.c.h.b16 %v8293
    %v8467 = vunpack.c.l.b16 %v8294
    %v8468 = vunpack.c.h.b16 %v8294
    %v8469 = vunpack.c.l.b16 %v8295
    %v8470 = vunpack.c.h.b16 %v8295
    %v8471 = vunpack.c.l.b16 %v8296
    %v8472 = vunpack.c.h.b16 %v8296
    %v8473 = vunpack.c.l.b16 %v8297
    %v8474 = vunpack.c.h.b16 %v8297
    %v8475 = vunpack.c.l.b16 %v8298
    %v8476 = vunpack.c.h.b16 %v8298
    %v8477 = vunpack.c.l.b16 %v8299
    %v8478 = vunpack.c.h.b16 %v8299
    %v8479 = vunpack.c.l.b16 %v8300
    %v8480 = vunpack.c.h.b16 %v8300
    %v8481 = vunpack.c.l.b16 %v8301
    %v8482 = vunpack.c.h.b16 %v8301
    %v8483 = vunpack.c.l.b16 %v8302
    %v8484 = vunpack.c.h.b16 %v8302
    %v8485 = vunpack.c.l.b16 %v8303
    %v8486 = vunpack.c.h.b16 %v8303
    %v8487 = vunpack.c.l.b16 %v8304
    %v8488 = vunpack.c.h.b16 %v8304
    %v8489 = vunpack.c.l.b16 %v8305
    %v8490 = vunpack.c.h.b16 %v8305
    %v8491 = vunpack.c.l.b16 %v8306
    %v8492 = vunpack.c.h.b16 %v8306
    %v8493 = vunpack.c.l.b16 %v8307
    %v8494 = vunpack.c.h.b16 %v8307
    %v8495 = vunpack.c.l.b16 %v8308
    %v8496 = vunpack.c.h.b16 %v8308
    %v8497 = vunpack.c.l.b16 %v8309
    %v8498 = vunpack.c.h.b16 %v8309
    %v8499 = vunpack.c.l.b16 %v8310
    %v8500 = vunpack.c.h.b16 %v8310
    %v8501 = vunpack.c.l.b16 %v8311
    %v8502 = vunpack.c.h.b16 %v8311
    %v8503 = vunpack.c.l.b16 %v8312
    %v8504 = vunpack.c.h.b16 %v8312
    %v8505 = vlaneseq
    %v8506 = vand.u32 %v8505, 127
    %v8507 = vlaneseq
    %v8508 = vshrl.u32 %v8507, 7
    %v8509 = vsub.s32 %v8506, %v8508
    %v8510 = vrot.slane %v8377, %v8509
    %v8511 = vadd.s32 %v8506, 4294967288
    %v8512 = vlaneseq
    %v8513 = vshrl.u32 %v8512, 7
    %v8514 = vsub.s32 %v8511, %v8513
    %v8515 = vrot.slane %v8378, %v8514
    %vm8516 = vcmask 130112
    %v8517 = vsel %vm8516, %v8515, %v8510
    %v8518 = vadd.s32 %v8506, 4294967280
    %v8519 = vlaneseq
    %v8520 = vshrl.u32 %v8519, 7
    %v8521 = vsub.s32 %v8518, %v8520
    %v8522 = vrot.slane %v8379, %v8521
    %vm8523 = vcmask 195712
    %v8524 = vsel %vm8523, %v8522, %v8517
    %v8525 = vadd.s32 %v8506, 4294967272
    %v8526 = vlaneseq
    %v8527 = vshrl.u32 %v8526, 7
    %v8528 = vsub.s32 %v8525, %v8527
    %v8529 = vrot.slane %v8380, %v8528
    %vm8530 = vcmask 261312
    %v8531 = vsel %vm8530, %v8529, %v8524
    %v8532 = vadd.s32 %v8506, 4294967264
    %v8533 = vlaneseq
    %v8534 = vshrl.u32 %v8533, 7
    %v8535 = vsub.s32 %v8532, %v8534
    %v8536 = vrot.slane %v8381, %v8535
    %vm8537 = vcmask 326912
    %v8538 = vsel %vm8537, %v8536, %v8531
    %v8539 = vadd.s32 %v8506, 4294967256
    %v8540 = vlaneseq
    %v8541 = vshrl.u32 %v8540, 7
    %v8542 = vsub.s32 %v8539, %v8541
    %v8543 = vrot.slane %v8382, %v8542
    %vm8544 = vcmask 392512
    %v8545 = vsel %vm8544, %v8543, %v8538
    %v8546 = vadd.s32 %v8506, 4294967248
    %v8547 = vlaneseq
    %v8548 = vshrl.u32 %v8547, 7
    %v8549 = vsub.s32 %v8546, %v8548
    %v8550 = vrot.slane %v8383, %v8549
    %vm8551 = vcmask 458112
    %v8552 = vsel %vm8551, %v8550, %v8545
    %v8553 = vadd.s32 %v8506, 4294967240
    %v8554 = vlaneseq
    %v8555 = vshrl.u32 %v8554, 7
    %v8556 = vsub.s32 %v8553, %v8555
    %v8557 = vrot.slane %v8384, %v8556
    %vm8558 = vcmask 523712
    %v8559 = vsel %vm8558, %v8557, %v8552
    %v8560 = vlaneseq
    %v8561 = vshrl.u32 %v8560, 7
    %v8562 = vsub.s32 %v8506, %v8561
    %v8563 = vrot.slane %v8385, %v8562
    %v8564 = vlaneseq
    %v8565 = vshrl.u32 %v8564, 7
    %v8566 = vsub.s32 %v8511, %v8565
    %v8567 = vrot.slane %v8386, %v8566
    %v8568 = vsel %vm8516, %v8567, %v8563
    %v8569 = vlaneseq
    %v8570 = vshrl.u32 %v8569, 7
    %v8571 = vsub.s32 %v8518, %v8570
    %v8572 = vrot.slane %v8387, %v8571
    %v8573 = vsel %vm8523, %v8572, %v8568
    %v8574 = vlaneseq
    %v8575 = vshrl.u32 %v8574, 7
    %v8576 = vsub.s32 %v8525, %v8575
    %v8577 = vrot.slane %v8388, %v8576
    %v8578 = vsel %vm8530, %v8577, %v8573
    %v8579 = vlaneseq
    %v8580 = vshrl.u32 %v8579, 7
    %v8581 = vsub.s32 %v8532, %v8580
    %v8582 = vrot.slane %v8389, %v8581
    %v8583 = vsel %vm8537, %v8582, %v8578
    %v8584 = vlaneseq
    %v8585 = vshrl.u32 %v8584, 7
    %v8586 = vsub.s32 %v8539, %v8585
    %v8587 = vrot.slane %v8390, %v8586
    %v8588 = vsel %vm8544, %v8587, %v8583
    %v8589 = vlaneseq
    %v8590 = vshrl.u32 %v8589, 7
    %v8591 = vsub.s32 %v8546, %v8590
    %v8592 = vrot.slane %v8391, %v8591
    %v8593 = vsel %vm8551, %v8592, %v8588
    %v8594 = vlaneseq
    %v8595 = vshrl.u32 %v8594, 7
    %v8596 = vsub.s32 %v8553, %v8595
    %v8597 = vrot.slane %v8392, %v8596
    %v8598 = vsel %vm8558, %v8597, %v8593
    %v8599 = vlaneseq
    %v8600 = vshrl.u32 %v8599, 7
    %v8601 = vsub.s32 %v8506, %v8600
    %v8602 = vrot.slane %v8393, %v8601
    %v8603 = vlaneseq
    %v8604 = vshrl.u32 %v8603, 7
    %v8605 = vsub.s32 %v8511, %v8604
    %v8606 = vrot.slane %v8394, %v8605
    %v8607 = vsel %vm8516, %v8606, %v8602
    %v8608 = vlaneseq
    %v8609 = vshrl.u32 %v8608, 7
    %v8610 = vsub.s32 %v8518, %v8609
    %v8611 = vrot.slane %v8395, %v8610
    %v8612 = vsel %vm8523, %v8611, %v8607
    %v8613 = vlaneseq
    %v8614 = vshrl.u32 %v8613, 7
    %v8615 = vsub.s32 %v8525, %v8614
    %v8616 = vrot.slane %v8396, %v8615
    %v8617 = vsel %vm8530, %v8616, %v8612
    %v8618 = vlaneseq
    %v8619 = vshrl.u32 %v8618, 7
    %v8620 = vsub.s32 %v8532, %v8619
    %v8621 = vrot.slane %v8397, %v8620
    %v8622 = vsel %vm8537, %v8621, %v8617
    %v8623 = vlaneseq
    %v8624 = vshrl.u32 %v8623, 7
    %v8625 = vsub.s32 %v8539, %v8624
    %v8626 = vrot.slane %v8398, %v8625
    %v8627 = vsel %vm8544, %v8626, %v8622
    %v8628 = vlaneseq
    %v8629 = vshrl.u32 %v8628, 7
    %v8630 = vsub.s32 %v8546, %v8629
    %v8631 = vrot.slane %v8399, %v8630
    %v8632 = vsel %vm8551, %v8631, %v8627
    %v8633 = vlaneseq
    %v8634 = vshrl.u32 %v8633, 7
    %v8635 = vsub.s32 %v8553, %v8634
    %v8636 = vrot.slane %v8400, %v8635
    %v8637 = vsel %vm8558, %v8636, %v8632
    %v8638 = vlaneseq
    %v8639 = vshrl.u32 %v8638, 7
    %v8640 = vsub.s32 %v8506, %v8639
    %v8641 = vrot.slane %v8401, %v8640
    %v8642 = vlaneseq
    %v8643 = vshrl.u32 %v8642, 7
    %v8644 = vsub.s32 %v8511, %v8643
    %v8645 = vrot.slane %v8402, %v8644
    %v8646 = vsel %vm8516, %v8645, %v8641
    %v8647 = vlaneseq
    %v8648 = vshrl.u32 %v8647, 7
    %v8649 = vsub.s32 %v8518, %v8648
    %v8650 = vrot.slane %v8403, %v8649
    %v8651 = vsel %vm8523, %v8650, %v8646
    %v8652 = vlaneseq
    %v8653 = vshrl.u32 %v8652, 7
    %v8654 = vsub.s32 %v8525, %v8653
    %v8655 = vrot.slane %v8404, %v8654
    %v8656 = vsel %vm8530, %v8655, %v8651
    %v8657 = vlaneseq
    %v8658 = vshrl.u32 %v8657, 7
    %v8659 = vsub.s32 %v8532, %v8658
    %v8660 = vrot.slane %v8405, %v8659
    %v8661 = vsel %vm8537, %v8660, %v8656
    %v8662 = vlaneseq
    %v8663 = vshrl.u32 %v8662, 7
    %v8664 = vsub.s32 %v8539, %v8663
    %v8665 = vrot.slane %v8406, %v8664
    %v8666 = vsel %vm8544, %v8665, %v8661
    %v8667 = vlaneseq
    %v8668 = vshrl.u32 %v8667, 7
    %v8669 = vsub.s32 %v8546, %v8668
    %v8670 = vrot.slane %v8407, %v8669
    %v8671 = vsel %vm8551, %v8670, %v8666
    %v8672 = vlaneseq
    %v8673 = vshrl.u32 %v8672, 7
    %v8674 = vsub.s32 %v8553, %v8673
    %v8675 = vrot.slane %v8408, %v8674
    %v8676 = vsel %vm8558, %v8675, %v8671
    %v8677 = vlaneseq
    %v8678 = vshrl.u32 %v8677, 7
    %v8679 = vsub.s32 %v8506, %v8678
    %v8680 = vrot.slane %v8409, %v8679
    %v8681 = vlaneseq
    %v8682 = vshrl.u32 %v8681, 7
    %v8683 = vsub.s32 %v8511, %v8682
    %v8684 = vrot.slane %v8410, %v8683
    %v8685 = vsel %vm8516, %v8684, %v8680
    %v8686 = vlaneseq
    %v8687 = vshrl.u32 %v8686, 7
    %v8688 = vsub.s32 %v8518, %v8687
    %v8689 = vrot.slane %v8411, %v8688
    %v8690 = vsel %vm8523, %v8689, %v8685
    %v8691 = vlaneseq
    %v8692 = vshrl.u32 %v8691, 7
    %v8693 = vsub.s32 %v8525, %v8692
    %v8694 = vrot.slane %v8412, %v8693
    %v8695 = vsel %vm8530, %v8694, %v8690
    %v8696 = vlaneseq
    %v8697 = vshrl.u32 %v8696, 7
    %v8698 = vsub.s32 %v8532, %v8697
    %v8699 = vrot.slane %v8413, %v8698
    %v8700 = vsel %vm8537, %v8699, %v8695
    %v8701 = vlaneseq
    %v8702 = vshrl.u32 %v8701, 7
    %v8703 = vsub.s32 %v8539, %v8702
    %v8704 = vrot.slane %v8414, %v8703
    %v8705 = vsel %vm8544, %v8704, %v8700
    %v8706 = vlaneseq
    %v8707 = vshrl.u32 %v8706, 7
    %v8708 = vsub.s32 %v8546, %v8707
    %v8709 = vrot.slane %v8415, %v8708
    %v8710 = vsel %vm8551, %v8709, %v8705
    %v8711 = vlaneseq
    %v8712 = vshrl.u32 %v8711, 7
    %v8713 = vsub.s32 %v8553, %v8712
    %v8714 = vrot.slane %v8416, %v8713
    %v8715 = vsel %vm8558, %v8714, %v8710
    %v8716 = vlaneseq
    %v8717 = vshrl.u32 %v8716, 7
    %v8718 = vsub.s32 %v8506, %v8717
    %v8719 = vrot.slane %v8417, %v8718
    %v8720 = vlaneseq
    %v8721 = vshrl.u32 %v8720, 7
    %v8722 = vsub.s32 %v8511, %v8721
    %v8723 = vrot.slane %v8418, %v8722
    %v8724 = vsel %vm8516, %v8723, %v8719
    %v8725 = vlaneseq
    %v8726 = vshrl.u32 %v8725, 7
    %v8727 = vsub.s32 %v8518, %v8726
    %v8728 = vrot.slane %v8419, %v8727
    %v8729 = vsel %vm8523, %v8728, %v8724
    %v8730 = vlaneseq
    %v8731 = vshrl.u32 %v8730, 7
    %v8732 = vsub.s32 %v8525, %v8731
    %v8733 = vrot.slane %v8420, %v8732
    %v8734 = vsel %vm8530, %v8733, %v8729
    %v8735 = vlaneseq
    %v8736 = vshrl.u32 %v8735, 7
    %v8737 = vsub.s32 %v8532, %v8736
    %v8738 = vrot.slane %v8421, %v8737
    %v8739 = vsel %vm8537, %v8738, %v8734
    %v8740 = vlaneseq
    %v8741 = vshrl.u32 %v8740, 7
    %v8742 = vsub.s32 %v8539, %v8741
    %v8743 = vrot.slane %v8422, %v8742
    %v8744 = vsel %vm8544, %v8743, %v8739
    %v8745 = vlaneseq
    %v8746 = vshrl.u32 %v8745, 7
    %v8747 = vsub.s32 %v8546, %v8746
    %v8748 = vrot.slane %v8423, %v8747
    %v8749 = vsel %vm8551, %v8748, %v8744
    %v8750 = vlaneseq
    %v8751 = vshrl.u32 %v8750, 7
    %v8752 = vsub.s32 %v8553, %v8751
    %v8753 = vrot.slane %v8424, %v8752
    %v8754 = vsel %vm8558, %v8753, %v8749
    %v8755 = vlaneseq
    %v8756 = vshrl.u32 %v8755, 7
    %v8757 = vsub.s32 %v8506, %v8756
    %v8758 = vrot.slane %v8425, %v8757
    %v8759 = vlaneseq
    %v8760 = vshrl.u32 %v8759, 7
    %v8761 = vsub.s32 %v8511, %v8760
    %v8762 = vrot.slane %v8426, %v8761
    %v8763 = vsel %vm8516, %v8762, %v8758
    %v8764 = vlaneseq
    %v8765 = vshrl.u32 %v8764, 7
    %v8766 = vsub.s32 %v8518, %v8765
    %v8767 = vrot.slane %v8427, %v8766
    %v8768 = vsel %vm8523, %v8767, %v8763
    %v8769 = vlaneseq
    %v8770 = vshrl.u32 %v8769, 7
    %v8771 = vsub.s32 %v8525, %v8770
    %v8772 = vrot.slane %v8428, %v8771
    %v8773 = vsel %vm8530, %v8772, %v8768
    %v8774 = vlaneseq
    %v8775 = vshrl.u32 %v8774, 7
    %v8776 = vsub.s32 %v8532, %v8775
    %v8777 = vrot.slane %v8429, %v8776
    %v8778 = vsel %vm8537, %v8777, %v8773
    %v8779 = vlaneseq
    %v8780 = vshrl.u32 %v8779, 7
    %v8781 = vsub.s32 %v8539, %v8780
    %v8782 = vrot.slane %v8430, %v8781
    %v8783 = vsel %vm8544, %v8782, %v8778
    %v8784 = vlaneseq
    %v8785 = vshrl.u32 %v8784, 7
    %v8786 = vsub.s32 %v8546, %v8785
    %v8787 = vrot.slane %v8431, %v8786
    %v8788 = vsel %vm8551, %v8787, %v8783
    %v8789 = vlaneseq
    %v8790 = vshrl.u32 %v8789, 7
    %v8791 = vsub.s32 %v8553, %v8790
    %v8792 = vrot.slane %v8432, %v8791
    %v8793 = vsel %vm8558, %v8792, %v8788
    %v8794 = vlaneseq
    %v8795 = vshrl.u32 %v8794, 7
    %v8796 = vsub.s32 %v8506, %v8795
    %v8797 = vrot.slane %v8433, %v8796
    %v8798 = vlaneseq
    %v8799 = vshrl.u32 %v8798, 7
    %v8800 = vsub.s32 %v8511, %v8799
    %v8801 = vrot.slane %v8434, %v8800
    %v8802 = vsel %vm8516, %v8801, %v8797
    %v8803 = vlaneseq
    %v8804 = vshrl.u32 %v8803, 7
    %v8805 = vsub.s32 %v8518, %v8804
    %v8806 = vrot.slane %v8435, %v8805
    %v8807 = vsel %vm8523, %v8806, %v8802
    %v8808 = vlaneseq
    %v8809 = vshrl.u32 %v8808, 7
    %v8810 = vsub.s32 %v8525, %v8809
    %v8811 = vrot.slane %v8436, %v8810
    %v8812 = vsel %vm8530, %v8811, %v8807
    %v8813 = vlaneseq
    %v8814 = vshrl.u32 %v8813, 7
    %v8815 = vsub.s32 %v8532, %v8814
    %v8816 = vrot.slane %v8437, %v8815
    %v8817 = vsel %vm8537, %v8816, %v8812
    %v8818 = vlaneseq
    %v8819 = vshrl.u32 %v8818, 7
    %v8820 = vsub.s32 %v8539, %v8819
    %v8821 = vrot.slane %v8438, %v8820
    %v8822 = vsel %vm8544, %v8821, %v8817
    %v8823 = vlaneseq
    %v8824 = vshrl.u32 %v8823, 7
    %v8825 = vsub.s32 %v8546, %v8824
    %v8826 = vrot.slane %v8439, %v8825
    %v8827 = vsel %vm8551, %v8826, %v8822
    %v8828 = vlaneseq
    %v8829 = vshrl.u32 %v8828, 7
    %v8830 = vsub.s32 %v8553, %v8829
    %v8831 = vrot.slane %v8440, %v8830
    %v8832 = vsel %vm8558, %v8831, %v8827
    %v8833 = vlaneseq
    %v8834 = vshrl.u32 %v8833, 7
    %v8835 = vsub.s32 %v8506, %v8834
    %v8836 = vrot.slane %v8441, %v8835
    %v8837 = vlaneseq
    %v8838 = vshrl.u32 %v8837, 7
    %v8839 = vsub.s32 %v8511, %v8838
    %v8840 = vrot.slane %v8442, %v8839
    %v8841 = vsel %vm8516, %v8840, %v8836
    %v8842 = vlaneseq
    %v8843 = vshrl.u32 %v8842, 7
    %v8844 = vsub.s32 %v8518, %v8843
    %v8845 = vrot.slane %v8443, %v8844
    %v8846 = vsel %vm8523, %v8845, %v8841
    %v8847 = vlaneseq
    %v8848 = vshrl.u32 %v8847, 7
    %v8849 = vsub.s32 %v8525, %v8848
    %v8850 = vrot.slane %v8444, %v8849
    %v8851 = vsel %vm8530, %v8850, %v8846
    %v8852 = vlaneseq
    %v8853 = vshrl.u32 %v8852, 7
    %v8854 = vsub.s32 %v8532, %v8853
    %v8855 = vrot.slane %v8445, %v8854
    %v8856 = vsel %vm8537, %v8855, %v8851
    %v8857 = vlaneseq
    %v8858 = vshrl.u32 %v8857, 7
    %v8859 = vsub.s32 %v8539, %v8858
    %v8860 = vrot.slane %v8446, %v8859
    %v8861 = vsel %vm8544, %v8860, %v8856
    %v8862 = vlaneseq
    %v8863 = vshrl.u32 %v8862, 7
    %v8864 = vsub.s32 %v8546, %v8863
    %v8865 = vrot.slane %v8447, %v8864
    %v8866 = vsel %vm8551, %v8865, %v8861
    %v8867 = vlaneseq
    %v8868 = vshrl.u32 %v8867, 7
    %v8869 = vsub.s32 %v8553, %v8868
    %v8870 = vrot.slane %v8448, %v8869
    %v8871 = vsel %vm8558, %v8870, %v8866
    %v8872 = vlaneseq
    %v8873 = vshrl.u32 %v8872, 7
    %v8874 = vsub.s32 %v8506, %v8873
    %v8875 = vrot.slane %v8449, %v8874
    %v8876 = vlaneseq
    %v8877 = vshrl.u32 %v8876, 7
    %v8878 = vsub.s32 %v8511, %v8877
    %v8879 = vrot.slane %v8450, %v8878
    %v8880 = vsel %vm8516, %v8879, %v8875
    %v8881 = vlaneseq
    %v8882 = vshrl.u32 %v8881, 7
    %v8883 = vsub.s32 %v8518, %v8882
    %v8884 = vrot.slane %v8451, %v8883
    %v8885 = vsel %vm8523, %v8884, %v8880
    %v8886 = vlaneseq
    %v8887 = vshrl.u32 %v8886, 7
    %v8888 = vsub.s32 %v8525, %v8887
    %v8889 = vrot.slane %v8452, %v8888
    %v8890 = vsel %vm8530, %v8889, %v8885
    %v8891 = vlaneseq
    %v8892 = vshrl.u32 %v8891, 7
    %v8893 = vsub.s32 %v8532, %v8892
    %v8894 = vrot.slane %v8453, %v8893
    %v8895 = vsel %vm8537, %v8894, %v8890
    %v8896 = vlaneseq
    %v8897 = vshrl.u32 %v8896, 7
    %v8898 = vsub.s32 %v8539, %v8897
    %v8899 = vrot.slane %v8454, %v8898
    %v8900 = vsel %vm8544, %v8899, %v8895
    %v8901 = vlaneseq
    %v8902 = vshrl.u32 %v8901, 7
    %v8903 = vsub.s32 %v8546, %v8902
    %v8904 = vrot.slane %v8455, %v8903
    %v8905 = vsel %vm8551, %v8904, %v8900
    %v8906 = vlaneseq
    %v8907 = vshrl.u32 %v8906, 7
    %v8908 = vsub.s32 %v8553, %v8907
    %v8909 = vrot.slane %v8456, %v8908
    %v8910 = vsel %vm8558, %v8909, %v8905
    %v8911 = vlaneseq
    %v8912 = vshrl.u32 %v8911, 7
    %v8913 = vsub.s32 %v8506, %v8912
    %v8914 = vrot.slane %v8457, %v8913
    %v8915 = vlaneseq
    %v8916 = vshrl.u32 %v8915, 7
    %v8917 = vsub.s32 %v8511, %v8916
    %v8918 = vrot.slane %v8458, %v8917
    %v8919 = vsel %vm8516, %v8918, %v8914
    %v8920 = vlaneseq
    %v8921 = vshrl.u32 %v8920, 7
    %v8922 = vsub.s32 %v8518, %v8921
    %v8923 = vrot.slane %v8459, %v8922
    %v8924 = vsel %vm8523, %v8923, %v8919
    %v8925 = vlaneseq
    %v8926 = vshrl.u32 %v8925, 7
    %v8927 = vsub.s32 %v8525, %v8926
    %v8928 = vrot.slane %v8460, %v8927
    %v8929 = vsel %vm8530, %v8928, %v8924
    %v8930 = vlaneseq
    %v8931 = vshrl.u32 %v8930, 7
    %v8932 = vsub.s32 %v8532, %v8931
    %v8933 = vrot.slane %v8461, %v8932
    %v8934 = vsel %vm8537, %v8933, %v8929
    %v8935 = vlaneseq
    %v8936 = vshrl.u32 %v8935, 7
    %v8937 = vsub.s32 %v8539, %v8936
    %v8938 = vrot.slane %v8462, %v8937
    %v8939 = vsel %vm8544, %v8938, %v8934
    %v8940 = vlaneseq
    %v8941 = vshrl.u32 %v8940, 7
    %v8942 = vsub.s32 %v8546, %v8941
    %v8943 = vrot.slane %v8463, %v8942
    %v8944 = vsel %vm8551, %v8943, %v8939
    %v8945 = vlaneseq
    %v8946 = vshrl.u32 %v8945, 7
    %v8947 = vsub.s32 %v8553, %v8946
    %v8948 = vrot.slane %v8464, %v8947
    %v8949 = vsel %vm8558, %v8948, %v8944
    %v8950 = vlaneseq
    %v8951 = vshrl.u32 %v8950, 7
    %v8952 = vsub.s32 %v8506, %v8951
    %v8953 = vrot.slane %v8465, %v8952
    %v8954 = vlaneseq
    %v8955 = vshrl.u32 %v8954, 7
    %v8956 = vsub.s32 %v8511, %v8955
    %v8957 = vrot.slane %v8466, %v8956
    %v8958 = vsel %vm8516, %v8957, %v8953
    %v8959 = vlaneseq
    %v8960 = vshrl.u32 %v8959, 7
    %v8961 = vsub.s32 %v8518, %v8960
    %v8962 = vrot.slane %v8467, %v8961
    %v8963 = vsel %vm8523, %v8962, %v8958
    %v8964 = vlaneseq
    %v8965 = vshrl.u32 %v8964, 7
    %v8966 = vsub.s32 %v8525, %v8965
    %v8967 = vrot.slane %v8468, %v8966
    %v8968 = vsel %vm8530, %v8967, %v8963
    %v8969 = vlaneseq
    %v8970 = vshrl.u32 %v8969, 7
    %v8971 = vsub.s32 %v8532, %v8970
    %v8972 = vrot.slane %v8469, %v8971
    %v8973 = vsel %vm8537, %v8972, %v8968
    %v8974 = vlaneseq
    %v8975 = vshrl.u32 %v8974, 7
    %v8976 = vsub.s32 %v8539, %v8975
    %v8977 = vrot.slane %v8470, %v8976
    %v8978 = vsel %vm8544, %v8977, %v8973
    %v8979 = vlaneseq
    %v8980 = vshrl.u32 %v8979, 7
    %v8981 = vsub.s32 %v8546, %v8980
    %v8982 = vrot.slane %v8471, %v8981
    %v8983 = vsel %vm8551, %v8982, %v8978
    %v8984 = vlaneseq
    %v8985 = vshrl.u32 %v8984, 7
    %v8986 = vsub.s32 %v8553, %v8985
    %v8987 = vrot.slane %v8472, %v8986
    %v8988 = vsel %vm8558, %v8987, %v8983
    %v8989 = vlaneseq
    %v8990 = vshrl.u32 %v8989, 7
    %v8991 = vsub.s32 %v8506, %v8990
    %v8992 = vrot.slane %v8473, %v8991
    %v8993 = vlaneseq
    %v8994 = vshrl.u32 %v8993, 7
    %v8995 = vsub.s32 %v8511, %v8994
    %v8996 = vrot.slane %v8474, %v8995
    %v8997 = vsel %vm8516, %v8996, %v8992
    %v8998 = vlaneseq
    %v8999 = vshrl.u32 %v8998, 7
    %v9000 = vsub.s32 %v8518, %v8999
    %v9001 = vrot.slane %v8475, %v9000
    %v9002 = vsel %vm8523, %v9001, %v8997
    %v9003 = vlaneseq
    %v9004 = vshrl.u32 %v9003, 7
    %v9005 = vsub.s32 %v8525, %v9004
    %v9006 = vrot.slane %v8476, %v9005
    %v9007 = vsel %vm8530, %v9006, %v9002
    %v9008 = vlaneseq
    %v9009 = vshrl.u32 %v9008, 7
    %v9010 = vsub.s32 %v8532, %v9009
    %v9011 = vrot.slane %v8477, %v9010
    %v9012 = vsel %vm8537, %v9011, %v9007
    %v9013 = vlaneseq
    %v9014 = vshrl.u32 %v9013, 7
    %v9015 = vsub.s32 %v8539, %v9014
    %v9016 = vrot.slane %v8478, %v9015
    %v9017 = vsel %vm8544, %v9016, %v9012
    %v9018 = vlaneseq
    %v9019 = vshrl.u32 %v9018, 7
    %v9020 = vsub.s32 %v8546, %v9019
    %v9021 = vrot.slane %v8479, %v9020
    %v9022 = vsel %vm8551, %v9021, %v9017
    %v9023 = vlaneseq
    %v9024 = vshrl.u32 %v9023, 7
    %v9025 = vsub.s32 %v8553, %v9024
    %v9026 = vrot.slane %v8480, %v9025
    %v9027 = vsel %vm8558, %v9026, %v9022
    %v9028 = vlaneseq
    %v9029 = vshrl.u32 %v9028, 7
    %v9030 = vsub.s32 %v8506, %v9029
    %v9031 = vrot.slane %v8481, %v9030
    %v9032 = vlaneseq
    %v9033 = vshrl.u32 %v9032, 7
    %v9034 = vsub.s32 %v8511, %v9033
    %v9035 = vrot.slane %v8482, %v9034
    %v9036 = vsel %vm8516, %v9035, %v9031
    %v9037 = vlaneseq
    %v9038 = vshrl.u32 %v9037, 7
    %v9039 = vsub.s32 %v8518, %v9038
    %v9040 = vrot.slane %v8483, %v9039
    %v9041 = vsel %vm8523, %v9040, %v9036
    %v9042 = vlaneseq
    %v9043 = vshrl.u32 %v9042, 7
    %v9044 = vsub.s32 %v8525, %v9043
    %v9045 = vrot.slane %v8484, %v9044
    %v9046 = vsel %vm8530, %v9045, %v9041
    %v9047 = vlaneseq
    %v9048 = vshrl.u32 %v9047, 7
    %v9049 = vsub.s32 %v8532, %v9048
    %v9050 = vrot.slane %v8485, %v9049
    %v9051 = vsel %vm8537, %v9050, %v9046
    %v9052 = vlaneseq
    %v9053 = vshrl.u32 %v9052, 7
    %v9054 = vsub.s32 %v8539, %v9053
    %v9055 = vrot.slane %v8486, %v9054
    %v9056 = vsel %vm8544, %v9055, %v9051
    %v9057 = vlaneseq
    %v9058 = vshrl.u32 %v9057, 7
    %v9059 = vsub.s32 %v8546, %v9058
    %v9060 = vrot.slane %v8487, %v9059
    %v9061 = vsel %vm8551, %v9060, %v9056
    %v9062 = vlaneseq
    %v9063 = vshrl.u32 %v9062, 7
    %v9064 = vsub.s32 %v8553, %v9063
    %v9065 = vrot.slane %v8488, %v9064
    %v9066 = vsel %vm8558, %v9065, %v9061
    %v9067 = vlaneseq
    %v9068 = vshrl.u32 %v9067, 7
    %v9069 = vsub.s32 %v8506, %v9068
    %v9070 = vrot.slane %v8489, %v9069
    %v9071 = vlaneseq
    %v9072 = vshrl.u32 %v9071, 7
    %v9073 = vsub.s32 %v8511, %v9072
    %v9074 = vrot.slane %v8490, %v9073
    %v9075 = vsel %vm8516, %v9074, %v9070
    %v9076 = vlaneseq
    %v9077 = vshrl.u32 %v9076, 7
    %v9078 = vsub.s32 %v8518, %v9077
    %v9079 = vrot.slane %v8491, %v9078
    %v9080 = vsel %vm8523, %v9079, %v9075
    %v9081 = vlaneseq
    %v9082 = vshrl.u32 %v9081, 7
    %v9083 = vsub.s32 %v8525, %v9082
    %v9084 = vrot.slane %v8492, %v9083
    %v9085 = vsel %vm8530, %v9084, %v9080
    %v9086 = vlaneseq
    %v9087 = vshrl.u32 %v9086, 7
    %v9088 = vsub.s32 %v8532, %v9087
    %v9089 = vrot.slane %v8493, %v9088
    %v9090 = vsel %vm8537, %v9089, %v9085
    %v9091 = vlaneseq
    %v9092 = vshrl.u32 %v9091, 7
    %v9093 = vsub.s32 %v8539, %v9092
    %v9094 = vrot.slane %v8494, %v9093
    %v9095 = vsel %vm8544, %v9094, %v9090
    %v9096 = vlaneseq
    %v9097 = vshrl.u32 %v9096, 7
    %v9098 = vsub.s32 %v8546, %v9097
    %v9099 = vrot.slane %v8495, %v9098
    %v9100 = vsel %vm8551, %v9099, %v9095
    %v9101 = vlaneseq
    %v9102 = vshrl.u32 %v9101, 7
    %v9103 = vsub.s32 %v8553, %v9102
    %v9104 = vrot.slane %v8496, %v9103
    %v9105 = vsel %vm8558, %v9104, %v9100
    %v9106 = vlaneseq
    %v9107 = vshrl.u32 %v9106, 7
    %v9108 = vsub.s32 %v8506, %v9107
    %v9109 = vrot.slane %v8497, %v9108
    %v9110 = vlaneseq
    %v9111 = vshrl.u32 %v9110, 7
    %v9112 = vsub.s32 %v8511, %v9111
    %v9113 = vrot.slane %v8498, %v9112
    %v9114 = vsel %vm8516, %v9113, %v9109
    %v9115 = vlaneseq
    %v9116 = vshrl.u32 %v9115, 7
    %v9117 = vsub.s32 %v8518, %v9116
    %v9118 = vrot.slane %v8499, %v9117
    %v9119 = vsel %vm8523, %v9118, %v9114
    %v9120 = vlaneseq
    %v9121 = vshrl.u32 %v9120, 7
    %v9122 = vsub.s32 %v8525, %v9121
    %v9123 = vrot.slane %v8500, %v9122
    %v9124 = vsel %vm8530, %v9123, %v9119
    %v9125 = vlaneseq
    %v9126 = vshrl.u32 %v9125, 7
    %v9127 = vsub.s32 %v8532, %v9126
    %v9128 = vrot.slane %v8501, %v9127
    %v9129 = vsel %vm8537, %v9128, %v9124
    %v9130 = vlaneseq
    %v9131 = vshrl.u32 %v9130, 7
    %v9132 = vsub.s32 %v8539, %v9131
    %v9133 = vrot.slane %v8502, %v9132
    %v9134 = vsel %vm8544, %v9133, %v9129
    %v9135 = vlaneseq
    %v9136 = vshrl.u32 %v9135, 7
    %v9137 = vsub.s32 %v8546, %v9136
    %v9138 = vrot.slane %v8503, %v9137
    %v9139 = vsel %vm8551, %v9138, %v9134
    %v9140 = vlaneseq
    %v9141 = vshrl.u32 %v9140, 7
    %v9142 = vsub.s32 %v8553, %v9141
    %v9143 = vrot.slane %v8504, %v9142
    %v9144 = vsel %vm8558, %v9143, %v9139
    %vm9145 = vcmask 1041409
    %v9146 = vsel %vm9145, %v8598, %v8559
    %vm9147 = vcmask 1042434
    %v9148 = vsel %vm9147, %v8637, %v9146
    %vm9149 = vcmask 1043459
    %v9150 = vsel %vm9149, %v8676, %v9148
    %vm9151 = vcmask 1044484
    %v9152 = vsel %vm9151, %v8715, %v9150
    %vm9153 = vcmask 1045509
    %v9154 = vsel %vm9153, %v8754, %v9152
    %vm9155 = vcmask 1046534
    %v9156 = vsel %vm9155, %v8793, %v9154
    %vm9157 = vcmask 1047559
    %v9158 = vsel %vm9157, %v8832, %v9156
    %v9159 = vsel %vm9145, %v8910, %v8871
    %v9160 = vsel %vm9147, %v8949, %v9159
    %v9161 = vsel %vm9149, %v8988, %v9160
    %v9162 = vsel %vm9151, %v9027, %v9161
    %v9163 = vsel %vm9153, %v9066, %v9162
    %v9164 = vsel %vm9155, %v9105, %v9163
    %v9165 = vsel %vm9157, %v9144, %v9164
    %v9166 = vpack.c.b16 %v9165, %v9158
    %v9175 = vunpack.c.l.b16 %v8241
    %v9176 = vunpack.c.l.b16 %v8242
    %v9177 = vunpack.c.l.b16 %v8243
    %v9178 = vunpack.c.l.b16 %v8244
    %v9179 = vunpack.c.l.b16 %v8245
    %v9180 = vunpack.c.l.b16 %v8246
    %v9181 = vunpack.c.l.b16 %v8247
    %v9182 = vunpack.c.l.b16 %v8248
    %v9183 = vpack.c.b16 %v9176, %v9175
    %v9184 = vpack.c.b16 %v9178, %v9177
    %v9185 = vpack.c.b16 %v9180, %v9179
    %v9186 = vpack.c.b16 %v9182, %v9181
    %v9192 = vsel %vm5899, %v9166, 0
    %9194 = vmatprep.subr.bf16.mxu0 0
    %9195 = vmatpush1.bf16.msra.mxu0 %v9183
    %9196 = vmatprep.subr.bf16.mxu0 0
    %9197 = vmatpush1.bf16.msra.mxu0 %v9184
    %9198 = vmatprep.subr.bf16.mxu0 0
    %9199 = vmatpush1.bf16.msra.mxu0 %v9185
    %9200 = vmatprep.subr.bf16.mxu0 0
    %9201 = vmatpush1.bf16.msra.mxu0 %v9186
    %9202 = vmatprep.subr.bf16.mxu0 0
    %9203 = vmatpush1.bf16.msra.mxu0 0
    %9204 = vmatprep.subr.bf16.mxu0 0
    %9205 = vmatpush1.bf16.msra.mxu0 0
    %9206 = vmatprep.subr.bf16.mxu0 0
    %9207 = vmatpush1.bf16.msra.mxu0 0
    %9208 = vmatprep.subr.bf16.mxu0 0
    %9209 = vmatpush1.bf16.msra.mxu0 0
    %9210 = vmatprep.subr.bf16.mxu0 0
    %9211 = vmatpush1.bf16.msra.mxu0 0
    %9212 = vmatprep.subr.bf16.mxu0 0
    %9213 = vmatpush1.bf16.msra.mxu0 0
    %9214 = vmatprep.subr.bf16.mxu0 0
    %9215 = vmatpush1.bf16.msra.mxu0 0
    %9216 = vmatprep.subr.bf16.mxu0 0
    %9217 = vmatpush1.bf16.msra.mxu0 0
    %9218 = vmatprep.subr.bf16.mxu0 0
    %9219 = vmatpush1.bf16.msra.mxu0 0
    %9220 = vmatprep.subr.bf16.mxu0 0
    %9221 = vmatpush1.bf16.msra.mxu0 0
    %9222 = vmatprep.subr.bf16.mxu0 0
    %9223 = vmatpush1.bf16.msra.mxu0 0
    %9224 = vmatprep.subr.bf16.mxu0 0
    %9225 = vmatpush1.bf16.msra.mxu0 0
    %9226 = vmatprep.mubr.bf16.mxu0 0
    %9227 = vmatmul.mubr.bf16.gmra.mrb[0].mxu0 %v9192
    %v9228 = vpop.f32.mrb[0].mxu0
    %v9229 = vadd.f32 0.0, %v9228
    %v9230 = vpop.f32.mrb[0].mxu0
    %v9231 = vpop.f32.mrb[0].mxu0
    %v9232 = vadd.f32 0.0, %v9231
    %v9233 = vpop.f32.mrb[0].mxu0
    %9234 = vdwg.mxu0
    %v9299 = vunpack.c.l.b16 %v7616
    %v9300 = vunpack.c.h.b16 %v7616
    %v9301 = vunpack.c.l.b16 %v7617
    %v9302 = vunpack.c.h.b16 %v7617
    %v9303 = vunpack.c.l.b16 %v7618
    %v9304 = vunpack.c.h.b16 %v7618
    %v9305 = vunpack.c.l.b16 %v7619
    %v9306 = vunpack.c.h.b16 %v7619
    %v9307 = vunpack.c.l.b16 %v7620
    %v9308 = vunpack.c.h.b16 %v7620
    %v9309 = vunpack.c.l.b16 %v7621
    %v9310 = vunpack.c.h.b16 %v7621
    %v9311 = vunpack.c.l.b16 %v7622
    %v9312 = vunpack.c.h.b16 %v7622
    %v9313 = vunpack.c.l.b16 %v7623
    %v9314 = vunpack.c.h.b16 %v7623
    %v9315 = vunpack.c.l.b16 %v7624
    %v9316 = vunpack.c.h.b16 %v7624
    %v9317 = vunpack.c.l.b16 %v7625
    %v9318 = vunpack.c.h.b16 %v7625
    %v9319 = vunpack.c.l.b16 %v7626
    %v9320 = vunpack.c.h.b16 %v7626
    %v9321 = vunpack.c.l.b16 %v7627
    %v9322 = vunpack.c.h.b16 %v7627
    %v9323 = vunpack.c.l.b16 %v7628
    %v9324 = vunpack.c.h.b16 %v7628
    %v9325 = vunpack.c.l.b16 %v7629
    %v9326 = vunpack.c.h.b16 %v7629
    %v9327 = vunpack.c.l.b16 %v7630
    %v9328 = vunpack.c.h.b16 %v7630
    %v9329 = vunpack.c.l.b16 %v7631
    %v9330 = vunpack.c.h.b16 %v7631
    %v9331 = vunpack.c.l.b16 %v7632
    %v9332 = vunpack.c.h.b16 %v7632
    %v9333 = vunpack.c.l.b16 %v7633
    %v9334 = vunpack.c.h.b16 %v7633
    %v9335 = vunpack.c.l.b16 %v7634
    %v9336 = vunpack.c.h.b16 %v7634
    %v9337 = vunpack.c.l.b16 %v7635
    %v9338 = vunpack.c.h.b16 %v7635
    %v9339 = vunpack.c.l.b16 %v7636
    %v9340 = vunpack.c.h.b16 %v7636
    %v9341 = vunpack.c.l.b16 %v7637
    %v9342 = vunpack.c.h.b16 %v7637
    %v9343 = vunpack.c.l.b16 %v7638
    %v9344 = vunpack.c.h.b16 %v7638
    %v9345 = vunpack.c.l.b16 %v7639
    %v9346 = vunpack.c.h.b16 %v7639
    %v9347 = vunpack.c.l.b16 %v7640
    %v9348 = vunpack.c.h.b16 %v7640
    %v9349 = vunpack.c.l.b16 %v7641
    %v9350 = vunpack.c.h.b16 %v7641
    %v9351 = vunpack.c.l.b16 %v7642
    %v9352 = vunpack.c.h.b16 %v7642
    %v9353 = vunpack.c.l.b16 %v7643
    %v9354 = vunpack.c.h.b16 %v7643
    %v9355 = vunpack.c.l.b16 %v7644
    %v9356 = vunpack.c.h.b16 %v7644
    %v9357 = vunpack.c.l.b16 %v7645
    %v9358 = vunpack.c.h.b16 %v7645
    %v9359 = vunpack.c.l.b16 %v7646
    %v9360 = vunpack.c.h.b16 %v7646
    %v9361 = vunpack.c.l.b16 %v7647
    %v9362 = vunpack.c.h.b16 %v7647
    %v9363 = vunpack.c.l.b16 %v7648
    %v9364 = vunpack.c.h.b16 %v7648
    %v9365 = vunpack.c.l.b16 %v7649
    %v9366 = vunpack.c.h.b16 %v7649
    %v9367 = vunpack.c.l.b16 %v7650
    %v9368 = vunpack.c.h.b16 %v7650
    %v9369 = vunpack.c.l.b16 %v7651
    %v9370 = vunpack.c.h.b16 %v7651
    %v9371 = vunpack.c.l.b16 %v7652
    %v9372 = vunpack.c.h.b16 %v7652
    %v9373 = vunpack.c.l.b16 %v7653
    %v9374 = vunpack.c.h.b16 %v7653
    %v9375 = vunpack.c.l.b16 %v7654
    %v9376 = vunpack.c.h.b16 %v7654
    %v9377 = vunpack.c.l.b16 %v7655
    %v9378 = vunpack.c.h.b16 %v7655
    %v9379 = vunpack.c.l.b16 %v7656
    %v9380 = vunpack.c.h.b16 %v7656
    %v9381 = vunpack.c.l.b16 %v7657
    %v9382 = vunpack.c.h.b16 %v7657
    %v9383 = vunpack.c.l.b16 %v7658
    %v9384 = vunpack.c.h.b16 %v7658
    %v9385 = vunpack.c.l.b16 %v7659
    %v9386 = vunpack.c.h.b16 %v7659
    %v9387 = vunpack.c.l.b16 %v7660
    %v9388 = vunpack.c.h.b16 %v7660
    %v9389 = vunpack.c.l.b16 %v7661
    %v9390 = vunpack.c.h.b16 %v7661
    %v9391 = vunpack.c.l.b16 %v7662
    %v9392 = vunpack.c.h.b16 %v7662
    %v9393 = vunpack.c.l.b16 %v7663
    %v9394 = vunpack.c.h.b16 %v7663
    %v9395 = vunpack.c.l.b16 %v7664
    %v9396 = vunpack.c.h.b16 %v7664
    %v9397 = vunpack.c.l.b16 %v7665
    %v9398 = vunpack.c.h.b16 %v7665
    %v9399 = vunpack.c.l.b16 %v7666
    %v9400 = vunpack.c.h.b16 %v7666
    %v9401 = vunpack.c.l.b16 %v7667
    %v9402 = vunpack.c.h.b16 %v7667
    %v9403 = vunpack.c.l.b16 %v7668
    %v9404 = vunpack.c.h.b16 %v7668
    %v9405 = vunpack.c.l.b16 %v7669
    %v9406 = vunpack.c.h.b16 %v7669
    %v9407 = vunpack.c.l.b16 %v7670
    %v9408 = vunpack.c.h.b16 %v7670
    %v9409 = vunpack.c.l.b16 %v7671
    %v9410 = vunpack.c.h.b16 %v7671
    %v9411 = vunpack.c.l.b16 %v7672
    %v9412 = vunpack.c.h.b16 %v7672
    %v9413 = vunpack.c.l.b16 %v7673
    %v9414 = vunpack.c.h.b16 %v7673
    %v9415 = vunpack.c.l.b16 %v7674
    %v9416 = vunpack.c.h.b16 %v7674
    %v9417 = vunpack.c.l.b16 %v7675
    %v9418 = vunpack.c.h.b16 %v7675
    %v9419 = vunpack.c.l.b16 %v7676
    %v9420 = vunpack.c.h.b16 %v7676
    %v9421 = vunpack.c.l.b16 %v7677
    %v9422 = vunpack.c.h.b16 %v7677
    %v9423 = vunpack.c.l.b16 %v7678
    %v9424 = vunpack.c.h.b16 %v7678
    %v9425 = vunpack.c.l.b16 %v7679
    %v9426 = vunpack.c.h.b16 %v7679
    %v9427 = vlaneseq
    %v9428 = vshrl.u32 %v9427, 7
    %v9429 = vsub.s32 %v8506, %v9428
    %v9430 = vrot.slane %v9299, %v9429
    %v9431 = vlaneseq
    %v9432 = vshrl.u32 %v9431, 7
    %v9433 = vsub.s32 %v8511, %v9432
    %v9434 = vrot.slane %v9300, %v9433
    %v9435 = vsel %vm8516, %v9434, %v9430
    %v9436 = vlaneseq
    %v9437 = vshrl.u32 %v9436, 7
    %v9438 = vsub.s32 %v8518, %v9437
    %v9439 = vrot.slane %v9301, %v9438
    %v9440 = vsel %vm8523, %v9439, %v9435
    %v9441 = vlaneseq
    %v9442 = vshrl.u32 %v9441, 7
    %v9443 = vsub.s32 %v8525, %v9442
    %v9444 = vrot.slane %v9302, %v9443
    %v9445 = vsel %vm8530, %v9444, %v9440
    %v9446 = vlaneseq
    %v9447 = vshrl.u32 %v9446, 7
    %v9448 = vsub.s32 %v8532, %v9447
    %v9449 = vrot.slane %v9303, %v9448
    %v9450 = vsel %vm8537, %v9449, %v9445
    %v9451 = vlaneseq
    %v9452 = vshrl.u32 %v9451, 7
    %v9453 = vsub.s32 %v8539, %v9452
    %v9454 = vrot.slane %v9304, %v9453
    %v9455 = vsel %vm8544, %v9454, %v9450
    %v9456 = vlaneseq
    %v9457 = vshrl.u32 %v9456, 7
    %v9458 = vsub.s32 %v8546, %v9457
    %v9459 = vrot.slane %v9305, %v9458
    %v9460 = vsel %vm8551, %v9459, %v9455
    %v9461 = vlaneseq
    %v9462 = vshrl.u32 %v9461, 7
    %v9463 = vsub.s32 %v8553, %v9462
    %v9464 = vrot.slane %v9306, %v9463
    %v9465 = vsel %vm8558, %v9464, %v9460
    %v9466 = vlaneseq
    %v9467 = vshrl.u32 %v9466, 7
    %v9468 = vsub.s32 %v8506, %v9467
    %v9469 = vrot.slane %v9307, %v9468
    %v9470 = vlaneseq
    %v9471 = vshrl.u32 %v9470, 7
    %v9472 = vsub.s32 %v8511, %v9471
    %v9473 = vrot.slane %v9308, %v9472
    %v9474 = vsel %vm8516, %v9473, %v9469
    %v9475 = vlaneseq
    %v9476 = vshrl.u32 %v9475, 7
    %v9477 = vsub.s32 %v8518, %v9476
    %v9478 = vrot.slane %v9309, %v9477
    %v9479 = vsel %vm8523, %v9478, %v9474
    %v9480 = vlaneseq
    %v9481 = vshrl.u32 %v9480, 7
    %v9482 = vsub.s32 %v8525, %v9481
    %v9483 = vrot.slane %v9310, %v9482
    %v9484 = vsel %vm8530, %v9483, %v9479
    %v9485 = vlaneseq
    %v9486 = vshrl.u32 %v9485, 7
    %v9487 = vsub.s32 %v8532, %v9486
    %v9488 = vrot.slane %v9311, %v9487
    %v9489 = vsel %vm8537, %v9488, %v9484
    %v9490 = vlaneseq
    %v9491 = vshrl.u32 %v9490, 7
    %v9492 = vsub.s32 %v8539, %v9491
    %v9493 = vrot.slane %v9312, %v9492
    %v9494 = vsel %vm8544, %v9493, %v9489
    %v9495 = vlaneseq
    %v9496 = vshrl.u32 %v9495, 7
    %v9497 = vsub.s32 %v8546, %v9496
    %v9498 = vrot.slane %v9313, %v9497
    %v9499 = vsel %vm8551, %v9498, %v9494
    %v9500 = vlaneseq
    %v9501 = vshrl.u32 %v9500, 7
    %v9502 = vsub.s32 %v8553, %v9501
    %v9503 = vrot.slane %v9314, %v9502
    %v9504 = vsel %vm8558, %v9503, %v9499
    %v9505 = vlaneseq
    %v9506 = vshrl.u32 %v9505, 7
    %v9507 = vsub.s32 %v8506, %v9506
    %v9508 = vrot.slane %v9315, %v9507
    %v9509 = vlaneseq
    %v9510 = vshrl.u32 %v9509, 7
    %v9511 = vsub.s32 %v8511, %v9510
    %v9512 = vrot.slane %v9316, %v9511
    %v9513 = vsel %vm8516, %v9512, %v9508
    %v9514 = vlaneseq
    %v9515 = vshrl.u32 %v9514, 7
    %v9516 = vsub.s32 %v8518, %v9515
    %v9517 = vrot.slane %v9317, %v9516
    %v9518 = vsel %vm8523, %v9517, %v9513
    %v9519 = vlaneseq
    %v9520 = vshrl.u32 %v9519, 7
    %v9521 = vsub.s32 %v8525, %v9520
    %v9522 = vrot.slane %v9318, %v9521
    %v9523 = vsel %vm8530, %v9522, %v9518
    %v9524 = vlaneseq
    %v9525 = vshrl.u32 %v9524, 7
    %v9526 = vsub.s32 %v8532, %v9525
    %v9527 = vrot.slane %v9319, %v9526
    %v9528 = vsel %vm8537, %v9527, %v9523
    %v9529 = vlaneseq
    %v9530 = vshrl.u32 %v9529, 7
    %v9531 = vsub.s32 %v8539, %v9530
    %v9532 = vrot.slane %v9320, %v9531
    %v9533 = vsel %vm8544, %v9532, %v9528
    %v9534 = vlaneseq
    %v9535 = vshrl.u32 %v9534, 7
    %v9536 = vsub.s32 %v8546, %v9535
    %v9537 = vrot.slane %v9321, %v9536
    %v9538 = vsel %vm8551, %v9537, %v9533
    %v9539 = vlaneseq
    %v9540 = vshrl.u32 %v9539, 7
    %v9541 = vsub.s32 %v8553, %v9540
    %v9542 = vrot.slane %v9322, %v9541
    %v9543 = vsel %vm8558, %v9542, %v9538
    %v9544 = vlaneseq
    %v9545 = vshrl.u32 %v9544, 7
    %v9546 = vsub.s32 %v8506, %v9545
    %v9547 = vrot.slane %v9323, %v9546
    %v9548 = vlaneseq
    %v9549 = vshrl.u32 %v9548, 7
    %v9550 = vsub.s32 %v8511, %v9549
    %v9551 = vrot.slane %v9324, %v9550
    %v9552 = vsel %vm8516, %v9551, %v9547
    %v9553 = vlaneseq
    %v9554 = vshrl.u32 %v9553, 7
    %v9555 = vsub.s32 %v8518, %v9554
    %v9556 = vrot.slane %v9325, %v9555
    %v9557 = vsel %vm8523, %v9556, %v9552
    %v9558 = vlaneseq
    %v9559 = vshrl.u32 %v9558, 7
    %v9560 = vsub.s32 %v8525, %v9559
    %v9561 = vrot.slane %v9326, %v9560
    %v9562 = vsel %vm8530, %v9561, %v9557
    %v9563 = vlaneseq
    %v9564 = vshrl.u32 %v9563, 7
    %v9565 = vsub.s32 %v8532, %v9564
    %v9566 = vrot.slane %v9327, %v9565
    %v9567 = vsel %vm8537, %v9566, %v9562
    %v9568 = vlaneseq
    %v9569 = vshrl.u32 %v9568, 7
    %v9570 = vsub.s32 %v8539, %v9569
    %v9571 = vrot.slane %v9328, %v9570
    %v9572 = vsel %vm8544, %v9571, %v9567
    %v9573 = vlaneseq
    %v9574 = vshrl.u32 %v9573, 7
    %v9575 = vsub.s32 %v8546, %v9574
    %v9576 = vrot.slane %v9329, %v9575
    %v9577 = vsel %vm8551, %v9576, %v9572
    %v9578 = vlaneseq
    %v9579 = vshrl.u32 %v9578, 7
    %v9580 = vsub.s32 %v8553, %v9579
    %v9581 = vrot.slane %v9330, %v9580
    %v9582 = vsel %vm8558, %v9581, %v9577
    %v9583 = vlaneseq
    %v9584 = vshrl.u32 %v9583, 7
    %v9585 = vsub.s32 %v8506, %v9584
    %v9586 = vrot.slane %v9331, %v9585
    %v9587 = vlaneseq
    %v9588 = vshrl.u32 %v9587, 7
    %v9589 = vsub.s32 %v8511, %v9588
    %v9590 = vrot.slane %v9332, %v9589
    %v9591 = vsel %vm8516, %v9590, %v9586
    %v9592 = vlaneseq
    %v9593 = vshrl.u32 %v9592, 7
    %v9594 = vsub.s32 %v8518, %v9593
    %v9595 = vrot.slane %v9333, %v9594
    %v9596 = vsel %vm8523, %v9595, %v9591
    %v9597 = vlaneseq
    %v9598 = vshrl.u32 %v9597, 7
    %v9599 = vsub.s32 %v8525, %v9598
    %v9600 = vrot.slane %v9334, %v9599
    %v9601 = vsel %vm8530, %v9600, %v9596
    %v9602 = vlaneseq
    %v9603 = vshrl.u32 %v9602, 7
    %v9604 = vsub.s32 %v8532, %v9603
    %v9605 = vrot.slane %v9335, %v9604
    %v9606 = vsel %vm8537, %v9605, %v9601
    %v9607 = vlaneseq
    %v9608 = vshrl.u32 %v9607, 7
    %v9609 = vsub.s32 %v8539, %v9608
    %v9610 = vrot.slane %v9336, %v9609
    %v9611 = vsel %vm8544, %v9610, %v9606
    %v9612 = vlaneseq
    %v9613 = vshrl.u32 %v9612, 7
    %v9614 = vsub.s32 %v8546, %v9613
    %v9615 = vrot.slane %v9337, %v9614
    %v9616 = vsel %vm8551, %v9615, %v9611
    %v9617 = vlaneseq
    %v9618 = vshrl.u32 %v9617, 7
    %v9619 = vsub.s32 %v8553, %v9618
    %v9620 = vrot.slane %v9338, %v9619
    %v9621 = vsel %vm8558, %v9620, %v9616
    %v9622 = vlaneseq
    %v9623 = vshrl.u32 %v9622, 7
    %v9624 = vsub.s32 %v8506, %v9623
    %v9625 = vrot.slane %v9339, %v9624
    %v9626 = vlaneseq
    %v9627 = vshrl.u32 %v9626, 7
    %v9628 = vsub.s32 %v8511, %v9627
    %v9629 = vrot.slane %v9340, %v9628
    %v9630 = vsel %vm8516, %v9629, %v9625
    %v9631 = vlaneseq
    %v9632 = vshrl.u32 %v9631, 7
    %v9633 = vsub.s32 %v8518, %v9632
    %v9634 = vrot.slane %v9341, %v9633
    %v9635 = vsel %vm8523, %v9634, %v9630
    %v9636 = vlaneseq
    %v9637 = vshrl.u32 %v9636, 7
    %v9638 = vsub.s32 %v8525, %v9637
    %v9639 = vrot.slane %v9342, %v9638
    %v9640 = vsel %vm8530, %v9639, %v9635
    %v9641 = vlaneseq
    %v9642 = vshrl.u32 %v9641, 7
    %v9643 = vsub.s32 %v8532, %v9642
    %v9644 = vrot.slane %v9343, %v9643
    %v9645 = vsel %vm8537, %v9644, %v9640
    %v9646 = vlaneseq
    %v9647 = vshrl.u32 %v9646, 7
    %v9648 = vsub.s32 %v8539, %v9647
    %v9649 = vrot.slane %v9344, %v9648
    %v9650 = vsel %vm8544, %v9649, %v9645
    %v9651 = vlaneseq
    %v9652 = vshrl.u32 %v9651, 7
    %v9653 = vsub.s32 %v8546, %v9652
    %v9654 = vrot.slane %v9345, %v9653
    %v9655 = vsel %vm8551, %v9654, %v9650
    %v9656 = vlaneseq
    %v9657 = vshrl.u32 %v9656, 7
    %v9658 = vsub.s32 %v8553, %v9657
    %v9659 = vrot.slane %v9346, %v9658
    %v9660 = vsel %vm8558, %v9659, %v9655
    %v9661 = vlaneseq
    %v9662 = vshrl.u32 %v9661, 7
    %v9663 = vsub.s32 %v8506, %v9662
    %v9664 = vrot.slane %v9347, %v9663
    %v9665 = vlaneseq
    %v9666 = vshrl.u32 %v9665, 7
    %v9667 = vsub.s32 %v8511, %v9666
    %v9668 = vrot.slane %v9348, %v9667
    %v9669 = vsel %vm8516, %v9668, %v9664
    %v9670 = vlaneseq
    %v9671 = vshrl.u32 %v9670, 7
    %v9672 = vsub.s32 %v8518, %v9671
    %v9673 = vrot.slane %v9349, %v9672
    %v9674 = vsel %vm8523, %v9673, %v9669
    %v9675 = vlaneseq
    %v9676 = vshrl.u32 %v9675, 7
    %v9677 = vsub.s32 %v8525, %v9676
    %v9678 = vrot.slane %v9350, %v9677
    %v9679 = vsel %vm8530, %v9678, %v9674
    %v9680 = vlaneseq
    %v9681 = vshrl.u32 %v9680, 7
    %v9682 = vsub.s32 %v8532, %v9681
    %v9683 = vrot.slane %v9351, %v9682
    %v9684 = vsel %vm8537, %v9683, %v9679
    %v9685 = vlaneseq
    %v9686 = vshrl.u32 %v9685, 7
    %v9687 = vsub.s32 %v8539, %v9686
    %v9688 = vrot.slane %v9352, %v9687
    %v9689 = vsel %vm8544, %v9688, %v9684
    %v9690 = vlaneseq
    %v9691 = vshrl.u32 %v9690, 7
    %v9692 = vsub.s32 %v8546, %v9691
    %v9693 = vrot.slane %v9353, %v9692
    %v9694 = vsel %vm8551, %v9693, %v9689
    %v9695 = vlaneseq
    %v9696 = vshrl.u32 %v9695, 7
    %v9697 = vsub.s32 %v8553, %v9696
    %v9698 = vrot.slane %v9354, %v9697
    %v9699 = vsel %vm8558, %v9698, %v9694
    %v9700 = vlaneseq
    %v9701 = vshrl.u32 %v9700, 7
    %v9702 = vsub.s32 %v8506, %v9701
    %v9703 = vrot.slane %v9355, %v9702
    %v9704 = vlaneseq
    %v9705 = vshrl.u32 %v9704, 7
    %v9706 = vsub.s32 %v8511, %v9705
    %v9707 = vrot.slane %v9356, %v9706
    %v9708 = vsel %vm8516, %v9707, %v9703
    %v9709 = vlaneseq
    %v9710 = vshrl.u32 %v9709, 7
    %v9711 = vsub.s32 %v8518, %v9710
    %v9712 = vrot.slane %v9357, %v9711
    %v9713 = vsel %vm8523, %v9712, %v9708
    %v9714 = vlaneseq
    %v9715 = vshrl.u32 %v9714, 7
    %v9716 = vsub.s32 %v8525, %v9715
    %v9717 = vrot.slane %v9358, %v9716
    %v9718 = vsel %vm8530, %v9717, %v9713
    %v9719 = vlaneseq
    %v9720 = vshrl.u32 %v9719, 7
    %v9721 = vsub.s32 %v8532, %v9720
    %v9722 = vrot.slane %v9359, %v9721
    %v9723 = vsel %vm8537, %v9722, %v9718
    %v9724 = vlaneseq
    %v9725 = vshrl.u32 %v9724, 7
    %v9726 = vsub.s32 %v8539, %v9725
    %v9727 = vrot.slane %v9360, %v9726
    %v9728 = vsel %vm8544, %v9727, %v9723
    %v9729 = vlaneseq
    %v9730 = vshrl.u32 %v9729, 7
    %v9731 = vsub.s32 %v8546, %v9730
    %v9732 = vrot.slane %v9361, %v9731
    %v9733 = vsel %vm8551, %v9732, %v9728
    %v9734 = vlaneseq
    %v9735 = vshrl.u32 %v9734, 7
    %v9736 = vsub.s32 %v8553, %v9735
    %v9737 = vrot.slane %v9362, %v9736
    %v9738 = vsel %vm8558, %v9737, %v9733
    %v9739 = vlaneseq
    %v9740 = vshrl.u32 %v9739, 7
    %v9741 = vsub.s32 %v8506, %v9740
    %v9742 = vrot.slane %v9363, %v9741
    %v9743 = vlaneseq
    %v9744 = vshrl.u32 %v9743, 7
    %v9745 = vsub.s32 %v8511, %v9744
    %v9746 = vrot.slane %v9364, %v9745
    %v9747 = vsel %vm8516, %v9746, %v9742
    %v9748 = vlaneseq
    %v9749 = vshrl.u32 %v9748, 7
    %v9750 = vsub.s32 %v8518, %v9749
    %v9751 = vrot.slane %v9365, %v9750
    %v9752 = vsel %vm8523, %v9751, %v9747
    %v9753 = vlaneseq
    %v9754 = vshrl.u32 %v9753, 7
    %v9755 = vsub.s32 %v8525, %v9754
    %v9756 = vrot.slane %v9366, %v9755
    %v9757 = vsel %vm8530, %v9756, %v9752
    %v9758 = vlaneseq
    %v9759 = vshrl.u32 %v9758, 7
    %v9760 = vsub.s32 %v8532, %v9759
    %v9761 = vrot.slane %v9367, %v9760
    %v9762 = vsel %vm8537, %v9761, %v9757
    %v9763 = vlaneseq
    %v9764 = vshrl.u32 %v9763, 7
    %v9765 = vsub.s32 %v8539, %v9764
    %v9766 = vrot.slane %v9368, %v9765
    %v9767 = vsel %vm8544, %v9766, %v9762
    %v9768 = vlaneseq
    %v9769 = vshrl.u32 %v9768, 7
    %v9770 = vsub.s32 %v8546, %v9769
    %v9771 = vrot.slane %v9369, %v9770
    %v9772 = vsel %vm8551, %v9771, %v9767
    %v9773 = vlaneseq
    %v9774 = vshrl.u32 %v9773, 7
    %v9775 = vsub.s32 %v8553, %v9774
    %v9776 = vrot.slane %v9370, %v9775
    %v9777 = vsel %vm8558, %v9776, %v9772
    %v9778 = vlaneseq
    %v9779 = vshrl.u32 %v9778, 7
    %v9780 = vsub.s32 %v8506, %v9779
    %v9781 = vrot.slane %v9371, %v9780
    %v9782 = vlaneseq
    %v9783 = vshrl.u32 %v9782, 7
    %v9784 = vsub.s32 %v8511, %v9783
    %v9785 = vrot.slane %v9372, %v9784
    %v9786 = vsel %vm8516, %v9785, %v9781
    %v9787 = vlaneseq
    %v9788 = vshrl.u32 %v9787, 7
    %v9789 = vsub.s32 %v8518, %v9788
    %v9790 = vrot.slane %v9373, %v9789
    %v9791 = vsel %vm8523, %v9790, %v9786
    %v9792 = vlaneseq
    %v9793 = vshrl.u32 %v9792, 7
    %v9794 = vsub.s32 %v8525, %v9793
    %v9795 = vrot.slane %v9374, %v9794
    %v9796 = vsel %vm8530, %v9795, %v9791
    %v9797 = vlaneseq
    %v9798 = vshrl.u32 %v9797, 7
    %v9799 = vsub.s32 %v8532, %v9798
    %v9800 = vrot.slane %v9375, %v9799
    %v9801 = vsel %vm8537, %v9800, %v9796
    %v9802 = vlaneseq
    %v9803 = vshrl.u32 %v9802, 7
    %v9804 = vsub.s32 %v8539, %v9803
    %v9805 = vrot.slane %v9376, %v9804
    %v9806 = vsel %vm8544, %v9805, %v9801
    %v9807 = vlaneseq
    %v9808 = vshrl.u32 %v9807, 7
    %v9809 = vsub.s32 %v8546, %v9808
    %v9810 = vrot.slane %v9377, %v9809
    %v9811 = vsel %vm8551, %v9810, %v9806
    %v9812 = vlaneseq
    %v9813 = vshrl.u32 %v9812, 7
    %v9814 = vsub.s32 %v8553, %v9813
    %v9815 = vrot.slane %v9378, %v9814
    %v9816 = vsel %vm8558, %v9815, %v9811
    %v9817 = vlaneseq
    %v9818 = vshrl.u32 %v9817, 7
    %v9819 = vsub.s32 %v8506, %v9818
    %v9820 = vrot.slane %v9379, %v9819
    %v9821 = vlaneseq
    %v9822 = vshrl.u32 %v9821, 7
    %v9823 = vsub.s32 %v8511, %v9822
    %v9824 = vrot.slane %v9380, %v9823
    %v9825 = vsel %vm8516, %v9824, %v9820
    %v9826 = vlaneseq
    %v9827 = vshrl.u32 %v9826, 7
    %v9828 = vsub.s32 %v8518, %v9827
    %v9829 = vrot.slane %v9381, %v9828
    %v9830 = vsel %vm8523, %v9829, %v9825
    %v9831 = vlaneseq
    %v9832 = vshrl.u32 %v9831, 7
    %v9833 = vsub.s32 %v8525, %v9832
    %v9834 = vrot.slane %v9382, %v9833
    %v9835 = vsel %vm8530, %v9834, %v9830
    %v9836 = vlaneseq
    %v9837 = vshrl.u32 %v9836, 7
    %v9838 = vsub.s32 %v8532, %v9837
    %v9839 = vrot.slane %v9383, %v9838
    %v9840 = vsel %vm8537, %v9839, %v9835
    %v9841 = vlaneseq
    %v9842 = vshrl.u32 %v9841, 7
    %v9843 = vsub.s32 %v8539, %v9842
    %v9844 = vrot.slane %v9384, %v9843
    %v9845 = vsel %vm8544, %v9844, %v9840
    %v9846 = vlaneseq
    %v9847 = vshrl.u32 %v9846, 7
    %v9848 = vsub.s32 %v8546, %v9847
    %v9849 = vrot.slane %v9385, %v9848
    %v9850 = vsel %vm8551, %v9849, %v9845
    %v9851 = vlaneseq
    %v9852 = vshrl.u32 %v9851, 7
    %v9853 = vsub.s32 %v8553, %v9852
    %v9854 = vrot.slane %v9386, %v9853
    %v9855 = vsel %vm8558, %v9854, %v9850
    %v9856 = vlaneseq
    %v9857 = vshrl.u32 %v9856, 7
    %v9858 = vsub.s32 %v8506, %v9857
    %v9859 = vrot.slane %v9387, %v9858
    %v9860 = vlaneseq
    %v9861 = vshrl.u32 %v9860, 7
    %v9862 = vsub.s32 %v8511, %v9861
    %v9863 = vrot.slane %v9388, %v9862
    %v9864 = vsel %vm8516, %v9863, %v9859
    %v9865 = vlaneseq
    %v9866 = vshrl.u32 %v9865, 7
    %v9867 = vsub.s32 %v8518, %v9866
    %v9868 = vrot.slane %v9389, %v9867
    %v9869 = vsel %vm8523, %v9868, %v9864
    %v9870 = vlaneseq
    %v9871 = vshrl.u32 %v9870, 7
    %v9872 = vsub.s32 %v8525, %v9871
    %v9873 = vrot.slane %v9390, %v9872
    %v9874 = vsel %vm8530, %v9873, %v9869
    %v9875 = vlaneseq
    %v9876 = vshrl.u32 %v9875, 7
    %v9877 = vsub.s32 %v8532, %v9876
    %v9878 = vrot.slane %v9391, %v9877
    %v9879 = vsel %vm8537, %v9878, %v9874
    %v9880 = vlaneseq
    %v9881 = vshrl.u32 %v9880, 7
    %v9882 = vsub.s32 %v8539, %v9881
    %v9883 = vrot.slane %v9392, %v9882
    %v9884 = vsel %vm8544, %v9883, %v9879
    %v9885 = vlaneseq
    %v9886 = vshrl.u32 %v9885, 7
    %v9887 = vsub.s32 %v8546, %v9886
    %v9888 = vrot.slane %v9393, %v9887
    %v9889 = vsel %vm8551, %v9888, %v9884
    %v9890 = vlaneseq
    %v9891 = vshrl.u32 %v9890, 7
    %v9892 = vsub.s32 %v8553, %v9891
    %v9893 = vrot.slane %v9394, %v9892
    %v9894 = vsel %vm8558, %v9893, %v9889
    %v9895 = vlaneseq
    %v9896 = vshrl.u32 %v9895, 7
    %v9897 = vsub.s32 %v8506, %v9896
    %v9898 = vrot.slane %v9395, %v9897
    %v9899 = vlaneseq
    %v9900 = vshrl.u32 %v9899, 7
    %v9901 = vsub.s32 %v8511, %v9900
    %v9902 = vrot.slane %v9396, %v9901
    %v9903 = vsel %vm8516, %v9902, %v9898
    %v9904 = vlaneseq
    %v9905 = vshrl.u32 %v9904, 7
    %v9906 = vsub.s32 %v8518, %v9905
    %v9907 = vrot.slane %v9397, %v9906
    %v9908 = vsel %vm8523, %v9907, %v9903
    %v9909 = vlaneseq
    %v9910 = vshrl.u32 %v9909, 7
    %v9911 = vsub.s32 %v8525, %v9910
    %v9912 = vrot.slane %v9398, %v9911
    %v9913 = vsel %vm8530, %v9912, %v9908
    %v9914 = vlaneseq
    %v9915 = vshrl.u32 %v9914, 7
    %v9916 = vsub.s32 %v8532, %v9915
    %v9917 = vrot.slane %v9399, %v9916
    %v9918 = vsel %vm8537, %v9917, %v9913
    %v9919 = vlaneseq
    %v9920 = vshrl.u32 %v9919, 7
    %v9921 = vsub.s32 %v8539, %v9920
    %v9922 = vrot.slane %v9400, %v9921
    %v9923 = vsel %vm8544, %v9922, %v9918
    %v9924 = vlaneseq
    %v9925 = vshrl.u32 %v9924, 7
    %v9926 = vsub.s32 %v8546, %v9925
    %v9927 = vrot.slane %v9401, %v9926
    %v9928 = vsel %vm8551, %v9927, %v9923
    %v9929 = vlaneseq
    %v9930 = vshrl.u32 %v9929, 7
    %v9931 = vsub.s32 %v8553, %v9930
    %v9932 = vrot.slane %v9402, %v9931
    %v9933 = vsel %vm8558, %v9932, %v9928
    %v9934 = vlaneseq
    %v9935 = vshrl.u32 %v9934, 7
    %v9936 = vsub.s32 %v8506, %v9935
    %v9937 = vrot.slane %v9403, %v9936
    %v9938 = vlaneseq
    %v9939 = vshrl.u32 %v9938, 7
    %v9940 = vsub.s32 %v8511, %v9939
    %v9941 = vrot.slane %v9404, %v9940
    %v9942 = vsel %vm8516, %v9941, %v9937
    %v9943 = vlaneseq
    %v9944 = vshrl.u32 %v9943, 7
    %v9945 = vsub.s32 %v8518, %v9944
    %v9946 = vrot.slane %v9405, %v9945
    %v9947 = vsel %vm8523, %v9946, %v9942
    %v9948 = vlaneseq
    %v9949 = vshrl.u32 %v9948, 7
    %v9950 = vsub.s32 %v8525, %v9949
    %v9951 = vrot.slane %v9406, %v9950
    %v9952 = vsel %vm8530, %v9951, %v9947
    %v9953 = vlaneseq
    %v9954 = vshrl.u32 %v9953, 7
    %v9955 = vsub.s32 %v8532, %v9954
    %v9956 = vrot.slane %v9407, %v9955
    %v9957 = vsel %vm8537, %v9956, %v9952
    %v9958 = vlaneseq
    %v9959 = vshrl.u32 %v9958, 7
    %v9960 = vsub.s32 %v8539, %v9959
    %v9961 = vrot.slane %v9408, %v9960
    %v9962 = vsel %vm8544, %v9961, %v9957
    %v9963 = vlaneseq
    %v9964 = vshrl.u32 %v9963, 7
    %v9965 = vsub.s32 %v8546, %v9964
    %v9966 = vrot.slane %v9409, %v9965
    %v9967 = vsel %vm8551, %v9966, %v9962
    %v9968 = vlaneseq
    %v9969 = vshrl.u32 %v9968, 7
    %v9970 = vsub.s32 %v8553, %v9969
    %v9971 = vrot.slane %v9410, %v9970
    %v9972 = vsel %vm8558, %v9971, %v9967
    %v9973 = vlaneseq
    %v9974 = vshrl.u32 %v9973, 7
    %v9975 = vsub.s32 %v8506, %v9974
    %v9976 = vrot.slane %v9411, %v9975
    %v9977 = vlaneseq
    %v9978 = vshrl.u32 %v9977, 7
    %v9979 = vsub.s32 %v8511, %v9978
    %v9980 = vrot.slane %v9412, %v9979
    %v9981 = vsel %vm8516, %v9980, %v9976
    %v9982 = vlaneseq
    %v9983 = vshrl.u32 %v9982, 7
    %v9984 = vsub.s32 %v8518, %v9983
    %v9985 = vrot.slane %v9413, %v9984
    %v9986 = vsel %vm8523, %v9985, %v9981
    %v9987 = vlaneseq
    %v9988 = vshrl.u32 %v9987, 7
    %v9989 = vsub.s32 %v8525, %v9988
    %v9990 = vrot.slane %v9414, %v9989
    %v9991 = vsel %vm8530, %v9990, %v9986
    %v9992 = vlaneseq
    %v9993 = vshrl.u32 %v9992, 7
    %v9994 = vsub.s32 %v8532, %v9993
    %v9995 = vrot.slane %v9415, %v9994
    %v9996 = vsel %vm8537, %v9995, %v9991
    %v9997 = vlaneseq
    %v9998 = vshrl.u32 %v9997, 7
    %v9999 = vsub.s32 %v8539, %v9998
    %v10000 = vrot.slane %v9416, %v9999
    %v10001 = vsel %vm8544, %v10000, %v9996
    %v10002 = vlaneseq
    %v10003 = vshrl.u32 %v10002, 7
    %v10004 = vsub.s32 %v8546, %v10003
    %v10005 = vrot.slane %v9417, %v10004
    %v10006 = vsel %vm8551, %v10005, %v10001
    %v10007 = vlaneseq
    %v10008 = vshrl.u32 %v10007, 7
    %v10009 = vsub.s32 %v8553, %v10008
    %v10010 = vrot.slane %v9418, %v10009
    %v10011 = vsel %vm8558, %v10010, %v10006
    %v10012 = vlaneseq
    %v10013 = vshrl.u32 %v10012, 7
    %v10014 = vsub.s32 %v8506, %v10013
    %v10015 = vrot.slane %v9419, %v10014
    %v10016 = vlaneseq
    %v10017 = vshrl.u32 %v10016, 7
    %v10018 = vsub.s32 %v8511, %v10017
    %v10019 = vrot.slane %v9420, %v10018
    %v10020 = vsel %vm8516, %v10019, %v10015
    %v10021 = vlaneseq
    %v10022 = vshrl.u32 %v10021, 7
    %v10023 = vsub.s32 %v8518, %v10022
    %v10024 = vrot.slane %v9421, %v10023
    %v10025 = vsel %vm8523, %v10024, %v10020
    %v10026 = vlaneseq
    %v10027 = vshrl.u32 %v10026, 7
    %v10028 = vsub.s32 %v8525, %v10027
    %v10029 = vrot.slane %v9422, %v10028
    %v10030 = vsel %vm8530, %v10029, %v10025
    %v10031 = vlaneseq
    %v10032 = vshrl.u32 %v10031, 7
    %v10033 = vsub.s32 %v8532, %v10032
    %v10034 = vrot.slane %v9423, %v10033
    %v10035 = vsel %vm8537, %v10034, %v10030
    %v10036 = vlaneseq
    %v10037 = vshrl.u32 %v10036, 7
    %v10038 = vsub.s32 %v8539, %v10037
    %v10039 = vrot.slane %v9424, %v10038
    %v10040 = vsel %vm8544, %v10039, %v10035
    %v10041 = vlaneseq
    %v10042 = vshrl.u32 %v10041, 7
    %v10043 = vsub.s32 %v8546, %v10042
    %v10044 = vrot.slane %v9425, %v10043
    %v10045 = vsel %vm8551, %v10044, %v10040
    %v10046 = vlaneseq
    %v10047 = vshrl.u32 %v10046, 7
    %v10048 = vsub.s32 %v8553, %v10047
    %v10049 = vrot.slane %v9426, %v10048
    %v10050 = vsel %vm8558, %v10049, %v10045
    %v10051 = vsel %vm9145, %v9504, %v9465
    %v10052 = vsel %vm9147, %v9543, %v10051
    %v10053 = vsel %vm9149, %v9582, %v10052
    %v10054 = vsel %vm9151, %v9621, %v10053
    %v10055 = vsel %vm9153, %v9660, %v10054
    %v10056 = vsel %vm9155, %v9699, %v10055
    %v10057 = vsel %vm9157, %v9738, %v10056
    %v10058 = vsel %vm9145, %v9816, %v9777
    %v10059 = vsel %vm9147, %v9855, %v10058
    %v10060 = vsel %vm9149, %v9894, %v10059
    %v10061 = vsel %vm9151, %v9933, %v10060
    %v10062 = vsel %vm9153, %v9972, %v10061
    %v10063 = vsel %vm9155, %v10011, %v10062
    %v10064 = vsel %vm9157, %v10050, %v10063
    %v10065 = vpack.c.b16 %v10064, %v10057
    %v10074 = vunpack.c.l.b16 %v7608
    %v10075 = vunpack.c.l.b16 %v7609
    %v10076 = vunpack.c.l.b16 %v7610
    %v10077 = vunpack.c.l.b16 %v7611
    %v10078 = vunpack.c.l.b16 %v7612
    %v10079 = vunpack.c.l.b16 %v7613
    %v10080 = vunpack.c.l.b16 %v7614
    %v10081 = vunpack.c.l.b16 %v7615
    %v10082 = vpack.c.b16 %v10075, %v10074
    %v10083 = vpack.c.b16 %v10077, %v10076
    %v10084 = vpack.c.b16 %v10079, %v10078
    %v10085 = vpack.c.b16 %v10081, %v10080
    %v10091 = vsel %vm5899, %v10065, 0
    %10093 = vmatprep.subr.bf16.mxu0 0
    %10094 = vmatpush1.bf16.msra.mxu0 %v10082
    %10095 = vmatprep.subr.bf16.mxu0 0
    %10096 = vmatpush1.bf16.msra.mxu0 %v10083
    %10097 = vmatprep.subr.bf16.mxu0 0
    %10098 = vmatpush1.bf16.msra.mxu0 %v10084
    %10099 = vmatprep.subr.bf16.mxu0 0
    %10100 = vmatpush1.bf16.msra.mxu0 %v10085
    %10101 = vmatprep.subr.bf16.mxu0 0
    %10102 = vmatpush1.bf16.msra.mxu0 0
    %10103 = vmatprep.subr.bf16.mxu0 0
    %10104 = vmatpush1.bf16.msra.mxu0 0
    %10105 = vmatprep.subr.bf16.mxu0 0
    %10106 = vmatpush1.bf16.msra.mxu0 0
    %10107 = vmatprep.subr.bf16.mxu0 0
    %10108 = vmatpush1.bf16.msra.mxu0 0
    %10109 = vmatprep.subr.bf16.mxu0 0
    %10110 = vmatpush1.bf16.msra.mxu0 0
    %10111 = vmatprep.subr.bf16.mxu0 0
    %10112 = vmatpush1.bf16.msra.mxu0 0
    %10113 = vmatprep.subr.bf16.mxu0 0
    %10114 = vmatpush1.bf16.msra.mxu0 0
    %10115 = vmatprep.subr.bf16.mxu0 0
    %10116 = vmatpush1.bf16.msra.mxu0 0
    %10117 = vmatprep.subr.bf16.mxu0 0
    %10118 = vmatpush1.bf16.msra.mxu0 0
    %10119 = vmatprep.subr.bf16.mxu0 0
    %10120 = vmatpush1.bf16.msra.mxu0 0
    %10121 = vmatprep.subr.bf16.mxu0 0
    %10122 = vmatpush1.bf16.msra.mxu0 0
    %10123 = vmatprep.subr.bf16.mxu0 0
    %10124 = vmatpush1.bf16.msra.mxu0 0
    %10125 = vmatprep.mubr.bf16.mxu0 0
    %10126 = vmatmul.mubr.bf16.gmra.mrb[0].mxu0 %v10091
    %v10127 = vpop.f32.mrb[0].mxu0
    %v10128 = vadd.f32 %v9229, %v10127
    %v10129 = vpop.f32.mrb[0].mxu0
    %v10130 = vpop.f32.mrb[0].mxu0
    %v10131 = vadd.f32 %v9232, %v10130
    %v10132 = vpop.f32.mrb[0].mxu0
    %10133 = vdwg.mxu0
    %v10136 = vcombine.high %v1341, %v1341
    %v10138 = vunpack.c.l.s4 1966171168
    %v10139 = vunpack.c.0.s8 %v10138
    %v10140 = vlaneseq
    %v10141 = vshrl.u32 %v10140, 7
    %v10142 = vsub.s32 %v10139, %v10141
    %v10143 = vrot.slane %v1341, %v10142
    %v10145 = vunpack.c.l.s4 1966171168
    %v10146 = vunpack.c.0.s8 %v10145
    %v10147 = vlaneseq
    %v10148 = vshrl.u32 %v10147, 7
    %v10149 = vsub.s32 %v10146, %v10148
    %v10150 = vrot.slane %v10136, %v10149
    %v10151 = vcombine.high %v10143, %v10143
    %v10152 = vcombine.high %v10150, %v10150
    %v10154 = vunpack.c.l.s4 1966171168
    %v10155 = vunpack.c.0.s8 %v10154
    %v10156 = vlaneseq
    %v10157 = vshrl.u32 %v10156, 7
    %v10158 = vsub.s32 %v10155, %v10157
    %v10159 = vrot.slane %v10143, %v10158
    %v10161 = vunpack.c.l.s4 1966171168
    %v10162 = vunpack.c.0.s8 %v10161
    %v10163 = vlaneseq
    %v10164 = vshrl.u32 %v10163, 7
    %v10165 = vsub.s32 %v10162, %v10164
    %v10166 = vrot.slane %v10150, %v10165
    %v10168 = vunpack.c.l.s4 1966171168
    %v10169 = vunpack.c.0.s8 %v10168
    %v10170 = vlaneseq
    %v10171 = vshrl.u32 %v10170, 7
    %v10172 = vsub.s32 %v10169, %v10171
    %v10173 = vrot.slane %v10151, %v10172
    %v10175 = vunpack.c.l.s4 1966171168
    %v10176 = vunpack.c.0.s8 %v10175
    %v10177 = vlaneseq
    %v10178 = vshrl.u32 %v10177, 7
    %v10179 = vsub.s32 %v10176, %v10178
    %v10180 = vrot.slane %v10152, %v10179
    %v10181 = vcombine.high %v10159, %v10159
    %v10182 = vcombine.high %v10166, %v10166
    %v10183 = vcombine.high %v10173, %v10173
    %v10184 = vcombine.high %v10180, %v10180
    %v10185 = vcombine.high %v1345, %v1345
    %v10187 = vunpack.c.l.s4 1966171168
    %v10188 = vunpack.c.0.s8 %v10187
    %v10189 = vlaneseq
    %v10190 = vshrl.u32 %v10189, 7
    %v10191 = vsub.s32 %v10188, %v10190
    %v10192 = vrot.slane %v1345, %v10191
    %v10194 = vunpack.c.l.s4 1966171168
    %v10195 = vunpack.c.0.s8 %v10194
    %v10196 = vlaneseq
    %v10197 = vshrl.u32 %v10196, 7
    %v10198 = vsub.s32 %v10195, %v10197
    %v10199 = vrot.slane %v10185, %v10198
    %v10200 = vcombine.high %v10192, %v10192
    %v10201 = vcombine.high %v10199, %v10199
    %v10203 = vunpack.c.l.s4 1966171168
    %v10204 = vunpack.c.0.s8 %v10203
    %v10205 = vlaneseq
    %v10206 = vshrl.u32 %v10205, 7
    %v10207 = vsub.s32 %v10204, %v10206
    %v10208 = vrot.slane %v10192, %v10207
    %v10210 = vunpack.c.l.s4 1966171168
    %v10211 = vunpack.c.0.s8 %v10210
    %v10212 = vlaneseq
    %v10213 = vshrl.u32 %v10212, 7
    %v10214 = vsub.s32 %v10211, %v10213
    %v10215 = vrot.slane %v10199, %v10214
    %v10217 = vunpack.c.l.s4 1966171168
    %v10218 = vunpack.c.0.s8 %v10217
    %v10219 = vlaneseq
    %v10220 = vshrl.u32 %v10219, 7
    %v10221 = vsub.s32 %v10218, %v10220
    %v10222 = vrot.slane %v10200, %v10221
    %v10224 = vunpack.c.l.s4 1966171168
    %v10225 = vunpack.c.0.s8 %v10224
    %v10226 = vlaneseq
    %v10227 = vshrl.u32 %v10226, 7
    %v10228 = vsub.s32 %v10225, %v10227
    %v10229 = vrot.slane %v10201, %v10228
    %v10230 = vcombine.high %v10208, %v10208
    %v10231 = vcombine.high %v10215, %v10215
    %v10232 = vcombine.high %v10222, %v10222
    %v10233 = vcombine.high %v10229, %v10229
    %v10234 = vlaneseq
    %v10235 = vshrl.u32 %v10234, 7
    %v10236 = vsub.s32 0, %v10235
    %v10237 = vrot.slane %v10159, %v10236
    %v10238 = vlaneseq
    %v10239 = vshrl.u32 %v10238, 7
    %v10240 = vsub.s32 0, %v10239
    %v10241 = vrot.slane %v10173, %v10240
    %v10242 = vlaneseq
    %v10243 = vshrl.u32 %v10242, 7
    %v10244 = vsub.s32 0, %v10243
    %v10245 = vrot.slane %v10181, %v10244
    %v10246 = vlaneseq
    %v10247 = vshrl.u32 %v10246, 7
    %v10248 = vsub.s32 0, %v10247
    %v10249 = vrot.slane %v10183, %v10248
    %v10250 = vlaneseq
    %v10251 = vshrl.u32 %v10250, 7
    %v10252 = vsub.s32 0, %v10251
    %v10253 = vrot.slane %v10166, %v10252
    %v10254 = vlaneseq
    %v10255 = vshrl.u32 %v10254, 7
    %v10256 = vsub.s32 0, %v10255
    %v10257 = vrot.slane %v10180, %v10256
    %v10258 = vlaneseq
    %v10259 = vshrl.u32 %v10258, 7
    %v10260 = vsub.s32 0, %v10259
    %v10261 = vrot.slane %v10182, %v10260
    %v10262 = vlaneseq
    %v10263 = vshrl.u32 %v10262, 7
    %v10264 = vsub.s32 0, %v10263
    %v10265 = vrot.slane %v10184, %v10264
    %v10266 = vlaneseq
    %v10267 = vshrl.u32 %v10266, 7
    %v10268 = vsub.s32 0, %v10267
    %v10269 = vrot.slane %v10208, %v10268
    %v10270 = vlaneseq
    %v10271 = vshrl.u32 %v10270, 7
    %v10272 = vsub.s32 0, %v10271
    %v10273 = vrot.slane %v10222, %v10272
    %v10274 = vlaneseq
    %v10275 = vshrl.u32 %v10274, 7
    %v10276 = vsub.s32 0, %v10275
    %v10277 = vrot.slane %v10230, %v10276
    %v10278 = vlaneseq
    %v10279 = vshrl.u32 %v10278, 7
    %v10280 = vsub.s32 0, %v10279
    %v10281 = vrot.slane %v10232, %v10280
    %v10282 = vlaneseq
    %v10283 = vshrl.u32 %v10282, 7
    %v10284 = vsub.s32 0, %v10283
    %v10285 = vrot.slane %v10215, %v10284
    %v10286 = vlaneseq
    %v10287 = vshrl.u32 %v10286, 7
    %v10288 = vsub.s32 0, %v10287
    %v10289 = vrot.slane %v10229, %v10288
    %v10290 = vlaneseq
    %v10291 = vshrl.u32 %v10290, 7
    %v10292 = vsub.s32 0, %v10291
    %v10293 = vrot.slane %v10231, %v10292
    %v10294 = vlaneseq
    %v10295 = vshrl.u32 %v10294, 7
    %v10296 = vsub.s32 0, %v10295
    %v10297 = vrot.slane %v10233, %v10296
    %v10314 = vmul.f32 %v6788, %v10237
    %v10315 = vmul.f32 %v6789, %v10237
    %v10316 = vmul.f32 %v6790, %v10237
    %v10317 = vmul.f32 %v6791, %v10237
    %v10318 = vmul.f32 %v6792, %v10237
    %v10319 = vmul.f32 %v6793, %v10237
    %v10320 = vmul.f32 %v6794, %v10237
    %v10321 = vmul.f32 %v6795, %v10237
    %v10322 = vmul.f32 %v6796, %v10241
    %v10323 = vmul.f32 %v6797, %v10241
    %v10324 = vmul.f32 %v6798, %v10241
    %v10325 = vmul.f32 %v6799, %v10241
    %v10326 = vmul.f32 %v6800, %v10241
    %v10327 = vmul.f32 %v6801, %v10241
    %v10328 = vmul.f32 %v6802, %v10241
    %v10329 = vmul.f32 %v6803, %v10241
    %v10330 = vmul.f32 %v6804, %v10245
    %v10331 = vmul.f32 %v6805, %v10245
    %v10332 = vmul.f32 %v6806, %v10245
    %v10333 = vmul.f32 %v6807, %v10245
    %v10334 = vmul.f32 %v6808, %v10245
    %v10335 = vmul.f32 %v6809, %v10245
    %v10336 = vmul.f32 %v6810, %v10245
    %v10337 = vmul.f32 %v6811, %v10245
    %v10338 = vmul.f32 %v6812, %v10249
    %v10339 = vmul.f32 %v6813, %v10249
    %v10340 = vmul.f32 %v6814, %v10249
    %v10341 = vmul.f32 %v6815, %v10249
    %v10342 = vmul.f32 %v6816, %v10249
    %v10343 = vmul.f32 %v6817, %v10249
    %v10344 = vmul.f32 %v6818, %v10249
    %v10345 = vmul.f32 %v6819, %v10249
    %v10346 = vmul.f32 %v6820, %v10253
    %v10347 = vmul.f32 %v6821, %v10253
    %v10348 = vmul.f32 %v6822, %v10253
    %v10349 = vmul.f32 %v6823, %v10253
    %v10350 = vmul.f32 %v6824, %v10253
    %v10351 = vmul.f32 %v6825, %v10253
    %v10352 = vmul.f32 %v6826, %v10253
    %v10353 = vmul.f32 %v6827, %v10253
    %v10354 = vmul.f32 %v6828, %v10257
    %v10355 = vmul.f32 %v6829, %v10257
    %v10356 = vmul.f32 %v6830, %v10257
    %v10357 = vmul.f32 %v6831, %v10257
    %v10358 = vmul.f32 %v6832, %v10257
    %v10359 = vmul.f32 %v6833, %v10257
    %v10360 = vmul.f32 %v6834, %v10257
    %v10361 = vmul.f32 %v6835, %v10257
    %v10362 = vmul.f32 %v6836, %v10261
    %v10363 = vmul.f32 %v6837, %v10261
    %v10364 = vmul.f32 %v6838, %v10261
    %v10365 = vmul.f32 %v6839, %v10261
    %v10366 = vmul.f32 %v6840, %v10261
    %v10367 = vmul.f32 %v6841, %v10261
    %v10368 = vmul.f32 %v6842, %v10261
    %v10369 = vmul.f32 %v6843, %v10261
    %v10370 = vmul.f32 %v6844, %v10265
    %v10371 = vmul.f32 %v6845, %v10265
    %v10372 = vmul.f32 %v6846, %v10265
    %v10373 = vmul.f32 %v6847, %v10265
    %v10374 = vmul.f32 %v6848, %v10265
    %v10375 = vmul.f32 %v6849, %v10265
    %v10376 = vmul.f32 %v6850, %v10265
    %v10377 = vmul.f32 %v6851, %v10265
    %v10378 = vmul.f32 %v6852, %v10269
    %v10379 = vmul.f32 %v6853, %v10269
    %v10380 = vmul.f32 %v6854, %v10269
    %v10381 = vmul.f32 %v6855, %v10269
    %v10382 = vmul.f32 %v6856, %v10269
    %v10383 = vmul.f32 %v6857, %v10269
    %v10384 = vmul.f32 %v6858, %v10269
    %v10385 = vmul.f32 %v6859, %v10269
    %v10386 = vmul.f32 %v6860, %v10273
    %v10387 = vmul.f32 %v6861, %v10273
    %v10388 = vmul.f32 %v6862, %v10273
    %v10389 = vmul.f32 %v6863, %v10273
    %v10390 = vmul.f32 %v6864, %v10273
    %v10391 = vmul.f32 %v6865, %v10273
    %v10392 = vmul.f32 %v6866, %v10273
    %v10393 = vmul.f32 %v6867, %v10273
    %v10394 = vmul.f32 %v6868, %v10277
    %v10395 = vmul.f32 %v6869, %v10277
    %v10396 = vmul.f32 %v6870, %v10277
    %v10397 = vmul.f32 %v6871, %v10277
    %v10398 = vmul.f32 %v6872, %v10277
    %v10399 = vmul.f32 %v6873, %v10277
    %v10400 = vmul.f32 %v6874, %v10277
    %v10401 = vmul.f32 %v6875, %v10277
    %v10402 = vmul.f32 %v6876, %v10281
    %v10403 = vmul.f32 %v6877, %v10281
    %v10404 = vmul.f32 %v6878, %v10281
    %v10405 = vmul.f32 %v6879, %v10281
    %v10406 = vmul.f32 %v6880, %v10281
    %v10407 = vmul.f32 %v6881, %v10281
    %v10408 = vmul.f32 %v6882, %v10281
    %v10409 = vmul.f32 %v6883, %v10281
    %v10410 = vmul.f32 %v6884, %v10285
    %v10411 = vmul.f32 %v6885, %v10285
    %v10412 = vmul.f32 %v6886, %v10285
    %v10413 = vmul.f32 %v6887, %v10285
    %v10414 = vmul.f32 %v6888, %v10285
    %v10415 = vmul.f32 %v6889, %v10285
    %v10416 = vmul.f32 %v6890, %v10285
    %v10417 = vmul.f32 %v6891, %v10285
    %v10418 = vmul.f32 %v6892, %v10289
    %v10419 = vmul.f32 %v6893, %v10289
    %v10420 = vmul.f32 %v6894, %v10289
    %v10421 = vmul.f32 %v6895, %v10289
    %v10422 = vmul.f32 %v6896, %v10289
    %v10423 = vmul.f32 %v6897, %v10289
    %v10424 = vmul.f32 %v6898, %v10289
    %v10425 = vmul.f32 %v6899, %v10289
    %v10426 = vmul.f32 %v6900, %v10293
    %v10427 = vmul.f32 %v6901, %v10293
    %v10428 = vmul.f32 %v6902, %v10293
    %v10429 = vmul.f32 %v6903, %v10293
    %v10430 = vmul.f32 %v6904, %v10293
    %v10431 = vmul.f32 %v6905, %v10293
    %v10432 = vmul.f32 %v6906, %v10293
    %v10433 = vmul.f32 %v6907, %v10293
    %v10434 = vmul.f32 %v6908, %v10297
    %v10435 = vmul.f32 %v6909, %v10297
    %v10436 = vmul.f32 %v6910, %v10297
    %v10437 = vmul.f32 %v6911, %v10297
    %v10438 = vmul.f32 %v6912, %v10297
    %v10439 = vmul.f32 %v6913, %v10297
    %v10440 = vmul.f32 %v6914, %v10297
    %v10441 = vmul.f32 %v6915, %v10297
    %v10442 = vsel %vm5899, %v10314, 0.0
    %10443 = vadd.xlane.f32.xlu0 %v10442
    %v10444 = vpop.xlane.xlu0 %10443
    %v10445 = vsel %vm5899, %v10315, 0.0
    %10446 = vadd.xlane.f32.xlu0 %v10445
    %v10447 = vpop.xlane.xlu0 %10446
    %v10448 = vsel %vm5899, %v10316, 0.0
    %10449 = vadd.xlane.f32.xlu0 %v10448
    %v10450 = vpop.xlane.xlu0 %10449
    %v10451 = vsel %vm5899, %v10317, 0.0
    %10452 = vadd.xlane.f32.xlu0 %v10451
    %v10453 = vpop.xlane.xlu0 %10452
    %v10454 = vsel %vm5899, %v10318, 0.0
    %10455 = vadd.xlane.f32.xlu0 %v10454
    %v10456 = vpop.xlane.xlu0 %10455
    %v10457 = vsel %vm5899, %v10319, 0.0
    %10458 = vadd.xlane.f32.xlu0 %v10457
    %v10459 = vpop.xlane.xlu0 %10458
    %v10460 = vsel %vm5899, %v10320, 0.0
    %10461 = vadd.xlane.f32.xlu0 %v10460
    %v10462 = vpop.xlane.xlu0 %10461
    %v10463 = vsel %vm5899, %v10321, 0.0
    %10464 = vadd.xlane.f32.xlu0 %v10463
    %v10465 = vpop.xlane.xlu0 %10464
    %v10466 = vsel %vm5899, %v10322, 0.0
    %10467 = vadd.xlane.f32.xlu0 %v10466
    %v10468 = vpop.xlane.xlu0 %10467
    %v10469 = vsel %vm5899, %v10323, 0.0
    %10470 = vadd.xlane.f32.xlu0 %v10469
    %v10471 = vpop.xlane.xlu0 %10470
    %v10472 = vsel %vm5899, %v10324, 0.0
    %10473 = vadd.xlane.f32.xlu0 %v10472
    %v10474 = vpop.xlane.xlu0 %10473
    %v10475 = vsel %vm5899, %v10325, 0.0
    %10476 = vadd.xlane.f32.xlu0 %v10475
    %v10477 = vpop.xlane.xlu0 %10476
    %v10478 = vsel %vm5899, %v10326, 0.0
    %10479 = vadd.xlane.f32.xlu0 %v10478
    %v10480 = vpop.xlane.xlu0 %10479
    %v10481 = vsel %vm5899, %v10327, 0.0
    %10482 = vadd.xlane.f32.xlu0 %v10481
    %v10483 = vpop.xlane.xlu0 %10482
    %v10484 = vsel %vm5899, %v10328, 0.0
    %10485 = vadd.xlane.f32.xlu0 %v10484
    %v10486 = vpop.xlane.xlu0 %10485
    %v10487 = vsel %vm5899, %v10329, 0.0
    %10488 = vadd.xlane.f32.xlu0 %v10487
    %v10489 = vpop.xlane.xlu0 %10488
    %v10490 = vsel %vm5899, %v10330, 0.0
    %10491 = vadd.xlane.f32.xlu0 %v10490
    %v10492 = vpop.xlane.xlu0 %10491
    %v10493 = vsel %vm5899, %v10331, 0.0
    %10494 = vadd.xlane.f32.xlu0 %v10493
    %v10495 = vpop.xlane.xlu0 %10494
    %v10496 = vsel %vm5899, %v10332, 0.0
    %10497 = vadd.xlane.f32.xlu0 %v10496
    %v10498 = vpop.xlane.xlu0 %10497
    %v10499 = vsel %vm5899, %v10333, 0.0
    %10500 = vadd.xlane.f32.xlu0 %v10499
    %v10501 = vpop.xlane.xlu0 %10500
    %v10502 = vsel %vm5899, %v10334, 0.0
    %10503 = vadd.xlane.f32.xlu0 %v10502
    %v10504 = vpop.xlane.xlu0 %10503
    %v10505 = vsel %vm5899, %v10335, 0.0
    %10506 = vadd.xlane.f32.xlu0 %v10505
    %v10507 = vpop.xlane.xlu0 %10506
    %v10508 = vsel %vm5899, %v10336, 0.0
    %10509 = vadd.xlane.f32.xlu0 %v10508
    %v10510 = vpop.xlane.xlu0 %10509
    %v10511 = vsel %vm5899, %v10337, 0.0
    %10512 = vadd.xlane.f32.xlu0 %v10511
    %v10513 = vpop.xlane.xlu0 %10512
    %v10514 = vsel %vm5899, %v10338, 0.0
    %10515 = vadd.xlane.f32.xlu0 %v10514
    %v10516 = vpop.xlane.xlu0 %10515
    %v10517 = vsel %vm5899, %v10339, 0.0
    %10518 = vadd.xlane.f32.xlu0 %v10517
    %v10519 = vpop.xlane.xlu0 %10518
    %v10520 = vsel %vm5899, %v10340, 0.0
    %10521 = vadd.xlane.f32.xlu0 %v10520
    %v10522 = vpop.xlane.xlu0 %10521
    %v10523 = vsel %vm5899, %v10341, 0.0
    %10524 = vadd.xlane.f32.xlu0 %v10523
    %v10525 = vpop.xlane.xlu0 %10524
    %v10526 = vsel %vm5899, %v10342, 0.0
    %10527 = vadd.xlane.f32.xlu0 %v10526
    %v10528 = vpop.xlane.xlu0 %10527
    %v10529 = vsel %vm5899, %v10343, 0.0
    %10530 = vadd.xlane.f32.xlu0 %v10529
    %v10531 = vpop.xlane.xlu0 %10530
    %v10532 = vsel %vm5899, %v10344, 0.0
    %10533 = vadd.xlane.f32.xlu0 %v10532
    %v10534 = vpop.xlane.xlu0 %10533
    %v10535 = vsel %vm5899, %v10345, 0.0
    %10536 = vadd.xlane.f32.xlu0 %v10535
    %v10537 = vpop.xlane.xlu0 %10536
    %v10538 = vsel %vm5899, %v10346, 0.0
    %10539 = vadd.xlane.f32.xlu0 %v10538
    %v10540 = vpop.xlane.xlu0 %10539
    %v10541 = vsel %vm5899, %v10347, 0.0
    %10542 = vadd.xlane.f32.xlu0 %v10541
    %v10543 = vpop.xlane.xlu0 %10542
    %v10544 = vsel %vm5899, %v10348, 0.0
    %10545 = vadd.xlane.f32.xlu0 %v10544
    %v10546 = vpop.xlane.xlu0 %10545
    %v10547 = vsel %vm5899, %v10349, 0.0
    %10548 = vadd.xlane.f32.xlu0 %v10547
    %v10549 = vpop.xlane.xlu0 %10548
    %v10550 = vsel %vm5899, %v10350, 0.0
    %10551 = vadd.xlane.f32.xlu0 %v10550
    %v10552 = vpop.xlane.xlu0 %10551
    %v10553 = vsel %vm5899, %v10351, 0.0
    %10554 = vadd.xlane.f32.xlu0 %v10553
    %v10555 = vpop.xlane.xlu0 %10554
    %v10556 = vsel %vm5899, %v10352, 0.0
    %10557 = vadd.xlane.f32.xlu0 %v10556
    %v10558 = vpop.xlane.xlu0 %10557
    %v10559 = vsel %vm5899, %v10353, 0.0
    %10560 = vadd.xlane.f32.xlu0 %v10559
    %v10561 = vpop.xlane.xlu0 %10560
    %v10562 = vsel %vm5899, %v10354, 0.0
    %10563 = vadd.xlane.f32.xlu0 %v10562
    %v10564 = vpop.xlane.xlu0 %10563
    %v10565 = vsel %vm5899, %v10355, 0.0
    %10566 = vadd.xlane.f32.xlu0 %v10565
    %v10567 = vpop.xlane.xlu0 %10566
    %v10568 = vsel %vm5899, %v10356, 0.0
    %10569 = vadd.xlane.f32.xlu0 %v10568
    %v10570 = vpop.xlane.xlu0 %10569
    %v10571 = vsel %vm5899, %v10357, 0.0
    %10572 = vadd.xlane.f32.xlu0 %v10571
    %v10573 = vpop.xlane.xlu0 %10572
    %v10574 = vsel %vm5899, %v10358, 0.0
    %10575 = vadd.xlane.f32.xlu0 %v10574
    %v10576 = vpop.xlane.xlu0 %10575
    %v10577 = vsel %vm5899, %v10359, 0.0
    %10578 = vadd.xlane.f32.xlu0 %v10577
    %v10579 = vpop.xlane.xlu0 %10578
    %v10580 = vsel %vm5899, %v10360, 0.0
    %10581 = vadd.xlane.f32.xlu0 %v10580
    %v10582 = vpop.xlane.xlu0 %10581
    %v10583 = vsel %vm5899, %v10361, 0.0
    %10584 = vadd.xlane.f32.xlu0 %v10583
    %v10585 = vpop.xlane.xlu0 %10584
    %v10586 = vsel %vm5899, %v10362, 0.0
    %10587 = vadd.xlane.f32.xlu0 %v10586
    %v10588 = vpop.xlane.xlu0 %10587
    %v10589 = vsel %vm5899, %v10363, 0.0
    %10590 = vadd.xlane.f32.xlu0 %v10589
    %v10591 = vpop.xlane.xlu0 %10590
    %v10592 = vsel %vm5899, %v10364, 0.0
    %10593 = vadd.xlane.f32.xlu0 %v10592
    %v10594 = vpop.xlane.xlu0 %10593
    %v10595 = vsel %vm5899, %v10365, 0.0
    %10596 = vadd.xlane.f32.xlu0 %v10595
    %v10597 = vpop.xlane.xlu0 %10596
    %v10598 = vsel %vm5899, %v10366, 0.0
    %10599 = vadd.xlane.f32.xlu0 %v10598
    %v10600 = vpop.xlane.xlu0 %10599
    %v10601 = vsel %vm5899, %v10367, 0.0
    %10602 = vadd.xlane.f32.xlu0 %v10601
    %v10603 = vpop.xlane.xlu0 %10602
    %v10604 = vsel %vm5899, %v10368, 0.0
    %10605 = vadd.xlane.f32.xlu0 %v10604
    %v10606 = vpop.xlane.xlu0 %10605
    %v10607 = vsel %vm5899, %v10369, 0.0
    %10608 = vadd.xlane.f32.xlu0 %v10607
    %v10609 = vpop.xlane.xlu0 %10608
    %v10610 = vsel %vm5899, %v10370, 0.0
    %10611 = vadd.xlane.f32.xlu0 %v10610
    %v10612 = vpop.xlane.xlu0 %10611
    %v10613 = vsel %vm5899, %v10371, 0.0
    %10614 = vadd.xlane.f32.xlu0 %v10613
    %v10615 = vpop.xlane.xlu0 %10614
    %v10616 = vsel %vm5899, %v10372, 0.0
    %10617 = vadd.xlane.f32.xlu0 %v10616
    %v10618 = vpop.xlane.xlu0 %10617
    %v10619 = vsel %vm5899, %v10373, 0.0
    %10620 = vadd.xlane.f32.xlu0 %v10619
    %v10621 = vpop.xlane.xlu0 %10620
    %v10622 = vsel %vm5899, %v10374, 0.0
    %10623 = vadd.xlane.f32.xlu0 %v10622
    %v10624 = vpop.xlane.xlu0 %10623
    %v10625 = vsel %vm5899, %v10375, 0.0
    %10626 = vadd.xlane.f32.xlu0 %v10625
    %v10627 = vpop.xlane.xlu0 %10626
    %v10628 = vsel %vm5899, %v10376, 0.0
    %10629 = vadd.xlane.f32.xlu0 %v10628
    %v10630 = vpop.xlane.xlu0 %10629
    %v10631 = vsel %vm5899, %v10377, 0.0
    %10632 = vadd.xlane.f32.xlu0 %v10631
    %v10633 = vpop.xlane.xlu0 %10632
    %v10634 = vsel %vm5899, %v10378, 0.0
    %10635 = vadd.xlane.f32.xlu0 %v10634
    %v10636 = vpop.xlane.xlu0 %10635
    %v10637 = vsel %vm5899, %v10379, 0.0
    %10638 = vadd.xlane.f32.xlu0 %v10637
    %v10639 = vpop.xlane.xlu0 %10638
    %v10640 = vsel %vm5899, %v10380, 0.0
    %10641 = vadd.xlane.f32.xlu0 %v10640
    %v10642 = vpop.xlane.xlu0 %10641
    %v10643 = vsel %vm5899, %v10381, 0.0
    %10644 = vadd.xlane.f32.xlu0 %v10643
    %v10645 = vpop.xlane.xlu0 %10644
    %v10646 = vsel %vm5899, %v10382, 0.0
    %10647 = vadd.xlane.f32.xlu0 %v10646
    %v10648 = vpop.xlane.xlu0 %10647
    %v10649 = vsel %vm5899, %v10383, 0.0
    %10650 = vadd.xlane.f32.xlu0 %v10649
    %v10651 = vpop.xlane.xlu0 %10650
    %v10652 = vsel %vm5899, %v10384, 0.0
    %10653 = vadd.xlane.f32.xlu0 %v10652
    %v10654 = vpop.xlane.xlu0 %10653
    %v10655 = vsel %vm5899, %v10385, 0.0
    %10656 = vadd.xlane.f32.xlu0 %v10655
    %v10657 = vpop.xlane.xlu0 %10656
    %v10658 = vsel %vm5899, %v10386, 0.0
    %10659 = vadd.xlane.f32.xlu0 %v10658
    %v10660 = vpop.xlane.xlu0 %10659
    %v10661 = vsel %vm5899, %v10387, 0.0
    %10662 = vadd.xlane.f32.xlu0 %v10661
    %v10663 = vpop.xlane.xlu0 %10662
    %v10664 = vsel %vm5899, %v10388, 0.0
    %10665 = vadd.xlane.f32.xlu0 %v10664
    %v10666 = vpop.xlane.xlu0 %10665
    %v10667 = vsel %vm5899, %v10389, 0.0
    %10668 = vadd.xlane.f32.xlu0 %v10667
    %v10669 = vpop.xlane.xlu0 %10668
    %v10670 = vsel %vm5899, %v10390, 0.0
    %10671 = vadd.xlane.f32.xlu0 %v10670
    %v10672 = vpop.xlane.xlu0 %10671
    %v10673 = vsel %vm5899, %v10391, 0.0
    %10674 = vadd.xlane.f32.xlu0 %v10673
    %v10675 = vpop.xlane.xlu0 %10674
    %v10676 = vsel %vm5899, %v10392, 0.0
    %10677 = vadd.xlane.f32.xlu0 %v10676
    %v10678 = vpop.xlane.xlu0 %10677
    %v10679 = vsel %vm5899, %v10393, 0.0
    %10680 = vadd.xlane.f32.xlu0 %v10679
    %v10681 = vpop.xlane.xlu0 %10680
    %v10682 = vsel %vm5899, %v10394, 0.0
    %10683 = vadd.xlane.f32.xlu0 %v10682
    %v10684 = vpop.xlane.xlu0 %10683
    %v10685 = vsel %vm5899, %v10395, 0.0
    %10686 = vadd.xlane.f32.xlu0 %v10685
    %v10687 = vpop.xlane.xlu0 %10686
    %v10688 = vsel %vm5899, %v10396, 0.0
    %10689 = vadd.xlane.f32.xlu0 %v10688
    %v10690 = vpop.xlane.xlu0 %10689
    %v10691 = vsel %vm5899, %v10397, 0.0
    %10692 = vadd.xlane.f32.xlu0 %v10691
    %v10693 = vpop.xlane.xlu0 %10692
    %v10694 = vsel %vm5899, %v10398, 0.0
    %10695 = vadd.xlane.f32.xlu0 %v10694
    %v10696 = vpop.xlane.xlu0 %10695
    %v10697 = vsel %vm5899, %v10399, 0.0
    %10698 = vadd.xlane.f32.xlu0 %v10697
    %v10699 = vpop.xlane.xlu0 %10698
    %v10700 = vsel %vm5899, %v10400, 0.0
    %10701 = vadd.xlane.f32.xlu0 %v10700
    %v10702 = vpop.xlane.xlu0 %10701
    %v10703 = vsel %vm5899, %v10401, 0.0
    %10704 = vadd.xlane.f32.xlu0 %v10703
    %v10705 = vpop.xlane.xlu0 %10704
    %v10706 = vsel %vm5899, %v10402, 0.0
    %10707 = vadd.xlane.f32.xlu0 %v10706
    %v10708 = vpop.xlane.xlu0 %10707
    %v10709 = vsel %vm5899, %v10403, 0.0
    %10710 = vadd.xlane.f32.xlu0 %v10709
    %v10711 = vpop.xlane.xlu0 %10710
    %v10712 = vsel %vm5899, %v10404, 0.0
    %10713 = vadd.xlane.f32.xlu0 %v10712
    %v10714 = vpop.xlane.xlu0 %10713
    %v10715 = vsel %vm5899, %v10405, 0.0
    %10716 = vadd.xlane.f32.xlu0 %v10715
    %v10717 = vpop.xlane.xlu0 %10716
    %v10718 = vsel %vm5899, %v10406, 0.0
    %10719 = vadd.xlane.f32.xlu0 %v10718
    %v10720 = vpop.xlane.xlu0 %10719
    %v10721 = vsel %vm5899, %v10407, 0.0
    %10722 = vadd.xlane.f32.xlu0 %v10721
    %v10723 = vpop.xlane.xlu0 %10722
    %v10724 = vsel %vm5899, %v10408, 0.0
    %10725 = vadd.xlane.f32.xlu0 %v10724
    %v10726 = vpop.xlane.xlu0 %10725
    %v10727 = vsel %vm5899, %v10409, 0.0
    %10728 = vadd.xlane.f32.xlu0 %v10727
    %v10729 = vpop.xlane.xlu0 %10728
    %v10730 = vsel %vm5899, %v10410, 0.0
    %10731 = vadd.xlane.f32.xlu0 %v10730
    %v10732 = vpop.xlane.xlu0 %10731
    %v10733 = vsel %vm5899, %v10411, 0.0
    %10734 = vadd.xlane.f32.xlu0 %v10733
    %v10735 = vpop.xlane.xlu0 %10734
    %v10736 = vsel %vm5899, %v10412, 0.0
    %10737 = vadd.xlane.f32.xlu0 %v10736
    %v10738 = vpop.xlane.xlu0 %10737
    %v10739 = vsel %vm5899, %v10413, 0.0
    %10740 = vadd.xlane.f32.xlu0 %v10739
    %v10741 = vpop.xlane.xlu0 %10740
    %v10742 = vsel %vm5899, %v10414, 0.0
    %10743 = vadd.xlane.f32.xlu0 %v10742
    %v10744 = vpop.xlane.xlu0 %10743
    %v10745 = vsel %vm5899, %v10415, 0.0
    %10746 = vadd.xlane.f32.xlu0 %v10745
    %v10747 = vpop.xlane.xlu0 %10746
    %v10748 = vsel %vm5899, %v10416, 0.0
    %10749 = vadd.xlane.f32.xlu0 %v10748
    %v10750 = vpop.xlane.xlu0 %10749
    %v10751 = vsel %vm5899, %v10417, 0.0
    %10752 = vadd.xlane.f32.xlu0 %v10751
    %v10753 = vpop.xlane.xlu0 %10752
    %v10754 = vsel %vm5899, %v10418, 0.0
    %10755 = vadd.xlane.f32.xlu0 %v10754
    %v10756 = vpop.xlane.xlu0 %10755
    %v10757 = vsel %vm5899, %v10419, 0.0
    %10758 = vadd.xlane.f32.xlu0 %v10757
    %v10759 = vpop.xlane.xlu0 %10758
    %v10760 = vsel %vm5899, %v10420, 0.0
    %10761 = vadd.xlane.f32.xlu0 %v10760
    %v10762 = vpop.xlane.xlu0 %10761
    %v10763 = vsel %vm5899, %v10421, 0.0
    %10764 = vadd.xlane.f32.xlu0 %v10763
    %v10765 = vpop.xlane.xlu0 %10764
    %v10766 = vsel %vm5899, %v10422, 0.0
    %10767 = vadd.xlane.f32.xlu0 %v10766
    %v10768 = vpop.xlane.xlu0 %10767
    %v10769 = vsel %vm5899, %v10423, 0.0
    %10770 = vadd.xlane.f32.xlu0 %v10769
    %v10771 = vpop.xlane.xlu0 %10770
    %v10772 = vsel %vm5899, %v10424, 0.0
    %10773 = vadd.xlane.f32.xlu0 %v10772
    %v10774 = vpop.xlane.xlu0 %10773
    %v10775 = vsel %vm5899, %v10425, 0.0
    %10776 = vadd.xlane.f32.xlu0 %v10775
    %v10777 = vpop.xlane.xlu0 %10776
    %v10778 = vsel %vm5899, %v10426, 0.0
    %10779 = vadd.xlane.f32.xlu0 %v10778
    %v10780 = vpop.xlane.xlu0 %10779
    %v10781 = vsel %vm5899, %v10427, 0.0
    %10782 = vadd.xlane.f32.xlu0 %v10781
    %v10783 = vpop.xlane.xlu0 %10782
    %v10784 = vsel %vm5899, %v10428, 0.0
    %10785 = vadd.xlane.f32.xlu0 %v10784
    %v10786 = vpop.xlane.xlu0 %10785
    %v10787 = vsel %vm5899, %v10429, 0.0
    %10788 = vadd.xlane.f32.xlu0 %v10787
    %v10789 = vpop.xlane.xlu0 %10788
    %v10790 = vsel %vm5899, %v10430, 0.0
    %10791 = vadd.xlane.f32.xlu0 %v10790
    %v10792 = vpop.xlane.xlu0 %10791
    %v10793 = vsel %vm5899, %v10431, 0.0
    %10794 = vadd.xlane.f32.xlu0 %v10793
    %v10795 = vpop.xlane.xlu0 %10794
    %v10796 = vsel %vm5899, %v10432, 0.0
    %10797 = vadd.xlane.f32.xlu0 %v10796
    %v10798 = vpop.xlane.xlu0 %10797
    %v10799 = vsel %vm5899, %v10433, 0.0
    %10800 = vadd.xlane.f32.xlu0 %v10799
    %v10801 = vpop.xlane.xlu0 %10800
    %v10802 = vsel %vm5899, %v10434, 0.0
    %10803 = vadd.xlane.f32.xlu0 %v10802
    %v10804 = vpop.xlane.xlu0 %10803
    %v10805 = vsel %vm5899, %v10435, 0.0
    %10806 = vadd.xlane.f32.xlu0 %v10805
    %v10807 = vpop.xlane.xlu0 %10806
    %v10808 = vsel %vm5899, %v10436, 0.0
    %10809 = vadd.xlane.f32.xlu0 %v10808
    %v10810 = vpop.xlane.xlu0 %10809
    %v10811 = vsel %vm5899, %v10437, 0.0
    %10812 = vadd.xlane.f32.xlu0 %v10811
    %v10813 = vpop.xlane.xlu0 %10812
    %v10814 = vsel %vm5899, %v10438, 0.0
    %10815 = vadd.xlane.f32.xlu0 %v10814
    %v10816 = vpop.xlane.xlu0 %10815
    %v10817 = vsel %vm5899, %v10439, 0.0
    %10818 = vadd.xlane.f32.xlu0 %v10817
    %v10819 = vpop.xlane.xlu0 %10818
    %v10820 = vsel %vm5899, %v10440, 0.0
    %10821 = vadd.xlane.f32.xlu0 %v10820
    %v10822 = vpop.xlane.xlu0 %10821
    %v10823 = vsel %vm5899, %v10441, 0.0
    %10824 = vadd.xlane.f32.xlu0 %v10823
    %v10825 = vpop.xlane.xlu0 %10824
    %s10826 = scalar_lea.vmem %s5, 64
    %v10827 = vld [vmem:[%s10826] sm:$0xf]
    %v10828 = vld [vmem:[%s10826 + $0x4] sm:$0xf]
    %v10829 = vld [vmem:[%s10826 + $0x8] sm:$0xf]
    %v10830 = vld [vmem:[%s10826 + $0xc] sm:$0xf]
    %v10831 = vld [vmem:[%s10826 + $0x10] sm:$0xf]
    %v10832 = vld [vmem:[%s10826 + $0x14] sm:$0xf]
    %v10833 = vld [vmem:[%s10826 + $0x18] sm:$0xf]
    %v10834 = vld [vmem:[%s10826 + $0x1c] sm:$0xf]
    %v10835 = vpack.c.bf16 %v10447, %v10444
    %v10836 = vpack.c.bf16 %v10453, %v10450
    %v10837 = vpack.c.bf16 %v10459, %v10456
    %v10838 = vpack.c.bf16 %v10465, %v10462
    %v10839 = vpack.c.bf16 %v10471, %v10468
    %v10840 = vpack.c.bf16 %v10477, %v10474
    %v10841 = vpack.c.bf16 %v10483, %v10480
    %v10842 = vpack.c.bf16 %v10489, %v10486
    %v10843 = vpack.c.bf16 %v10495, %v10492
    %v10844 = vpack.c.bf16 %v10501, %v10498
    %v10845 = vpack.c.bf16 %v10507, %v10504
    %v10846 = vpack.c.bf16 %v10513, %v10510
    %v10847 = vpack.c.bf16 %v10519, %v10516
    %v10848 = vpack.c.bf16 %v10525, %v10522
    %v10849 = vpack.c.bf16 %v10531, %v10528
    %v10850 = vpack.c.bf16 %v10537, %v10534
    %v10851 = vpack.c.bf16 %v10543, %v10540
    %v10852 = vpack.c.bf16 %v10549, %v10546
    %v10853 = vpack.c.bf16 %v10555, %v10552
    %v10854 = vpack.c.bf16 %v10561, %v10558
    %v10855 = vpack.c.bf16 %v10567, %v10564
    %v10856 = vpack.c.bf16 %v10573, %v10570
    %v10857 = vpack.c.bf16 %v10579, %v10576
    %v10858 = vpack.c.bf16 %v10585, %v10582
    %v10859 = vpack.c.bf16 %v10591, %v10588
    %v10860 = vpack.c.bf16 %v10597, %v10594
    %v10861 = vpack.c.bf16 %v10603, %v10600
    %v10862 = vpack.c.bf16 %v10609, %v10606
    %v10863 = vpack.c.bf16 %v10615, %v10612
    %v10864 = vpack.c.bf16 %v10621, %v10618
    %v10865 = vpack.c.bf16 %v10627, %v10624
    %v10866 = vpack.c.bf16 %v10633, %v10630
    %v10867 = vpack.c.bf16 %v10639, %v10636
    %v10868 = vpack.c.bf16 %v10645, %v10642
    %v10869 = vpack.c.bf16 %v10651, %v10648
    %v10870 = vpack.c.bf16 %v10657, %v10654
    %v10871 = vpack.c.bf16 %v10663, %v10660
    %v10872 = vpack.c.bf16 %v10669, %v10666
    %v10873 = vpack.c.bf16 %v10675, %v10672
    %v10874 = vpack.c.bf16 %v10681, %v10678
    %v10875 = vpack.c.bf16 %v10687, %v10684
    %v10876 = vpack.c.bf16 %v10693, %v10690
    %v10877 = vpack.c.bf16 %v10699, %v10696
    %v10878 = vpack.c.bf16 %v10705, %v10702
    %v10879 = vpack.c.bf16 %v10711, %v10708
    %v10880 = vpack.c.bf16 %v10717, %v10714
    %v10881 = vpack.c.bf16 %v10723, %v10720
    %v10882 = vpack.c.bf16 %v10729, %v10726
    %v10883 = vpack.c.bf16 %v10735, %v10732
    %v10884 = vpack.c.bf16 %v10741, %v10738
    %v10885 = vpack.c.bf16 %v10747, %v10744
    %v10886 = vpack.c.bf16 %v10753, %v10750
    %v10887 = vpack.c.bf16 %v10759, %v10756
    %v10888 = vpack.c.bf16 %v10765, %v10762
    %v10889 = vpack.c.bf16 %v10771, %v10768
    %v10890 = vpack.c.bf16 %v10777, %v10774
    %v10891 = vpack.c.bf16 %v10783, %v10780
    %v10892 = vpack.c.bf16 %v10789, %v10786
    %v10893 = vpack.c.bf16 %v10795, %v10792
    %v10894 = vpack.c.bf16 %v10801, %v10798
    %v10895 = vpack.c.bf16 %v10807, %v10804
    %v10896 = vpack.c.bf16 %v10813, %v10810
    %v10897 = vpack.c.bf16 %v10819, %v10816
    %v10898 = vpack.c.bf16 %v10825, %v10822
    %v10963 = vunpack.c.l.b16 %v10835
    %v10964 = vunpack.c.h.b16 %v10835
    %v10965 = vunpack.c.l.b16 %v10836
    %v10966 = vunpack.c.h.b16 %v10836
    %v10967 = vunpack.c.l.b16 %v10837
    %v10968 = vunpack.c.h.b16 %v10837
    %v10969 = vunpack.c.l.b16 %v10838
    %v10970 = vunpack.c.h.b16 %v10838
    %v10971 = vunpack.c.l.b16 %v10839
    %v10972 = vunpack.c.h.b16 %v10839
    %v10973 = vunpack.c.l.b16 %v10840
    %v10974 = vunpack.c.h.b16 %v10840
    %v10975 = vunpack.c.l.b16 %v10841
    %v10976 = vunpack.c.h.b16 %v10841
    %v10977 = vunpack.c.l.b16 %v10842
    %v10978 = vunpack.c.h.b16 %v10842
    %v10979 = vunpack.c.l.b16 %v10843
    %v10980 = vunpack.c.h.b16 %v10843
    %v10981 = vunpack.c.l.b16 %v10844
    %v10982 = vunpack.c.h.b16 %v10844
    %v10983 = vunpack.c.l.b16 %v10845
    %v10984 = vunpack.c.h.b16 %v10845
    %v10985 = vunpack.c.l.b16 %v10846
    %v10986 = vunpack.c.h.b16 %v10846
    %v10987 = vunpack.c.l.b16 %v10847
    %v10988 = vunpack.c.h.b16 %v10847
    %v10989 = vunpack.c.l.b16 %v10848
    %v10990 = vunpack.c.h.b16 %v10848
    %v10991 = vunpack.c.l.b16 %v10849
    %v10992 = vunpack.c.h.b16 %v10849
    %v10993 = vunpack.c.l.b16 %v10850
    %v10994 = vunpack.c.h.b16 %v10850
    %v10995 = vunpack.c.l.b16 %v10851
    %v10996 = vunpack.c.h.b16 %v10851
    %v10997 = vunpack.c.l.b16 %v10852
    %v10998 = vunpack.c.h.b16 %v10852
    %v10999 = vunpack.c.l.b16 %v10853
    %v11000 = vunpack.c.h.b16 %v10853
    %v11001 = vunpack.c.l.b16 %v10854
    %v11002 = vunpack.c.h.b16 %v10854
    %v11003 = vunpack.c.l.b16 %v10855
    %v11004 = vunpack.c.h.b16 %v10855
    %v11005 = vunpack.c.l.b16 %v10856
    %v11006 = vunpack.c.h.b16 %v10856
    %v11007 = vunpack.c.l.b16 %v10857
    %v11008 = vunpack.c.h.b16 %v10857
    %v11009 = vunpack.c.l.b16 %v10858
    %v11010 = vunpack.c.h.b16 %v10858
    %v11011 = vunpack.c.l.b16 %v10859
    %v11012 = vunpack.c.h.b16 %v10859
    %v11013 = vunpack.c.l.b16 %v10860
    %v11014 = vunpack.c.h.b16 %v10860
    %v11015 = vunpack.c.l.b16 %v10861
    %v11016 = vunpack.c.h.b16 %v10861
    %v11017 = vunpack.c.l.b16 %v10862
    %v11018 = vunpack.c.h.b16 %v10862
    %v11019 = vunpack.c.l.b16 %v10863
    %v11020 = vunpack.c.h.b16 %v10863
    %v11021 = vunpack.c.l.b16 %v10864
    %v11022 = vunpack.c.h.b16 %v10864
    %v11023 = vunpack.c.l.b16 %v10865
    %v11024 = vunpack.c.h.b16 %v10865
    %v11025 = vunpack.c.l.b16 %v10866
    %v11026 = vunpack.c.h.b16 %v10866
    %v11027 = vunpack.c.l.b16 %v10867
    %v11028 = vunpack.c.h.b16 %v10867
    %v11029 = vunpack.c.l.b16 %v10868
    %v11030 = vunpack.c.h.b16 %v10868
    %v11031 = vunpack.c.l.b16 %v10869
    %v11032 = vunpack.c.h.b16 %v10869
    %v11033 = vunpack.c.l.b16 %v10870
    %v11034 = vunpack.c.h.b16 %v10870
    %v11035 = vunpack.c.l.b16 %v10871
    %v11036 = vunpack.c.h.b16 %v10871
    %v11037 = vunpack.c.l.b16 %v10872
    %v11038 = vunpack.c.h.b16 %v10872
    %v11039 = vunpack.c.l.b16 %v10873
    %v11040 = vunpack.c.h.b16 %v10873
    %v11041 = vunpack.c.l.b16 %v10874
    %v11042 = vunpack.c.h.b16 %v10874
    %v11043 = vunpack.c.l.b16 %v10875
    %v11044 = vunpack.c.h.b16 %v10875
    %v11045 = vunpack.c.l.b16 %v10876
    %v11046 = vunpack.c.h.b16 %v10876
    %v11047 = vunpack.c.l.b16 %v10877
    %v11048 = vunpack.c.h.b16 %v10877
    %v11049 = vunpack.c.l.b16 %v10878
    %v11050 = vunpack.c.h.b16 %v10878
    %v11051 = vunpack.c.l.b16 %v10879
    %v11052 = vunpack.c.h.b16 %v10879
    %v11053 = vunpack.c.l.b16 %v10880
    %v11054 = vunpack.c.h.b16 %v10880
    %v11055 = vunpack.c.l.b16 %v10881
    %v11056 = vunpack.c.h.b16 %v10881
    %v11057 = vunpack.c.l.b16 %v10882
    %v11058 = vunpack.c.h.b16 %v10882
    %v11059 = vunpack.c.l.b16 %v10883
    %v11060 = vunpack.c.h.b16 %v10883
    %v11061 = vunpack.c.l.b16 %v10884
    %v11062 = vunpack.c.h.b16 %v10884
    %v11063 = vunpack.c.l.b16 %v10885
    %v11064 = vunpack.c.h.b16 %v10885
    %v11065 = vunpack.c.l.b16 %v10886
    %v11066 = vunpack.c.h.b16 %v10886
    %v11067 = vunpack.c.l.b16 %v10887
    %v11068 = vunpack.c.h.b16 %v10887
    %v11069 = vunpack.c.l.b16 %v10888
    %v11070 = vunpack.c.h.b16 %v10888
    %v11071 = vunpack.c.l.b16 %v10889
    %v11072 = vunpack.c.h.b16 %v10889
    %v11073 = vunpack.c.l.b16 %v10890
    %v11074 = vunpack.c.h.b16 %v10890
    %v11075 = vunpack.c.l.b16 %v10891
    %v11076 = vunpack.c.h.b16 %v10891
    %v11077 = vunpack.c.l.b16 %v10892
    %v11078 = vunpack.c.h.b16 %v10892
    %v11079 = vunpack.c.l.b16 %v10893
    %v11080 = vunpack.c.h.b16 %v10893
    %v11081 = vunpack.c.l.b16 %v10894
    %v11082 = vunpack.c.h.b16 %v10894
    %v11083 = vunpack.c.l.b16 %v10895
    %v11084 = vunpack.c.h.b16 %v10895
    %v11085 = vunpack.c.l.b16 %v10896
    %v11086 = vunpack.c.h.b16 %v10896
    %v11087 = vunpack.c.l.b16 %v10897
    %v11088 = vunpack.c.h.b16 %v10897
    %v11089 = vunpack.c.l.b16 %v10898
    %v11090 = vunpack.c.h.b16 %v10898
    %v11091 = vlaneseq
    %v11092 = vshrl.u32 %v11091, 7
    %v11093 = vsub.s32 %v8506, %v11092
    %v11094 = vrot.slane %v10963, %v11093
    %v11095 = vlaneseq
    %v11096 = vshrl.u32 %v11095, 7
    %v11097 = vsub.s32 %v8511, %v11096
    %v11098 = vrot.slane %v10964, %v11097
    %v11099 = vsel %vm8516, %v11098, %v11094
    %v11100 = vlaneseq
    %v11101 = vshrl.u32 %v11100, 7
    %v11102 = vsub.s32 %v8518, %v11101
    %v11103 = vrot.slane %v10965, %v11102
    %v11104 = vsel %vm8523, %v11103, %v11099
    %v11105 = vlaneseq
    %v11106 = vshrl.u32 %v11105, 7
    %v11107 = vsub.s32 %v8525, %v11106
    %v11108 = vrot.slane %v10966, %v11107
    %v11109 = vsel %vm8530, %v11108, %v11104
    %v11110 = vlaneseq
    %v11111 = vshrl.u32 %v11110, 7
    %v11112 = vsub.s32 %v8532, %v11111
    %v11113 = vrot.slane %v10967, %v11112
    %v11114 = vsel %vm8537, %v11113, %v11109
    %v11115 = vlaneseq
    %v11116 = vshrl.u32 %v11115, 7
    %v11117 = vsub.s32 %v8539, %v11116
    %v11118 = vrot.slane %v10968, %v11117
    %v11119 = vsel %vm8544, %v11118, %v11114
    %v11120 = vlaneseq
    %v11121 = vshrl.u32 %v11120, 7
    %v11122 = vsub.s32 %v8546, %v11121
    %v11123 = vrot.slane %v10969, %v11122
    %v11124 = vsel %vm8551, %v11123, %v11119
    %v11125 = vlaneseq
    %v11126 = vshrl.u32 %v11125, 7
    %v11127 = vsub.s32 %v8553, %v11126
    %v11128 = vrot.slane %v10970, %v11127
    %v11129 = vsel %vm8558, %v11128, %v11124
    %v11130 = vlaneseq
    %v11131 = vshrl.u32 %v11130, 7
    %v11132 = vsub.s32 %v8506, %v11131
    %v11133 = vrot.slane %v10971, %v11132
    %v11134 = vlaneseq
    %v11135 = vshrl.u32 %v11134, 7
    %v11136 = vsub.s32 %v8511, %v11135
    %v11137 = vrot.slane %v10972, %v11136
    %v11138 = vsel %vm8516, %v11137, %v11133
    %v11139 = vlaneseq
    %v11140 = vshrl.u32 %v11139, 7
    %v11141 = vsub.s32 %v8518, %v11140
    %v11142 = vrot.slane %v10973, %v11141
    %v11143 = vsel %vm8523, %v11142, %v11138
    %v11144 = vlaneseq
    %v11145 = vshrl.u32 %v11144, 7
    %v11146 = vsub.s32 %v8525, %v11145
    %v11147 = vrot.slane %v10974, %v11146
    %v11148 = vsel %vm8530, %v11147, %v11143
    %v11149 = vlaneseq
    %v11150 = vshrl.u32 %v11149, 7
    %v11151 = vsub.s32 %v8532, %v11150
    %v11152 = vrot.slane %v10975, %v11151
    %v11153 = vsel %vm8537, %v11152, %v11148
    %v11154 = vlaneseq
    %v11155 = vshrl.u32 %v11154, 7
    %v11156 = vsub.s32 %v8539, %v11155
    %v11157 = vrot.slane %v10976, %v11156
    %v11158 = vsel %vm8544, %v11157, %v11153
    %v11159 = vlaneseq
    %v11160 = vshrl.u32 %v11159, 7
    %v11161 = vsub.s32 %v8546, %v11160
    %v11162 = vrot.slane %v10977, %v11161
    %v11163 = vsel %vm8551, %v11162, %v11158
    %v11164 = vlaneseq
    %v11165 = vshrl.u32 %v11164, 7
    %v11166 = vsub.s32 %v8553, %v11165
    %v11167 = vrot.slane %v10978, %v11166
    %v11168 = vsel %vm8558, %v11167, %v11163
    %v11169 = vlaneseq
    %v11170 = vshrl.u32 %v11169, 7
    %v11171 = vsub.s32 %v8506, %v11170
    %v11172 = vrot.slane %v10979, %v11171
    %v11173 = vlaneseq
    %v11174 = vshrl.u32 %v11173, 7
    %v11175 = vsub.s32 %v8511, %v11174
    %v11176 = vrot.slane %v10980, %v11175
    %v11177 = vsel %vm8516, %v11176, %v11172
    %v11178 = vlaneseq
    %v11179 = vshrl.u32 %v11178, 7
    %v11180 = vsub.s32 %v8518, %v11179
    %v11181 = vrot.slane %v10981, %v11180
    %v11182 = vsel %vm8523, %v11181, %v11177
    %v11183 = vlaneseq
    %v11184 = vshrl.u32 %v11183, 7
    %v11185 = vsub.s32 %v8525, %v11184
    %v11186 = vrot.slane %v10982, %v11185
    %v11187 = vsel %vm8530, %v11186, %v11182
    %v11188 = vlaneseq
    %v11189 = vshrl.u32 %v11188, 7
    %v11190 = vsub.s32 %v8532, %v11189
    %v11191 = vrot.slane %v10983, %v11190
    %v11192 = vsel %vm8537, %v11191, %v11187
    %v11193 = vlaneseq
    %v11194 = vshrl.u32 %v11193, 7
    %v11195 = vsub.s32 %v8539, %v11194
    %v11196 = vrot.slane %v10984, %v11195
    %v11197 = vsel %vm8544, %v11196, %v11192
    %v11198 = vlaneseq
    %v11199 = vshrl.u32 %v11198, 7
    %v11200 = vsub.s32 %v8546, %v11199
    %v11201 = vrot.slane %v10985, %v11200
    %v11202 = vsel %vm8551, %v11201, %v11197
    %v11203 = vlaneseq
    %v11204 = vshrl.u32 %v11203, 7
    %v11205 = vsub.s32 %v8553, %v11204
    %v11206 = vrot.slane %v10986, %v11205
    %v11207 = vsel %vm8558, %v11206, %v11202
    %v11208 = vlaneseq
    %v11209 = vshrl.u32 %v11208, 7
    %v11210 = vsub.s32 %v8506, %v11209
    %v11211 = vrot.slane %v10987, %v11210
    %v11212 = vlaneseq
    %v11213 = vshrl.u32 %v11212, 7
    %v11214 = vsub.s32 %v8511, %v11213
    %v11215 = vrot.slane %v10988, %v11214
    %v11216 = vsel %vm8516, %v11215, %v11211
    %v11217 = vlaneseq
    %v11218 = vshrl.u32 %v11217, 7
    %v11219 = vsub.s32 %v8518, %v11218
    %v11220 = vrot.slane %v10989, %v11219
    %v11221 = vsel %vm8523, %v11220, %v11216
    %v11222 = vlaneseq
    %v11223 = vshrl.u32 %v11222, 7
    %v11224 = vsub.s32 %v8525, %v11223
    %v11225 = vrot.slane %v10990, %v11224
    %v11226 = vsel %vm8530, %v11225, %v11221
    %v11227 = vlaneseq
    %v11228 = vshrl.u32 %v11227, 7
    %v11229 = vsub.s32 %v8532, %v11228
    %v11230 = vrot.slane %v10991, %v11229
    %v11231 = vsel %vm8537, %v11230, %v11226
    %v11232 = vlaneseq
    %v11233 = vshrl.u32 %v11232, 7
    %v11234 = vsub.s32 %v8539, %v11233
    %v11235 = vrot.slane %v10992, %v11234
    %v11236 = vsel %vm8544, %v11235, %v11231
    %v11237 = vlaneseq
    %v11238 = vshrl.u32 %v11237, 7
    %v11239 = vsub.s32 %v8546, %v11238
    %v11240 = vrot.slane %v10993, %v11239
    %v11241 = vsel %vm8551, %v11240, %v11236
    %v11242 = vlaneseq
    %v11243 = vshrl.u32 %v11242, 7
    %v11244 = vsub.s32 %v8553, %v11243
    %v11245 = vrot.slane %v10994, %v11244
    %v11246 = vsel %vm8558, %v11245, %v11241
    %v11247 = vlaneseq
    %v11248 = vshrl.u32 %v11247, 7
    %v11249 = vsub.s32 %v8506, %v11248
    %v11250 = vrot.slane %v10995, %v11249
    %v11251 = vlaneseq
    %v11252 = vshrl.u32 %v11251, 7
    %v11253 = vsub.s32 %v8511, %v11252
    %v11254 = vrot.slane %v10996, %v11253
    %v11255 = vsel %vm8516, %v11254, %v11250
    %v11256 = vlaneseq
    %v11257 = vshrl.u32 %v11256, 7
    %v11258 = vsub.s32 %v8518, %v11257
    %v11259 = vrot.slane %v10997, %v11258
    %v11260 = vsel %vm8523, %v11259, %v11255
    %v11261 = vlaneseq
    %v11262 = vshrl.u32 %v11261, 7
    %v11263 = vsub.s32 %v8525, %v11262
    %v11264 = vrot.slane %v10998, %v11263
    %v11265 = vsel %vm8530, %v11264, %v11260
    %v11266 = vlaneseq
    %v11267 = vshrl.u32 %v11266, 7
    %v11268 = vsub.s32 %v8532, %v11267
    %v11269 = vrot.slane %v10999, %v11268
    %v11270 = vsel %vm8537, %v11269, %v11265
    %v11271 = vlaneseq
    %v11272 = vshrl.u32 %v11271, 7
    %v11273 = vsub.s32 %v8539, %v11272
    %v11274 = vrot.slane %v11000, %v11273
    %v11275 = vsel %vm8544, %v11274, %v11270
    %v11276 = vlaneseq
    %v11277 = vshrl.u32 %v11276, 7
    %v11278 = vsub.s32 %v8546, %v11277
    %v11279 = vrot.slane %v11001, %v11278
    %v11280 = vsel %vm8551, %v11279, %v11275
    %v11281 = vlaneseq
    %v11282 = vshrl.u32 %v11281, 7
    %v11283 = vsub.s32 %v8553, %v11282
    %v11284 = vrot.slane %v11002, %v11283
    %v11285 = vsel %vm8558, %v11284, %v11280
    %v11286 = vlaneseq
    %v11287 = vshrl.u32 %v11286, 7
    %v11288 = vsub.s32 %v8506, %v11287
    %v11289 = vrot.slane %v11003, %v11288
    %v11290 = vlaneseq
    %v11291 = vshrl.u32 %v11290, 7
    %v11292 = vsub.s32 %v8511, %v11291
    %v11293 = vrot.slane %v11004, %v11292
    %v11294 = vsel %vm8516, %v11293, %v11289
    %v11295 = vlaneseq
    %v11296 = vshrl.u32 %v11295, 7
    %v11297 = vsub.s32 %v8518, %v11296
    %v11298 = vrot.slane %v11005, %v11297
    %v11299 = vsel %vm8523, %v11298, %v11294
    %v11300 = vlaneseq
    %v11301 = vshrl.u32 %v11300, 7
    %v11302 = vsub.s32 %v8525, %v11301
    %v11303 = vrot.slane %v11006, %v11302
    %v11304 = vsel %vm8530, %v11303, %v11299
    %v11305 = vlaneseq
    %v11306 = vshrl.u32 %v11305, 7
    %v11307 = vsub.s32 %v8532, %v11306
    %v11308 = vrot.slane %v11007, %v11307
    %v11309 = vsel %vm8537, %v11308, %v11304
    %v11310 = vlaneseq
    %v11311 = vshrl.u32 %v11310, 7
    %v11312 = vsub.s32 %v8539, %v11311
    %v11313 = vrot.slane %v11008, %v11312
    %v11314 = vsel %vm8544, %v11313, %v11309
    %v11315 = vlaneseq
    %v11316 = vshrl.u32 %v11315, 7
    %v11317 = vsub.s32 %v8546, %v11316
    %v11318 = vrot.slane %v11009, %v11317
    %v11319 = vsel %vm8551, %v11318, %v11314
    %v11320 = vlaneseq
    %v11321 = vshrl.u32 %v11320, 7
    %v11322 = vsub.s32 %v8553, %v11321
    %v11323 = vrot.slane %v11010, %v11322
    %v11324 = vsel %vm8558, %v11323, %v11319
    %v11325 = vlaneseq
    %v11326 = vshrl.u32 %v11325, 7
    %v11327 = vsub.s32 %v8506, %v11326
    %v11328 = vrot.slane %v11011, %v11327
    %v11329 = vlaneseq
    %v11330 = vshrl.u32 %v11329, 7
    %v11331 = vsub.s32 %v8511, %v11330
    %v11332 = vrot.slane %v11012, %v11331
    %v11333 = vsel %vm8516, %v11332, %v11328
    %v11334 = vlaneseq
    %v11335 = vshrl.u32 %v11334, 7
    %v11336 = vsub.s32 %v8518, %v11335
    %v11337 = vrot.slane %v11013, %v11336
    %v11338 = vsel %vm8523, %v11337, %v11333
    %v11339 = vlaneseq
    %v11340 = vshrl.u32 %v11339, 7
    %v11341 = vsub.s32 %v8525, %v11340
    %v11342 = vrot.slane %v11014, %v11341
    %v11343 = vsel %vm8530, %v11342, %v11338
    %v11344 = vlaneseq
    %v11345 = vshrl.u32 %v11344, 7
    %v11346 = vsub.s32 %v8532, %v11345
    %v11347 = vrot.slane %v11015, %v11346
    %v11348 = vsel %vm8537, %v11347, %v11343
    %v11349 = vlaneseq
    %v11350 = vshrl.u32 %v11349, 7
    %v11351 = vsub.s32 %v8539, %v11350
    %v11352 = vrot.slane %v11016, %v11351
    %v11353 = vsel %vm8544, %v11352, %v11348
    %v11354 = vlaneseq
    %v11355 = vshrl.u32 %v11354, 7
    %v11356 = vsub.s32 %v8546, %v11355
    %v11357 = vrot.slane %v11017, %v11356
    %v11358 = vsel %vm8551, %v11357, %v11353
    %v11359 = vlaneseq
    %v11360 = vshrl.u32 %v11359, 7
    %v11361 = vsub.s32 %v8553, %v11360
    %v11362 = vrot.slane %v11018, %v11361
    %v11363 = vsel %vm8558, %v11362, %v11358
    %v11364 = vlaneseq
    %v11365 = vshrl.u32 %v11364, 7
    %v11366 = vsub.s32 %v8506, %v11365
    %v11367 = vrot.slane %v11019, %v11366
    %v11368 = vlaneseq
    %v11369 = vshrl.u32 %v11368, 7
    %v11370 = vsub.s32 %v8511, %v11369
    %v11371 = vrot.slane %v11020, %v11370
    %v11372 = vsel %vm8516, %v11371, %v11367
    %v11373 = vlaneseq
    %v11374 = vshrl.u32 %v11373, 7
    %v11375 = vsub.s32 %v8518, %v11374
    %v11376 = vrot.slane %v11021, %v11375
    %v11377 = vsel %vm8523, %v11376, %v11372
    %v11378 = vlaneseq
    %v11379 = vshrl.u32 %v11378, 7
    %v11380 = vsub.s32 %v8525, %v11379
    %v11381 = vrot.slane %v11022, %v11380
    %v11382 = vsel %vm8530, %v11381, %v11377
    %v11383 = vlaneseq
    %v11384 = vshrl.u32 %v11383, 7
    %v11385 = vsub.s32 %v8532, %v11384
    %v11386 = vrot.slane %v11023, %v11385
    %v11387 = vsel %vm8537, %v11386, %v11382
    %v11388 = vlaneseq
    %v11389 = vshrl.u32 %v11388, 7
    %v11390 = vsub.s32 %v8539, %v11389
    %v11391 = vrot.slane %v11024, %v11390
    %v11392 = vsel %vm8544, %v11391, %v11387
    %v11393 = vlaneseq
    %v11394 = vshrl.u32 %v11393, 7
    %v11395 = vsub.s32 %v8546, %v11394
    %v11396 = vrot.slane %v11025, %v11395
    %v11397 = vsel %vm8551, %v11396, %v11392
    %v11398 = vlaneseq
    %v11399 = vshrl.u32 %v11398, 7
    %v11400 = vsub.s32 %v8553, %v11399
    %v11401 = vrot.slane %v11026, %v11400
    %v11402 = vsel %vm8558, %v11401, %v11397
    %v11403 = vlaneseq
    %v11404 = vshrl.u32 %v11403, 7
    %v11405 = vsub.s32 %v8506, %v11404
    %v11406 = vrot.slane %v11027, %v11405
    %v11407 = vlaneseq
    %v11408 = vshrl.u32 %v11407, 7
    %v11409 = vsub.s32 %v8511, %v11408
    %v11410 = vrot.slane %v11028, %v11409
    %v11411 = vsel %vm8516, %v11410, %v11406
    %v11412 = vlaneseq
    %v11413 = vshrl.u32 %v11412, 7
    %v11414 = vsub.s32 %v8518, %v11413
    %v11415 = vrot.slane %v11029, %v11414
    %v11416 = vsel %vm8523, %v11415, %v11411
    %v11417 = vlaneseq
    %v11418 = vshrl.u32 %v11417, 7
    %v11419 = vsub.s32 %v8525, %v11418
    %v11420 = vrot.slane %v11030, %v11419
    %v11421 = vsel %vm8530, %v11420, %v11416
    %v11422 = vlaneseq
    %v11423 = vshrl.u32 %v11422, 7
    %v11424 = vsub.s32 %v8532, %v11423
    %v11425 = vrot.slane %v11031, %v11424
    %v11426 = vsel %vm8537, %v11425, %v11421
    %v11427 = vlaneseq
    %v11428 = vshrl.u32 %v11427, 7
    %v11429 = vsub.s32 %v8539, %v11428
    %v11430 = vrot.slane %v11032, %v11429
    %v11431 = vsel %vm8544, %v11430, %v11426
    %v11432 = vlaneseq
    %v11433 = vshrl.u32 %v11432, 7
    %v11434 = vsub.s32 %v8546, %v11433
    %v11435 = vrot.slane %v11033, %v11434
    %v11436 = vsel %vm8551, %v11435, %v11431
    %v11437 = vlaneseq
    %v11438 = vshrl.u32 %v11437, 7
    %v11439 = vsub.s32 %v8553, %v11438
    %v11440 = vrot.slane %v11034, %v11439
    %v11441 = vsel %vm8558, %v11440, %v11436
    %v11442 = vlaneseq
    %v11443 = vshrl.u32 %v11442, 7
    %v11444 = vsub.s32 %v8506, %v11443
    %v11445 = vrot.slane %v11035, %v11444
    %v11446 = vlaneseq
    %v11447 = vshrl.u32 %v11446, 7
    %v11448 = vsub.s32 %v8511, %v11447
    %v11449 = vrot.slane %v11036, %v11448
    %v11450 = vsel %vm8516, %v11449, %v11445
    %v11451 = vlaneseq
    %v11452 = vshrl.u32 %v11451, 7
    %v11453 = vsub.s32 %v8518, %v11452
    %v11454 = vrot.slane %v11037, %v11453
    %v11455 = vsel %vm8523, %v11454, %v11450
    %v11456 = vlaneseq
    %v11457 = vshrl.u32 %v11456, 7
    %v11458 = vsub.s32 %v8525, %v11457
    %v11459 = vrot.slane %v11038, %v11458
    %v11460 = vsel %vm8530, %v11459, %v11455
    %v11461 = vlaneseq
    %v11462 = vshrl.u32 %v11461, 7
    %v11463 = vsub.s32 %v8532, %v11462
    %v11464 = vrot.slane %v11039, %v11463
    %v11465 = vsel %vm8537, %v11464, %v11460
    %v11466 = vlaneseq
    %v11467 = vshrl.u32 %v11466, 7
    %v11468 = vsub.s32 %v8539, %v11467
    %v11469 = vrot.slane %v11040, %v11468
    %v11470 = vsel %vm8544, %v11469, %v11465
    %v11471 = vlaneseq
    %v11472 = vshrl.u32 %v11471, 7
    %v11473 = vsub.s32 %v8546, %v11472
    %v11474 = vrot.slane %v11041, %v11473
    %v11475 = vsel %vm8551, %v11474, %v11470
    %v11476 = vlaneseq
    %v11477 = vshrl.u32 %v11476, 7
    %v11478 = vsub.s32 %v8553, %v11477
    %v11479 = vrot.slane %v11042, %v11478
    %v11480 = vsel %vm8558, %v11479, %v11475
    %v11481 = vlaneseq
    %v11482 = vshrl.u32 %v11481, 7
    %v11483 = vsub.s32 %v8506, %v11482
    %v11484 = vrot.slane %v11043, %v11483
    %v11485 = vlaneseq
    %v11486 = vshrl.u32 %v11485, 7
    %v11487 = vsub.s32 %v8511, %v11486
    %v11488 = vrot.slane %v11044, %v11487
    %v11489 = vsel %vm8516, %v11488, %v11484
    %v11490 = vlaneseq
    %v11491 = vshrl.u32 %v11490, 7
    %v11492 = vsub.s32 %v8518, %v11491
    %v11493 = vrot.slane %v11045, %v11492
    %v11494 = vsel %vm8523, %v11493, %v11489
    %v11495 = vlaneseq
    %v11496 = vshrl.u32 %v11495, 7
    %v11497 = vsub.s32 %v8525, %v11496
    %v11498 = vrot.slane %v11046, %v11497
    %v11499 = vsel %vm8530, %v11498, %v11494
    %v11500 = vlaneseq
    %v11501 = vshrl.u32 %v11500, 7
    %v11502 = vsub.s32 %v8532, %v11501
    %v11503 = vrot.slane %v11047, %v11502
    %v11504 = vsel %vm8537, %v11503, %v11499
    %v11505 = vlaneseq
    %v11506 = vshrl.u32 %v11505, 7
    %v11507 = vsub.s32 %v8539, %v11506
    %v11508 = vrot.slane %v11048, %v11507
    %v11509 = vsel %vm8544, %v11508, %v11504
    %v11510 = vlaneseq
    %v11511 = vshrl.u32 %v11510, 7
    %v11512 = vsub.s32 %v8546, %v11511
    %v11513 = vrot.slane %v11049, %v11512
    %v11514 = vsel %vm8551, %v11513, %v11509
    %v11515 = vlaneseq
    %v11516 = vshrl.u32 %v11515, 7
    %v11517 = vsub.s32 %v8553, %v11516
    %v11518 = vrot.slane %v11050, %v11517
    %v11519 = vsel %vm8558, %v11518, %v11514
    %v11520 = vlaneseq
    %v11521 = vshrl.u32 %v11520, 7
    %v11522 = vsub.s32 %v8506, %v11521
    %v11523 = vrot.slane %v11051, %v11522
    %v11524 = vlaneseq
    %v11525 = vshrl.u32 %v11524, 7
    %v11526 = vsub.s32 %v8511, %v11525
    %v11527 = vrot.slane %v11052, %v11526
    %v11528 = vsel %vm8516, %v11527, %v11523
    %v11529 = vlaneseq
    %v11530 = vshrl.u32 %v11529, 7
    %v11531 = vsub.s32 %v8518, %v11530
    %v11532 = vrot.slane %v11053, %v11531
    %v11533 = vsel %vm8523, %v11532, %v11528
    %v11534 = vlaneseq
    %v11535 = vshrl.u32 %v11534, 7
    %v11536 = vsub.s32 %v8525, %v11535
    %v11537 = vrot.slane %v11054, %v11536
    %v11538 = vsel %vm8530, %v11537, %v11533
    %v11539 = vlaneseq
    %v11540 = vshrl.u32 %v11539, 7
    %v11541 = vsub.s32 %v8532, %v11540
    %v11542 = vrot.slane %v11055, %v11541
    %v11543 = vsel %vm8537, %v11542, %v11538
    %v11544 = vlaneseq
    %v11545 = vshrl.u32 %v11544, 7
    %v11546 = vsub.s32 %v8539, %v11545
    %v11547 = vrot.slane %v11056, %v11546
    %v11548 = vsel %vm8544, %v11547, %v11543
    %v11549 = vlaneseq
    %v11550 = vshrl.u32 %v11549, 7
    %v11551 = vsub.s32 %v8546, %v11550
    %v11552 = vrot.slane %v11057, %v11551
    %v11553 = vsel %vm8551, %v11552, %v11548
    %v11554 = vlaneseq
    %v11555 = vshrl.u32 %v11554, 7
    %v11556 = vsub.s32 %v8553, %v11555
    %v11557 = vrot.slane %v11058, %v11556
    %v11558 = vsel %vm8558, %v11557, %v11553
    %v11559 = vlaneseq
    %v11560 = vshrl.u32 %v11559, 7
    %v11561 = vsub.s32 %v8506, %v11560
    %v11562 = vrot.slane %v11059, %v11561
    %v11563 = vlaneseq
    %v11564 = vshrl.u32 %v11563, 7
    %v11565 = vsub.s32 %v8511, %v11564
    %v11566 = vrot.slane %v11060, %v11565
    %v11567 = vsel %vm8516, %v11566, %v11562
    %v11568 = vlaneseq
    %v11569 = vshrl.u32 %v11568, 7
    %v11570 = vsub.s32 %v8518, %v11569
    %v11571 = vrot.slane %v11061, %v11570
    %v11572 = vsel %vm8523, %v11571, %v11567
    %v11573 = vlaneseq
    %v11574 = vshrl.u32 %v11573, 7
    %v11575 = vsub.s32 %v8525, %v11574
    %v11576 = vrot.slane %v11062, %v11575
    %v11577 = vsel %vm8530, %v11576, %v11572
    %v11578 = vlaneseq
    %v11579 = vshrl.u32 %v11578, 7
    %v11580 = vsub.s32 %v8532, %v11579
    %v11581 = vrot.slane %v11063, %v11580
    %v11582 = vsel %vm8537, %v11581, %v11577
    %v11583 = vlaneseq
    %v11584 = vshrl.u32 %v11583, 7
    %v11585 = vsub.s32 %v8539, %v11584
    %v11586 = vrot.slane %v11064, %v11585
    %v11587 = vsel %vm8544, %v11586, %v11582
    %v11588 = vlaneseq
    %v11589 = vshrl.u32 %v11588, 7
    %v11590 = vsub.s32 %v8546, %v11589
    %v11591 = vrot.slane %v11065, %v11590
    %v11592 = vsel %vm8551, %v11591, %v11587
    %v11593 = vlaneseq
    %v11594 = vshrl.u32 %v11593, 7
    %v11595 = vsub.s32 %v8553, %v11594
    %v11596 = vrot.slane %v11066, %v11595
    %v11597 = vsel %vm8558, %v11596, %v11592
    %v11598 = vlaneseq
    %v11599 = vshrl.u32 %v11598, 7
    %v11600 = vsub.s32 %v8506, %v11599
    %v11601 = vrot.slane %v11067, %v11600
    %v11602 = vlaneseq
    %v11603 = vshrl.u32 %v11602, 7
    %v11604 = vsub.s32 %v8511, %v11603
    %v11605 = vrot.slane %v11068, %v11604
    %v11606 = vsel %vm8516, %v11605, %v11601
    %v11607 = vlaneseq
    %v11608 = vshrl.u32 %v11607, 7
    %v11609 = vsub.s32 %v8518, %v11608
    %v11610 = vrot.slane %v11069, %v11609
    %v11611 = vsel %vm8523, %v11610, %v11606
    %v11612 = vlaneseq
    %v11613 = vshrl.u32 %v11612, 7
    %v11614 = vsub.s32 %v8525, %v11613
    %v11615 = vrot.slane %v11070, %v11614
    %v11616 = vsel %vm8530, %v11615, %v11611
    %v11617 = vlaneseq
    %v11618 = vshrl.u32 %v11617, 7
    %v11619 = vsub.s32 %v8532, %v11618
    %v11620 = vrot.slane %v11071, %v11619
    %v11621 = vsel %vm8537, %v11620, %v11616
    %v11622 = vlaneseq
    %v11623 = vshrl.u32 %v11622, 7
    %v11624 = vsub.s32 %v8539, %v11623
    %v11625 = vrot.slane %v11072, %v11624
    %v11626 = vsel %vm8544, %v11625, %v11621
    %v11627 = vlaneseq
    %v11628 = vshrl.u32 %v11627, 7
    %v11629 = vsub.s32 %v8546, %v11628
    %v11630 = vrot.slane %v11073, %v11629
    %v11631 = vsel %vm8551, %v11630, %v11626
    %v11632 = vlaneseq
    %v11633 = vshrl.u32 %v11632, 7
    %v11634 = vsub.s32 %v8553, %v11633
    %v11635 = vrot.slane %v11074, %v11634
    %v11636 = vsel %vm8558, %v11635, %v11631
    %v11637 = vlaneseq
    %v11638 = vshrl.u32 %v11637, 7
    %v11639 = vsub.s32 %v8506, %v11638
    %v11640 = vrot.slane %v11075, %v11639
    %v11641 = vlaneseq
    %v11642 = vshrl.u32 %v11641, 7
    %v11643 = vsub.s32 %v8511, %v11642
    %v11644 = vrot.slane %v11076, %v11643
    %v11645 = vsel %vm8516, %v11644, %v11640
    %v11646 = vlaneseq
    %v11647 = vshrl.u32 %v11646, 7
    %v11648 = vsub.s32 %v8518, %v11647
    %v11649 = vrot.slane %v11077, %v11648
    %v11650 = vsel %vm8523, %v11649, %v11645
    %v11651 = vlaneseq
    %v11652 = vshrl.u32 %v11651, 7
    %v11653 = vsub.s32 %v8525, %v11652
    %v11654 = vrot.slane %v11078, %v11653
    %v11655 = vsel %vm8530, %v11654, %v11650
    %v11656 = vlaneseq
    %v11657 = vshrl.u32 %v11656, 7
    %v11658 = vsub.s32 %v8532, %v11657
    %v11659 = vrot.slane %v11079, %v11658
    %v11660 = vsel %vm8537, %v11659, %v11655
    %v11661 = vlaneseq
    %v11662 = vshrl.u32 %v11661, 7
    %v11663 = vsub.s32 %v8539, %v11662
    %v11664 = vrot.slane %v11080, %v11663
    %v11665 = vsel %vm8544, %v11664, %v11660
    %v11666 = vlaneseq
    %v11667 = vshrl.u32 %v11666, 7
    %v11668 = vsub.s32 %v8546, %v11667
    %v11669 = vrot.slane %v11081, %v11668
    %v11670 = vsel %vm8551, %v11669, %v11665
    %v11671 = vlaneseq
    %v11672 = vshrl.u32 %v11671, 7
    %v11673 = vsub.s32 %v8553, %v11672
    %v11674 = vrot.slane %v11082, %v11673
    %v11675 = vsel %vm8558, %v11674, %v11670
    %v11676 = vlaneseq
    %v11677 = vshrl.u32 %v11676, 7
    %v11678 = vsub.s32 %v8506, %v11677
    %v11679 = vrot.slane %v11083, %v11678
    %v11680 = vlaneseq
    %v11681 = vshrl.u32 %v11680, 7
    %v11682 = vsub.s32 %v8511, %v11681
    %v11683 = vrot.slane %v11084, %v11682
    %v11684 = vsel %vm8516, %v11683, %v11679
    %v11685 = vlaneseq
    %v11686 = vshrl.u32 %v11685, 7
    %v11687 = vsub.s32 %v8518, %v11686
    %v11688 = vrot.slane %v11085, %v11687
    %v11689 = vsel %vm8523, %v11688, %v11684
    %v11690 = vlaneseq
    %v11691 = vshrl.u32 %v11690, 7
    %v11692 = vsub.s32 %v8525, %v11691
    %v11693 = vrot.slane %v11086, %v11692
    %v11694 = vsel %vm8530, %v11693, %v11689
    %v11695 = vlaneseq
    %v11696 = vshrl.u32 %v11695, 7
    %v11697 = vsub.s32 %v8532, %v11696
    %v11698 = vrot.slane %v11087, %v11697
    %v11699 = vsel %vm8537, %v11698, %v11694
    %v11700 = vlaneseq
    %v11701 = vshrl.u32 %v11700, 7
    %v11702 = vsub.s32 %v8539, %v11701
    %v11703 = vrot.slane %v11088, %v11702
    %v11704 = vsel %vm8544, %v11703, %v11699
    %v11705 = vlaneseq
    %v11706 = vshrl.u32 %v11705, 7
    %v11707 = vsub.s32 %v8546, %v11706
    %v11708 = vrot.slane %v11089, %v11707
    %v11709 = vsel %vm8551, %v11708, %v11704
    %v11710 = vlaneseq
    %v11711 = vshrl.u32 %v11710, 7
    %v11712 = vsub.s32 %v8553, %v11711
    %v11713 = vrot.slane %v11090, %v11712
    %v11714 = vsel %vm8558, %v11713, %v11709
    %v11715 = vsel %vm9145, %v11168, %v11129
    %v11716 = vsel %vm9147, %v11207, %v11715
    %v11717 = vsel %vm9149, %v11246, %v11716
    %v11718 = vsel %vm9151, %v11285, %v11717
    %v11719 = vsel %vm9153, %v11324, %v11718
    %v11720 = vsel %vm9155, %v11363, %v11719
    %v11721 = vsel %vm9157, %v11402, %v11720
    %v11722 = vsel %vm9145, %v11480, %v11441
    %v11723 = vsel %vm9147, %v11519, %v11722
    %v11724 = vsel %vm9149, %v11558, %v11723
    %v11725 = vsel %vm9151, %v11597, %v11724
    %v11726 = vsel %vm9153, %v11636, %v11725
    %v11727 = vsel %vm9155, %v11675, %v11726
    %v11728 = vsel %vm9157, %v11714, %v11727
    %v11729 = vpack.c.b16 %v11728, %v11721
    %v11738 = vunpack.c.l.b16 %v10827
    %v11739 = vunpack.c.l.b16 %v10828
    %v11740 = vunpack.c.l.b16 %v10829
    %v11741 = vunpack.c.l.b16 %v10830
    %v11742 = vunpack.c.l.b16 %v10831
    %v11743 = vunpack.c.l.b16 %v10832
    %v11744 = vunpack.c.l.b16 %v10833
    %v11745 = vunpack.c.l.b16 %v10834
    %v11746 = vpack.c.b16 %v11739, %v11738
    %v11747 = vpack.c.b16 %v11741, %v11740
    %v11748 = vpack.c.b16 %v11743, %v11742
    %v11749 = vpack.c.b16 %v11745, %v11744
    %v11755 = vsel %vm5899, %v11729, 0
    %11757 = vmatprep.subr.bf16.mxu0 0
    %11758 = vmatpush1.bf16.msra.mxu0 %v11746
    %11759 = vmatprep.subr.bf16.mxu0 0
    %11760 = vmatpush1.bf16.msra.mxu0 %v11747
    %11761 = vmatprep.subr.bf16.mxu0 0
    %11762 = vmatpush1.bf16.msra.mxu0 %v11748
    %11763 = vmatprep.subr.bf16.mxu0 0
    %11764 = vmatpush1.bf16.msra.mxu0 %v11749
    %11765 = vmatprep.subr.bf16.mxu0 0
    %11766 = vmatpush1.bf16.msra.mxu0 0
    %11767 = vmatprep.subr.bf16.mxu0 0
    %11768 = vmatpush1.bf16.msra.mxu0 0
    %11769 = vmatprep.subr.bf16.mxu0 0
    %11770 = vmatpush1.bf16.msra.mxu0 0
    %11771 = vmatprep.subr.bf16.mxu0 0
    %11772 = vmatpush1.bf16.msra.mxu0 0
    %11773 = vmatprep.subr.bf16.mxu0 0
    %11774 = vmatpush1.bf16.msra.mxu0 0
    %11775 = vmatprep.subr.bf16.mxu0 0
    %11776 = vmatpush1.bf16.msra.mxu0 0
    %11777 = vmatprep.subr.bf16.mxu0 0
    %11778 = vmatpush1.bf16.msra.mxu0 0
    %11779 = vmatprep.subr.bf16.mxu0 0
    %11780 = vmatpush1.bf16.msra.mxu0 0
    %11781 = vmatprep.subr.bf16.mxu0 0
    %11782 = vmatpush1.bf16.msra.mxu0 0
    %11783 = vmatprep.subr.bf16.mxu0 0
    %11784 = vmatpush1.bf16.msra.mxu0 0
    %11785 = vmatprep.subr.bf16.mxu0 0
    %11786 = vmatpush1.bf16.msra.mxu0 0
    %11787 = vmatprep.subr.bf16.mxu0 0
    %11788 = vmatpush1.bf16.msra.mxu0 0
    %11789 = vmatprep.mubr.bf16.mxu0 0
    %11790 = vmatmul.mubr.bf16.gmra.mrb[0].mxu0 %v11755
    %v11791 = vpop.f32.mrb[0].mxu0
    %v11792 = vadd.f32 0.0, %v11791
    %v11793 = vpop.f32.mrb[0].mxu0
    %v11794 = vpop.f32.mrb[0].mxu0
    %v11795 = vadd.f32 0.0, %v11794
    %v11796 = vpop.f32.mrb[0].mxu0
    %11797 = vdwg.mxu0
    %v11798 = vadd.f32 %v10128, %v11792
    %v11799 = vadd.f32 %v10131, %v11795
    %11800 = vrot.lane.b32.xlu0 %v10237, 64
    %v11801 = vpop.permute.xlu0 %11800
    %11802 = vrot.lane.b32.xlu0 %v10241, 64
    %v11803 = vpop.permute.xlu0 %11802
    %11804 = vrot.lane.b32.xlu0 %v10245, 64
    %v11805 = vpop.permute.xlu0 %11804
    %11806 = vrot.lane.b32.xlu0 %v10249, 64
    %v11807 = vpop.permute.xlu0 %11806
    %11808 = vrot.lane.b32.xlu0 %v10253, 64
    %v11809 = vpop.permute.xlu0 %11808
    %11810 = vrot.lane.b32.xlu0 %v10257, 64
    %v11811 = vpop.permute.xlu0 %11810
    %11812 = vrot.lane.b32.xlu0 %v10261, 64
    %v11813 = vpop.permute.xlu0 %11812
    %11814 = vrot.lane.b32.xlu0 %v10265, 64
    %v11815 = vpop.permute.xlu0 %11814
    %11816 = vrot.lane.b32.xlu0 %v10269, 64
    %v11817 = vpop.permute.xlu0 %11816
    %11818 = vrot.lane.b32.xlu0 %v10273, 64
    %v11819 = vpop.permute.xlu0 %11818
    %11820 = vrot.lane.b32.xlu0 %v10277, 64
    %v11821 = vpop.permute.xlu0 %11820
    %11822 = vrot.lane.b32.xlu0 %v10281, 64
    %v11823 = vpop.permute.xlu0 %11822
    %11824 = vrot.lane.b32.xlu0 %v10285, 64
    %v11825 = vpop.permute.xlu0 %11824
    %11826 = vrot.lane.b32.xlu0 %v10289, 64
    %v11827 = vpop.permute.xlu0 %11826
    %11828 = vrot.lane.b32.xlu0 %v10293, 64
    %v11829 = vpop.permute.xlu0 %11828
    %11830 = vrot.lane.b32.xlu0 %v10297, 64
    %v11831 = vpop.permute.xlu0 %11830
    %v11848 = vmul.f32 %v6788, %v11801
    %v11849 = vmul.f32 %v6789, %v11801
    %v11850 = vmul.f32 %v6790, %v11801
    %v11851 = vmul.f32 %v6791, %v11801
    %v11852 = vmul.f32 %v6792, %v11801
    %v11853 = vmul.f32 %v6793, %v11801
    %v11854 = vmul.f32 %v6794, %v11801
    %v11855 = vmul.f32 %v6795, %v11801
    %v11856 = vmul.f32 %v6796, %v11803
    %v11857 = vmul.f32 %v6797, %v11803
    %v11858 = vmul.f32 %v6798, %v11803
    %v11859 = vmul.f32 %v6799, %v11803
    %v11860 = vmul.f32 %v6800, %v11803
    %v11861 = vmul.f32 %v6801, %v11803
    %v11862 = vmul.f32 %v6802, %v11803
    %v11863 = vmul.f32 %v6803, %v11803
    %v11864 = vmul.f32 %v6804, %v11805
    %v11865 = vmul.f32 %v6805, %v11805
    %v11866 = vmul.f32 %v6806, %v11805
    %v11867 = vmul.f32 %v6807, %v11805
    %v11868 = vmul.f32 %v6808, %v11805
    %v11869 = vmul.f32 %v6809, %v11805
    %v11870 = vmul.f32 %v6810, %v11805
    %v11871 = vmul.f32 %v6811, %v11805
    %v11872 = vmul.f32 %v6812, %v11807
    %v11873 = vmul.f32 %v6813, %v11807
    %v11874 = vmul.f32 %v6814, %v11807
    %v11875 = vmul.f32 %v6815, %v11807
    %v11876 = vmul.f32 %v6816, %v11807
    %v11877 = vmul.f32 %v6817, %v11807
    %v11878 = vmul.f32 %v6818, %v11807
    %v11879 = vmul.f32 %v6819, %v11807
    %v11880 = vmul.f32 %v6820, %v11809
    %v11881 = vmul.f32 %v6821, %v11809
    %v11882 = vmul.f32 %v6822, %v11809
    %v11883 = vmul.f32 %v6823, %v11809
    %v11884 = vmul.f32 %v6824, %v11809
    %v11885 = vmul.f32 %v6825, %v11809
    %v11886 = vmul.f32 %v6826, %v11809
    %v11887 = vmul.f32 %v6827, %v11809
    %v11888 = vmul.f32 %v6828, %v11811
    %v11889 = vmul.f32 %v6829, %v11811
    %v11890 = vmul.f32 %v6830, %v11811
    %v11891 = vmul.f32 %v6831, %v11811
    %v11892 = vmul.f32 %v6832, %v11811
    %v11893 = vmul.f32 %v6833, %v11811
    %v11894 = vmul.f32 %v6834, %v11811
    %v11895 = vmul.f32 %v6835, %v11811
    %v11896 = vmul.f32 %v6836, %v11813
    %v11897 = vmul.f32 %v6837, %v11813
    %v11898 = vmul.f32 %v6838, %v11813
    %v11899 = vmul.f32 %v6839, %v11813
    %v11900 = vmul.f32 %v6840, %v11813
    %v11901 = vmul.f32 %v6841, %v11813
    %v11902 = vmul.f32 %v6842, %v11813
    %v11903 = vmul.f32 %v6843, %v11813
    %v11904 = vmul.f32 %v6844, %v11815
    %v11905 = vmul.f32 %v6845, %v11815
    %v11906 = vmul.f32 %v6846, %v11815
    %v11907 = vmul.f32 %v6847, %v11815
    %v11908 = vmul.f32 %v6848, %v11815
    %v11909 = vmul.f32 %v6849, %v11815
    %v11910 = vmul.f32 %v6850, %v11815
    %v11911 = vmul.f32 %v6851, %v11815
    %v11912 = vmul.f32 %v6852, %v11817
    %v11913 = vmul.f32 %v6853, %v11817
    %v11914 = vmul.f32 %v6854, %v11817
    %v11915 = vmul.f32 %v6855, %v11817
    %v11916 = vmul.f32 %v6856, %v11817
    %v11917 = vmul.f32 %v6857, %v11817
    %v11918 = vmul.f32 %v6858, %v11817
    %v11919 = vmul.f32 %v6859, %v11817
    %v11920 = vmul.f32 %v6860, %v11819
    %v11921 = vmul.f32 %v6861, %v11819
    %v11922 = vmul.f32 %v6862, %v11819
    %v11923 = vmul.f32 %v6863, %v11819
    %v11924 = vmul.f32 %v6864, %v11819
    %v11925 = vmul.f32 %v6865, %v11819
    %v11926 = vmul.f32 %v6866, %v11819
    %v11927 = vmul.f32 %v6867, %v11819
    %v11928 = vmul.f32 %v6868, %v11821
    %v11929 = vmul.f32 %v6869, %v11821
    %v11930 = vmul.f32 %v6870, %v11821
    %v11931 = vmul.f32 %v6871, %v11821
    %v11932 = vmul.f32 %v6872, %v11821
    %v11933 = vmul.f32 %v6873, %v11821
    %v11934 = vmul.f32 %v6874, %v11821
    %v11935 = vmul.f32 %v6875, %v11821
    %v11936 = vmul.f32 %v6876, %v11823
    %v11937 = vmul.f32 %v6877, %v11823
    %v11938 = vmul.f32 %v6878, %v11823
    %v11939 = vmul.f32 %v6879, %v11823
    %v11940 = vmul.f32 %v6880, %v11823
    %v11941 = vmul.f32 %v6881, %v11823
    %v11942 = vmul.f32 %v6882, %v11823
    %v11943 = vmul.f32 %v6883, %v11823
    %v11944 = vmul.f32 %v6884, %v11825
    %v11945 = vmul.f32 %v6885, %v11825
    %v11946 = vmul.f32 %v6886, %v11825
    %v11947 = vmul.f32 %v6887, %v11825
    %v11948 = vmul.f32 %v6888, %v11825
    %v11949 = vmul.f32 %v6889, %v11825
    %v11950 = vmul.f32 %v6890, %v11825
    %v11951 = vmul.f32 %v6891, %v11825
    %v11952 = vmul.f32 %v6892, %v11827
    %v11953 = vmul.f32 %v6893, %v11827
    %v11954 = vmul.f32 %v6894, %v11827
    %v11955 = vmul.f32 %v6895, %v11827
    %v11956 = vmul.f32 %v6896, %v11827
    %v11957 = vmul.f32 %v6897, %v11827
    %v11958 = vmul.f32 %v6898, %v11827
    %v11959 = vmul.f32 %v6899, %v11827
    %v11960 = vmul.f32 %v6900, %v11829
    %v11961 = vmul.f32 %v6901, %v11829
    %v11962 = vmul.f32 %v6902, %v11829
    %v11963 = vmul.f32 %v6903, %v11829
    %v11964 = vmul.f32 %v6904, %v11829
    %v11965 = vmul.f32 %v6905, %v11829
    %v11966 = vmul.f32 %v6906, %v11829
    %v11967 = vmul.f32 %v6907, %v11829
    %v11968 = vmul.f32 %v6908, %v11831
    %v11969 = vmul.f32 %v6909, %v11831
    %v11970 = vmul.f32 %v6910, %v11831
    %v11971 = vmul.f32 %v6911, %v11831
    %v11972 = vmul.f32 %v6912, %v11831
    %v11973 = vmul.f32 %v6913, %v11831
    %v11974 = vmul.f32 %v6914, %v11831
    %v11975 = vmul.f32 %v6915, %v11831
    %v11976 = vsel %vm5899, %v11848, 0.0
    %11977 = vadd.xlane.f32.xlu0 %v11976
    %v11978 = vpop.xlane.xlu0 %11977
    %v11979 = vsel %vm5899, %v11849, 0.0
    %11980 = vadd.xlane.f32.xlu0 %v11979
    %v11981 = vpop.xlane.xlu0 %11980
    %v11982 = vsel %vm5899, %v11850, 0.0
    %11983 = vadd.xlane.f32.xlu0 %v11982
    %v11984 = vpop.xlane.xlu0 %11983
    %v11985 = vsel %vm5899, %v11851, 0.0
    %11986 = vadd.xlane.f32.xlu0 %v11985
    %v11987 = vpop.xlane.xlu0 %11986
    %v11988 = vsel %vm5899, %v11852, 0.0
    %11989 = vadd.xlane.f32.xlu0 %v11988
    %v11990 = vpop.xlane.xlu0 %11989
    %v11991 = vsel %vm5899, %v11853, 0.0
    %11992 = vadd.xlane.f32.xlu0 %v11991
    %v11993 = vpop.xlane.xlu0 %11992
    %v11994 = vsel %vm5899, %v11854, 0.0
    %11995 = vadd.xlane.f32.xlu0 %v11994
    %v11996 = vpop.xlane.xlu0 %11995
    %v11997 = vsel %vm5899, %v11855, 0.0
    %11998 = vadd.xlane.f32.xlu0 %v11997
    %v11999 = vpop.xlane.xlu0 %11998
    %v12000 = vsel %vm5899, %v11856, 0.0
    %12001 = vadd.xlane.f32.xlu0 %v12000
    %v12002 = vpop.xlane.xlu0 %12001
    %v12003 = vsel %vm5899, %v11857, 0.0
    %12004 = vadd.xlane.f32.xlu0 %v12003
    %v12005 = vpop.xlane.xlu0 %12004
    %v12006 = vsel %vm5899, %v11858, 0.0
    %12007 = vadd.xlane.f32.xlu0 %v12006
    %v12008 = vpop.xlane.xlu0 %12007
    %v12009 = vsel %vm5899, %v11859, 0.0
    %12010 = vadd.xlane.f32.xlu0 %v12009
    %v12011 = vpop.xlane.xlu0 %12010
    %v12012 = vsel %vm5899, %v11860, 0.0
    %12013 = vadd.xlane.f32.xlu0 %v12012
    %v12014 = vpop.xlane.xlu0 %12013
    %v12015 = vsel %vm5899, %v11861, 0.0
    %12016 = vadd.xlane.f32.xlu0 %v12015
    %v12017 = vpop.xlane.xlu0 %12016
    %v12018 = vsel %vm5899, %v11862, 0.0
    %12019 = vadd.xlane.f32.xlu0 %v12018
    %v12020 = vpop.xlane.xlu0 %12019
    %v12021 = vsel %vm5899, %v11863, 0.0
    %12022 = vadd.xlane.f32.xlu0 %v12021
    %v12023 = vpop.xlane.xlu0 %12022
    %v12024 = vsel %vm5899, %v11864, 0.0
    %12025 = vadd.xlane.f32.xlu0 %v12024
    %v12026 = vpop.xlane.xlu0 %12025
    %v12027 = vsel %vm5899, %v11865, 0.0
    %12028 = vadd.xlane.f32.xlu0 %v12027
    %v12029 = vpop.xlane.xlu0 %12028
    %v12030 = vsel %vm5899, %v11866, 0.0
    %12031 = vadd.xlane.f32.xlu0 %v12030
    %v12032 = vpop.xlane.xlu0 %12031
    %v12033 = vsel %vm5899, %v11867, 0.0
    %12034 = vadd.xlane.f32.xlu0 %v12033
    %v12035 = vpop.xlane.xlu0 %12034
    %v12036 = vsel %vm5899, %v11868, 0.0
    %12037 = vadd.xlane.f32.xlu0 %v12036
    %v12038 = vpop.xlane.xlu0 %12037
    %v12039 = vsel %vm5899, %v11869, 0.0
    %12040 = vadd.xlane.f32.xlu0 %v12039
    %v12041 = vpop.xlane.xlu0 %12040
    %v12042 = vsel %vm5899, %v11870, 0.0
    %12043 = vadd.xlane.f32.xlu0 %v12042
    %v12044 = vpop.xlane.xlu0 %12043
    %v12045 = vsel %vm5899, %v11871, 0.0
    %12046 = vadd.xlane.f32.xlu0 %v12045
    %v12047 = vpop.xlane.xlu0 %12046
    %v12048 = vsel %vm5899, %v11872, 0.0
    %12049 = vadd.xlane.f32.xlu0 %v12048
    %v12050 = vpop.xlane.xlu0 %12049
    %v12051 = vsel %vm5899, %v11873, 0.0
    %12052 = vadd.xlane.f32.xlu0 %v12051
    %v12053 = vpop.xlane.xlu0 %12052
    %v12054 = vsel %vm5899, %v11874, 0.0
    %12055 = vadd.xlane.f32.xlu0 %v12054
    %v12056 = vpop.xlane.xlu0 %12055
    %v12057 = vsel %vm5899, %v11875, 0.0
    %12058 = vadd.xlane.f32.xlu0 %v12057
    %v12059 = vpop.xlane.xlu0 %12058
    %v12060 = vsel %vm5899, %v11876, 0.0
    %12061 = vadd.xlane.f32.xlu0 %v12060
    %v12062 = vpop.xlane.xlu0 %12061
    %v12063 = vsel %vm5899, %v11877, 0.0
    %12064 = vadd.xlane.f32.xlu0 %v12063
    %v12065 = vpop.xlane.xlu0 %12064
    %v12066 = vsel %vm5899, %v11878, 0.0
    %12067 = vadd.xlane.f32.xlu0 %v12066
    %v12068 = vpop.xlane.xlu0 %12067
    %v12069 = vsel %vm5899, %v11879, 0.0
    %12070 = vadd.xlane.f32.xlu0 %v12069
    %v12071 = vpop.xlane.xlu0 %12070
    %v12072 = vsel %vm5899, %v11880, 0.0
    %12073 = vadd.xlane.f32.xlu0 %v12072
    %v12074 = vpop.xlane.xlu0 %12073
    %v12075 = vsel %vm5899, %v11881, 0.0
    %12076 = vadd.xlane.f32.xlu0 %v12075
    %v12077 = vpop.xlane.xlu0 %12076
    %v12078 = vsel %vm5899, %v11882, 0.0
    %12079 = vadd.xlane.f32.xlu0 %v12078
    %v12080 = vpop.xlane.xlu0 %12079
    %v12081 = vsel %vm5899, %v11883, 0.0
    %12082 = vadd.xlane.f32.xlu0 %v12081
    %v12083 = vpop.xlane.xlu0 %12082
    %v12084 = vsel %vm5899, %v11884, 0.0
    %12085 = vadd.xlane.f32.xlu0 %v12084
    %v12086 = vpop.xlane.xlu0 %12085
    %v12087 = vsel %vm5899, %v11885, 0.0
    %12088 = vadd.xlane.f32.xlu0 %v12087
    %v12089 = vpop.xlane.xlu0 %12088
    %v12090 = vsel %vm5899, %v11886, 0.0
    %12091 = vadd.xlane.f32.xlu0 %v12090
    %v12092 = vpop.xlane.xlu0 %12091
    %v12093 = vsel %vm5899, %v11887, 0.0
    %12094 = vadd.xlane.f32.xlu0 %v12093
    %v12095 = vpop.xlane.xlu0 %12094
    %v12096 = vsel %vm5899, %v11888, 0.0
    %12097 = vadd.xlane.f32.xlu0 %v12096
    %v12098 = vpop.xlane.xlu0 %12097
    %v12099 = vsel %vm5899, %v11889, 0.0
    %12100 = vadd.xlane.f32.xlu0 %v12099
    %v12101 = vpop.xlane.xlu0 %12100
    %v12102 = vsel %vm5899, %v11890, 0.0
    %12103 = vadd.xlane.f32.xlu0 %v12102
    %v12104 = vpop.xlane.xlu0 %12103
    %v12105 = vsel %vm5899, %v11891, 0.0
    %12106 = vadd.xlane.f32.xlu0 %v12105
    %v12107 = vpop.xlane.xlu0 %12106
    %v12108 = vsel %vm5899, %v11892, 0.0
    %12109 = vadd.xlane.f32.xlu0 %v12108
    %v12110 = vpop.xlane.xlu0 %12109
    %v12111 = vsel %vm5899, %v11893, 0.0
    %12112 = vadd.xlane.f32.xlu0 %v12111
    %v12113 = vpop.xlane.xlu0 %12112
    %v12114 = vsel %vm5899, %v11894, 0.0
    %12115 = vadd.xlane.f32.xlu0 %v12114
    %v12116 = vpop.xlane.xlu0 %12115
    %v12117 = vsel %vm5899, %v11895, 0.0
    %12118 = vadd.xlane.f32.xlu0 %v12117
    %v12119 = vpop.xlane.xlu0 %12118
    %v12120 = vsel %vm5899, %v11896, 0.0
    %12121 = vadd.xlane.f32.xlu0 %v12120
    %v12122 = vpop.xlane.xlu0 %12121
    %v12123 = vsel %vm5899, %v11897, 0.0
    %12124 = vadd.xlane.f32.xlu0 %v12123
    %v12125 = vpop.xlane.xlu0 %12124
    %v12126 = vsel %vm5899, %v11898, 0.0
    %12127 = vadd.xlane.f32.xlu0 %v12126
    %v12128 = vpop.xlane.xlu0 %12127
    %v12129 = vsel %vm5899, %v11899, 0.0
    %12130 = vadd.xlane.f32.xlu0 %v12129
    %v12131 = vpop.xlane.xlu0 %12130
    %v12132 = vsel %vm5899, %v11900, 0.0
    %12133 = vadd.xlane.f32.xlu0 %v12132
    %v12134 = vpop.xlane.xlu0 %12133
    %v12135 = vsel %vm5899, %v11901, 0.0
    %12136 = vadd.xlane.f32.xlu0 %v12135
    %v12137 = vpop.xlane.xlu0 %12136
    %v12138 = vsel %vm5899, %v11902, 0.0
    %12139 = vadd.xlane.f32.xlu0 %v12138
    %v12140 = vpop.xlane.xlu0 %12139
    %v12141 = vsel %vm5899, %v11903, 0.0
    %12142 = vadd.xlane.f32.xlu0 %v12141
    %v12143 = vpop.xlane.xlu0 %12142
    %v12144 = vsel %vm5899, %v11904, 0.0
    %12145 = vadd.xlane.f32.xlu0 %v12144
    %v12146 = vpop.xlane.xlu0 %12145
    %v12147 = vsel %vm5899, %v11905, 0.0
    %12148 = vadd.xlane.f32.xlu0 %v12147
    %v12149 = vpop.xlane.xlu0 %12148
    %v12150 = vsel %vm5899, %v11906, 0.0
    %12151 = vadd.xlane.f32.xlu0 %v12150
    %v12152 = vpop.xlane.xlu0 %12151
    %v12153 = vsel %vm5899, %v11907, 0.0
    %12154 = vadd.xlane.f32.xlu0 %v12153
    %v12155 = vpop.xlane.xlu0 %12154
    %v12156 = vsel %vm5899, %v11908, 0.0
    %12157 = vadd.xlane.f32.xlu0 %v12156
    %v12158 = vpop.xlane.xlu0 %12157
    %v12159 = vsel %vm5899, %v11909, 0.0
    %12160 = vadd.xlane.f32.xlu0 %v12159
    %v12161 = vpop.xlane.xlu0 %12160
    %v12162 = vsel %vm5899, %v11910, 0.0
    %12163 = vadd.xlane.f32.xlu0 %v12162
    %v12164 = vpop.xlane.xlu0 %12163
    %v12165 = vsel %vm5899, %v11911, 0.0
    %12166 = vadd.xlane.f32.xlu0 %v12165
    %v12167 = vpop.xlane.xlu0 %12166
    %v12168 = vsel %vm5899, %v11912, 0.0
    %12169 = vadd.xlane.f32.xlu0 %v12168
    %v12170 = vpop.xlane.xlu0 %12169
    %v12171 = vsel %vm5899, %v11913, 0.0
    %12172 = vadd.xlane.f32.xlu0 %v12171
    %v12173 = vpop.xlane.xlu0 %12172
    %v12174 = vsel %vm5899, %v11914, 0.0
    %12175 = vadd.xlane.f32.xlu0 %v12174
    %v12176 = vpop.xlane.xlu0 %12175
    %v12177 = vsel %vm5899, %v11915, 0.0
    %12178 = vadd.xlane.f32.xlu0 %v12177
    %v12179 = vpop.xlane.xlu0 %12178
    %v12180 = vsel %vm5899, %v11916, 0.0
    %12181 = vadd.xlane.f32.xlu0 %v12180
    %v12182 = vpop.xlane.xlu0 %12181
    %v12183 = vsel %vm5899, %v11917, 0.0
    %12184 = vadd.xlane.f32.xlu0 %v12183
    %v12185 = vpop.xlane.xlu0 %12184
    %v12186 = vsel %vm5899, %v11918, 0.0
    %12187 = vadd.xlane.f32.xlu0 %v12186
    %v12188 = vpop.xlane.xlu0 %12187
    %v12189 = vsel %vm5899, %v11919, 0.0
    %12190 = vadd.xlane.f32.xlu0 %v12189
    %v12191 = vpop.xlane.xlu0 %12190
    %v12192 = vsel %vm5899, %v11920, 0.0
    %12193 = vadd.xlane.f32.xlu0 %v12192
    %v12194 = vpop.xlane.xlu0 %12193
    %v12195 = vsel %vm5899, %v11921, 0.0
    %12196 = vadd.xlane.f32.xlu0 %v12195
    %v12197 = vpop.xlane.xlu0 %12196
    %v12198 = vsel %vm5899, %v11922, 0.0
    %12199 = vadd.xlane.f32.xlu0 %v12198
    %v12200 = vpop.xlane.xlu0 %12199
    %v12201 = vsel %vm5899, %v11923, 0.0
    %12202 = vadd.xlane.f32.xlu0 %v12201
    %v12203 = vpop.xlane.xlu0 %12202
    %v12204 = vsel %vm5899, %v11924, 0.0
    %12205 = vadd.xlane.f32.xlu0 %v12204
    %v12206 = vpop.xlane.xlu0 %12205
    %v12207 = vsel %vm5899, %v11925, 0.0
    %12208 = vadd.xlane.f32.xlu0 %v12207
    %v12209 = vpop.xlane.xlu0 %12208
    %v12210 = vsel %vm5899, %v11926, 0.0
    %12211 = vadd.xlane.f32.xlu0 %v12210
    %v12212 = vpop.xlane.xlu0 %12211
    %v12213 = vsel %vm5899, %v11927, 0.0
    %12214 = vadd.xlane.f32.xlu0 %v12213
    %v12215 = vpop.xlane.xlu0 %12214
    %v12216 = vsel %vm5899, %v11928, 0.0
    %12217 = vadd.xlane.f32.xlu0 %v12216
    %v12218 = vpop.xlane.xlu0 %12217
    %v12219 = vsel %vm5899, %v11929, 0.0
    %12220 = vadd.xlane.f32.xlu0 %v12219
    %v12221 = vpop.xlane.xlu0 %12220
    %v12222 = vsel %vm5899, %v11930, 0.0
    %12223 = vadd.xlane.f32.xlu0 %v12222
    %v12224 = vpop.xlane.xlu0 %12223
    %v12225 = vsel %vm5899, %v11931, 0.0
    %12226 = vadd.xlane.f32.xlu0 %v12225
    %v12227 = vpop.xlane.xlu0 %12226
    %v12228 = vsel %vm5899, %v11932, 0.0
    %12229 = vadd.xlane.f32.xlu0 %v12228
    %v12230 = vpop.xlane.xlu0 %12229
    %v12231 = vsel %vm5899, %v11933, 0.0
    %12232 = vadd.xlane.f32.xlu0 %v12231
    %v12233 = vpop.xlane.xlu0 %12232
    %v12234 = vsel %vm5899, %v11934, 0.0
    %12235 = vadd.xlane.f32.xlu0 %v12234
    %v12236 = vpop.xlane.xlu0 %12235
    %v12237 = vsel %vm5899, %v11935, 0.0
    %12238 = vadd.xlane.f32.xlu0 %v12237
    %v12239 = vpop.xlane.xlu0 %12238
    %v12240 = vsel %vm5899, %v11936, 0.0
    %12241 = vadd.xlane.f32.xlu0 %v12240
    %v12242 = vpop.xlane.xlu0 %12241
    %v12243 = vsel %vm5899, %v11937, 0.0
    %12244 = vadd.xlane.f32.xlu0 %v12243
    %v12245 = vpop.xlane.xlu0 %12244
    %v12246 = vsel %vm5899, %v11938, 0.0
    %12247 = vadd.xlane.f32.xlu0 %v12246
    %v12248 = vpop.xlane.xlu0 %12247
    %v12249 = vsel %vm5899, %v11939, 0.0
    %12250 = vadd.xlane.f32.xlu0 %v12249
    %v12251 = vpop.xlane.xlu0 %12250
    %v12252 = vsel %vm5899, %v11940, 0.0
    %12253 = vadd.xlane.f32.xlu0 %v12252
    %v12254 = vpop.xlane.xlu0 %12253
    %v12255 = vsel %vm5899, %v11941, 0.0
    %12256 = vadd.xlane.f32.xlu0 %v12255
    %v12257 = vpop.xlane.xlu0 %12256
    %v12258 = vsel %vm5899, %v11942, 0.0
    %12259 = vadd.xlane.f32.xlu0 %v12258
    %v12260 = vpop.xlane.xlu0 %12259
    %v12261 = vsel %vm5899, %v11943, 0.0
    %12262 = vadd.xlane.f32.xlu0 %v12261
    %v12263 = vpop.xlane.xlu0 %12262
    %v12264 = vsel %vm5899, %v11944, 0.0
    %12265 = vadd.xlane.f32.xlu0 %v12264
    %v12266 = vpop.xlane.xlu0 %12265
    %v12267 = vsel %vm5899, %v11945, 0.0
    %12268 = vadd.xlane.f32.xlu0 %v12267
    %v12269 = vpop.xlane.xlu0 %12268
    %v12270 = vsel %vm5899, %v11946, 0.0
    %12271 = vadd.xlane.f32.xlu0 %v12270
    %v12272 = vpop.xlane.xlu0 %12271
    %v12273 = vsel %vm5899, %v11947, 0.0
    %12274 = vadd.xlane.f32.xlu0 %v12273
    %v12275 = vpop.xlane.xlu0 %12274
    %v12276 = vsel %vm5899, %v11948, 0.0
    %12277 = vadd.xlane.f32.xlu0 %v12276
    %v12278 = vpop.xlane.xlu0 %12277
    %v12279 = vsel %vm5899, %v11949, 0.0
    %12280 = vadd.xlane.f32.xlu0 %v12279
    %v12281 = vpop.xlane.xlu0 %12280
    %v12282 = vsel %vm5899, %v11950, 0.0
    %12283 = vadd.xlane.f32.xlu0 %v12282
    %v12284 = vpop.xlane.xlu0 %12283
    %v12285 = vsel %vm5899, %v11951, 0.0
    %12286 = vadd.xlane.f32.xlu0 %v12285
    %v12287 = vpop.xlane.xlu0 %12286
    %v12288 = vsel %vm5899, %v11952, 0.0
    %12289 = vadd.xlane.f32.xlu0 %v12288
    %v12290 = vpop.xlane.xlu0 %12289
    %v12291 = vsel %vm5899, %v11953, 0.0
    %12292 = vadd.xlane.f32.xlu0 %v12291
    %v12293 = vpop.xlane.xlu0 %12292
    %v12294 = vsel %vm5899, %v11954, 0.0
    %12295 = vadd.xlane.f32.xlu0 %v12294
    %v12296 = vpop.xlane.xlu0 %12295
    %v12297 = vsel %vm5899, %v11955, 0.0
    %12298 = vadd.xlane.f32.xlu0 %v12297
    %v12299 = vpop.xlane.xlu0 %12298
    %v12300 = vsel %vm5899, %v11956, 0.0
    %12301 = vadd.xlane.f32.xlu0 %v12300
    %v12302 = vpop.xlane.xlu0 %12301
    %v12303 = vsel %vm5899, %v11957, 0.0
    %12304 = vadd.xlane.f32.xlu0 %v12303
    %v12305 = vpop.xlane.xlu0 %12304
    %v12306 = vsel %vm5899, %v11958, 0.0
    %12307 = vadd.xlane.f32.xlu0 %v12306
    %v12308 = vpop.xlane.xlu0 %12307
    %v12309 = vsel %vm5899, %v11959, 0.0
    %12310 = vadd.xlane.f32.xlu0 %v12309
    %v12311 = vpop.xlane.xlu0 %12310
    %v12312 = vsel %vm5899, %v11960, 0.0
    %12313 = vadd.xlane.f32.xlu0 %v12312
    %v12314 = vpop.xlane.xlu0 %12313
    %v12315 = vsel %vm5899, %v11961, 0.0
    %12316 = vadd.xlane.f32.xlu0 %v12315
    %v12317 = vpop.xlane.xlu0 %12316
    %v12318 = vsel %vm5899, %v11962, 0.0
    %12319 = vadd.xlane.f32.xlu0 %v12318
    %v12320 = vpop.xlane.xlu0 %12319
    %v12321 = vsel %vm5899, %v11963, 0.0
    %12322 = vadd.xlane.f32.xlu0 %v12321
    %v12323 = vpop.xlane.xlu0 %12322
    %v12324 = vsel %vm5899, %v11964, 0.0
    %12325 = vadd.xlane.f32.xlu0 %v12324
    %v12326 = vpop.xlane.xlu0 %12325
    %v12327 = vsel %vm5899, %v11965, 0.0
    %12328 = vadd.xlane.f32.xlu0 %v12327
    %v12329 = vpop.xlane.xlu0 %12328
    %v12330 = vsel %vm5899, %v11966, 0.0
    %12331 = vadd.xlane.f32.xlu0 %v12330
    %v12332 = vpop.xlane.xlu0 %12331
    %v12333 = vsel %vm5899, %v11967, 0.0
    %12334 = vadd.xlane.f32.xlu0 %v12333
    %v12335 = vpop.xlane.xlu0 %12334
    %v12336 = vsel %vm5899, %v11968, 0.0
    %12337 = vadd.xlane.f32.xlu0 %v12336
    %v12338 = vpop.xlane.xlu0 %12337
    %v12339 = vsel %vm5899, %v11969, 0.0
    %12340 = vadd.xlane.f32.xlu0 %v12339
    %v12341 = vpop.xlane.xlu0 %12340
    %v12342 = vsel %vm5899, %v11970, 0.0
    %12343 = vadd.xlane.f32.xlu0 %v12342
    %v12344 = vpop.xlane.xlu0 %12343
    %v12345 = vsel %vm5899, %v11971, 0.0
    %12346 = vadd.xlane.f32.xlu0 %v12345
    %v12347 = vpop.xlane.xlu0 %12346
    %v12348 = vsel %vm5899, %v11972, 0.0
    %12349 = vadd.xlane.f32.xlu0 %v12348
    %v12350 = vpop.xlane.xlu0 %12349
    %v12351 = vsel %vm5899, %v11973, 0.0
    %12352 = vadd.xlane.f32.xlu0 %v12351
    %v12353 = vpop.xlane.xlu0 %12352
    %v12354 = vsel %vm5899, %v11974, 0.0
    %12355 = vadd.xlane.f32.xlu0 %v12354
    %v12356 = vpop.xlane.xlu0 %12355
    %v12357 = vsel %vm5899, %v11975, 0.0
    %12358 = vadd.xlane.f32.xlu0 %v12357
    %v12359 = vpop.xlane.xlu0 %12358
    %s12360 = scalar_lea.vmem %s5, 96
    %v12361 = vld [vmem:[%s12360] sm:$0xf]
    %v12362 = vld [vmem:[%s12360 + $0x4] sm:$0xf]
    %v12363 = vld [vmem:[%s12360 + $0x8] sm:$0xf]
    %v12364 = vld [vmem:[%s12360 + $0xc] sm:$0xf]
    %v12365 = vld [vmem:[%s12360 + $0x10] sm:$0xf]
    %v12366 = vld [vmem:[%s12360 + $0x14] sm:$0xf]
    %v12367 = vld [vmem:[%s12360 + $0x18] sm:$0xf]
    %v12368 = vld [vmem:[%s12360 + $0x1c] sm:$0xf]
    %v12369 = vpack.c.bf16 %v11981, %v11978
    %v12370 = vpack.c.bf16 %v11987, %v11984
    %v12371 = vpack.c.bf16 %v11993, %v11990
    %v12372 = vpack.c.bf16 %v11999, %v11996
    %v12373 = vpack.c.bf16 %v12005, %v12002
    %v12374 = vpack.c.bf16 %v12011, %v12008
    %v12375 = vpack.c.bf16 %v12017, %v12014
    %v12376 = vpack.c.bf16 %v12023, %v12020
    %v12377 = vpack.c.bf16 %v12029, %v12026
    %v12378 = vpack.c.bf16 %v12035, %v12032
    %v12379 = vpack.c.bf16 %v12041, %v12038
    %v12380 = vpack.c.bf16 %v12047, %v12044
    %v12381 = vpack.c.bf16 %v12053, %v12050
    %v12382 = vpack.c.bf16 %v12059, %v12056
    %v12383 = vpack.c.bf16 %v12065, %v12062
    %v12384 = vpack.c.bf16 %v12071, %v12068
    %v12385 = vpack.c.bf16 %v12077, %v12074
    %v12386 = vpack.c.bf16 %v12083, %v12080
    %v12387 = vpack.c.bf16 %v12089, %v12086
    %v12388 = vpack.c.bf16 %v12095, %v12092
    %v12389 = vpack.c.bf16 %v12101, %v12098
    %v12390 = vpack.c.bf16 %v12107, %v12104
    %v12391 = vpack.c.bf16 %v12113, %v12110
    %v12392 = vpack.c.bf16 %v12119, %v12116
    %v12393 = vpack.c.bf16 %v12125, %v12122
    %v12394 = vpack.c.bf16 %v12131, %v12128
    %v12395 = vpack.c.bf16 %v12137, %v12134
    %v12396 = vpack.c.bf16 %v12143, %v12140
    %v12397 = vpack.c.bf16 %v12149, %v12146
    %v12398 = vpack.c.bf16 %v12155, %v12152
    %v12399 = vpack.c.bf16 %v12161, %v12158
    %v12400 = vpack.c.bf16 %v12167, %v12164
    %v12401 = vpack.c.bf16 %v12173, %v12170
    %v12402 = vpack.c.bf16 %v12179, %v12176
    %v12403 = vpack.c.bf16 %v12185, %v12182
    %v12404 = vpack.c.bf16 %v12191, %v12188
    %v12405 = vpack.c.bf16 %v12197, %v12194
    %v12406 = vpack.c.bf16 %v12203, %v12200
    %v12407 = vpack.c.bf16 %v12209, %v12206
    %v12408 = vpack.c.bf16 %v12215, %v12212
    %v12409 = vpack.c.bf16 %v12221, %v12218
    %v12410 = vpack.c.bf16 %v12227, %v12224
    %v12411 = vpack.c.bf16 %v12233, %v12230
    %v12412 = vpack.c.bf16 %v12239, %v12236
    %v12413 = vpack.c.bf16 %v12245, %v12242
    %v12414 = vpack.c.bf16 %v12251, %v12248
    %v12415 = vpack.c.bf16 %v12257, %v12254
    %v12416 = vpack.c.bf16 %v12263, %v12260
    %v12417 = vpack.c.bf16 %v12269, %v12266
    %v12418 = vpack.c.bf16 %v12275, %v12272
    %v12419 = vpack.c.bf16 %v12281, %v12278
    %v12420 = vpack.c.bf16 %v12287, %v12284
    %v12421 = vpack.c.bf16 %v12293, %v12290
    %v12422 = vpack.c.bf16 %v12299, %v12296
    %v12423 = vpack.c.bf16 %v12305, %v12302
    %v12424 = vpack.c.bf16 %v12311, %v12308
    %v12425 = vpack.c.bf16 %v12317, %v12314
    %v12426 = vpack.c.bf16 %v12323, %v12320
    %v12427 = vpack.c.bf16 %v12329, %v12326
    %v12428 = vpack.c.bf16 %v12335, %v12332
    %v12429 = vpack.c.bf16 %v12341, %v12338
    %v12430 = vpack.c.bf16 %v12347, %v12344
    %v12431 = vpack.c.bf16 %v12353, %v12350
    %v12432 = vpack.c.bf16 %v12359, %v12356
    %v12497 = vunpack.c.l.b16 %v12369
    %v12498 = vunpack.c.h.b16 %v12369
    %v12499 = vunpack.c.l.b16 %v12370
    %v12500 = vunpack.c.h.b16 %v12370
    %v12501 = vunpack.c.l.b16 %v12371
    %v12502 = vunpack.c.h.b16 %v12371
    %v12503 = vunpack.c.l.b16 %v12372
    %v12504 = vunpack.c.h.b16 %v12372
    %v12505 = vunpack.c.l.b16 %v12373
    %v12506 = vunpack.c.h.b16 %v12373
    %v12507 = vunpack.c.l.b16 %v12374
    %v12508 = vunpack.c.h.b16 %v12374
    %v12509 = vunpack.c.l.b16 %v12375
    %v12510 = vunpack.c.h.b16 %v12375
    %v12511 = vunpack.c.l.b16 %v12376
    %v12512 = vunpack.c.h.b16 %v12376
    %v12513 = vunpack.c.l.b16 %v12377
    %v12514 = vunpack.c.h.b16 %v12377
    %v12515 = vunpack.c.l.b16 %v12378
    %v12516 = vunpack.c.h.b16 %v12378
    %v12517 = vunpack.c.l.b16 %v12379
    %v12518 = vunpack.c.h.b16 %v12379
    %v12519 = vunpack.c.l.b16 %v12380
    %v12520 = vunpack.c.h.b16 %v12380
    %v12521 = vunpack.c.l.b16 %v12381
    %v12522 = vunpack.c.h.b16 %v12381
    %v12523 = vunpack.c.l.b16 %v12382
    %v12524 = vunpack.c.h.b16 %v12382
    %v12525 = vunpack.c.l.b16 %v12383
    %v12526 = vunpack.c.h.b16 %v12383
    %v12527 = vunpack.c.l.b16 %v12384
    %v12528 = vunpack.c.h.b16 %v12384
    %v12529 = vunpack.c.l.b16 %v12385
    %v12530 = vunpack.c.h.b16 %v12385
    %v12531 = vunpack.c.l.b16 %v12386
    %v12532 = vunpack.c.h.b16 %v12386
    %v12533 = vunpack.c.l.b16 %v12387
    %v12534 = vunpack.c.h.b16 %v12387
    %v12535 = vunpack.c.l.b16 %v12388
    %v12536 = vunpack.c.h.b16 %v12388
    %v12537 = vunpack.c.l.b16 %v12389
    %v12538 = vunpack.c.h.b16 %v12389
    %v12539 = vunpack.c.l.b16 %v12390
    %v12540 = vunpack.c.h.b16 %v12390
    %v12541 = vunpack.c.l.b16 %v12391
    %v12542 = vunpack.c.h.b16 %v12391
    %v12543 = vunpack.c.l.b16 %v12392
    %v12544 = vunpack.c.h.b16 %v12392
    %v12545 = vunpack.c.l.b16 %v12393
    %v12546 = vunpack.c.h.b16 %v12393
    %v12547 = vunpack.c.l.b16 %v12394
    %v12548 = vunpack.c.h.b16 %v12394
    %v12549 = vunpack.c.l.b16 %v12395
    %v12550 = vunpack.c.h.b16 %v12395
    %v12551 = vunpack.c.l.b16 %v12396
    %v12552 = vunpack.c.h.b16 %v12396
    %v12553 = vunpack.c.l.b16 %v12397
    %v12554 = vunpack.c.h.b16 %v12397
    %v12555 = vunpack.c.l.b16 %v12398
    %v12556 = vunpack.c.h.b16 %v12398
    %v12557 = vunpack.c.l.b16 %v12399
    %v12558 = vunpack.c.h.b16 %v12399
    %v12559 = vunpack.c.l.b16 %v12400
    %v12560 = vunpack.c.h.b16 %v12400
    %v12561 = vunpack.c.l.b16 %v12401
    %v12562 = vunpack.c.h.b16 %v12401
    %v12563 = vunpack.c.l.b16 %v12402
    %v12564 = vunpack.c.h.b16 %v12402
    %v12565 = vunpack.c.l.b16 %v12403
    %v12566 = vunpack.c.h.b16 %v12403
    %v12567 = vunpack.c.l.b16 %v12404
    %v12568 = vunpack.c.h.b16 %v12404
    %v12569 = vunpack.c.l.b16 %v12405
    %v12570 = vunpack.c.h.b16 %v12405
    %v12571 = vunpack.c.l.b16 %v12406
    %v12572 = vunpack.c.h.b16 %v12406
    %v12573 = vunpack.c.l.b16 %v12407
    %v12574 = vunpack.c.h.b16 %v12407
    %v12575 = vunpack.c.l.b16 %v12408
    %v12576 = vunpack.c.h.b16 %v12408
    %v12577 = vunpack.c.l.b16 %v12409
    %v12578 = vunpack.c.h.b16 %v12409
    %v12579 = vunpack.c.l.b16 %v12410
    %v12580 = vunpack.c.h.b16 %v12410
    %v12581 = vunpack.c.l.b16 %v12411
    %v12582 = vunpack.c.h.b16 %v12411
    %v12583 = vunpack.c.l.b16 %v12412
    %v12584 = vunpack.c.h.b16 %v12412
    %v12585 = vunpack.c.l.b16 %v12413
    %v12586 = vunpack.c.h.b16 %v12413
    %v12587 = vunpack.c.l.b16 %v12414
    %v12588 = vunpack.c.h.b16 %v12414
    %v12589 = vunpack.c.l.b16 %v12415
    %v12590 = vunpack.c.h.b16 %v12415
    %v12591 = vunpack.c.l.b16 %v12416
    %v12592 = vunpack.c.h.b16 %v12416
    %v12593 = vunpack.c.l.b16 %v12417
    %v12594 = vunpack.c.h.b16 %v12417
    %v12595 = vunpack.c.l.b16 %v12418
    %v12596 = vunpack.c.h.b16 %v12418
    %v12597 = vunpack.c.l.b16 %v12419
    %v12598 = vunpack.c.h.b16 %v12419
    %v12599 = vunpack.c.l.b16 %v12420
    %v12600 = vunpack.c.h.b16 %v12420
    %v12601 = vunpack.c.l.b16 %v12421
    %v12602 = vunpack.c.h.b16 %v12421
    %v12603 = vunpack.c.l.b16 %v12422
    %v12604 = vunpack.c.h.b16 %v12422
    %v12605 = vunpack.c.l.b16 %v12423
    %v12606 = vunpack.c.h.b16 %v12423
    %v12607 = vunpack.c.l.b16 %v12424
    %v12608 = vunpack.c.h.b16 %v12424
    %v12609 = vunpack.c.l.b16 %v12425
    %v12610 = vunpack.c.h.b16 %v12425
    %v12611 = vunpack.c.l.b16 %v12426
    %v12612 = vunpack.c.h.b16 %v12426
    %v12613 = vunpack.c.l.b16 %v12427
    %v12614 = vunpack.c.h.b16 %v12427
    %v12615 = vunpack.c.l.b16 %v12428
    %v12616 = vunpack.c.h.b16 %v12428
    %v12617 = vunpack.c.l.b16 %v12429
    %v12618 = vunpack.c.h.b16 %v12429
    %v12619 = vunpack.c.l.b16 %v12430
    %v12620 = vunpack.c.h.b16 %v12430
    %v12621 = vunpack.c.l.b16 %v12431
    %v12622 = vunpack.c.h.b16 %v12431
    %v12623 = vunpack.c.l.b16 %v12432
    %v12624 = vunpack.c.h.b16 %v12432
    %v12625 = vlaneseq
    %v12626 = vshrl.u32 %v12625, 7
    %v12627 = vsub.s32 %v8506, %v12626
    %v12628 = vrot.slane %v12497, %v12627
    %v12629 = vlaneseq
    %v12630 = vshrl.u32 %v12629, 7
    %v12631 = vsub.s32 %v8511, %v12630
    %v12632 = vrot.slane %v12498, %v12631
    %v12633 = vsel %vm8516, %v12632, %v12628
    %v12634 = vlaneseq
    %v12635 = vshrl.u32 %v12634, 7
    %v12636 = vsub.s32 %v8518, %v12635
    %v12637 = vrot.slane %v12499, %v12636
    %v12638 = vsel %vm8523, %v12637, %v12633
    %v12639 = vlaneseq
    %v12640 = vshrl.u32 %v12639, 7
    %v12641 = vsub.s32 %v8525, %v12640
    %v12642 = vrot.slane %v12500, %v12641
    %v12643 = vsel %vm8530, %v12642, %v12638
    %v12644 = vlaneseq
    %v12645 = vshrl.u32 %v12644, 7
    %v12646 = vsub.s32 %v8532, %v12645
    %v12647 = vrot.slane %v12501, %v12646
    %v12648 = vsel %vm8537, %v12647, %v12643
    %v12649 = vlaneseq
    %v12650 = vshrl.u32 %v12649, 7
    %v12651 = vsub.s32 %v8539, %v12650
    %v12652 = vrot.slane %v12502, %v12651
    %v12653 = vsel %vm8544, %v12652, %v12648
    %v12654 = vlaneseq
    %v12655 = vshrl.u32 %v12654, 7
    %v12656 = vsub.s32 %v8546, %v12655
    %v12657 = vrot.slane %v12503, %v12656
    %v12658 = vsel %vm8551, %v12657, %v12653
    %v12659 = vlaneseq
    %v12660 = vshrl.u32 %v12659, 7
    %v12661 = vsub.s32 %v8553, %v12660
    %v12662 = vrot.slane %v12504, %v12661
    %v12663 = vsel %vm8558, %v12662, %v12658
    %v12664 = vlaneseq
    %v12665 = vshrl.u32 %v12664, 7
    %v12666 = vsub.s32 %v8506, %v12665
    %v12667 = vrot.slane %v12505, %v12666
    %v12668 = vlaneseq
    %v12669 = vshrl.u32 %v12668, 7
    %v12670 = vsub.s32 %v8511, %v12669
    %v12671 = vrot.slane %v12506, %v12670
    %v12672 = vsel %vm8516, %v12671, %v12667
    %v12673 = vlaneseq
    %v12674 = vshrl.u32 %v12673, 7
    %v12675 = vsub.s32 %v8518, %v12674
    %v12676 = vrot.slane %v12507, %v12675
    %v12677 = vsel %vm8523, %v12676, %v12672
    %v12678 = vlaneseq
    %v12679 = vshrl.u32 %v12678, 7
    %v12680 = vsub.s32 %v8525, %v12679
    %v12681 = vrot.slane %v12508, %v12680
    %v12682 = vsel %vm8530, %v12681, %v12677
    %v12683 = vlaneseq
    %v12684 = vshrl.u32 %v12683, 7
    %v12685 = vsub.s32 %v8532, %v12684
    %v12686 = vrot.slane %v12509, %v12685
    %v12687 = vsel %vm8537, %v12686, %v12682
    %v12688 = vlaneseq
    %v12689 = vshrl.u32 %v12688, 7
    %v12690 = vsub.s32 %v8539, %v12689
    %v12691 = vrot.slane %v12510, %v12690
    %v12692 = vsel %vm8544, %v12691, %v12687
    %v12693 = vlaneseq
    %v12694 = vshrl.u32 %v12693, 7
    %v12695 = vsub.s32 %v8546, %v12694
    %v12696 = vrot.slane %v12511, %v12695
    %v12697 = vsel %vm8551, %v12696, %v12692
    %v12698 = vlaneseq
    %v12699 = vshrl.u32 %v12698, 7
    %v12700 = vsub.s32 %v8553, %v12699
    %v12701 = vrot.slane %v12512, %v12700
    %v12702 = vsel %vm8558, %v12701, %v12697
    %v12703 = vlaneseq
    %v12704 = vshrl.u32 %v12703, 7
    %v12705 = vsub.s32 %v8506, %v12704
    %v12706 = vrot.slane %v12513, %v12705
    %v12707 = vlaneseq
    %v12708 = vshrl.u32 %v12707, 7
    %v12709 = vsub.s32 %v8511, %v12708
    %v12710 = vrot.slane %v12514, %v12709
    %v12711 = vsel %vm8516, %v12710, %v12706
    %v12712 = vlaneseq
    %v12713 = vshrl.u32 %v12712, 7
    %v12714 = vsub.s32 %v8518, %v12713
    %v12715 = vrot.slane %v12515, %v12714
    %v12716 = vsel %vm8523, %v12715, %v12711
    %v12717 = vlaneseq
    %v12718 = vshrl.u32 %v12717, 7
    %v12719 = vsub.s32 %v8525, %v12718
    %v12720 = vrot.slane %v12516, %v12719
    %v12721 = vsel %vm8530, %v12720, %v12716
    %v12722 = vlaneseq
    %v12723 = vshrl.u32 %v12722, 7
    %v12724 = vsub.s32 %v8532, %v12723
    %v12725 = vrot.slane %v12517, %v12724
    %v12726 = vsel %vm8537, %v12725, %v12721
    %v12727 = vlaneseq
    %v12728 = vshrl.u32 %v12727, 7
    %v12729 = vsub.s32 %v8539, %v12728
    %v12730 = vrot.slane %v12518, %v12729
    %v12731 = vsel %vm8544, %v12730, %v12726
    %v12732 = vlaneseq
    %v12733 = vshrl.u32 %v12732, 7
    %v12734 = vsub.s32 %v8546, %v12733
    %v12735 = vrot.slane %v12519, %v12734
    %v12736 = vsel %vm8551, %v12735, %v12731
    %v12737 = vlaneseq
    %v12738 = vshrl.u32 %v12737, 7
    %v12739 = vsub.s32 %v8553, %v12738
    %v12740 = vrot.slane %v12520, %v12739
    %v12741 = vsel %vm8558, %v12740, %v12736
    %v12742 = vlaneseq
    %v12743 = vshrl.u32 %v12742, 7
    %v12744 = vsub.s32 %v8506, %v12743
    %v12745 = vrot.slane %v12521, %v12744
    %v12746 = vlaneseq
    %v12747 = vshrl.u32 %v12746, 7
    %v12748 = vsub.s32 %v8511, %v12747
    %v12749 = vrot.slane %v12522, %v12748
    %v12750 = vsel %vm8516, %v12749, %v12745
    %v12751 = vlaneseq
    %v12752 = vshrl.u32 %v12751, 7
    %v12753 = vsub.s32 %v8518, %v12752
    %v12754 = vrot.slane %v12523, %v12753
    %v12755 = vsel %vm8523, %v12754, %v12750
    %v12756 = vlaneseq
    %v12757 = vshrl.u32 %v12756, 7
    %v12758 = vsub.s32 %v8525, %v12757
    %v12759 = vrot.slane %v12524, %v12758
    %v12760 = vsel %vm8530, %v12759, %v12755
    %v12761 = vlaneseq
    %v12762 = vshrl.u32 %v12761, 7
    %v12763 = vsub.s32 %v8532, %v12762
    %v12764 = vrot.slane %v12525, %v12763
    %v12765 = vsel %vm8537, %v12764, %v12760
    %v12766 = vlaneseq
    %v12767 = vshrl.u32 %v12766, 7
    %v12768 = vsub.s32 %v8539, %v12767
    %v12769 = vrot.slane %v12526, %v12768
    %v12770 = vsel %vm8544, %v12769, %v12765
    %v12771 = vlaneseq
    %v12772 = vshrl.u32 %v12771, 7
    %v12773 = vsub.s32 %v8546, %v12772
    %v12774 = vrot.slane %v12527, %v12773
    %v12775 = vsel %vm8551, %v12774, %v12770
    %v12776 = vlaneseq
    %v12777 = vshrl.u32 %v12776, 7
    %v12778 = vsub.s32 %v8553, %v12777
    %v12779 = vrot.slane %v12528, %v12778
    %v12780 = vsel %vm8558, %v12779, %v12775
    %v12781 = vlaneseq
    %v12782 = vshrl.u32 %v12781, 7
    %v12783 = vsub.s32 %v8506, %v12782
    %v12784 = vrot.slane %v12529, %v12783
    %v12785 = vlaneseq
    %v12786 = vshrl.u32 %v12785, 7
    %v12787 = vsub.s32 %v8511, %v12786
    %v12788 = vrot.slane %v12530, %v12787
    %v12789 = vsel %vm8516, %v12788, %v12784
    %v12790 = vlaneseq
    %v12791 = vshrl.u32 %v12790, 7
    %v12792 = vsub.s32 %v8518, %v12791
    %v12793 = vrot.slane %v12531, %v12792
    %v12794 = vsel %vm8523, %v12793, %v12789
    %v12795 = vlaneseq
    %v12796 = vshrl.u32 %v12795, 7
    %v12797 = vsub.s32 %v8525, %v12796
    %v12798 = vrot.slane %v12532, %v12797
    %v12799 = vsel %vm8530, %v12798, %v12794
    %v12800 = vlaneseq
    %v12801 = vshrl.u32 %v12800, 7
    %v12802 = vsub.s32 %v8532, %v12801
    %v12803 = vrot.slane %v12533, %v12802
    %v12804 = vsel %vm8537, %v12803, %v12799
    %v12805 = vlaneseq
    %v12806 = vshrl.u32 %v12805, 7
    %v12807 = vsub.s32 %v8539, %v12806
    %v12808 = vrot.slane %v12534, %v12807
    %v12809 = vsel %vm8544, %v12808, %v12804
    %v12810 = vlaneseq
    %v12811 = vshrl.u32 %v12810, 7
    %v12812 = vsub.s32 %v8546, %v12811
    %v12813 = vrot.slane %v12535, %v12812
    %v12814 = vsel %vm8551, %v12813, %v12809
    %v12815 = vlaneseq
    %v12816 = vshrl.u32 %v12815, 7
    %v12817 = vsub.s32 %v8553, %v12816
    %v12818 = vrot.slane %v12536, %v12817
    %v12819 = vsel %vm8558, %v12818, %v12814
    %v12820 = vlaneseq
    %v12821 = vshrl.u32 %v12820, 7
    %v12822 = vsub.s32 %v8506, %v12821
    %v12823 = vrot.slane %v12537, %v12822
    %v12824 = vlaneseq
    %v12825 = vshrl.u32 %v12824, 7
    %v12826 = vsub.s32 %v8511, %v12825
    %v12827 = vrot.slane %v12538, %v12826
    %v12828 = vsel %vm8516, %v12827, %v12823
    %v12829 = vlaneseq
    %v12830 = vshrl.u32 %v12829, 7
    %v12831 = vsub.s32 %v8518, %v12830
    %v12832 = vrot.slane %v12539, %v12831
    %v12833 = vsel %vm8523, %v12832, %v12828
    %v12834 = vlaneseq
    %v12835 = vshrl.u32 %v12834, 7
    %v12836 = vsub.s32 %v8525, %v12835
    %v12837 = vrot.slane %v12540, %v12836
    %v12838 = vsel %vm8530, %v12837, %v12833
    %v12839 = vlaneseq
    %v12840 = vshrl.u32 %v12839, 7
    %v12841 = vsub.s32 %v8532, %v12840
    %v12842 = vrot.slane %v12541, %v12841
    %v12843 = vsel %vm8537, %v12842, %v12838
    %v12844 = vlaneseq
    %v12845 = vshrl.u32 %v12844, 7
    %v12846 = vsub.s32 %v8539, %v12845
    %v12847 = vrot.slane %v12542, %v12846
    %v12848 = vsel %vm8544, %v12847, %v12843
    %v12849 = vlaneseq
    %v12850 = vshrl.u32 %v12849, 7
    %v12851 = vsub.s32 %v8546, %v12850
    %v12852 = vrot.slane %v12543, %v12851
    %v12853 = vsel %vm8551, %v12852, %v12848
    %v12854 = vlaneseq
    %v12855 = vshrl.u32 %v12854, 7
    %v12856 = vsub.s32 %v8553, %v12855
    %v12857 = vrot.slane %v12544, %v12856
    %v12858 = vsel %vm8558, %v12857, %v12853
    %v12859 = vlaneseq
    %v12860 = vshrl.u32 %v12859, 7
    %v12861 = vsub.s32 %v8506, %v12860
    %v12862 = vrot.slane %v12545, %v12861
    %v12863 = vlaneseq
    %v12864 = vshrl.u32 %v12863, 7
    %v12865 = vsub.s32 %v8511, %v12864
    %v12866 = vrot.slane %v12546, %v12865
    %v12867 = vsel %vm8516, %v12866, %v12862
    %v12868 = vlaneseq
    %v12869 = vshrl.u32 %v12868, 7
    %v12870 = vsub.s32 %v8518, %v12869
    %v12871 = vrot.slane %v12547, %v12870
    %v12872 = vsel %vm8523, %v12871, %v12867
    %v12873 = vlaneseq
    %v12874 = vshrl.u32 %v12873, 7
    %v12875 = vsub.s32 %v8525, %v12874
    %v12876 = vrot.slane %v12548, %v12875
    %v12877 = vsel %vm8530, %v12876, %v12872
    %v12878 = vlaneseq
    %v12879 = vshrl.u32 %v12878, 7
    %v12880 = vsub.s32 %v8532, %v12879
    %v12881 = vrot.slane %v12549, %v12880
    %v12882 = vsel %vm8537, %v12881, %v12877
    %v12883 = vlaneseq
    %v12884 = vshrl.u32 %v12883, 7
    %v12885 = vsub.s32 %v8539, %v12884
    %v12886 = vrot.slane %v12550, %v12885
    %v12887 = vsel %vm8544, %v12886, %v12882
    %v12888 = vlaneseq
    %v12889 = vshrl.u32 %v12888, 7
    %v12890 = vsub.s32 %v8546, %v12889
    %v12891 = vrot.slane %v12551, %v12890
    %v12892 = vsel %vm8551, %v12891, %v12887
    %v12893 = vlaneseq
    %v12894 = vshrl.u32 %v12893, 7
    %v12895 = vsub.s32 %v8553, %v12894
    %v12896 = vrot.slane %v12552, %v12895
    %v12897 = vsel %vm8558, %v12896, %v12892
    %v12898 = vlaneseq
    %v12899 = vshrl.u32 %v12898, 7
    %v12900 = vsub.s32 %v8506, %v12899
    %v12901 = vrot.slane %v12553, %v12900
    %v12902 = vlaneseq
    %v12903 = vshrl.u32 %v12902, 7
    %v12904 = vsub.s32 %v8511, %v12903
    %v12905 = vrot.slane %v12554, %v12904
    %v12906 = vsel %vm8516, %v12905, %v12901
    %v12907 = vlaneseq
    %v12908 = vshrl.u32 %v12907, 7
    %v12909 = vsub.s32 %v8518, %v12908
    %v12910 = vrot.slane %v12555, %v12909
    %v12911 = vsel %vm8523, %v12910, %v12906
    %v12912 = vlaneseq
    %v12913 = vshrl.u32 %v12912, 7
    %v12914 = vsub.s32 %v8525, %v12913
    %v12915 = vrot.slane %v12556, %v12914
    %v12916 = vsel %vm8530, %v12915, %v12911
    %v12917 = vlaneseq
    %v12918 = vshrl.u32 %v12917, 7
    %v12919 = vsub.s32 %v8532, %v12918
    %v12920 = vrot.slane %v12557, %v12919
    %v12921 = vsel %vm8537, %v12920, %v12916
    %v12922 = vlaneseq
    %v12923 = vshrl.u32 %v12922, 7
    %v12924 = vsub.s32 %v8539, %v12923
    %v12925 = vrot.slane %v12558, %v12924
    %v12926 = vsel %vm8544, %v12925, %v12921
    %v12927 = vlaneseq
    %v12928 = vshrl.u32 %v12927, 7
    %v12929 = vsub.s32 %v8546, %v12928
    %v12930 = vrot.slane %v12559, %v12929
    %v12931 = vsel %vm8551, %v12930, %v12926
    %v12932 = vlaneseq
    %v12933 = vshrl.u32 %v12932, 7
    %v12934 = vsub.s32 %v8553, %v12933
    %v12935 = vrot.slane %v12560, %v12934
    %v12936 = vsel %vm8558, %v12935, %v12931
    %v12937 = vlaneseq
    %v12938 = vshrl.u32 %v12937, 7
    %v12939 = vsub.s32 %v8506, %v12938
    %v12940 = vrot.slane %v12561, %v12939
    %v12941 = vlaneseq
    %v12942 = vshrl.u32 %v12941, 7
    %v12943 = vsub.s32 %v8511, %v12942
    %v12944 = vrot.slane %v12562, %v12943
    %v12945 = vsel %vm8516, %v12944, %v12940
    %v12946 = vlaneseq
    %v12947 = vshrl.u32 %v12946, 7
    %v12948 = vsub.s32 %v8518, %v12947
    %v12949 = vrot.slane %v12563, %v12948
    %v12950 = vsel %vm8523, %v12949, %v12945
    %v12951 = vlaneseq
    %v12952 = vshrl.u32 %v12951, 7
    %v12953 = vsub.s32 %v8525, %v12952
    %v12954 = vrot.slane %v12564, %v12953
    %v12955 = vsel %vm8530, %v12954, %v12950
    %v12956 = vlaneseq
    %v12957 = vshrl.u32 %v12956, 7
    %v12958 = vsub.s32 %v8532, %v12957
    %v12959 = vrot.slane %v12565, %v12958
    %v12960 = vsel %vm8537, %v12959, %v12955
    %v12961 = vlaneseq
    %v12962 = vshrl.u32 %v12961, 7
    %v12963 = vsub.s32 %v8539, %v12962
    %v12964 = vrot.slane %v12566, %v12963
    %v12965 = vsel %vm8544, %v12964, %v12960
    %v12966 = vlaneseq
    %v12967 = vshrl.u32 %v12966, 7
    %v12968 = vsub.s32 %v8546, %v12967
    %v12969 = vrot.slane %v12567, %v12968
    %v12970 = vsel %vm8551, %v12969, %v12965
    %v12971 = vlaneseq
    %v12972 = vshrl.u32 %v12971, 7
    %v12973 = vsub.s32 %v8553, %v12972
    %v12974 = vrot.slane %v12568, %v12973
    %v12975 = vsel %vm8558, %v12974, %v12970
    %v12976 = vlaneseq
    %v12977 = vshrl.u32 %v12976, 7
    %v12978 = vsub.s32 %v8506, %v12977
    %v12979 = vrot.slane %v12569, %v12978
    %v12980 = vlaneseq
    %v12981 = vshrl.u32 %v12980, 7
    %v12982 = vsub.s32 %v8511, %v12981
    %v12983 = vrot.slane %v12570, %v12982
    %v12984 = vsel %vm8516, %v12983, %v12979
    %v12985 = vlaneseq
    %v12986 = vshrl.u32 %v12985, 7
    %v12987 = vsub.s32 %v8518, %v12986
    %v12988 = vrot.slane %v12571, %v12987
    %v12989 = vsel %vm8523, %v12988, %v12984
    %v12990 = vlaneseq
    %v12991 = vshrl.u32 %v12990, 7
    %v12992 = vsub.s32 %v8525, %v12991
    %v12993 = vrot.slane %v12572, %v12992
    %v12994 = vsel %vm8530, %v12993, %v12989
    %v12995 = vlaneseq
    %v12996 = vshrl.u32 %v12995, 7
    %v12997 = vsub.s32 %v8532, %v12996
    %v12998 = vrot.slane %v12573, %v12997
    %v12999 = vsel %vm8537, %v12998, %v12994
    %v13000 = vlaneseq
    %v13001 = vshrl.u32 %v13000, 7
    %v13002 = vsub.s32 %v8539, %v13001
    %v13003 = vrot.slane %v12574, %v13002
    %v13004 = vsel %vm8544, %v13003, %v12999
    %v13005 = vlaneseq
    %v13006 = vshrl.u32 %v13005, 7
    %v13007 = vsub.s32 %v8546, %v13006
    %v13008 = vrot.slane %v12575, %v13007
    %v13009 = vsel %vm8551, %v13008, %v13004
    %v13010 = vlaneseq
    %v13011 = vshrl.u32 %v13010, 7
    %v13012 = vsub.s32 %v8553, %v13011
    %v13013 = vrot.slane %v12576, %v13012
    %v13014 = vsel %vm8558, %v13013, %v13009
    %v13015 = vlaneseq
    %v13016 = vshrl.u32 %v13015, 7
    %v13017 = vsub.s32 %v8506, %v13016
    %v13018 = vrot.slane %v12577, %v13017
    %v13019 = vlaneseq
    %v13020 = vshrl.u32 %v13019, 7
    %v13021 = vsub.s32 %v8511, %v13020
    %v13022 = vrot.slane %v12578, %v13021
    %v13023 = vsel %vm8516, %v13022, %v13018
    %v13024 = vlaneseq
    %v13025 = vshrl.u32 %v13024, 7
    %v13026 = vsub.s32 %v8518, %v13025
    %v13027 = vrot.slane %v12579, %v13026
    %v13028 = vsel %vm8523, %v13027, %v13023
    %v13029 = vlaneseq
    %v13030 = vshrl.u32 %v13029, 7
    %v13031 = vsub.s32 %v8525, %v13030
    %v13032 = vrot.slane %v12580, %v13031
    %v13033 = vsel %vm8530, %v13032, %v13028
    %v13034 = vlaneseq
    %v13035 = vshrl.u32 %v13034, 7
    %v13036 = vsub.s32 %v8532, %v13035
    %v13037 = vrot.slane %v12581, %v13036
    %v13038 = vsel %vm8537, %v13037, %v13033
    %v13039 = vlaneseq
    %v13040 = vshrl.u32 %v13039, 7
    %v13041 = vsub.s32 %v8539, %v13040
    %v13042 = vrot.slane %v12582, %v13041
    %v13043 = vsel %vm8544, %v13042, %v13038
    %v13044 = vlaneseq
    %v13045 = vshrl.u32 %v13044, 7
    %v13046 = vsub.s32 %v8546, %v13045
    %v13047 = vrot.slane %v12583, %v13046
    %v13048 = vsel %vm8551, %v13047, %v13043
    %v13049 = vlaneseq
    %v13050 = vshrl.u32 %v13049, 7
    %v13051 = vsub.s32 %v8553, %v13050
    %v13052 = vrot.slane %v12584, %v13051
    %v13053 = vsel %vm8558, %v13052, %v13048
    %v13054 = vlaneseq
    %v13055 = vshrl.u32 %v13054, 7
    %v13056 = vsub.s32 %v8506, %v13055
    %v13057 = vrot.slane %v12585, %v13056
    %v13058 = vlaneseq
    %v13059 = vshrl.u32 %v13058, 7
    %v13060 = vsub.s32 %v8511, %v13059
    %v13061 = vrot.slane %v12586, %v13060
    %v13062 = vsel %vm8516, %v13061, %v13057
    %v13063 = vlaneseq
    %v13064 = vshrl.u32 %v13063, 7
    %v13065 = vsub.s32 %v8518, %v13064
    %v13066 = vrot.slane %v12587, %v13065
    %v13067 = vsel %vm8523, %v13066, %v13062
    %v13068 = vlaneseq
    %v13069 = vshrl.u32 %v13068, 7
    %v13070 = vsub.s32 %v8525, %v13069
    %v13071 = vrot.slane %v12588, %v13070
    %v13072 = vsel %vm8530, %v13071, %v13067
    %v13073 = vlaneseq
    %v13074 = vshrl.u32 %v13073, 7
    %v13075 = vsub.s32 %v8532, %v13074
    %v13076 = vrot.slane %v12589, %v13075
    %v13077 = vsel %vm8537, %v13076, %v13072
    %v13078 = vlaneseq
    %v13079 = vshrl.u32 %v13078, 7
    %v13080 = vsub.s32 %v8539, %v13079
    %v13081 = vrot.slane %v12590, %v13080
    %v13082 = vsel %vm8544, %v13081, %v13077
    %v13083 = vlaneseq
    %v13084 = vshrl.u32 %v13083, 7
    %v13085 = vsub.s32 %v8546, %v13084
    %v13086 = vrot.slane %v12591, %v13085
    %v13087 = vsel %vm8551, %v13086, %v13082
    %v13088 = vlaneseq
    %v13089 = vshrl.u32 %v13088, 7
    %v13090 = vsub.s32 %v8553, %v13089
    %v13091 = vrot.slane %v12592, %v13090
    %v13092 = vsel %vm8558, %v13091, %v13087
    %v13093 = vlaneseq
    %v13094 = vshrl.u32 %v13093, 7
    %v13095 = vsub.s32 %v8506, %v13094
    %v13096 = vrot.slane %v12593, %v13095
    %v13097 = vlaneseq
    %v13098 = vshrl.u32 %v13097, 7
    %v13099 = vsub.s32 %v8511, %v13098
    %v13100 = vrot.slane %v12594, %v13099
    %v13101 = vsel %vm8516, %v13100, %v13096
    %v13102 = vlaneseq
    %v13103 = vshrl.u32 %v13102, 7
    %v13104 = vsub.s32 %v8518, %v13103
    %v13105 = vrot.slane %v12595, %v13104
    %v13106 = vsel %vm8523, %v13105, %v13101
    %v13107 = vlaneseq
    %v13108 = vshrl.u32 %v13107, 7
    %v13109 = vsub.s32 %v8525, %v13108
    %v13110 = vrot.slane %v12596, %v13109
    %v13111 = vsel %vm8530, %v13110, %v13106
    %v13112 = vlaneseq
    %v13113 = vshrl.u32 %v13112, 7
    %v13114 = vsub.s32 %v8532, %v13113
    %v13115 = vrot.slane %v12597, %v13114
    %v13116 = vsel %vm8537, %v13115, %v13111
    %v13117 = vlaneseq
    %v13118 = vshrl.u32 %v13117, 7
    %v13119 = vsub.s32 %v8539, %v13118
    %v13120 = vrot.slane %v12598, %v13119
    %v13121 = vsel %vm8544, %v13120, %v13116
    %v13122 = vlaneseq
    %v13123 = vshrl.u32 %v13122, 7
    %v13124 = vsub.s32 %v8546, %v13123
    %v13125 = vrot.slane %v12599, %v13124
    %v13126 = vsel %vm8551, %v13125, %v13121
    %v13127 = vlaneseq
    %v13128 = vshrl.u32 %v13127, 7
    %v13129 = vsub.s32 %v8553, %v13128
    %v13130 = vrot.slane %v12600, %v13129
    %v13131 = vsel %vm8558, %v13130, %v13126
    %v13132 = vlaneseq
    %v13133 = vshrl.u32 %v13132, 7
    %v13134 = vsub.s32 %v8506, %v13133
    %v13135 = vrot.slane %v12601, %v13134
    %v13136 = vlaneseq
    %v13137 = vshrl.u32 %v13136, 7
    %v13138 = vsub.s32 %v8511, %v13137
    %v13139 = vrot.slane %v12602, %v13138
    %v13140 = vsel %vm8516, %v13139, %v13135
    %v13141 = vlaneseq
    %v13142 = vshrl.u32 %v13141, 7
    %v13143 = vsub.s32 %v8518, %v13142
    %v13144 = vrot.slane %v12603, %v13143
    %v13145 = vsel %vm8523, %v13144, %v13140
    %v13146 = vlaneseq
    %v13147 = vshrl.u32 %v13146, 7
    %v13148 = vsub.s32 %v8525, %v13147
    %v13149 = vrot.slane %v12604, %v13148
    %v13150 = vsel %vm8530, %v13149, %v13145
    %v13151 = vlaneseq
    %v13152 = vshrl.u32 %v13151, 7
    %v13153 = vsub.s32 %v8532, %v13152
    %v13154 = vrot.slane %v12605, %v13153
    %v13155 = vsel %vm8537, %v13154, %v13150
    %v13156 = vlaneseq
    %v13157 = vshrl.u32 %v13156, 7
    %v13158 = vsub.s32 %v8539, %v13157
    %v13159 = vrot.slane %v12606, %v13158
    %v13160 = vsel %vm8544, %v13159, %v13155
    %v13161 = vlaneseq
    %v13162 = vshrl.u32 %v13161, 7
    %v13163 = vsub.s32 %v8546, %v13162
    %v13164 = vrot.slane %v12607, %v13163
    %v13165 = vsel %vm8551, %v13164, %v13160
    %v13166 = vlaneseq
    %v13167 = vshrl.u32 %v13166, 7
    %v13168 = vsub.s32 %v8553, %v13167
    %v13169 = vrot.slane %v12608, %v13168
    %v13170 = vsel %vm8558, %v13169, %v13165
    %v13171 = vlaneseq
    %v13172 = vshrl.u32 %v13171, 7
    %v13173 = vsub.s32 %v8506, %v13172
    %v13174 = vrot.slane %v12609, %v13173
    %v13175 = vlaneseq
    %v13176 = vshrl.u32 %v13175, 7
    %v13177 = vsub.s32 %v8511, %v13176
    %v13178 = vrot.slane %v12610, %v13177
    %v13179 = vsel %vm8516, %v13178, %v13174
    %v13180 = vlaneseq
    %v13181 = vshrl.u32 %v13180, 7
    %v13182 = vsub.s32 %v8518, %v13181
    %v13183 = vrot.slane %v12611, %v13182
    %v13184 = vsel %vm8523, %v13183, %v13179
    %v13185 = vlaneseq
    %v13186 = vshrl.u32 %v13185, 7
    %v13187 = vsub.s32 %v8525, %v13186
    %v13188 = vrot.slane %v12612, %v13187
    %v13189 = vsel %vm8530, %v13188, %v13184
    %v13190 = vlaneseq
    %v13191 = vshrl.u32 %v13190, 7
    %v13192 = vsub.s32 %v8532, %v13191
    %v13193 = vrot.slane %v12613, %v13192
    %v13194 = vsel %vm8537, %v13193, %v13189
    %v13195 = vlaneseq
    %v13196 = vshrl.u32 %v13195, 7
    %v13197 = vsub.s32 %v8539, %v13196
    %v13198 = vrot.slane %v12614, %v13197
    %v13199 = vsel %vm8544, %v13198, %v13194
    %v13200 = vlaneseq
    %v13201 = vshrl.u32 %v13200, 7
    %v13202 = vsub.s32 %v8546, %v13201
    %v13203 = vrot.slane %v12615, %v13202
    %v13204 = vsel %vm8551, %v13203, %v13199
    %v13205 = vlaneseq
    %v13206 = vshrl.u32 %v13205, 7
    %v13207 = vsub.s32 %v8553, %v13206
    %v13208 = vrot.slane %v12616, %v13207
    %v13209 = vsel %vm8558, %v13208, %v13204
    %v13210 = vlaneseq
    %v13211 = vshrl.u32 %v13210, 7
    %v13212 = vsub.s32 %v8506, %v13211
    %v13213 = vrot.slane %v12617, %v13212
    %v13214 = vlaneseq
    %v13215 = vshrl.u32 %v13214, 7
    %v13216 = vsub.s32 %v8511, %v13215
    %v13217 = vrot.slane %v12618, %v13216
    %v13218 = vsel %vm8516, %v13217, %v13213
    %v13219 = vlaneseq
    %v13220 = vshrl.u32 %v13219, 7
    %v13221 = vsub.s32 %v8518, %v13220
    %v13222 = vrot.slane %v12619, %v13221
    %v13223 = vsel %vm8523, %v13222, %v13218
    %v13224 = vlaneseq
    %v13225 = vshrl.u32 %v13224, 7
    %v13226 = vsub.s32 %v8525, %v13225
    %v13227 = vrot.slane %v12620, %v13226
    %v13228 = vsel %vm8530, %v13227, %v13223
    %v13229 = vlaneseq
    %v13230 = vshrl.u32 %v13229, 7
    %v13231 = vsub.s32 %v8532, %v13230
    %v13232 = vrot.slane %v12621, %v13231
    %v13233 = vsel %vm8537, %v13232, %v13228
    %v13234 = vlaneseq
    %v13235 = vshrl.u32 %v13234, 7
    %v13236 = vsub.s32 %v8539, %v13235
    %v13237 = vrot.slane %v12622, %v13236
    %v13238 = vsel %vm8544, %v13237, %v13233
    %v13239 = vlaneseq
    %v13240 = vshrl.u32 %v13239, 7
    %v13241 = vsub.s32 %v8546, %v13240
    %v13242 = vrot.slane %v12623, %v13241
    %v13243 = vsel %vm8551, %v13242, %v13238
    %v13244 = vlaneseq
    %v13245 = vshrl.u32 %v13244, 7
    %v13246 = vsub.s32 %v8553, %v13245
    %v13247 = vrot.slane %v12624, %v13246
    %v13248 = vsel %vm8558, %v13247, %v13243
    %v13249 = vsel %vm9145, %v12702, %v12663
    %v13250 = vsel %vm9147, %v12741, %v13249
    %v13251 = vsel %vm9149, %v12780, %v13250
    %v13252 = vsel %vm9151, %v12819, %v13251
    %v13253 = vsel %vm9153, %v12858, %v13252
    %v13254 = vsel %vm9155, %v12897, %v13253
    %v13255 = vsel %vm9157, %v12936, %v13254
    %v13256 = vsel %vm9145, %v13014, %v12975
    %v13257 = vsel %vm9147, %v13053, %v13256
    %v13258 = vsel %vm9149, %v13092, %v13257
    %v13259 = vsel %vm9151, %v13131, %v13258
    %v13260 = vsel %vm9153, %v13170, %v13259
    %v13261 = vsel %vm9155, %v13209, %v13260
    %v13262 = vsel %vm9157, %v13248, %v13261
    %v13263 = vpack.c.b16 %v13262, %v13255
    %v13272 = vunpack.c.l.b16 %v12361
    %v13273 = vunpack.c.l.b16 %v12362
    %v13274 = vunpack.c.l.b16 %v12363
    %v13275 = vunpack.c.l.b16 %v12364
    %v13276 = vunpack.c.l.b16 %v12365
    %v13277 = vunpack.c.l.b16 %v12366
    %v13278 = vunpack.c.l.b16 %v12367
    %v13279 = vunpack.c.l.b16 %v12368
    %v13280 = vpack.c.b16 %v13273, %v13272
    %v13281 = vpack.c.b16 %v13275, %v13274
    %v13282 = vpack.c.b16 %v13277, %v13276
    %v13283 = vpack.c.b16 %v13279, %v13278
    %v13289 = vsel %vm5899, %v13263, 0
    %13291 = vmatprep.subr.bf16.mxu0 0
    %13292 = vmatpush1.bf16.msra.mxu0 %v13280
    %13293 = vmatprep.subr.bf16.mxu0 0
    %13294 = vmatpush1.bf16.msra.mxu0 %v13281
    %13295 = vmatprep.subr.bf16.mxu0 0
    %13296 = vmatpush1.bf16.msra.mxu0 %v13282
    %13297 = vmatprep.subr.bf16.mxu0 0
    %13298 = vmatpush1.bf16.msra.mxu0 %v13283
    %13299 = vmatprep.subr.bf16.mxu0 0
    %13300 = vmatpush1.bf16.msra.mxu0 0
    %13301 = vmatprep.subr.bf16.mxu0 0
    %13302 = vmatpush1.bf16.msra.mxu0 0
    %13303 = vmatprep.subr.bf16.mxu0 0
    %13304 = vmatpush1.bf16.msra.mxu0 0
    %13305 = vmatprep.subr.bf16.mxu0 0
    %13306 = vmatpush1.bf16.msra.mxu0 0
    %13307 = vmatprep.subr.bf16.mxu0 0
    %13308 = vmatpush1.bf16.msra.mxu0 0
    %13309 = vmatprep.subr.bf16.mxu0 0
    %13310 = vmatpush1.bf16.msra.mxu0 0
    %13311 = vmatprep.subr.bf16.mxu0 0
    %13312 = vmatpush1.bf16.msra.mxu0 0
    %13313 = vmatprep.subr.bf16.mxu0 0
    %13314 = vmatpush1.bf16.msra.mxu0 0
    %13315 = vmatprep.subr.bf16.mxu0 0
    %13316 = vmatpush1.bf16.msra.mxu0 0
    %13317 = vmatprep.subr.bf16.mxu0 0
    %13318 = vmatpush1.bf16.msra.mxu0 0
    %13319 = vmatprep.subr.bf16.mxu0 0
    %13320 = vmatpush1.bf16.msra.mxu0 0
    %13321 = vmatprep.subr.bf16.mxu0 0
    %13322 = vmatpush1.bf16.msra.mxu0 0
    %13323 = vmatprep.mubr.bf16.mxu0 0
    %13324 = vmatmul.mubr.bf16.gmra.mrb[0].mxu0 %v13289
    %v13325 = vpop.f32.mrb[0].mxu0
    %v13326 = vadd.f32 0.0, %v13325
    %v13327 = vpop.f32.mrb[0].mxu0
    %v13328 = vpop.f32.mrb[0].mxu0
    %v13329 = vadd.f32 0.0, %v13328
    %v13330 = vpop.f32.mrb[0].mxu0
    %13331 = vdwg.mxu0
    %v13332 = vadd.f32 %v11798, %v13326
    %v13333 = vadd.f32 %v11799, %v13329
    %v13334 = vld [vmem:[%s6] sm:$0x1]
    %v13336 = vlaneseq
    %v13337 = vshrl.u32 %v13336, 7
    %v13338 = vsub.s32 0, %v13337
    %v13339 = vrot.slane %v13334, %v13338
    %v13341 = vadd.f32 %v13332, %v13339
    %v13342 = vadd.f32 %v13333, %v13339
    %v13343 = vxor.u32 %v13341, 2147483648
    %v13344 = vxor.u32 %v13342, 2147483648
    %v13345 = vmul.f32 %v13343, 1.442695
    %v13346 = vpow.pop %v13345
    %v13347 = vmul.f32 %v13344, 1.442695
    %v13348 = vpow.pop %v13347
    %v13349 = vadd.f32 %v13346, 1.0
    %v13350 = vadd.f32 %v13348, 1.0
    %v13351 = vrcp.pop %v13349
    %v13352 = vmul.f32 1.0, %v13351
    %v13353 = vrcp.pop %v13350
    %v13354 = vmul.f32 1.0, %v13353
    %v13355 = vld [vmem:[#allocation10] sm:$0xf]
    %v13356 = vld [vmem:[#allocation10 + $0x4] sm:$0xf]
    %v13357 = vld [vmem:[#allocation10 + $0x8] sm:$0xf]
    %v13358 = vld [vmem:[#allocation10 + $0xc] sm:$0xf]
    %v13359 = vpack.c.bf16 %v13354, %v13352
    %v13360 = vld [vmem:[#allocation11] sm:$0x1]
    %v13362 = vlaneseq
    %v13363 = vshrl.u32 %v13362, 7
    %v13364 = vsub.s32 0, %v13363
    %v13365 = vrot.slane %v13360, %v13364
    %v13371 = vunpack.c.l.b16 %v13355
    %v13372 = vunpack.c.l.b16 %v13356
    %v13373 = vunpack.c.l.b16 %v13357
    %v13374 = vunpack.c.l.b16 %v13358
    %v13375 = vpack.c.b16 %v13372, %v13371
    %v13376 = vpack.c.b16 %v13374, %v13373
    %vm13379 = vcmask 261120
    %v13381 = vsel %vm13379, %v13359, 0
    %13383 = vmatprep.subr.bf16.mxu0 0
    %13384 = vmatpush1.bf16.msra.mxu0 %v13375
    %13385 = vmatprep.subr.bf16.mxu0 0
    %13386 = vmatpush1.bf16.msra.mxu0 %v13376
    %13387 = vmatprep.subr.bf16.mxu0 0
    %13388 = vmatpush1.bf16.msra.mxu0 0
    %13389 = vmatprep.subr.bf16.mxu0 0
    %13390 = vmatpush1.bf16.msra.mxu0 0
    %13391 = vmatprep.subr.bf16.mxu0 0
    %13392 = vmatpush1.bf16.msra.mxu0 0
    %13393 = vmatprep.subr.bf16.mxu0 0
    %13394 = vmatpush1.bf16.msra.mxu0 0
    %13395 = vmatprep.subr.bf16.mxu0 0
    %13396 = vmatpush1.bf16.msra.mxu0 0
    %13397 = vmatprep.subr.bf16.mxu0 0
    %13398 = vmatpush1.bf16.msra.mxu0 0
    %13399 = vmatprep.subr.bf16.mxu0 0
    %13400 = vmatpush1.bf16.msra.mxu0 0
    %13401 = vmatprep.subr.bf16.mxu0 0
    %13402 = vmatpush1.bf16.msra.mxu0 0
    %13403 = vmatprep.subr.bf16.mxu0 0
    %13404 = vmatpush1.bf16.msra.mxu0 0
    %13405 = vmatprep.subr.bf16.mxu0 0
    %13406 = vmatpush1.bf16.msra.mxu0 0
    %13407 = vmatprep.subr.bf16.mxu0 0
    %13408 = vmatpush1.bf16.msra.mxu0 0
    %13409 = vmatprep.subr.bf16.mxu0 0
    %13410 = vmatpush1.bf16.msra.mxu0 0
    %13411 = vmatprep.subr.bf16.mxu0 0
    %13412 = vmatpush1.bf16.msra.mxu0 0
    %13413 = vmatprep.subr.bf16.mxu0 0
    %13414 = vmatpush1.bf16.msra.mxu0 0
    %13415 = vmatprep.mubr.bf16.mxu0 0
    %13416 = vmatmul.mubr.bf16.gmra.mrb[0].mxu0 %v13381
    %v13417 = vpop.f32.mrb[0].mxu0
    %v13418 = vadd.f32 %v13365, %v13417
    %v13419 = vpop.f32.mrb[0].mxu0
    %v13420 = vpop.f32.mrb[0].mxu0
    %v13421 = vadd.f32 %v13365, %v13420
    %v13422 = vpop.f32.mrb[0].mxu0
    %13423 = vdwg.mxu0
    %vm13424 = vcmp.ge.f32.partialorder %v13418, 0.0
    %vm13425 = vcmp.ge.f32.partialorder %v13421, 0.0
    %v13426 = vmul.f32 %v13418, 0.01
    %v13427 = vmul.f32 %v13421, 0.01
    %v13428 = vsel %vm13424, %v13418, %v13426
    %v13429 = vsel %vm13425, %v13421, %v13427
    %v13430 = vadd.f32 %v604, %v13428
    %v13431 = vadd.f32 %v607, %v13429
    %v13432 = vld [vmem:[#allocation13] sm:$0x1]
    %v13433 = vld [vmem:[#allocation14] sm:$0x1]
    %v13434 = vsel %vm13379, %v13430, 0.0
    %13435 = vadd.xlane.f32.xlu0 %v13434
    %v13436 = vpop.xlane.xlu0 %13435
    %v13437 = vsel %vm13379, %v13431, 0.0
    %13438 = vadd.xlane.f32.xlu0 %v13437
    %v13439 = vpop.xlane.xlu0 %13438
    %v13440 = vrcp.pop 32.0
    %v13441 = vmul.f32 %v13436, %v13440
    %v13442 = vmul.f32 %v13439, %v13440
    %v13443 = vsub.f32 %v13430, %v13441
    %v13444 = vsub.f32 %v13431, %v13442
    %v13445 = vmul.f32 %v13443, %v13443
    %v13446 = vmul.f32 %v13444, %v13444
    %v13447 = vsel %vm13379, %v13445, 0.0
    %13448 = vadd.xlane.f32.xlu0 %v13447
    %v13449 = vpop.xlane.xlu0 %13448
    %v13450 = vsel %vm13379, %v13446, 0.0
    %13451 = vadd.xlane.f32.xlu0 %v13450
    %v13452 = vpop.xlane.xlu0 %13451
    %v13453 = vmul.f32 %v13449, %v13440
    %v13454 = vmul.f32 %v13452, %v13440
    %v13455 = vadd.f32 %v13453, 1e-05
    %v13456 = vadd.f32 %v13454, 1e-05
    %v13457 = vrsqrt.pop %v13455
    %v13458 = vrsqrt.pop %v13456
    %v13459 = vmul.f32 %v13443, %v13457
    %v13460 = vmul.f32 %v13444, %v13458
    %v13462 = vlaneseq
    %v13463 = vshrl.u32 %v13462, 7
    %v13464 = vsub.s32 0, %v13463
    %v13465 = vrot.slane %v13432, %v13464
    %v13467 = vmul.f32 %v13459, %v13465
    %v13468 = vmul.f32 %v13460, %v13465
    %v13470 = vlaneseq
    %v13471 = vshrl.u32 %v13470, 7
    %v13472 = vsub.s32 0, %v13471
    %v13473 = vrot.slane %v13433, %v13472
    %v13475 = vadd.f32 %v13467, %v13473
    %v13476 = vadd.f32 %v13468, %v13473
    %v13477 = vld [vmem:[%s13] sm:$0xf]
    %v13478 = vld [vmem:[%s13 + $0x4] sm:$0xf]
    %v13479 = vld [vmem:[%s13 + $0x8] sm:$0xf]
    %v13480 = vld [vmem:[%s13 + $0xc] sm:$0xf]
    %v13481 = vpack.c.bf16 %v13476, %v13475
    %v13482 = vld [vmem:[%s14] sm:$0x1]
    %v13484 = vlaneseq
    %v13485 = vshrl.u32 %v13484, 7
    %v13486 = vsub.s32 0, %v13485
    %v13487 = vrot.slane %v13482, %v13486
    %v13493 = vunpack.c.l.b16 %v13477
    %v13494 = vunpack.c.l.b16 %v13478
    %v13495 = vunpack.c.l.b16 %v13479
    %v13496 = vunpack.c.l.b16 %v13480
    %v13497 = vpack.c.b16 %v13494, %v13493
    %v13498 = vpack.c.b16 %v13496, %v13495
    %v13502 = vsel %vm13379, %v13481, 0
    %13504 = vmatprep.subr.bf16.mxu0 0
    %13505 = vmatpush1.bf16.msra.mxu0 %v13497
    %13506 = vmatprep.subr.bf16.mxu0 0
    %13507 = vmatpush1.bf16.msra.mxu0 %v13498
    %13508 = vmatprep.subr.bf16.mxu0 0
    %13509 = vmatpush1.bf16.msra.mxu0 0
    %13510 = vmatprep.subr.bf16.mxu0 0
    %13511 = vmatpush1.bf16.msra.mxu0 0
    %13512 = vmatprep.subr.bf16.mxu0 0
    %13513 = vmatpush1.bf16.msra.mxu0 0
    %13514 = vmatprep.subr.bf16.mxu0 0
    %13515 = vmatpush1.bf16.msra.mxu0 0
    %13516 = vmatprep.subr.bf16.mxu0 0
    %13517 = vmatpush1.bf16.msra.mxu0 0
    %13518 = vmatprep.subr.bf16.mxu0 0
    %13519 = vmatpush1.bf16.msra.mxu0 0
    %13520 = vmatprep.subr.bf16.mxu0 0
    %13521 = vmatpush1.bf16.msra.mxu0 0
    %13522 = vmatprep.subr.bf16.mxu0 0
    %13523 = vmatpush1.bf16.msra.mxu0 0
    %13524 = vmatprep.subr.bf16.mxu0 0
    %13525 = vmatpush1.bf16.msra.mxu0 0
    %13526 = vmatprep.subr.bf16.mxu0 0
    %13527 = vmatpush1.bf16.msra.mxu0 0
    %13528 = vmatprep.subr.bf16.mxu0 0
    %13529 = vmatpush1.bf16.msra.mxu0 0
    %13530 = vmatprep.subr.bf16.mxu0 0
    %13531 = vmatpush1.bf16.msra.mxu0 0
    %13532 = vmatprep.subr.bf16.mxu0 0
    %13533 = vmatpush1.bf16.msra.mxu0 0
    %13534 = vmatprep.subr.bf16.mxu0 0
    %13535 = vmatpush1.bf16.msra.mxu0 0
    %13536 = vmatprep.mubr.bf16.mxu0 0
    %13537 = vmatmul.mubr.bf16.gmra.mrb[0].mxu0 %v13502
    %v13538 = vpop.f32.mrb[0].mxu0
    %v13539 = vadd.f32 %v13487, %v13538
    %v13540 = vpop.f32.mrb[0].mxu0
    %v13541 = vpop.f32.mrb[0].mxu0
    %v13542 = vadd.f32 %v13487, %v13541
    %v13543 = vpop.f32.mrb[0].mxu0
    %13544 = vdwg.mxu0
    %vm13545 = vcmp.ge.f32.partialorder %v13539, 0.0
    %vm13546 = vcmp.ge.f32.partialorder %v13542, 0.0
    %v13547 = vmul.f32 %v13539, 0.01
    %v13548 = vmul.f32 %v13542, 0.01
    %v13549 = vsel %vm13545, %v13539, %v13547
    %v13550 = vsel %vm13546, %v13542, %v13548
    %v13551 = vld [vmem:[%s15] sm:$0xf]
    %v13552 = vld [vmem:[%s15 + $0x4] sm:$0xf]
    %v13553 = vld [vmem:[%s15 + $0x8] sm:$0xf]
    %v13554 = vld [vmem:[%s15 + $0xc] sm:$0xf]
    %v13555 = vld [vmem:[%s15 + $0x10] sm:$0xf]
    %v13556 = vld [vmem:[%s15 + $0x14] sm:$0xf]
    %v13557 = vld [vmem:[%s15 + $0x18] sm:$0xf]
    %v13558 = vld [vmem:[%s15 + $0x1c] sm:$0xf]
    %v13559 = vpack.c.bf16 %v13550, %v13549
    %v13560 = vld [vmem:[%s16] sm:$0x1]
    %v13562 = vlaneseq
    %v13563 = vshrl.u32 %v13562, 7
    %v13564 = vsub.s32 0, %v13563
    %v13565 = vrot.slane %v13560, %v13564
    %v13575 = vunpack.c.l.b16 %v13551
    %v13576 = vunpack.c.l.b16 %v13552
    %v13577 = vunpack.c.l.b16 %v13553
    %v13578 = vunpack.c.l.b16 %v13554
    %v13579 = vunpack.c.l.b16 %v13555
    %v13580 = vunpack.c.l.b16 %v13556
    %v13581 = vunpack.c.l.b16 %v13557
    %v13582 = vunpack.c.l.b16 %v13558
    %v13583 = vpack.c.b16 %v13576, %v13575
    %v13584 = vpack.c.b16 %v13578, %v13577
    %v13585 = vpack.c.b16 %v13580, %v13579
    %v13586 = vpack.c.b16 %v13582, %v13581
    %v13592 = vsel %vm5899, %v13559, 0
    %13594 = vmatprep.subr.bf16.mxu0 0
    %13595 = vmatpush1.bf16.msra.mxu0 %v13583
    %13596 = vmatprep.subr.bf16.mxu0 0
    %13597 = vmatpush1.bf16.msra.mxu0 %v13584
    %13598 = vmatprep.subr.bf16.mxu0 0
    %13599 = vmatpush1.bf16.msra.mxu0 %v13585
    %13600 = vmatprep.subr.bf16.mxu0 0
    %13601 = vmatpush1.bf16.msra.mxu0 %v13586
    %13602 = vmatprep.subr.bf16.mxu0 0
    %13603 = vmatpush1.bf16.msra.mxu0 0
    %13604 = vmatprep.subr.bf16.mxu0 0
    %13605 = vmatpush1.bf16.msra.mxu0 0
    %13606 = vmatprep.subr.bf16.mxu0 0
    %13607 = vmatpush1.bf16.msra.mxu0 0
    %13608 = vmatprep.subr.bf16.mxu0 0
    %13609 = vmatpush1.bf16.msra.mxu0 0
    %13610 = vmatprep.subr.bf16.mxu0 0
    %13611 = vmatpush1.bf16.msra.mxu0 0
    %13612 = vmatprep.subr.bf16.mxu0 0
    %13613 = vmatpush1.bf16.msra.mxu0 0
    %13614 = vmatprep.subr.bf16.mxu0 0
    %13615 = vmatpush1.bf16.msra.mxu0 0
    %13616 = vmatprep.subr.bf16.mxu0 0
    %13617 = vmatpush1.bf16.msra.mxu0 0
    %13618 = vmatprep.subr.bf16.mxu0 0
    %13619 = vmatpush1.bf16.msra.mxu0 0
    %13620 = vmatprep.subr.bf16.mxu0 0
    %13621 = vmatpush1.bf16.msra.mxu0 0
    %13622 = vmatprep.subr.bf16.mxu0 0
    %13623 = vmatpush1.bf16.msra.mxu0 0
    %13624 = vmatprep.subr.bf16.mxu0 0
    %13625 = vmatpush1.bf16.msra.mxu0 0
    %13626 = vmatprep.mubr.bf16.mxu0 0
    %13627 = vmatmul.mubr.bf16.gmra.mrb[0].mxu0 %v13592
    %v13628 = vpop.f32.mrb[0].mxu0
    %v13629 = vadd.f32 %v13565, %v13628
    %v13630 = vpop.f32.mrb[0].mxu0
    %v13631 = vpop.f32.mrb[0].mxu0
    %v13632 = vadd.f32 %v13565, %v13631
    %v13633 = vpop.f32.mrb[0].mxu0
    %13634 = vdwg.mxu0
    %vm13635 = vcmp.ge.f32.partialorder %v13629, 0.0
    %vm13636 = vcmp.ge.f32.partialorder %v13632, 0.0
    %v13637 = vmul.f32 %v13629, 0.01
    %v13638 = vmul.f32 %v13632, 0.01
    %v13639 = vsel %vm13635, %v13629, %v13637
    %v13640 = vsel %vm13636, %v13632, %v13638
    %v13641 = vadd.f32 %v13475, %v13639
    %v13642 = vadd.f32 %v13476, %v13640
    %v13643 = vld [vmem:[%s17] sm:$0x1]
    %v13644 = vld [vmem:[%s18] sm:$0x1]
    %v13645 = vsel %vm13379, %v13641, 0.0
    %13646 = vadd.xlane.f32.xlu0 %v13645
    %v13647 = vpop.xlane.xlu0 %13646
    %v13648 = vsel %vm13379, %v13642, 0.0
    %13649 = vadd.xlane.f32.xlu0 %v13648
    %v13650 = vpop.xlane.xlu0 %13649
    %v13651 = vmul.f32 %v13647, %v13440
    %v13652 = vmul.f32 %v13650, %v13440
    %v13653 = vsub.f32 %v13641, %v13651
    %v13654 = vsub.f32 %v13642, %v13652
    %v13655 = vmul.f32 %v13653, %v13653
    %v13656 = vmul.f32 %v13654, %v13654
    %v13657 = vsel %vm13379, %v13655, 0.0
    %13658 = vadd.xlane.f32.xlu0 %v13657
    %v13659 = vpop.xlane.xlu0 %13658
    %v13660 = vsel %vm13379, %v13656, 0.0
    %13661 = vadd.xlane.f32.xlu0 %v13660
    %v13662 = vpop.xlane.xlu0 %13661
    %v13663 = vmul.f32 %v13659, %v13440
    %v13664 = vmul.f32 %v13662, %v13440
    %v13665 = vadd.f32 %v13663, 1e-05
    %v13666 = vadd.f32 %v13664, 1e-05
    %v13667 = vrsqrt.pop %v13665
    %v13668 = vrsqrt.pop %v13666
    %v13669 = vmul.f32 %v13653, %v13667
    %v13670 = vmul.f32 %v13654, %v13668
    %v13672 = vlaneseq
    %v13673 = vshrl.u32 %v13672, 7
    %v13674 = vsub.s32 0, %v13673
    %v13675 = vrot.slane %v13643, %v13674
    %v13677 = vmul.f32 %v13669, %v13675
    %v13678 = vmul.f32 %v13670, %v13675
    %v13680 = vlaneseq
    %v13681 = vshrl.u32 %v13680, 7
    %v13682 = vsub.s32 0, %v13681
    %v13683 = vrot.slane %v13644, %v13682
    %v13685 = vadd.f32 %v13677, %v13683
    %v13686 = vadd.f32 %v13678, %v13683
    %v13687 = vld [vmem:[%s19] sm:$0xff]
    %v13688 = vld [vmem:[%s19 + $0x8] sm:$0xff]
    %v13689 = vld [vmem:[%s19 + $0x10] sm:$0xff]
    %v13690 = vld [vmem:[%s19 + $0x18] sm:$0xff]
    %v13691 = vpack.c.bf16 %v13686, %v13685
    %v13692 = vld [vmem:[%s20] sm:$0x3]
    %v13694 = vlaneseq
    %v13695 = vshrl.u32 %v13694, 7
    %v13696 = vsub.s32 0, %v13695
    %v13697 = vrot.slane %v13692, %v13696
    %v13698 = vlaneseq
    %v13699 = vshrl.u32 %v13698, 7
    %v13700 = vsub.s32 1, %v13699
    %v13701 = vrot.slane %v13692, %v13700
    %v13708 = vunpack.c.l.b16 %v13687
    %v13709 = vunpack.c.h.b16 %v13687
    %v13710 = vunpack.c.l.b16 %v13688
    %v13711 = vunpack.c.h.b16 %v13688
    %v13712 = vunpack.c.l.b16 %v13689
    %v13713 = vunpack.c.h.b16 %v13689
    %v13714 = vunpack.c.l.b16 %v13690
    %v13715 = vunpack.c.h.b16 %v13690
    %v13716 = vpack.c.b16 %v13710, %v13708
    %v13717 = vpack.c.b16 %v13711, %v13709
    %v13718 = vpack.c.b16 %v13714, %v13712
    %v13719 = vpack.c.b16 %v13715, %v13713
    %v13725 = vsel %vm13379, %v13691, 0
    %13727 = vmatprep.subr.bf16.mxu0 %v13717
    %13728 = vmatpush1.bf16.msra.mxu0 %v13716
    %13729 = vmatprep.subr.bf16.mxu0 %v13719
    %13730 = vmatpush1.bf16.msra.mxu0 %v13718
    %13731 = vmatprep.subr.bf16.mxu0 0
    %13732 = vmatpush1.bf16.msra.mxu0 0
    %13733 = vmatprep.subr.bf16.mxu0 0
    %13734 = vmatpush1.bf16.msra.mxu0 0
    %13735 = vmatprep.subr.bf16.mxu0 0
    %13736 = vmatpush1.bf16.msra.mxu0 0
    %13737 = vmatprep.subr.bf16.mxu0 0
    %13738 = vmatpush1.bf16.msra.mxu0 0
    %13739 = vmatprep.subr.bf16.mxu0 0
    %13740 = vmatpush1.bf16.msra.mxu0 0
    %13741 = vmatprep.subr.bf16.mxu0 0
    %13742 = vmatpush1.bf16.msra.mxu0 0
    %13743 = vmatprep.subr.bf16.mxu0 0
    %13744 = vmatpush1.bf16.msra.mxu0 0
    %13745 = vmatprep.subr.bf16.mxu0 0
    %13746 = vmatpush1.bf16.msra.mxu0 0
    %13747 = vmatprep.subr.bf16.mxu0 0
    %13748 = vmatpush1.bf16.msra.mxu0 0
    %13749 = vmatprep.subr.bf16.mxu0 0
    %13750 = vmatpush1.bf16.msra.mxu0 0
    %13751 = vmatprep.subr.bf16.mxu0 0
    %13752 = vmatpush1.bf16.msra.mxu0 0
    %13753 = vmatprep.subr.bf16.mxu0 0
    %13754 = vmatpush1.bf16.msra.mxu0 0
    %13755 = vmatprep.subr.bf16.mxu0 0
    %13756 = vmatpush1.bf16.msra.mxu0 0
    %13757 = vmatprep.subr.bf16.mxu0 0
    %13758 = vmatpush1.bf16.msra.mxu0 0
    %13759 = vmatprep.mubr.bf16.mxu0 0
    %13760 = vmatmul.mubr.bf16.gmra.mrb[0].mxu0 %v13725
    %v13761 = vpop.f32.mrb[0].mxu0
    %v13762 = vadd.f32 %v13697, %v13761
    %v13763 = vpop.f32.mrb[0].mxu0
    %v13764 = vadd.f32 %v13701, %v13763
    %v13765 = vpop.f32.mrb[0].mxu0
    %v13766 = vadd.f32 %v13697, %v13765
    %v13767 = vpop.f32.mrb[0].mxu0
    %v13768 = vadd.f32 %v13701, %v13767
    %13769 = vdwg.mxu0
    %vm13770 = vcmp.ge.f32.partialorder %v13762, 0.0
    %vm13771 = vcmp.ge.f32.partialorder %v13764, 0.0
    %vm13772 = vcmp.ge.f32.partialorder %v13766, 0.0
    %vm13773 = vcmp.ge.f32.partialorder %v13768, 0.0
    %v13774 = vmul.f32 %v13762, 0.01
    %v13775 = vmul.f32 %v13764, 0.01
    %v13776 = vmul.f32 %v13766, 0.01
    %v13777 = vmul.f32 %v13768, 0.01
    %v13778 = vsel %vm13770, %v13762, %v13774
    %v13779 = vsel %vm13771, %v13764, %v13775
    %v13780 = vsel %vm13772, %v13766, %v13776
    %v13781 = vsel %vm13773, %v13768, %v13777
    %13782 = vst [vmem:[#allocation16] sm:$0xff] %v13778
    %13783 = vst [vmem:[#allocation16 + $0x8] sm:$0xff] %v13779
    %13784 = vst [vmem:[#allocation16 + $0x10] sm:$0xff] %v13780
    %13785 = vst [vmem:[#allocation16 + $0x18] sm:$0xff] %v13781
    // Predicated region
    $region118: #{tpu_custom_call.1} parent=1 // pred_check
      _
    $region119: #{tpu_custom_call.1} parent=1 // pred_check_branch
      %13787 = sbr.rel (0) target = $region121
    $region120: #{tpu_custom_call.1} parent=1 // pred_region
      %s13789 = ssub.s32 512, 512
      %13790 = vsyncadd [#allocation4], %s13789
      %s13791 = sshll.u32 [#allocation16], 4
      %s13792 = int_to_ptr.vmem [resolvable:$true] %s13791
      %13797 = dma.vmem_to_hbm [thread:$0]  %s13792, 512, %s21, [#allocation4], 256, 256, 16
    $region121: #{tpu_custom_call.1} parent=1 // pred_fallthru
      _
    // Predicated region
    $region122: #{tpu_custom_call.1} parent=1 // pred_check
      _
    $region123: #{tpu_custom_call.1} parent=1 // pred_check_branch
      %13799 = sbr.rel (0) target = $region125
    $region124: #{tpu_custom_call.1} parent=1 // pred_region
      %13800 = dma.done [#allocation4], 512
    $region125: #{tpu_custom_call.1} parent=1 // pred_fallthru
      _
    %13801 = vsyncpa [#allocation3], 1
    %13802 = vsyncpa [#allocation6], 1
    %13803 = vsyncpa [#allocation9], 1
    %13804 = vsyncpa [#allocation12], 1
    %13805 = vsyncpa [#allocation15], 1
    %13806 = vsyncpa [#allocation4], 1

</llo_original>
